<compile_context>
chip_gen: v7x
topology: tpu7x:2x2x1
jax: 0.10.0
libtpu: 0.0.40
codegen_flags: <defaults>
</compile_context>

<pallas_src>
import functools
import math

import jax
import jax.numpy as jnp
from jax import lax
from jax.experimental import pallas as pl
from jax.experimental.pallas import tpu as pltpu


# ----------------------------------------------------------------------------
# In-kernel dropout: hash(position, seed, salt) compared against an integer
# threshold (no float convert, no TPU-only PRNG primitives).
# ----------------------------------------------------------------------------
def _hash_dropout(x2d, seed_i32, rate, cell, salt):
    rows, cols = x2d.shape
    r_idx = lax.broadcasted_iota(jnp.int32, (rows, cols), 0).astype(jnp.uint32)
    c_idx = lax.broadcasted_iota(jnp.int32, (rows, cols), 1).astype(jnp.uint32)
    # unique element id within this dropout application
    uid = (cell.astype(jnp.uint32) * jnp.uint32(rows) + r_idx) * jnp.uint32(cols) + c_idx
    key = seed_i32.astype(jnp.uint32) + jnp.uint32((salt * 0x9E3779B9) & 0xFFFFFFFF)
    h = uid * jnp.uint32(2654435761) + key
    h = h ^ (h >> jnp.uint32(16))
    h = h * jnp.uint32(0x7FEB352D)
    h = h ^ (h >> jnp.uint32(15))
    h = h * jnp.uint32(0x846CA68B)
    h = h ^ (h >> jnp.uint32(16))
    thr = jnp.uint32(min(int(rate * 4294967296.0), 4294967295))     # P(drop) ~= rate
    scale = jnp.float32(1.0 / (1.0 - rate))
    return jnp.where(h >= thr, x2d * scale, jnp.float32(0.0))


# ----------------------------------------------------------------------------
# Fused kernel: input dropout + n_layers GRU + inter-layer dropout.
# PyTorch nn.GRU gate equations (gate order r, z, n; zero initial state):
#   r = sigmoid(x W_ir + h W_hr + (b_ir + b_hr))
#   z = sigmoid(x W_iz + h W_hz + (b_iz + b_hz))
#   n = tanh  (x W_in + b_in + r * (h W_hn + b_hn))
#   h' = (1 - z) * n + z * h   ==   n + z * (h - n)
# ----------------------------------------------------------------------------
def _gru_stack_kernel(seed_ref, x_ref, wih_ref, whh_ref, bg_ref, bhn_ref,
                      out_ref, hn_ref, h_scr, xbuf, gi_scr, *,
                      n_layers, tc, tb, p_in, p_mid, training, compute_dtype):
    H = whh_ref.shape[3]
    R = tc * tb
    bt = pl.program_id(0)              # batch tile   ("parallel" axis)
    ck = pl.program_id(1)              # time chunk   ("arbitrary" axis, innermost)
    n_ck = pl.num_programs(1)
    cell = bt * n_ck + ck              # unique grid-cell id (dropout decorrelation)

    def _cast(v):
        return v if compute_dtype is None else v.astype(compute_dtype)

    # new batch tile -> zero initial hidden state for every layer (PyTorch default h_0)
    @pl.when(ck == 0)
    def _():
        h_scr[...] = jnp.zeros_like(h_scr)

    # Load the (tc, tb, H) input chunk, flatten time*batch onto the sublane axis
    # (tb is sublane-aligned) and apply the *input* dropout in-register.
    xc = x_ref[...].astype(jnp.float32).reshape(R, H)
    if training and p_in > 0.0:
        xc = _hash_dropout(xc, seed_ref[0], p_in, cell, salt=0)
    xbuf[...] = xc

    for layer in range(n_layers):
        is_last = layer == n_layers - 1

        # nn.GRU drops the *output* of every layer except the last; that output
        # is exactly the current contents of xbuf (written by the previous layer).
        if training and layer > 0 and p_mid > 0.0:
            xbuf[...] = _hash_dropout(xbuf[...], seed_ref[0], p_mid, cell, salt=layer)

        # ---- hoisted input projection: one big (R, H) @ (H, H) matmul per gate
        # for the whole time chunk, off the sequential critical path.
        x_l = _cast(xbuf[...])
        for g in range(3):
            gi_scr[g] = jnp.dot(x_l, _cast(wih_ref[layer, g]),
                                preferred_element_type=jnp.float32)

        w_hr = _cast(whh_ref[layer, 0])
        w_hz = _cast(whh_ref[layer, 1])
        w_hn = _cast(whh_ref[layer, 2])
        b_r = bg_ref[layer, 0]          # (1, H) == b_ir + b_hr  (pre-folded)
        b_z = bg_ref[layer, 1]          # (1, H) == b_iz + b_hz
        b_in = bg_ref[layer, 2]         # (1, H) == b_in
        b_hn = bhn_ref[layer]           # (1, H) == b_hn (must stay inside r*(.))

        def step(t, h):
            row = t * tb
            hc = _cast(h)
            gh_r = jnp.dot(hc, w_hr, preferred_element_type=jnp.float32)
            gh_z = jnp.dot(hc, w_hz, preferred_element_type=jnp.float32)
            gh_n = jnp.dot(hc, w_hn, preferred_element_type=jnp.float32)
            r = jax.nn.sigmoid(gi_scr[0, pl.ds(row, tb)] + gh_r + b_r)
            z = jax.nn.sigmoid(gi_scr[1, pl.ds(row, tb)] + gh_z + b_z)
            n = jnp.tanh(gi_scr[2, pl.ds(row, tb)] + b_in + r * (gh_n + b_hn))
            h_new = n + z * (h - n)     # == (1 - z) * n + z * h (one mul saved)
            if is_last:
                out_ref[t] = h_new.astype(out_ref.dtype)   # final layer -> HBM output
            else:
                xbuf[pl.ds(row, tb)] = h_new               # feeds the next layer
            return h_new

        h_last = lax.fori_loop(0, tc, step, h_scr[layer], unroll=tc <= 16)
        h_scr[layer] = h_last

    # write h_n once, on the last time chunk only (constant output block index)
    @pl.when(ck == n_ck - 1)
    def _():
        hn_ref[...] = h_scr[...].astype(hn_ref.dtype)


def _largest_divisor_leq(n, cap):
    best = 1
    for c in range(1, min(n, cap) + 1):
        if n % c == 0:
            best = c
    return best


def gru_stack_pallas(x, w_ih, w_hh, b_gates, b_hn, seed, *,
                     input_dropout_perc, dropout_perc, training,
                     time_chunk=None, batch_tile=None, compute_dtype=None):
    """Fused stacked-GRU forward.

      x       : (T, B, H) float32, time-major
      w_ih    : (L, 3, H, H) per-gate input weights, pre-transposed (x @ W)
      w_hh    : (L, 3, H, H) per-gate hidden weights, pre-transposed (h @ W)
      b_gates : (L, 3, 1, H) folded biases [b_ir+b_hr, b_iz+b_hz, b_in]
      b_hn    : (L, 1, H)    hidden bias of the new gate
      seed    : (1,) int32   dropout seed
    Returns (outputs (T, B, H), h_n (L, B, H)).
    compute_dtype=jnp.bfloat16 is recommended on v6e/v7x (MXU still accumulates f32).
    """
    T, B, H = x.shape
    L = int(w_ih.shape[0])
    assert w_ih.shape == (L, 3, H, H) and w_hh.shape == (L, 3, H, H)
    assert b_gates.shape == (L, 3, 1, H) and b_hn.shape == (L, 1, H)

    tc = time_chunk if time_chunk is not None else _largest_divisor_leq(T, 64)
    tb = batch_tile if batch_tile is not None else B
    assert T % tc == 0 and B % tb == 0
    assert tb == B or tb % 8 == 0     # partial batch tiles must stay sublane-aligned
    n_bt, n_ck = B // tb, T // tc

    kernel = functools.partial(
        _gru_stack_kernel, n_layers=L, tc=tc, tb=tb,
        p_in=float(input_dropout_perc), p_mid=float(dropout_perc),
        training=bool(training), compute_dtype=compute_dtype)

    # Grid-invariant weights/biases: fetch once, single-buffered.
    res = dict(pipeline_mode=pl.Buffered(1))
    in_specs = [
        pl.BlockSpec(memory_space=pltpu.MemorySpace.SMEM),                 # seed
        pl.BlockSpec((tc, tb, H), lambda b, t: (t, b, 0)),                 # x chunk
        pl.BlockSpec((L, 3, H, H), lambda b, t: (0, 0, 0, 0), **res),      # w_ih
        pl.BlockSpec((L, 3, H, H), lambda b, t: (0, 0, 0, 0), **res),      # w_hh
        pl.BlockSpec((L, 3, 1, H), lambda b, t: (0, 0, 0, 0), **res),      # b_gates
        pl.BlockSpec((L, 1, H), lambda b, t: (0, 0, 0), **res),            # b_hn
    ]
    out_specs = (
        pl.BlockSpec((tc, tb, H), lambda b, t: (t, b, 0)),                 # outputs
        pl.BlockSpec((L, tb, H), lambda b, t: (0, b, 0)),                  # h_n
    )
    scratch_shapes = [
        pltpu.VMEM((L, tb, H), jnp.float32),        # per-layer hidden-state carry
        pltpu.VMEM((tc * tb, H), jnp.float32),      # current layer-input chunk
        pltpu.VMEM((3, tc * tb, H), jnp.float32),   # hoisted per-gate input projections
    ]

    # Explicit VMEM budget (v7x only has 64 MiB physical; don't rely on defaults).
    est = 4 * (2 * 2 * tc * tb * H              # x / out blocks, double-buffered
               + 2 * L * tb * H                 # h_n block
               + L * tb * H + 4 * tc * tb * H   # scratch
               + 6 * L * H * H + 4 * L * H)     # weights + biases (single-buffered)
    vmem_limit = int(min(max(2 * est, 32 * 1024 * 1024), 64 * 1024 * 1024))

    outputs, h_n = pl.pallas_call(
        kernel,
        grid=(n_bt, n_ck),
        in_specs=in_specs,
        out_specs=out_specs,
        out_shape=(jax.ShapeDtypeStruct((T, B, H), x.dtype),
                   jax.ShapeDtypeStruct((L, B, H), x.dtype)),
        scratch_shapes=scratch_shapes,
        compiler_params=pltpu.CompilerParams(
            # independent batch tiles -> "parallel" (2 TCs on v7x);
            # the time recurrence must stay sequential -> "arbitrary".
            dimension_semantics=("parallel", "arbitrary"),
            vmem_limit_bytes=vmem_limit),
    )(seed, x, w_ih, w_hh, b_gates, b_hn)
    return outputs, h_n


# ----------------------------------------------------------------------------
# BaseRNN equivalent (parameter setup + forward wiring is plain-JAX glue)
# ----------------------------------------------------------------------------
class BaseRNNPallas:
    def __init__(self, vocab_size, max_len, hidden_size, input_dropout_perc,
                 dropout_perc, n_layers, rnn_cell):
        self.vocab_size = vocab_size
        self.max_len = max_len
        self.hidden_size = hidden_size
        self.n_layers = n_layers
        self.input_dropout_perc = input_dropout_perc
        self.dropout_perc = dropout_perc
        rnn_cell = rnn_cell.lower()
        if rnn_cell == "gru":
            self.rnn_cell = "gru"
        elif rnn_cell == "lstm":
            # TODO(synk): 'lstm' cell kernel not implemented; only the 'gru' path is provided.
            raise NotImplementedError("lstm cell kernel not implemented in this script")
        else:
            raise ValueError("unsupported RNN cell: {rnn_cell}".format(rnn_cell=rnn_cell))

    def init_params(self, key):
        """uniform(-1/sqrt(H), 1/sqrt(H)) init, matching nn.GRU.reset_parameters.

        Layout chosen for the kernel: per-gate (H_in, H) weight blocks (gate
        order r, z, n) so each gate's matmul and elementwise math stays
        lane-aligned even when H % 128 != 0, and the r/z biases pre-folded.
        """
        H, L = self.hidden_size, self.n_layers
        k = 1.0 / math.sqrt(H)
        w_ih, w_hh, b_gates, b_hn = [], [], [], []
        for _ in range(L):
            key, k1, k2, k3, k4 = jax.random.split(key, 5)
            # input to every layer is hidden_size (already-embedded input)
            w_ih.append(jax.random.uniform(k1, (3, H, H), jnp.float32, -k, k))
            w_hh.append(jax.random.uniform(k2, (3, H, H), jnp.float32, -k, k))
            b_i = jax.random.uniform(k3, (3, H), jnp.float32, -k, k)
            b_h = jax.random.uniform(k4, (3, H), jnp.float32, -k, k)
            b_gates.append(
                jnp.stack([b_i[0] + b_h[0], b_i[1] + b_h[1], b_i[2]]).reshape(3, 1, H))
            b_hn.append(b_h[2].reshape(1, H))
        return {
            "w_ih": jnp.stack(w_ih),        # (L, 3, H, H)
            "w_hh": jnp.stack(w_hh),        # (L, 3, H, H)
            "b_gates": jnp.stack(b_gates),  # (L, 3, 1, H)
            "b_hn": jnp.stack(b_hn),        # (L, 1, H)
        }

    def forward(self, params, x, seed, training=True, compute_dtype=None):
        """x: (T, B, hidden_size) float32 time-major (already-embedded input)."""
        return gru_stack_pallas(
            x, params["w_ih"], params["w_hh"], params["b_gates"], params["b_hn"],
            seed,
            input_dropout_perc=self.input_dropout_perc,
            dropout_perc=self.dropout_perc,
            training=training,
            compute_dtype=compute_dtype)


# ----------------------------------------------------------------------------
# Pure-JAX reference (no dropout) used as a correctness spot-check
# ----------------------------------------------------------------------------
def _gru_stack_reference(params, x):
    w_ih, w_hh = params["w_ih"], params["w_hh"]
    bg, bhn = params["b_gates"], params["b_hn"]
    L = w_ih.shape[0]
    T, B, H = x.shape
    inp, finals = x, []
    for layer in range(L):
        h = jnp.zeros((B, H), jnp.float32)
        outs = []
        for t in range(T):
            xt = inp[t]
            r = jax.nn.sigmoid(xt @ w_ih[layer, 0] + h @ w_hh[layer, 0] + bg[layer, 0])
            z = jax.nn.sigmoid(xt @ w_ih[layer, 1] + h @ w_hh[layer, 1] + bg[layer, 1])
            n = jnp.tanh(xt @ w_ih[layer, 2] + bg[layer, 2]
                         + r * (h @ w_hh[layer, 2] + bhn[layer]))
            h = (1.0 - z) * n + z * h
            outs.append(h)
        inp = jnp.stack(outs)
        finals.append(h)
    return inp, jnp.stack(finals)


if __name__ == "__main__":
    vocab_size = 16
    max_len = 8        # T
    hidden_size = 32   # H
    batch = 8          # B
    n_layers = 2

    model = BaseRNNPallas(vocab_size=vocab_size, max_len=max_len,
                          hidden_size=hidden_size, input_dropout_perc=0.1,
                          dropout_perc=0.1, n_layers=n_layers, rnn_cell="gru")

    key = jax.random.PRNGKey(0)
    key, pkey, xkey = jax.random.split(key, 3)
    params = model.init_params(pkey)

    # (T, B, H) time-major float input (as produced by an embedding layer)
    x = jax.random.normal(xkey, (max_len, batch, hidden_size), dtype=jnp.float32)
    seed = jnp.array([42], dtype=jnp.int32)

    # training path (fused input + inter-layer dropout)
    outputs, h_n = model.forward(params, x, seed, training=True)
    outputs = jax.block_until_ready(outputs)
    h_n = jax.block_until_ready(h_n)
    assert outputs.shape == (max_len, batch, hidden_size)
    assert h_n.shape == (n_layers, batch, hidden_size)
    assert bool(jnp.all(jnp.isfinite(outputs))) and bool(jnp.all(jnp.isfinite(h_n)))

    # eval path (dropout off) vs pure-JAX reference
    out_eval, hn_eval = model.forward(params, x, seed, training=False)
    out_expected, hn_expected = _gru_stack_reference(params, x)
    out_eval = jax.block_until_ready(out_eval)
    assert float(jnp.max(jnp.abs(out_eval - out_expected))) < 5e-2
    assert float(jnp.max(jnp.abs(hn_eval - hn_expected))) < 5e-2

    print("KERNEL_OK")
</pallas_src>

<mosaic_0001>
module attributes {stable_mosaic.version = 11 : i64} {
  func.func @_gru_stack_kernel(%arg0: i32, %arg1: i32, %arg2: memref<1xi32, #tpu.memory_space<smem>>, %arg3: memref<8x8x32xf32, #tpu.memory_space<vmem>>, %arg4: memref<2x3x32x32xf32, #tpu.memory_space<vmem>>, %arg5: memref<2x3x32x32xf32, #tpu.memory_space<vmem>>, %arg6: memref<2x3x1x32xf32, #tpu.memory_space<vmem>>, %arg7: memref<2x1x32xf32, #tpu.memory_space<vmem>>, %arg8: memref<8x8x32xf32, #tpu.memory_space<vmem>>, %arg9: memref<2x8x32xf32, #tpu.memory_space<vmem>>, %arg10: memref<2x8x32xf32, #tpu.memory_space<vmem>>, %arg11: memref<64x32xf32, #tpu.memory_space<vmem>>, %arg12: memref<3x64x32xf32, #tpu.memory_space<vmem>>) attributes {dimension_semantics = [#tpu.dimension_semantics<parallel>, #tpu.dimension_semantics<arbitrary>], iteration_bounds = array<i64: 1, 1>, scalar_prefetch = 0 : i64, scratch_operands = 3 : i64, tpu.core_type = #tpu.core_type<tc>, window_params = [{transform_indices = @transform_0, window_bounds = array<i64: 1>}, {transform_indices = @transform_1, window_bounds = array<i64: 8, 8, 32>}, {pipeline_mode = #tpu.pipeline_mode<synchronous>, transform_indices = @transform_2, window_bounds = array<i64: 2, 3, 32, 32>}, {pipeline_mode = #tpu.pipeline_mode<synchronous>, transform_indices = @transform_3, window_bounds = array<i64: 2, 3, 32, 32>}, {pipeline_mode = #tpu.pipeline_mode<synchronous>, transform_indices = @transform_4, window_bounds = array<i64: 2, 3, 1, 32>}, {pipeline_mode = #tpu.pipeline_mode<synchronous>, transform_indices = @transform_5, window_bounds = array<i64: 2, 1, 32>}, {transform_indices = @transform_6, window_bounds = array<i64: 8, 8, 32>}, {transform_indices = @transform_7, window_bounds = array<i64: 2, 8, 32>}]} {
    %c1_i32 = arith.constant 1 : i32
    %0 = arith.muli %arg0, %c1_i32 : i32
    %1 = arith.addi %0, %arg1 : i32
    %c0_i32 = arith.constant 0 : i32
    %2 = arith.cmpi eq, %arg1, %c0_i32 : i32
    %3 = arith.extui %2 : i1 to i32
    %c0_i32_0 = arith.constant 0 : i32
    %4 = arith.cmpi ne, %3, %c0_i32_0 : i32
    scf.if %4 {
      %cst_370 = arith.constant 0.000000e+00 : f32
      %827 = vector.broadcast %cst_370 : f32 to vector<2x8x32xf32>
      %c0_371 = arith.constant 0 : index
      %c0_372 = arith.constant 0 : index
      %c0_373 = arith.constant 0 : index
      %828 = vector.load %arg10[%c0_371, %c0_372, %c0_373] : memref<2x8x32xf32, #tpu.memory_space<vmem>>, vector<2x8x32xf32>
      tpu.vector_store %arg10[%c0_371, %c0_372, %c0_373], %827 {strides = array<i32>} : memref<2x8x32xf32, #tpu.memory_space<vmem>>, vector<2x8x32xf32>,
    } else {
    }
    %c0 = arith.constant 0 : index
    %c0_1 = arith.constant 0 : index
    %c0_2 = arith.constant 0 : index
    %5 = vector.load %arg3[%c0, %c0_1, %c0_2] : memref<8x8x32xf32, #tpu.memory_space<vmem>>, vector<8x8x32xf32>
    %6 = vector.shape_cast %5 : vector<8x8x32xf32> to vector<64x32xf32>
    %c0_3 = arith.constant 0 : index
    %7 = memref.load %arg2[%c0_3] : memref<1xi32, #tpu.memory_space<smem>>
    %8 = tpu.iota {dimensions = array<i32: 0>} : vector<64x32xi32>
    %9 = tpu.iota {dimensions = array<i32: 1>} : vector<64x32xi32>
    %c64_i32 = arith.constant 64 : i32
    %10 = arith.muli %1, %c64_i32 : i32
    %11 = vector.broadcast %10 : i32 to vector<64x32xi32>
    %12 = arith.addi %11, %8 : vector<64x32xi32>
    %c32_i32 = arith.constant 32 : i32
    %13 = vector.broadcast %c32_i32 : i32 to vector<64x32xi32>
    %14 = arith.muli %12, %13 : vector<64x32xi32>
    %15 = arith.addi %14, %9 : vector<64x32xi32>
    %c0_i32_4 = arith.constant 0 : i32
    %16 = arith.addi %7, %c0_i32_4 : i32
    %c-1640531535_i32 = arith.constant -1640531535 : i32
    %17 = vector.broadcast %c-1640531535_i32 : i32 to vector<64x32xi32>
    %18 = arith.muli %15, %17 : vector<64x32xi32>
    %19 = vector.broadcast %16 : i32 to vector<64x32xi32>
    %20 = arith.addi %18, %19 : vector<64x32xi32>
    %c16_i32 = arith.constant 16 : i32
    %21 = vector.broadcast %c16_i32 : i32 to vector<64x32xi32>
    %22 = arith.shrui %20, %21 : vector<64x32xi32>
    %23 = arith.xori %20, %22 : vector<64x32xi32>
    %c2146121005_i32 = arith.constant 2146121005 : i32
    %24 = vector.broadcast %c2146121005_i32 : i32 to vector<64x32xi32>
    %25 = arith.muli %23, %24 : vector<64x32xi32>
    %c15_i32 = arith.constant 15 : i32
    %26 = vector.broadcast %c15_i32 : i32 to vector<64x32xi32>
    %27 = arith.shrui %25, %26 : vector<64x32xi32>
    %28 = arith.xori %25, %27 : vector<64x32xi32>
    %c-2073254261_i32 = arith.constant -2073254261 : i32
    %29 = vector.broadcast %c-2073254261_i32 : i32 to vector<64x32xi32>
    %30 = arith.muli %28, %29 : vector<64x32xi32>
    %c16_i32_5 = arith.constant 16 : i32
    %31 = vector.broadcast %c16_i32_5 : i32 to vector<64x32xi32>
    %32 = arith.shrui %30, %31 : vector<64x32xi32>
    %33 = arith.xori %30, %32 : vector<64x32xi32>
    %c429496729_i32 = arith.constant 429496729 : i32
    %34 = vector.broadcast %c429496729_i32 : i32 to vector<64x32xi32>
    %35 = arith.cmpi uge, %33, %34 : vector<64x32xi32>
    %cst = arith.constant 1.11111116 : f32
    %36 = vector.broadcast %cst : f32 to vector<64x32xf32>
    %37 = arith.mulf %6, %36 : vector<64x32xf32>
    %cst_6 = arith.constant 0.000000e+00 : f32
    %38 = vector.broadcast %cst_6 : f32 to vector<64x32xf32>
    %39 = arith.select %35, %37, %38 : vector<64x32xi1>, vector<64x32xf32>
    %c0_7 = arith.constant 0 : index
    %c0_8 = arith.constant 0 : index
    %40 = vector.load %arg11[%c0_7, %c0_8] : memref<64x32xf32, #tpu.memory_space<vmem>>, vector<64x32xf32>
    tpu.vector_store %arg11[%c0_7, %c0_8], %39 {strides = array<i32>} : memref<64x32xf32, #tpu.memory_space<vmem>>, vector<64x32xf32>,
    %c0_9 = arith.constant 0 : index
    %c0_10 = arith.constant 0 : index
    %41 = vector.load %arg11[%c0_9, %c0_10] : memref<64x32xf32, #tpu.memory_space<vmem>>, vector<64x32xf32>
    %c0_11 = arith.constant 0 : index
    %c0_12 = arith.constant 0 : index
    %c0_13 = arith.constant 0 : index
    %c0_14 = arith.constant 0 : index
    %42 = vector.load %arg4[%c0_11, %c0_12, %c0_13, %c0_14] : memref<2x3x32x32xf32, #tpu.memory_space<vmem>>, vector<1x1x32x32xf32>
    %43 = vector.shape_cast %42 : vector<1x1x32x32xf32> to vector<32x32xf32>
    %cst_15 = arith.constant dense<0.000000e+00> : vector<64x32xf32>
    %44 = tpu.matmul %41, %43, %cst_15 {dimension_numbers = #tpu.dot_dimension_numbers<[1], [0], [0], [1], [0, 0, 1, 1], [], []>} : vector<64x32xf32>, vector<32x32xf32>, vector<64x32xf32> -> vector<64x32xf32>
    %c0_16 = arith.constant 0 : index
    %c0_17 = arith.constant 0 : index
    %c0_18 = arith.constant 0 : index
    %45 = vector.load %arg12[%c0_16, %c0_17, %c0_18] : memref<3x64x32xf32, #tpu.memory_space<vmem>>, vector<1x64x32xf32>
    %46 = vector.shape_cast %45 : vector<1x64x32xf32> to vector<64x32xf32>
    %47 = vector.shape_cast %44 : vector<64x32xf32> to vector<1x64x32xf32>
    tpu.vector_store %arg12[%c0_16, %c0_17, %c0_18], %47 {strides = array<i32>} : memref<3x64x32xf32, #tpu.memory_space<vmem>>, vector<1x64x32xf32>,
    %c0_19 = arith.constant 0 : index
    %c1 = arith.constant 1 : index
    %c0_20 = arith.constant 0 : index
    %c0_21 = arith.constant 0 : index
    %48 = vector.load %arg4[%c0_19, %c1, %c0_20, %c0_21] : memref<2x3x32x32xf32, #tpu.memory_space<vmem>>, vector<1x1x32x32xf32>
    %49 = vector.shape_cast %48 : vector<1x1x32x32xf32> to vector<32x32xf32>
    %cst_22 = arith.constant dense<0.000000e+00> : vector<64x32xf32>
    %50 = tpu.matmul %41, %49, %cst_22 {dimension_numbers = #tpu.dot_dimension_numbers<[1], [0], [0], [1], [0, 0, 1, 1], [], []>} : vector<64x32xf32>, vector<32x32xf32>, vector<64x32xf32> -> vector<64x32xf32>
    %c1_23 = arith.constant 1 : index
    %c0_24 = arith.constant 0 : index
    %c0_25 = arith.constant 0 : index
    %51 = vector.load %arg12[%c1_23, %c0_24, %c0_25] : memref<3x64x32xf32, #tpu.memory_space<vmem>>, vector<1x64x32xf32>
    %52 = vector.shape_cast %51 : vector<1x64x32xf32> to vector<64x32xf32>
    %53 = vector.shape_cast %50 : vector<64x32xf32> to vector<1x64x32xf32>
    tpu.vector_store %arg12[%c1_23, %c0_24, %c0_25], %53 {strides = array<i32>} : memref<3x64x32xf32, #tpu.memory_space<vmem>>, vector<1x64x32xf32>,
    %c0_26 = arith.constant 0 : index
    %c2 = arith.constant 2 : index
    %c0_27 = arith.constant 0 : index
    %c0_28 = arith.constant 0 : index
    %54 = vector.load %arg4[%c0_26, %c2, %c0_27, %c0_28] : memref<2x3x32x32xf32, #tpu.memory_space<vmem>>, vector<1x1x32x32xf32>
    %55 = vector.shape_cast %54 : vector<1x1x32x32xf32> to vector<32x32xf32>
    %cst_29 = arith.constant dense<0.000000e+00> : vector<64x32xf32>
    %56 = tpu.matmul %41, %55, %cst_29 {dimension_numbers = #tpu.dot_dimension_numbers<[1], [0], [0], [1], [0, 0, 1, 1], [], []>} : vector<64x32xf32>, vector<32x32xf32>, vector<64x32xf32> -> vector<64x32xf32>
    %c2_30 = arith.constant 2 : index
    %c0_31 = arith.constant 0 : index
    %c0_32 = arith.constant 0 : index
    %57 = vector.load %arg12[%c2_30, %c0_31, %c0_32] : memref<3x64x32xf32, #tpu.memory_space<vmem>>, vector<1x64x32xf32>
    %58 = vector.shape_cast %57 : vector<1x64x32xf32> to vector<64x32xf32>
    %59 = vector.shape_cast %56 : vector<64x32xf32> to vector<1x64x32xf32>
    tpu.vector_store %arg12[%c2_30, %c0_31, %c0_32], %59 {strides = array<i32>} : memref<3x64x32xf32, #tpu.memory_space<vmem>>, vector<1x64x32xf32>,
    %c0_33 = arith.constant 0 : index
    %c0_34 = arith.constant 0 : index
    %c0_35 = arith.constant 0 : index
    %c0_36 = arith.constant 0 : index
    %60 = vector.load %arg5[%c0_33, %c0_34, %c0_35, %c0_36] : memref<2x3x32x32xf32, #tpu.memory_space<vmem>>, vector<1x1x32x32xf32>
    %61 = vector.shape_cast %60 : vector<1x1x32x32xf32> to vector<32x32xf32>
    %c0_37 = arith.constant 0 : index
    %c1_38 = arith.constant 1 : index
    %c0_39 = arith.constant 0 : index
    %c0_40 = arith.constant 0 : index
    %62 = vector.load %arg5[%c0_37, %c1_38, %c0_39, %c0_40] : memref<2x3x32x32xf32, #tpu.memory_space<vmem>>, vector<1x1x32x32xf32>
    %63 = vector.shape_cast %62 : vector<1x1x32x32xf32> to vector<32x32xf32>
    %c0_41 = arith.constant 0 : index
    %c2_42 = arith.constant 2 : index
    %c0_43 = arith.constant 0 : index
    %c0_44 = arith.constant 0 : index
    %64 = vector.load %arg5[%c0_41, %c2_42, %c0_43, %c0_44] : memref<2x3x32x32xf32, #tpu.memory_space<vmem>>, vector<1x1x32x32xf32>
    %65 = vector.shape_cast %64 : vector<1x1x32x32xf32> to vector<32x32xf32>
    %c0_45 = arith.constant 0 : index
    %c0_46 = arith.constant 0 : index
    %c0_47 = arith.constant 0 : index
    %c0_48 = arith.constant 0 : index
    %66 = vector.load %arg6[%c0_45, %c0_46, %c0_47, %c0_48] : memref<2x3x1x32xf32, #tpu.memory_space<vmem>>, vector<1x1x1x32xf32>
    %67 = vector.shape_cast %66 : vector<1x1x1x32xf32> to vector<1x32xf32>
    %c0_49 = arith.constant 0 : index
    %c1_50 = arith.constant 1 : index
    %c0_51 = arith.constant 0 : index
    %c0_52 = arith.constant 0 : index
    %68 = vector.load %arg6[%c0_49, %c1_50, %c0_51, %c0_52] : memref<2x3x1x32xf32, #tpu.memory_space<vmem>>, vector<1x1x1x32xf32>
    %69 = vector.shape_cast %68 : vector<1x1x1x32xf32> to vector<1x32xf32>
    %c0_53 = arith.constant 0 : index
    %c2_54 = arith.constant 2 : index
    %c0_55 = arith.constant 0 : index
    %c0_56 = arith.constant 0 : index
    %70 = vector.load %arg6[%c0_53, %c2_54, %c0_55, %c0_56] : memref<2x3x1x32xf32, #tpu.memory_space<vmem>>, vector<1x1x1x32xf32>
    %71 = vector.shape_cast %70 : vector<1x1x1x32xf32> to vector<1x32xf32>
    %c0_57 = arith.constant 0 : index
    %c0_58 = arith.constant 0 : index
    %c0_59 = arith.constant 0 : index
    %72 = vector.load %arg7[%c0_57, %c0_58, %c0_59] : memref<2x1x32xf32, #tpu.memory_space<vmem>>, vector<1x1x32xf32>
    %73 = vector.shape_cast %72 : vector<1x1x32xf32> to vector<1x32xf32>
    %c0_60 = arith.constant 0 : index
    %c0_61 = arith.constant 0 : index
    %c0_62 = arith.constant 0 : index
    %74 = vector.load %arg10[%c0_60, %c0_61, %c0_62] : memref<2x8x32xf32, #tpu.memory_space<vmem>>, vector<1x8x32xf32>
    %75 = vector.shape_cast %74 : vector<1x8x32xf32> to vector<8x32xf32>
    %c0_i32_63 = arith.constant 0 : i32
    %c8_i32 = arith.constant 8 : i32
    %76 = arith.muli %c0_i32_63, %c8_i32 : i32
    %cst_64 = arith.constant dense<0.000000e+00> : vector<8x32xf32>
    %77 = tpu.matmul %75, %61, %cst_64 {dimension_numbers = #tpu.dot_dimension_numbers<[1], [0], [0], [1], [0, 0, 1, 1], [], []>} : vector<8x32xf32>, vector<32x32xf32>, vector<8x32xf32> -> vector<8x32xf32>
    %cst_65 = arith.constant dense<0.000000e+00> : vector<8x32xf32>
    %78 = tpu.matmul %75, %63, %cst_65 {dimension_numbers = #tpu.dot_dimension_numbers<[1], [0], [0], [1], [0, 0, 1, 1], [], []>} : vector<8x32xf32>, vector<32x32xf32>, vector<8x32xf32> -> vector<8x32xf32>
    %cst_66 = arith.constant dense<0.000000e+00> : vector<8x32xf32>
    %79 = tpu.matmul %75, %65, %cst_66 {dimension_numbers = #tpu.dot_dimension_numbers<[1], [0], [0], [1], [0, 0, 1, 1], [], []>} : vector<8x32xf32>, vector<32x32xf32>, vector<8x32xf32> -> vector<8x32xf32>
    %c0_67 = arith.constant 0 : index
    %80 = arith.index_cast %76 : i32 to index
    %c0_68 = arith.constant 0 : index
    %81 = vector.load %arg12[%c0_67, %80, %c0_68] : memref<3x64x32xf32, #tpu.memory_space<vmem>>, vector<1x8x32xf32>
    %82 = vector.shape_cast %81 : vector<1x8x32xf32> to vector<8x32xf32>
    %83 = arith.addf %82, %77 : vector<8x32xf32>
    %84 = vector.broadcast %67 : vector<1x32xf32> to vector<8x32xf32>
    %85 = arith.addf %83, %84 : vector<8x32xf32>
    %86 = arith.negf %85 : vector<8x32xf32>
    %87 = math.exp %86 : vector<8x32xf32>
    %cst_69 = arith.constant 1.000000e+00 : f32
    %88 = vector.broadcast %cst_69 : f32 to vector<8x32xf32>
    %89 = arith.addf %88, %87 : vector<8x32xf32>
    %90 = arith.divf %88, %89 : vector<8x32xf32>
    %c1_70 = arith.constant 1 : index
    %91 = arith.index_cast %76 : i32 to index
    %c0_71 = arith.constant 0 : index
    %92 = vector.load %arg12[%c1_70, %91, %c0_71] : memref<3x64x32xf32, #tpu.memory_space<vmem>>, vector<1x8x32xf32>
    %93 = vector.shape_cast %92 : vector<1x8x32xf32> to vector<8x32xf32>
    %94 = arith.addf %93, %78 : vector<8x32xf32>
    %95 = vector.broadcast %69 : vector<1x32xf32> to vector<8x32xf32>
    %96 = arith.addf %94, %95 : vector<8x32xf32>
    %97 = arith.negf %96 : vector<8x32xf32>
    %98 = math.exp %97 : vector<8x32xf32>
    %cst_72 = arith.constant 1.000000e+00 : f32
    %99 = vector.broadcast %cst_72 : f32 to vector<8x32xf32>
    %100 = arith.addf %99, %98 : vector<8x32xf32>
    %101 = arith.divf %99, %100 : vector<8x32xf32>
    %c2_73 = arith.constant 2 : index
    %102 = arith.index_cast %76 : i32 to index
    %c0_74 = arith.constant 0 : index
    %103 = vector.load %arg12[%c2_73, %102, %c0_74] : memref<3x64x32xf32, #tpu.memory_space<vmem>>, vector<1x8x32xf32>
    %104 = vector.shape_cast %103 : vector<1x8x32xf32> to vector<8x32xf32>
    %105 = vector.broadcast %71 : vector<1x32xf32> to vector<8x32xf32>
    %106 = arith.addf %104, %105 : vector<8x32xf32>
    %107 = vector.broadcast %73 : vector<1x32xf32> to vector<8x32xf32>
    %108 = arith.addf %79, %107 : vector<8x32xf32>
    %109 = arith.mulf %90, %108 : vector<8x32xf32>
    %110 = arith.addf %106, %109 : vector<8x32xf32>
    %111 = math.tanh %110 : vector<8x32xf32>
    %112 = arith.subf %75, %111 : vector<8x32xf32>
    %113 = arith.mulf %101, %112 : vector<8x32xf32>
    %114 = arith.addf %111, %113 : vector<8x32xf32>
    %115 = arith.index_cast %76 : i32 to index
    %c0_75 = arith.constant 0 : index
    %116 = vector.load %arg11[%115, %c0_75] : memref<64x32xf32, #tpu.memory_space<vmem>>, vector<8x32xf32>
    tpu.vector_store %arg11[%115, %c0_75], %114 {strides = array<i32>} : memref<64x32xf32, #tpu.memory_space<vmem>>, vector<8x32xf32>,
    %c1_i32_76 = arith.constant 1 : i32
    %c8_i32_77 = arith.constant 8 : i32
    %117 = arith.muli %c1_i32_76, %c8_i32_77 : i32
    %cst_78 = arith.constant dense<0.000000e+00> : vector<8x32xf32>
    %118 = tpu.matmul %114, %61, %cst_78 {dimension_numbers = #tpu.dot_dimension_numbers<[1], [0], [0], [1], [0, 0, 1, 1], [], []>} : vector<8x32xf32>, vector<32x32xf32>, vector<8x32xf32> -> vector<8x32xf32>
    %cst_79 = arith.constant dense<0.000000e+00> : vector<8x32xf32>
    %119 = tpu.matmul %114, %63, %cst_79 {dimension_numbers = #tpu.dot_dimension_numbers<[1], [0], [0], [1], [0, 0, 1, 1], [], []>} : vector<8x32xf32>, vector<32x32xf32>, vector<8x32xf32> -> vector<8x32xf32>
    %cst_80 = arith.constant dense<0.000000e+00> : vector<8x32xf32>
    %120 = tpu.matmul %114, %65, %cst_80 {dimension_numbers = #tpu.dot_dimension_numbers<[1], [0], [0], [1], [0, 0, 1, 1], [], []>} : vector<8x32xf32>, vector<32x32xf32>, vector<8x32xf32> -> vector<8x32xf32>
    %c0_81 = arith.constant 0 : index
    %121 = arith.index_cast %117 : i32 to index
    %c0_82 = arith.constant 0 : index
    %122 = vector.load %arg12[%c0_81, %121, %c0_82] : memref<3x64x32xf32, #tpu.memory_space<vmem>>, vector<1x8x32xf32>
    %123 = vector.shape_cast %122 : vector<1x8x32xf32> to vector<8x32xf32>
    %124 = arith.addf %123, %118 : vector<8x32xf32>
    %125 = vector.broadcast %67 : vector<1x32xf32> to vector<8x32xf32>
    %126 = arith.addf %124, %125 : vector<8x32xf32>
    %127 = arith.negf %126 : vector<8x32xf32>
    %128 = math.exp %127 : vector<8x32xf32>
    %cst_83 = arith.constant 1.000000e+00 : f32
    %129 = vector.broadcast %cst_83 : f32 to vector<8x32xf32>
    %130 = arith.addf %129, %128 : vector<8x32xf32>
    %131 = arith.divf %129, %130 : vector<8x32xf32>
    %c1_84 = arith.constant 1 : index
    %132 = arith.index_cast %117 : i32 to index
    %c0_85 = arith.constant 0 : index
    %133 = vector.load %arg12[%c1_84, %132, %c0_85] : memref<3x64x32xf32, #tpu.memory_space<vmem>>, vector<1x8x32xf32>
    %134 = vector.shape_cast %133 : vector<1x8x32xf32> to vector<8x32xf32>
    %135 = arith.addf %134, %119 : vector<8x32xf32>
    %136 = vector.broadcast %69 : vector<1x32xf32> to vector<8x32xf32>
    %137 = arith.addf %135, %136 : vector<8x32xf32>
    %138 = arith.negf %137 : vector<8x32xf32>
    %139 = math.exp %138 : vector<8x32xf32>
    %cst_86 = arith.constant 1.000000e+00 : f32
    %140 = vector.broadcast %cst_86 : f32 to vector<8x32xf32>
    %141 = arith.addf %140, %139 : vector<8x32xf32>
    %142 = arith.divf %140, %141 : vector<8x32xf32>
    %c2_87 = arith.constant 2 : index
    %143 = arith.index_cast %117 : i32 to index
    %c0_88 = arith.constant 0 : index
    %144 = vector.load %arg12[%c2_87, %143, %c0_88] : memref<3x64x32xf32, #tpu.memory_space<vmem>>, vector<1x8x32xf32>
    %145 = vector.shape_cast %144 : vector<1x8x32xf32> to vector<8x32xf32>
    %146 = vector.broadcast %71 : vector<1x32xf32> to vector<8x32xf32>
    %147 = arith.addf %145, %146 : vector<8x32xf32>
    %148 = vector.broadcast %73 : vector<1x32xf32> to vector<8x32xf32>
    %149 = arith.addf %120, %148 : vector<8x32xf32>
    %150 = arith.mulf %131, %149 : vector<8x32xf32>
    %151 = arith.addf %147, %150 : vector<8x32xf32>
    %152 = math.tanh %151 : vector<8x32xf32>
    %153 = arith.subf %114, %152 : vector<8x32xf32>
    %154 = arith.mulf %142, %153 : vector<8x32xf32>
    %155 = arith.addf %152, %154 : vector<8x32xf32>
    %156 = arith.index_cast %117 : i32 to index
    %c0_89 = arith.constant 0 : index
    %157 = vector.load %arg11[%156, %c0_89] : memref<64x32xf32, #tpu.memory_space<vmem>>, vector<8x32xf32>
    tpu.vector_store %arg11[%156, %c0_89], %155 {strides = array<i32>} : memref<64x32xf32, #tpu.memory_space<vmem>>, vector<8x32xf32>,
    %c2_i32 = arith.constant 2 : i32
    %c8_i32_90 = arith.constant 8 : i32
    %158 = arith.muli %c2_i32, %c8_i32_90 : i32
    %cst_91 = arith.constant dense<0.000000e+00> : vector<8x32xf32>
    %159 = tpu.matmul %155, %61, %cst_91 {dimension_numbers = #tpu.dot_dimension_numbers<[1], [0], [0], [1], [0, 0, 1, 1], [], []>} : vector<8x32xf32>, vector<32x32xf32>, vector<8x32xf32> -> vector<8x32xf32>
    %cst_92 = arith.constant dense<0.000000e+00> : vector<8x32xf32>
    %160 = tpu.matmul %155, %63, %cst_92 {dimension_numbers = #tpu.dot_dimension_numbers<[1], [0], [0], [1], [0, 0, 1, 1], [], []>} : vector<8x32xf32>, vector<32x32xf32>, vector<8x32xf32> -> vector<8x32xf32>
    %cst_93 = arith.constant dense<0.000000e+00> : vector<8x32xf32>
    %161 = tpu.matmul %155, %65, %cst_93 {dimension_numbers = #tpu.dot_dimension_numbers<[1], [0], [0], [1], [0, 0, 1, 1], [], []>} : vector<8x32xf32>, vector<32x32xf32>, vector<8x32xf32> -> vector<8x32xf32>
    %c0_94 = arith.constant 0 : index
    %162 = arith.index_cast %158 : i32 to index
    %c0_95 = arith.constant 0 : index
    %163 = vector.load %arg12[%c0_94, %162, %c0_95] : memref<3x64x32xf32, #tpu.memory_space<vmem>>, vector<1x8x32xf32>
    %164 = vector.shape_cast %163 : vector<1x8x32xf32> to vector<8x32xf32>
    %165 = arith.addf %164, %159 : vector<8x32xf32>
    %166 = vector.broadcast %67 : vector<1x32xf32> to vector<8x32xf32>
    %167 = arith.addf %165, %166 : vector<8x32xf32>
    %168 = arith.negf %167 : vector<8x32xf32>
    %169 = math.exp %168 : vector<8x32xf32>
    %cst_96 = arith.constant 1.000000e+00 : f32
    %170 = vector.broadcast %cst_96 : f32 to vector<8x32xf32>
    %171 = arith.addf %170, %169 : vector<8x32xf32>
    %172 = arith.divf %170, %171 : vector<8x32xf32>
    %c1_97 = arith.constant 1 : index
    %173 = arith.index_cast %158 : i32 to index
    %c0_98 = arith.constant 0 : index
    %174 = vector.load %arg12[%c1_97, %173, %c0_98] : memref<3x64x32xf32, #tpu.memory_space<vmem>>, vector<1x8x32xf32>
    %175 = vector.shape_cast %174 : vector<1x8x32xf32> to vector<8x32xf32>
    %176 = arith.addf %175, %160 : vector<8x32xf32>
    %177 = vector.broadcast %69 : vector<1x32xf32> to vector<8x32xf32>
    %178 = arith.addf %176, %177 : vector<8x32xf32>
    %179 = arith.negf %178 : vector<8x32xf32>
    %180 = math.exp %179 : vector<8x32xf32>
    %cst_99 = arith.constant 1.000000e+00 : f32
    %181 = vector.broadcast %cst_99 : f32 to vector<8x32xf32>
    %182 = arith.addf %181, %180 : vector<8x32xf32>
    %183 = arith.divf %181, %182 : vector<8x32xf32>
    %c2_100 = arith.constant 2 : index
    %184 = arith.index_cast %158 : i32 to index
    %c0_101 = arith.constant 0 : index
    %185 = vector.load %arg12[%c2_100, %184, %c0_101] : memref<3x64x32xf32, #tpu.memory_space<vmem>>, vector<1x8x32xf32>
    %186 = vector.shape_cast %185 : vector<1x8x32xf32> to vector<8x32xf32>
    %187 = vector.broadcast %71 : vector<1x32xf32> to vector<8x32xf32>
    %188 = arith.addf %186, %187 : vector<8x32xf32>
    %189 = vector.broadcast %73 : vector<1x32xf32> to vector<8x32xf32>
    %190 = arith.addf %161, %189 : vector<8x32xf32>
    %191 = arith.mulf %172, %190 : vector<8x32xf32>
    %192 = arith.addf %188, %191 : vector<8x32xf32>
    %193 = math.tanh %192 : vector<8x32xf32>
    %194 = arith.subf %155, %193 : vector<8x32xf32>
    %195 = arith.mulf %183, %194 : vector<8x32xf32>
    %196 = arith.addf %193, %195 : vector<8x32xf32>
    %197 = arith.index_cast %158 : i32 to index
    %c0_102 = arith.constant 0 : index
    %198 = vector.load %arg11[%197, %c0_102] : memref<64x32xf32, #tpu.memory_space<vmem>>, vector<8x32xf32>
    tpu.vector_store %arg11[%197, %c0_102], %196 {strides = array<i32>} : memref<64x32xf32, #tpu.memory_space<vmem>>, vector<8x32xf32>,
    %c3_i32 = arith.constant 3 : i32
    %c8_i32_103 = arith.constant 8 : i32
    %199 = arith.muli %c3_i32, %c8_i32_103 : i32
    %cst_104 = arith.constant dense<0.000000e+00> : vector<8x32xf32>
    %200 = tpu.matmul %196, %61, %cst_104 {dimension_numbers = #tpu.dot_dimension_numbers<[1], [0], [0], [1], [0, 0, 1, 1], [], []>} : vector<8x32xf32>, vector<32x32xf32>, vector<8x32xf32> -> vector<8x32xf32>
    %cst_105 = arith.constant dense<0.000000e+00> : vector<8x32xf32>
    %201 = tpu.matmul %196, %63, %cst_105 {dimension_numbers = #tpu.dot_dimension_numbers<[1], [0], [0], [1], [0, 0, 1, 1], [], []>} : vector<8x32xf32>, vector<32x32xf32>, vector<8x32xf32> -> vector<8x32xf32>
    %cst_106 = arith.constant dense<0.000000e+00> : vector<8x32xf32>
    %202 = tpu.matmul %196, %65, %cst_106 {dimension_numbers = #tpu.dot_dimension_numbers<[1], [0], [0], [1], [0, 0, 1, 1], [], []>} : vector<8x32xf32>, vector<32x32xf32>, vector<8x32xf32> -> vector<8x32xf32>
    %c0_107 = arith.constant 0 : index
    %203 = arith.index_cast %199 : i32 to index
    %c0_108 = arith.constant 0 : index
    %204 = vector.load %arg12[%c0_107, %203, %c0_108] : memref<3x64x32xf32, #tpu.memory_space<vmem>>, vector<1x8x32xf32>
    %205 = vector.shape_cast %204 : vector<1x8x32xf32> to vector<8x32xf32>
    %206 = arith.addf %205, %200 : vector<8x32xf32>
    %207 = vector.broadcast %67 : vector<1x32xf32> to vector<8x32xf32>
    %208 = arith.addf %206, %207 : vector<8x32xf32>
    %209 = arith.negf %208 : vector<8x32xf32>
    %210 = math.exp %209 : vector<8x32xf32>
    %cst_109 = arith.constant 1.000000e+00 : f32
    %211 = vector.broadcast %cst_109 : f32 to vector<8x32xf32>
    %212 = arith.addf %211, %210 : vector<8x32xf32>
    %213 = arith.divf %211, %212 : vector<8x32xf32>
    %c1_110 = arith.constant 1 : index
    %214 = arith.index_cast %199 : i32 to index
    %c0_111 = arith.constant 0 : index
    %215 = vector.load %arg12[%c1_110, %214, %c0_111] : memref<3x64x32xf32, #tpu.memory_space<vmem>>, vector<1x8x32xf32>
    %216 = vector.shape_cast %215 : vector<1x8x32xf32> to vector<8x32xf32>
    %217 = arith.addf %216, %201 : vector<8x32xf32>
    %218 = vector.broadcast %69 : vector<1x32xf32> to vector<8x32xf32>
    %219 = arith.addf %217, %218 : vector<8x32xf32>
    %220 = arith.negf %219 : vector<8x32xf32>
    %221 = math.exp %220 : vector<8x32xf32>
    %cst_112 = arith.constant 1.000000e+00 : f32
    %222 = vector.broadcast %cst_112 : f32 to vector<8x32xf32>
    %223 = arith.addf %222, %221 : vector<8x32xf32>
    %224 = arith.divf %222, %223 : vector<8x32xf32>
    %c2_113 = arith.constant 2 : index
    %225 = arith.index_cast %199 : i32 to index
    %c0_114 = arith.constant 0 : index
    %226 = vector.load %arg12[%c2_113, %225, %c0_114] : memref<3x64x32xf32, #tpu.memory_space<vmem>>, vector<1x8x32xf32>
    %227 = vector.shape_cast %226 : vector<1x8x32xf32> to vector<8x32xf32>
    %228 = vector.broadcast %71 : vector<1x32xf32> to vector<8x32xf32>
    %229 = arith.addf %227, %228 : vector<8x32xf32>
    %230 = vector.broadcast %73 : vector<1x32xf32> to vector<8x32xf32>
    %231 = arith.addf %202, %230 : vector<8x32xf32>
    %232 = arith.mulf %213, %231 : vector<8x32xf32>
    %233 = arith.addf %229, %232 : vector<8x32xf32>
    %234 = math.tanh %233 : vector<8x32xf32>
    %235 = arith.subf %196, %234 : vector<8x32xf32>
    %236 = arith.mulf %224, %235 : vector<8x32xf32>
    %237 = arith.addf %234, %236 : vector<8x32xf32>
    %238 = arith.index_cast %199 : i32 to index
    %c0_115 = arith.constant 0 : index
    %239 = vector.load %arg11[%238, %c0_115] : memref<64x32xf32, #tpu.memory_space<vmem>>, vector<8x32xf32>
    tpu.vector_store %arg11[%238, %c0_115], %237 {strides = array<i32>} : memref<64x32xf32, #tpu.memory_space<vmem>>, vector<8x32xf32>,
    %c4_i32 = arith.constant 4 : i32
    %c8_i32_116 = arith.constant 8 : i32
    %240 = arith.muli %c4_i32, %c8_i32_116 : i32
    %cst_117 = arith.constant dense<0.000000e+00> : vector<8x32xf32>
    %241 = tpu.matmul %237, %61, %cst_117 {dimension_numbers = #tpu.dot_dimension_numbers<[1], [0], [0], [1], [0, 0, 1, 1], [], []>} : vector<8x32xf32>, vector<32x32xf32>, vector<8x32xf32> -> vector<8x32xf32>
    %cst_118 = arith.constant dense<0.000000e+00> : vector<8x32xf32>
    %242 = tpu.matmul %237, %63, %cst_118 {dimension_numbers = #tpu.dot_dimension_numbers<[1], [0], [0], [1], [0, 0, 1, 1], [], []>} : vector<8x32xf32>, vector<32x32xf32>, vector<8x32xf32> -> vector<8x32xf32>
    %cst_119 = arith.constant dense<0.000000e+00> : vector<8x32xf32>
    %243 = tpu.matmul %237, %65, %cst_119 {dimension_numbers = #tpu.dot_dimension_numbers<[1], [0], [0], [1], [0, 0, 1, 1], [], []>} : vector<8x32xf32>, vector<32x32xf32>, vector<8x32xf32> -> vector<8x32xf32>
    %c0_120 = arith.constant 0 : index
    %244 = arith.index_cast %240 : i32 to index
    %c0_121 = arith.constant 0 : index
    %245 = vector.load %arg12[%c0_120, %244, %c0_121] : memref<3x64x32xf32, #tpu.memory_space<vmem>>, vector<1x8x32xf32>
    %246 = vector.shape_cast %245 : vector<1x8x32xf32> to vector<8x32xf32>
    %247 = arith.addf %246, %241 : vector<8x32xf32>
    %248 = vector.broadcast %67 : vector<1x32xf32> to vector<8x32xf32>
    %249 = arith.addf %247, %248 : vector<8x32xf32>
    %250 = arith.negf %249 : vector<8x32xf32>
    %251 = math.exp %250 : vector<8x32xf32>
    %cst_122 = arith.constant 1.000000e+00 : f32
    %252 = vector.broadcast %cst_122 : f32 to vector<8x32xf32>
    %253 = arith.addf %252, %251 : vector<8x32xf32>
    %254 = arith.divf %252, %253 : vector<8x32xf32>
    %c1_123 = arith.constant 1 : index
    %255 = arith.index_cast %240 : i32 to index
    %c0_124 = arith.constant 0 : index
    %256 = vector.load %arg12[%c1_123, %255, %c0_124] : memref<3x64x32xf32, #tpu.memory_space<vmem>>, vector<1x8x32xf32>
    %257 = vector.shape_cast %256 : vector<1x8x32xf32> to vector<8x32xf32>
    %258 = arith.addf %257, %242 : vector<8x32xf32>
    %259 = vector.broadcast %69 : vector<1x32xf32> to vector<8x32xf32>
    %260 = arith.addf %258, %259 : vector<8x32xf32>
    %261 = arith.negf %260 : vector<8x32xf32>
    %262 = math.exp %261 : vector<8x32xf32>
    %cst_125 = arith.constant 1.000000e+00 : f32
    %263 = vector.broadcast %cst_125 : f32 to vector<8x32xf32>
    %264 = arith.addf %263, %262 : vector<8x32xf32>
    %265 = arith.divf %263, %264 : vector<8x32xf32>
    %c2_126 = arith.constant 2 : index
    %266 = arith.index_cast %240 : i32 to index
    %c0_127 = arith.constant 0 : index
    %267 = vector.load %arg12[%c2_126, %266, %c0_127] : memref<3x64x32xf32, #tpu.memory_space<vmem>>, vector<1x8x32xf32>
    %268 = vector.shape_cast %267 : vector<1x8x32xf32> to vector<8x32xf32>
    %269 = vector.broadcast %71 : vector<1x32xf32> to vector<8x32xf32>
    %270 = arith.addf %268, %269 : vector<8x32xf32>
    %271 = vector.broadcast %73 : vector<1x32xf32> to vector<8x32xf32>
    %272 = arith.addf %243, %271 : vector<8x32xf32>
    %273 = arith.mulf %254, %272 : vector<8x32xf32>
    %274 = arith.addf %270, %273 : vector<8x32xf32>
    %275 = math.tanh %274 : vector<8x32xf32>
    %276 = arith.subf %237, %275 : vector<8x32xf32>
    %277 = arith.mulf %265, %276 : vector<8x32xf32>
    %278 = arith.addf %275, %277 : vector<8x32xf32>
    %279 = arith.index_cast %240 : i32 to index
    %c0_128 = arith.constant 0 : index
    %280 = vector.load %arg11[%279, %c0_128] : memref<64x32xf32, #tpu.memory_space<vmem>>, vector<8x32xf32>
    tpu.vector_store %arg11[%279, %c0_128], %278 {strides = array<i32>} : memref<64x32xf32, #tpu.memory_space<vmem>>, vector<8x32xf32>,
    %c5_i32 = arith.constant 5 : i32
    %c8_i32_129 = arith.constant 8 : i32
    %281 = arith.muli %c5_i32, %c8_i32_129 : i32
    %cst_130 = arith.constant dense<0.000000e+00> : vector<8x32xf32>
    %282 = tpu.matmul %278, %61, %cst_130 {dimension_numbers = #tpu.dot_dimension_numbers<[1], [0], [0], [1], [0, 0, 1, 1], [], []>} : vector<8x32xf32>, vector<32x32xf32>, vector<8x32xf32> -> vector<8x32xf32>
    %cst_131 = arith.constant dense<0.000000e+00> : vector<8x32xf32>
    %283 = tpu.matmul %278, %63, %cst_131 {dimension_numbers = #tpu.dot_dimension_numbers<[1], [0], [0], [1], [0, 0, 1, 1], [], []>} : vector<8x32xf32>, vector<32x32xf32>, vector<8x32xf32> -> vector<8x32xf32>
    %cst_132 = arith.constant dense<0.000000e+00> : vector<8x32xf32>
    %284 = tpu.matmul %278, %65, %cst_132 {dimension_numbers = #tpu.dot_dimension_numbers<[1], [0], [0], [1], [0, 0, 1, 1], [], []>} : vector<8x32xf32>, vector<32x32xf32>, vector<8x32xf32> -> vector<8x32xf32>
    %c0_133 = arith.constant 0 : index
    %285 = arith.index_cast %281 : i32 to index
    %c0_134 = arith.constant 0 : index
    %286 = vector.load %arg12[%c0_133, %285, %c0_134] : memref<3x64x32xf32, #tpu.memory_space<vmem>>, vector<1x8x32xf32>
    %287 = vector.shape_cast %286 : vector<1x8x32xf32> to vector<8x32xf32>
    %288 = arith.addf %287, %282 : vector<8x32xf32>
    %289 = vector.broadcast %67 : vector<1x32xf32> to vector<8x32xf32>
    %290 = arith.addf %288, %289 : vector<8x32xf32>
    %291 = arith.negf %290 : vector<8x32xf32>
    %292 = math.exp %291 : vector<8x32xf32>
    %cst_135 = arith.constant 1.000000e+00 : f32
    %293 = vector.broadcast %cst_135 : f32 to vector<8x32xf32>
    %294 = arith.addf %293, %292 : vector<8x32xf32>
    %295 = arith.divf %293, %294 : vector<8x32xf32>
    %c1_136 = arith.constant 1 : index
    %296 = arith.index_cast %281 : i32 to index
    %c0_137 = arith.constant 0 : index
    %297 = vector.load %arg12[%c1_136, %296, %c0_137] : memref<3x64x32xf32, #tpu.memory_space<vmem>>, vector<1x8x32xf32>
    %298 = vector.shape_cast %297 : vector<1x8x32xf32> to vector<8x32xf32>
    %299 = arith.addf %298, %283 : vector<8x32xf32>
    %300 = vector.broadcast %69 : vector<1x32xf32> to vector<8x32xf32>
    %301 = arith.addf %299, %300 : vector<8x32xf32>
    %302 = arith.negf %301 : vector<8x32xf32>
    %303 = math.exp %302 : vector<8x32xf32>
    %cst_138 = arith.constant 1.000000e+00 : f32
    %304 = vector.broadcast %cst_138 : f32 to vector<8x32xf32>
    %305 = arith.addf %304, %303 : vector<8x32xf32>
    %306 = arith.divf %304, %305 : vector<8x32xf32>
    %c2_139 = arith.constant 2 : index
    %307 = arith.index_cast %281 : i32 to index
    %c0_140 = arith.constant 0 : index
    %308 = vector.load %arg12[%c2_139, %307, %c0_140] : memref<3x64x32xf32, #tpu.memory_space<vmem>>, vector<1x8x32xf32>
    %309 = vector.shape_cast %308 : vector<1x8x32xf32> to vector<8x32xf32>
    %310 = vector.broadcast %71 : vector<1x32xf32> to vector<8x32xf32>
    %311 = arith.addf %309, %310 : vector<8x32xf32>
    %312 = vector.broadcast %73 : vector<1x32xf32> to vector<8x32xf32>
    %313 = arith.addf %284, %312 : vector<8x32xf32>
    %314 = arith.mulf %295, %313 : vector<8x32xf32>
    %315 = arith.addf %311, %314 : vector<8x32xf32>
    %316 = math.tanh %315 : vector<8x32xf32>
    %317 = arith.subf %278, %316 : vector<8x32xf32>
    %318 = arith.mulf %306, %317 : vector<8x32xf32>
    %319 = arith.addf %316, %318 : vector<8x32xf32>
    %320 = arith.index_cast %281 : i32 to index
    %c0_141 = arith.constant 0 : index
    %321 = vector.load %arg11[%320, %c0_141] : memref<64x32xf32, #tpu.memory_space<vmem>>, vector<8x32xf32>
    tpu.vector_store %arg11[%320, %c0_141], %319 {strides = array<i32>} : memref<64x32xf32, #tpu.memory_space<vmem>>, vector<8x32xf32>,
    %c6_i32 = arith.constant 6 : i32
    %c8_i32_142 = arith.constant 8 : i32
    %322 = arith.muli %c6_i32, %c8_i32_142 : i32
    %cst_143 = arith.constant dense<0.000000e+00> : vector<8x32xf32>
    %323 = tpu.matmul %319, %61, %cst_143 {dimension_numbers = #tpu.dot_dimension_numbers<[1], [0], [0], [1], [0, 0, 1, 1], [], []>} : vector<8x32xf32>, vector<32x32xf32>, vector<8x32xf32> -> vector<8x32xf32>
    %cst_144 = arith.constant dense<0.000000e+00> : vector<8x32xf32>
    %324 = tpu.matmul %319, %63, %cst_144 {dimension_numbers = #tpu.dot_dimension_numbers<[1], [0], [0], [1], [0, 0, 1, 1], [], []>} : vector<8x32xf32>, vector<32x32xf32>, vector<8x32xf32> -> vector<8x32xf32>
    %cst_145 = arith.constant dense<0.000000e+00> : vector<8x32xf32>
    %325 = tpu.matmul %319, %65, %cst_145 {dimension_numbers = #tpu.dot_dimension_numbers<[1], [0], [0], [1], [0, 0, 1, 1], [], []>} : vector<8x32xf32>, vector<32x32xf32>, vector<8x32xf32> -> vector<8x32xf32>
    %c0_146 = arith.constant 0 : index
    %326 = arith.index_cast %322 : i32 to index
    %c0_147 = arith.constant 0 : index
    %327 = vector.load %arg12[%c0_146, %326, %c0_147] : memref<3x64x32xf32, #tpu.memory_space<vmem>>, vector<1x8x32xf32>
    %328 = vector.shape_cast %327 : vector<1x8x32xf32> to vector<8x32xf32>
    %329 = arith.addf %328, %323 : vector<8x32xf32>
    %330 = vector.broadcast %67 : vector<1x32xf32> to vector<8x32xf32>
    %331 = arith.addf %329, %330 : vector<8x32xf32>
    %332 = arith.negf %331 : vector<8x32xf32>
    %333 = math.exp %332 : vector<8x32xf32>
    %cst_148 = arith.constant 1.000000e+00 : f32
    %334 = vector.broadcast %cst_148 : f32 to vector<8x32xf32>
    %335 = arith.addf %334, %333 : vector<8x32xf32>
    %336 = arith.divf %334, %335 : vector<8x32xf32>
    %c1_149 = arith.constant 1 : index
    %337 = arith.index_cast %322 : i32 to index
    %c0_150 = arith.constant 0 : index
    %338 = vector.load %arg12[%c1_149, %337, %c0_150] : memref<3x64x32xf32, #tpu.memory_space<vmem>>, vector<1x8x32xf32>
    %339 = vector.shape_cast %338 : vector<1x8x32xf32> to vector<8x32xf32>
    %340 = arith.addf %339, %324 : vector<8x32xf32>
    %341 = vector.broadcast %69 : vector<1x32xf32> to vector<8x32xf32>
    %342 = arith.addf %340, %341 : vector<8x32xf32>
    %343 = arith.negf %342 : vector<8x32xf32>
    %344 = math.exp %343 : vector<8x32xf32>
    %cst_151 = arith.constant 1.000000e+00 : f32
    %345 = vector.broadcast %cst_151 : f32 to vector<8x32xf32>
    %346 = arith.addf %345, %344 : vector<8x32xf32>
    %347 = arith.divf %345, %346 : vector<8x32xf32>
    %c2_152 = arith.constant 2 : index
    %348 = arith.index_cast %322 : i32 to index
    %c0_153 = arith.constant 0 : index
    %349 = vector.load %arg12[%c2_152, %348, %c0_153] : memref<3x64x32xf32, #tpu.memory_space<vmem>>, vector<1x8x32xf32>
    %350 = vector.shape_cast %349 : vector<1x8x32xf32> to vector<8x32xf32>
    %351 = vector.broadcast %71 : vector<1x32xf32> to vector<8x32xf32>
    %352 = arith.addf %350, %351 : vector<8x32xf32>
    %353 = vector.broadcast %73 : vector<1x32xf32> to vector<8x32xf32>
    %354 = arith.addf %325, %353 : vector<8x32xf32>
    %355 = arith.mulf %336, %354 : vector<8x32xf32>
    %356 = arith.addf %352, %355 : vector<8x32xf32>
    %357 = math.tanh %356 : vector<8x32xf32>
    %358 = arith.subf %319, %357 : vector<8x32xf32>
    %359 = arith.mulf %347, %358 : vector<8x32xf32>
    %360 = arith.addf %357, %359 : vector<8x32xf32>
    %361 = arith.index_cast %322 : i32 to index
    %c0_154 = arith.constant 0 : index
    %362 = vector.load %arg11[%361, %c0_154] : memref<64x32xf32, #tpu.memory_space<vmem>>, vector<8x32xf32>
    tpu.vector_store %arg11[%361, %c0_154], %360 {strides = array<i32>} : memref<64x32xf32, #tpu.memory_space<vmem>>, vector<8x32xf32>,
    %c7_i32 = arith.constant 7 : i32
    %c8_i32_155 = arith.constant 8 : i32
    %363 = arith.muli %c7_i32, %c8_i32_155 : i32
    %cst_156 = arith.constant dense<0.000000e+00> : vector<8x32xf32>
    %364 = tpu.matmul %360, %61, %cst_156 {dimension_numbers = #tpu.dot_dimension_numbers<[1], [0], [0], [1], [0, 0, 1, 1], [], []>} : vector<8x32xf32>, vector<32x32xf32>, vector<8x32xf32> -> vector<8x32xf32>
    %cst_157 = arith.constant dense<0.000000e+00> : vector<8x32xf32>
    %365 = tpu.matmul %360, %63, %cst_157 {dimension_numbers = #tpu.dot_dimension_numbers<[1], [0], [0], [1], [0, 0, 1, 1], [], []>} : vector<8x32xf32>, vector<32x32xf32>, vector<8x32xf32> -> vector<8x32xf32>
    %cst_158 = arith.constant dense<0.000000e+00> : vector<8x32xf32>
    %366 = tpu.matmul %360, %65, %cst_158 {dimension_numbers = #tpu.dot_dimension_numbers<[1], [0], [0], [1], [0, 0, 1, 1], [], []>} : vector<8x32xf32>, vector<32x32xf32>, vector<8x32xf32> -> vector<8x32xf32>
    %c0_159 = arith.constant 0 : index
    %367 = arith.index_cast %363 : i32 to index
    %c0_160 = arith.constant 0 : index
    %368 = vector.load %arg12[%c0_159, %367, %c0_160] : memref<3x64x32xf32, #tpu.memory_space<vmem>>, vector<1x8x32xf32>
    %369 = vector.shape_cast %368 : vector<1x8x32xf32> to vector<8x32xf32>
    %370 = arith.addf %369, %364 : vector<8x32xf32>
    %371 = vector.broadcast %67 : vector<1x32xf32> to vector<8x32xf32>
    %372 = arith.addf %370, %371 : vector<8x32xf32>
    %373 = arith.negf %372 : vector<8x32xf32>
    %374 = math.exp %373 : vector<8x32xf32>
    %cst_161 = arith.constant 1.000000e+00 : f32
    %375 = vector.broadcast %cst_161 : f32 to vector<8x32xf32>
    %376 = arith.addf %375, %374 : vector<8x32xf32>
    %377 = arith.divf %375, %376 : vector<8x32xf32>
    %c1_162 = arith.constant 1 : index
    %378 = arith.index_cast %363 : i32 to index
    %c0_163 = arith.constant 0 : index
    %379 = vector.load %arg12[%c1_162, %378, %c0_163] : memref<3x64x32xf32, #tpu.memory_space<vmem>>, vector<1x8x32xf32>
    %380 = vector.shape_cast %379 : vector<1x8x32xf32> to vector<8x32xf32>
    %381 = arith.addf %380, %365 : vector<8x32xf32>
    %382 = vector.broadcast %69 : vector<1x32xf32> to vector<8x32xf32>
    %383 = arith.addf %381, %382 : vector<8x32xf32>
    %384 = arith.negf %383 : vector<8x32xf32>
    %385 = math.exp %384 : vector<8x32xf32>
    %cst_164 = arith.constant 1.000000e+00 : f32
    %386 = vector.broadcast %cst_164 : f32 to vector<8x32xf32>
    %387 = arith.addf %386, %385 : vector<8x32xf32>
    %388 = arith.divf %386, %387 : vector<8x32xf32>
    %c2_165 = arith.constant 2 : index
    %389 = arith.index_cast %363 : i32 to index
    %c0_166 = arith.constant 0 : index
    %390 = vector.load %arg12[%c2_165, %389, %c0_166] : memref<3x64x32xf32, #tpu.memory_space<vmem>>, vector<1x8x32xf32>
    %391 = vector.shape_cast %390 : vector<1x8x32xf32> to vector<8x32xf32>
    %392 = vector.broadcast %71 : vector<1x32xf32> to vector<8x32xf32>
    %393 = arith.addf %391, %392 : vector<8x32xf32>
    %394 = vector.broadcast %73 : vector<1x32xf32> to vector<8x32xf32>
    %395 = arith.addf %366, %394 : vector<8x32xf32>
    %396 = arith.mulf %377, %395 : vector<8x32xf32>
    %397 = arith.addf %393, %396 : vector<8x32xf32>
    %398 = math.tanh %397 : vector<8x32xf32>
    %399 = arith.subf %360, %398 : vector<8x32xf32>
    %400 = arith.mulf %388, %399 : vector<8x32xf32>
    %401 = arith.addf %398, %400 : vector<8x32xf32>
    %402 = arith.index_cast %363 : i32 to index
    %c0_167 = arith.constant 0 : index
    %403 = vector.load %arg11[%402, %c0_167] : memref<64x32xf32, #tpu.memory_space<vmem>>, vector<8x32xf32>
    tpu.vector_store %arg11[%402, %c0_167], %401 {strides = array<i32>} : memref<64x32xf32, #tpu.memory_space<vmem>>, vector<8x32xf32>,
    %c8_i32_168 = arith.constant 8 : i32
    %c0_169 = arith.constant 0 : index
    %c0_170 = arith.constant 0 : index
    %c0_171 = arith.constant 0 : index
    %404 = vector.load %arg10[%c0_169, %c0_170, %c0_171] : memref<2x8x32xf32, #tpu.memory_space<vmem>>, vector<1x8x32xf32>
    %405 = vector.shape_cast %404 : vector<1x8x32xf32> to vector<8x32xf32>
    %406 = vector.shape_cast %401 : vector<8x32xf32> to vector<1x8x32xf32>
    tpu.vector_store %arg10[%c0_169, %c0_170, %c0_171], %406 {strides = array<i32>} : memref<2x8x32xf32, #tpu.memory_space<vmem>>, vector<1x8x32xf32>,
    %c0_172 = arith.constant 0 : index
    %c0_173 = arith.constant 0 : index
    %407 = vector.load %arg11[%c0_172, %c0_173] : memref<64x32xf32, #tpu.memory_space<vmem>>, vector<64x32xf32>
    %c0_174 = arith.constant 0 : index
    %408 = memref.load %arg2[%c0_174] : memref<1xi32, #tpu.memory_space<smem>>
    %409 = tpu.iota {dimensions = array<i32: 0>} : vector<64x32xi32>
    %410 = tpu.iota {dimensions = array<i32: 1>} : vector<64x32xi32>
    %c64_i32_175 = arith.constant 64 : i32
    %411 = arith.muli %1, %c64_i32_175 : i32
    %412 = vector.broadcast %411 : i32 to vector<64x32xi32>
    %413 = arith.addi %412, %409 : vector<64x32xi32>
    %c32_i32_176 = arith.constant 32 : i32
    %414 = vector.broadcast %c32_i32_176 : i32 to vector<64x32xi32>
    %415 = arith.muli %413, %414 : vector<64x32xi32>
    %416 = arith.addi %415, %410 : vector<64x32xi32>
    %c-1640531527_i32 = arith.constant -1640531527 : i32
    %417 = arith.addi %408, %c-1640531527_i32 : i32
    %c-1640531535_i32_177 = arith.constant -1640531535 : i32
    %418 = vector.broadcast %c-1640531535_i32_177 : i32 to vector<64x32xi32>
    %419 = arith.muli %416, %418 : vector<64x32xi32>
    %420 = vector.broadcast %417 : i32 to vector<64x32xi32>
    %421 = arith.addi %419, %420 : vector<64x32xi32>
    %c16_i32_178 = arith.constant 16 : i32
    %422 = vector.broadcast %c16_i32_178 : i32 to vector<64x32xi32>
    %423 = arith.shrui %421, %422 : vector<64x32xi32>
    %424 = arith.xori %421, %423 : vector<64x32xi32>
    %c2146121005_i32_179 = arith.constant 2146121005 : i32
    %425 = vector.broadcast %c2146121005_i32_179 : i32 to vector<64x32xi32>
    %426 = arith.muli %424, %425 : vector<64x32xi32>
    %c15_i32_180 = arith.constant 15 : i32
    %427 = vector.broadcast %c15_i32_180 : i32 to vector<64x32xi32>
    %428 = arith.shrui %426, %427 : vector<64x32xi32>
    %429 = arith.xori %426, %428 : vector<64x32xi32>
    %c-2073254261_i32_181 = arith.constant -2073254261 : i32
    %430 = vector.broadcast %c-2073254261_i32_181 : i32 to vector<64x32xi32>
    %431 = arith.muli %429, %430 : vector<64x32xi32>
    %c16_i32_182 = arith.constant 16 : i32
    %432 = vector.broadcast %c16_i32_182 : i32 to vector<64x32xi32>
    %433 = arith.shrui %431, %432 : vector<64x32xi32>
    %434 = arith.xori %431, %433 : vector<64x32xi32>
    %c429496729_i32_183 = arith.constant 429496729 : i32
    %435 = vector.broadcast %c429496729_i32_183 : i32 to vector<64x32xi32>
    %436 = arith.cmpi uge, %434, %435 : vector<64x32xi32>
    %cst_184 = arith.constant 1.11111116 : f32
    %437 = vector.broadcast %cst_184 : f32 to vector<64x32xf32>
    %438 = arith.mulf %407, %437 : vector<64x32xf32>
    %cst_185 = arith.constant 0.000000e+00 : f32
    %439 = vector.broadcast %cst_185 : f32 to vector<64x32xf32>
    %440 = arith.select %436, %438, %439 : vector<64x32xi1>, vector<64x32xf32>
    %c0_186 = arith.constant 0 : index
    %c0_187 = arith.constant 0 : index
    %441 = vector.load %arg11[%c0_186, %c0_187] : memref<64x32xf32, #tpu.memory_space<vmem>>, vector<64x32xf32>
    tpu.vector_store %arg11[%c0_186, %c0_187], %440 {strides = array<i32>} : memref<64x32xf32, #tpu.memory_space<vmem>>, vector<64x32xf32>,
    %c0_188 = arith.constant 0 : index
    %c0_189 = arith.constant 0 : index
    %442 = vector.load %arg11[%c0_188, %c0_189] : memref<64x32xf32, #tpu.memory_space<vmem>>, vector<64x32xf32>
    %c1_190 = arith.constant 1 : index
    %c0_191 = arith.constant 0 : index
    %c0_192 = arith.constant 0 : index
    %c0_193 = arith.constant 0 : index
    %443 = vector.load %arg4[%c1_190, %c0_191, %c0_192, %c0_193] : memref<2x3x32x32xf32, #tpu.memory_space<vmem>>, vector<1x1x32x32xf32>
    %444 = vector.shape_cast %443 : vector<1x1x32x32xf32> to vector<32x32xf32>
    %cst_194 = arith.constant dense<0.000000e+00> : vector<64x32xf32>
    %445 = tpu.matmul %442, %444, %cst_194 {dimension_numbers = #tpu.dot_dimension_numbers<[1], [0], [0], [1], [0, 0, 1, 1], [], []>} : vector<64x32xf32>, vector<32x32xf32>, vector<64x32xf32> -> vector<64x32xf32>
    %c0_195 = arith.constant 0 : index
    %c0_196 = arith.constant 0 : index
    %c0_197 = arith.constant 0 : index
    %446 = vector.load %arg12[%c0_195, %c0_196, %c0_197] : memref<3x64x32xf32, #tpu.memory_space<vmem>>, vector<1x64x32xf32>
    %447 = vector.shape_cast %446 : vector<1x64x32xf32> to vector<64x32xf32>
    %448 = vector.shape_cast %445 : vector<64x32xf32> to vector<1x64x32xf32>
    tpu.vector_store %arg12[%c0_195, %c0_196, %c0_197], %448 {strides = array<i32>} : memref<3x64x32xf32, #tpu.memory_space<vmem>>, vector<1x64x32xf32>,
    %c1_198 = arith.constant 1 : index
    %c1_199 = arith.constant 1 : index
    %c0_200 = arith.constant 0 : index
    %c0_201 = arith.constant 0 : index
    %449 = vector.load %arg4[%c1_198, %c1_199, %c0_200, %c0_201] : memref<2x3x32x32xf32, #tpu.memory_space<vmem>>, vector<1x1x32x32xf32>
    %450 = vector.shape_cast %449 : vector<1x1x32x32xf32> to vector<32x32xf32>
    %cst_202 = arith.constant dense<0.000000e+00> : vector<64x32xf32>
    %451 = tpu.matmul %442, %450, %cst_202 {dimension_numbers = #tpu.dot_dimension_numbers<[1], [0], [0], [1], [0, 0, 1, 1], [], []>} : vector<64x32xf32>, vector<32x32xf32>, vector<64x32xf32> -> vector<64x32xf32>
    %c1_203 = arith.constant 1 : index
    %c0_204 = arith.constant 0 : index
    %c0_205 = arith.constant 0 : index
    %452 = vector.load %arg12[%c1_203, %c0_204, %c0_205] : memref<3x64x32xf32, #tpu.memory_space<vmem>>, vector<1x64x32xf32>
    %453 = vector.shape_cast %452 : vector<1x64x32xf32> to vector<64x32xf32>
    %454 = vector.shape_cast %451 : vector<64x32xf32> to vector<1x64x32xf32>
    tpu.vector_store %arg12[%c1_203, %c0_204, %c0_205], %454 {strides = array<i32>} : memref<3x64x32xf32, #tpu.memory_space<vmem>>, vector<1x64x32xf32>,
    %c1_206 = arith.constant 1 : index
    %c2_207 = arith.constant 2 : index
    %c0_208 = arith.constant 0 : index
    %c0_209 = arith.constant 0 : index
    %455 = vector.load %arg4[%c1_206, %c2_207, %c0_208, %c0_209] : memref<2x3x32x32xf32, #tpu.memory_space<vmem>>, vector<1x1x32x32xf32>
    %456 = vector.shape_cast %455 : vector<1x1x32x32xf32> to vector<32x32xf32>
    %cst_210 = arith.constant dense<0.000000e+00> : vector<64x32xf32>
    %457 = tpu.matmul %442, %456, %cst_210 {dimension_numbers = #tpu.dot_dimension_numbers<[1], [0], [0], [1], [0, 0, 1, 1], [], []>} : vector<64x32xf32>, vector<32x32xf32>, vector<64x32xf32> -> vector<64x32xf32>
    %c2_211 = arith.constant 2 : index
    %c0_212 = arith.constant 0 : index
    %c0_213 = arith.constant 0 : index
    %458 = vector.load %arg12[%c2_211, %c0_212, %c0_213] : memref<3x64x32xf32, #tpu.memory_space<vmem>>, vector<1x64x32xf32>
    %459 = vector.shape_cast %458 : vector<1x64x32xf32> to vector<64x32xf32>
    %460 = vector.shape_cast %457 : vector<64x32xf32> to vector<1x64x32xf32>
    tpu.vector_store %arg12[%c2_211, %c0_212, %c0_213], %460 {strides = array<i32>} : memref<3x64x32xf32, #tpu.memory_space<vmem>>, vector<1x64x32xf32>,
    %c1_214 = arith.constant 1 : index
    %c0_215 = arith.constant 0 : index
    %c0_216 = arith.constant 0 : index
    %c0_217 = arith.constant 0 : index
    %461 = vector.load %arg5[%c1_214, %c0_215, %c0_216, %c0_217] : memref<2x3x32x32xf32, #tpu.memory_space<vmem>>, vector<1x1x32x32xf32>
    %462 = vector.shape_cast %461 : vector<1x1x32x32xf32> to vector<32x32xf32>
    %c1_218 = arith.constant 1 : index
    %c1_219 = arith.constant 1 : index
    %c0_220 = arith.constant 0 : index
    %c0_221 = arith.constant 0 : index
    %463 = vector.load %arg5[%c1_218, %c1_219, %c0_220, %c0_221] : memref<2x3x32x32xf32, #tpu.memory_space<vmem>>, vector<1x1x32x32xf32>
    %464 = vector.shape_cast %463 : vector<1x1x32x32xf32> to vector<32x32xf32>
    %c1_222 = arith.constant 1 : index
    %c2_223 = arith.constant 2 : index
    %c0_224 = arith.constant 0 : index
    %c0_225 = arith.constant 0 : index
    %465 = vector.load %arg5[%c1_222, %c2_223, %c0_224, %c0_225] : memref<2x3x32x32xf32, #tpu.memory_space<vmem>>, vector<1x1x32x32xf32>
    %466 = vector.shape_cast %465 : vector<1x1x32x32xf32> to vector<32x32xf32>
    %c1_226 = arith.constant 1 : index
    %c0_227 = arith.constant 0 : index
    %c0_228 = arith.constant 0 : index
    %c0_229 = arith.constant 0 : index
    %467 = vector.load %arg6[%c1_226, %c0_227, %c0_228, %c0_229] : memref<2x3x1x32xf32, #tpu.memory_space<vmem>>, vector<1x1x1x32xf32>
    %468 = vector.shape_cast %467 : vector<1x1x1x32xf32> to vector<1x32xf32>
    %c1_230 = arith.constant 1 : index
    %c1_231 = arith.constant 1 : index
    %c0_232 = arith.constant 0 : index
    %c0_233 = arith.constant 0 : index
    %469 = vector.load %arg6[%c1_230, %c1_231, %c0_232, %c0_233] : memref<2x3x1x32xf32, #tpu.memory_space<vmem>>, vector<1x1x1x32xf32>
    %470 = vector.shape_cast %469 : vector<1x1x1x32xf32> to vector<1x32xf32>
    %c1_234 = arith.constant 1 : index
    %c2_235 = arith.constant 2 : index
    %c0_236 = arith.constant 0 : index
    %c0_237 = arith.constant 0 : index
    %471 = vector.load %arg6[%c1_234, %c2_235, %c0_236, %c0_237] : memref<2x3x1x32xf32, #tpu.memory_space<vmem>>, vector<1x1x1x32xf32>
    %472 = vector.shape_cast %471 : vector<1x1x1x32xf32> to vector<1x32xf32>
    %c1_238 = arith.constant 1 : index
    %c0_239 = arith.constant 0 : index
    %c0_240 = arith.constant 0 : index
    %473 = vector.load %arg7[%c1_238, %c0_239, %c0_240] : memref<2x1x32xf32, #tpu.memory_space<vmem>>, vector<1x1x32xf32>
    %474 = vector.shape_cast %473 : vector<1x1x32xf32> to vector<1x32xf32>
    %c1_241 = arith.constant 1 : index
    %c0_242 = arith.constant 0 : index
    %c0_243 = arith.constant 0 : index
    %475 = vector.load %arg10[%c1_241, %c0_242, %c0_243] : memref<2x8x32xf32, #tpu.memory_space<vmem>>, vector<1x8x32xf32>
    %476 = vector.shape_cast %475 : vector<1x8x32xf32> to vector<8x32xf32>
    %c0_i32_244 = arith.constant 0 : i32
    %c8_i32_245 = arith.constant 8 : i32
    %477 = arith.muli %c0_i32_244, %c8_i32_245 : i32
    %cst_246 = arith.constant dense<0.000000e+00> : vector<8x32xf32>
    %478 = tpu.matmul %476, %462, %cst_246 {dimension_numbers = #tpu.dot_dimension_numbers<[1], [0], [0], [1], [0, 0, 1, 1], [], []>} : vector<8x32xf32>, vector<32x32xf32>, vector<8x32xf32> -> vector<8x32xf32>
    %cst_247 = arith.constant dense<0.000000e+00> : vector<8x32xf32>
    %479 = tpu.matmul %476, %464, %cst_247 {dimension_numbers = #tpu.dot_dimension_numbers<[1], [0], [0], [1], [0, 0, 1, 1], [], []>} : vector<8x32xf32>, vector<32x32xf32>, vector<8x32xf32> -> vector<8x32xf32>
    %cst_248 = arith.constant dense<0.000000e+00> : vector<8x32xf32>
    %480 = tpu.matmul %476, %466, %cst_248 {dimension_numbers = #tpu.dot_dimension_numbers<[1], [0], [0], [1], [0, 0, 1, 1], [], []>} : vector<8x32xf32>, vector<32x32xf32>, vector<8x32xf32> -> vector<8x32xf32>
    %c0_249 = arith.constant 0 : index
    %481 = arith.index_cast %477 : i32 to index
    %c0_250 = arith.constant 0 : index
    %482 = vector.load %arg12[%c0_249, %481, %c0_250] : memref<3x64x32xf32, #tpu.memory_space<vmem>>, vector<1x8x32xf32>
    %483 = vector.shape_cast %482 : vector<1x8x32xf32> to vector<8x32xf32>
    %484 = arith.addf %483, %478 : vector<8x32xf32>
    %485 = vector.broadcast %468 : vector<1x32xf32> to vector<8x32xf32>
    %486 = arith.addf %484, %485 : vector<8x32xf32>
    %487 = arith.negf %486 : vector<8x32xf32>
    %488 = math.exp %487 : vector<8x32xf32>
    %cst_251 = arith.constant 1.000000e+00 : f32
    %489 = vector.broadcast %cst_251 : f32 to vector<8x32xf32>
    %490 = arith.addf %489, %488 : vector<8x32xf32>
    %491 = arith.divf %489, %490 : vector<8x32xf32>
    %c1_252 = arith.constant 1 : index
    %492 = arith.index_cast %477 : i32 to index
    %c0_253 = arith.constant 0 : index
    %493 = vector.load %arg12[%c1_252, %492, %c0_253] : memref<3x64x32xf32, #tpu.memory_space<vmem>>, vector<1x8x32xf32>
    %494 = vector.shape_cast %493 : vector<1x8x32xf32> to vector<8x32xf32>
    %495 = arith.addf %494, %479 : vector<8x32xf32>
    %496 = vector.broadcast %470 : vector<1x32xf32> to vector<8x32xf32>
    %497 = arith.addf %495, %496 : vector<8x32xf32>
    %498 = arith.negf %497 : vector<8x32xf32>
    %499 = math.exp %498 : vector<8x32xf32>
    %cst_254 = arith.constant 1.000000e+00 : f32
    %500 = vector.broadcast %cst_254 : f32 to vector<8x32xf32>
    %501 = arith.addf %500, %499 : vector<8x32xf32>
    %502 = arith.divf %500, %501 : vector<8x32xf32>
    %c2_255 = arith.constant 2 : index
    %503 = arith.index_cast %477 : i32 to index
    %c0_256 = arith.constant 0 : index
    %504 = vector.load %arg12[%c2_255, %503, %c0_256] : memref<3x64x32xf32, #tpu.memory_space<vmem>>, vector<1x8x32xf32>
    %505 = vector.shape_cast %504 : vector<1x8x32xf32> to vector<8x32xf32>
    %506 = vector.broadcast %472 : vector<1x32xf32> to vector<8x32xf32>
    %507 = arith.addf %505, %506 : vector<8x32xf32>
    %508 = vector.broadcast %474 : vector<1x32xf32> to vector<8x32xf32>
    %509 = arith.addf %480, %508 : vector<8x32xf32>
    %510 = arith.mulf %491, %509 : vector<8x32xf32>
    %511 = arith.addf %507, %510 : vector<8x32xf32>
    %512 = math.tanh %511 : vector<8x32xf32>
    %513 = arith.subf %476, %512 : vector<8x32xf32>
    %514 = arith.mulf %502, %513 : vector<8x32xf32>
    %515 = arith.addf %512, %514 : vector<8x32xf32>
    %516 = arith.index_cast %c0_i32_244 : i32 to index
    %c0_257 = arith.constant 0 : index
    %c0_258 = arith.constant 0 : index
    %517 = vector.load %arg8[%516, %c0_257, %c0_258] : memref<8x8x32xf32, #tpu.memory_space<vmem>>, vector<1x8x32xf32>
    %518 = vector.shape_cast %517 : vector<1x8x32xf32> to vector<8x32xf32>
    %519 = vector.shape_cast %515 : vector<8x32xf32> to vector<1x8x32xf32>
    tpu.vector_store %arg8[%516, %c0_257, %c0_258], %519 {strides = array<i32>} : memref<8x8x32xf32, #tpu.memory_space<vmem>>, vector<1x8x32xf32>,
    %c1_i32_259 = arith.constant 1 : i32
    %c8_i32_260 = arith.constant 8 : i32
    %520 = arith.muli %c1_i32_259, %c8_i32_260 : i32
    %cst_261 = arith.constant dense<0.000000e+00> : vector<8x32xf32>
    %521 = tpu.matmul %515, %462, %cst_261 {dimension_numbers = #tpu.dot_dimension_numbers<[1], [0], [0], [1], [0, 0, 1, 1], [], []>} : vector<8x32xf32>, vector<32x32xf32>, vector<8x32xf32> -> vector<8x32xf32>
    %cst_262 = arith.constant dense<0.000000e+00> : vector<8x32xf32>
    %522 = tpu.matmul %515, %464, %cst_262 {dimension_numbers = #tpu.dot_dimension_numbers<[1], [0], [0], [1], [0, 0, 1, 1], [], []>} : vector<8x32xf32>, vector<32x32xf32>, vector<8x32xf32> -> vector<8x32xf32>
    %cst_263 = arith.constant dense<0.000000e+00> : vector<8x32xf32>
    %523 = tpu.matmul %515, %466, %cst_263 {dimension_numbers = #tpu.dot_dimension_numbers<[1], [0], [0], [1], [0, 0, 1, 1], [], []>} : vector<8x32xf32>, vector<32x32xf32>, vector<8x32xf32> -> vector<8x32xf32>
    %c0_264 = arith.constant 0 : index
    %524 = arith.index_cast %520 : i32 to index
    %c0_265 = arith.constant 0 : index
    %525 = vector.load %arg12[%c0_264, %524, %c0_265] : memref<3x64x32xf32, #tpu.memory_space<vmem>>, vector<1x8x32xf32>
    %526 = vector.shape_cast %525 : vector<1x8x32xf32> to vector<8x32xf32>
    %527 = arith.addf %526, %521 : vector<8x32xf32>
    %528 = vector.broadcast %468 : vector<1x32xf32> to vector<8x32xf32>
    %529 = arith.addf %527, %528 : vector<8x32xf32>
    %530 = arith.negf %529 : vector<8x32xf32>
    %531 = math.exp %530 : vector<8x32xf32>
    %cst_266 = arith.constant 1.000000e+00 : f32
    %532 = vector.broadcast %cst_266 : f32 to vector<8x32xf32>
    %533 = arith.addf %532, %531 : vector<8x32xf32>
    %534 = arith.divf %532, %533 : vector<8x32xf32>
    %c1_267 = arith.constant 1 : index
    %535 = arith.index_cast %520 : i32 to index
    %c0_268 = arith.constant 0 : index
    %536 = vector.load %arg12[%c1_267, %535, %c0_268] : memref<3x64x32xf32, #tpu.memory_space<vmem>>, vector<1x8x32xf32>
    %537 = vector.shape_cast %536 : vector<1x8x32xf32> to vector<8x32xf32>
    %538 = arith.addf %537, %522 : vector<8x32xf32>
    %539 = vector.broadcast %470 : vector<1x32xf32> to vector<8x32xf32>
    %540 = arith.addf %538, %539 : vector<8x32xf32>
    %541 = arith.negf %540 : vector<8x32xf32>
    %542 = math.exp %541 : vector<8x32xf32>
    %cst_269 = arith.constant 1.000000e+00 : f32
    %543 = vector.broadcast %cst_269 : f32 to vector<8x32xf32>
    %544 = arith.addf %543, %542 : vector<8x32xf32>
    %545 = arith.divf %543, %544 : vector<8x32xf32>
    %c2_270 = arith.constant 2 : index
    %546 = arith.index_cast %520 : i32 to index
    %c0_271 = arith.constant 0 : index
    %547 = vector.load %arg12[%c2_270, %546, %c0_271] : memref<3x64x32xf32, #tpu.memory_space<vmem>>, vector<1x8x32xf32>
    %548 = vector.shape_cast %547 : vector<1x8x32xf32> to vector<8x32xf32>
    %549 = vector.broadcast %472 : vector<1x32xf32> to vector<8x32xf32>
    %550 = arith.addf %548, %549 : vector<8x32xf32>
    %551 = vector.broadcast %474 : vector<1x32xf32> to vector<8x32xf32>
    %552 = arith.addf %523, %551 : vector<8x32xf32>
    %553 = arith.mulf %534, %552 : vector<8x32xf32>
    %554 = arith.addf %550, %553 : vector<8x32xf32>
    %555 = math.tanh %554 : vector<8x32xf32>
    %556 = arith.subf %515, %555 : vector<8x32xf32>
    %557 = arith.mulf %545, %556 : vector<8x32xf32>
    %558 = arith.addf %555, %557 : vector<8x32xf32>
    %559 = arith.index_cast %c1_i32_259 : i32 to index
    %c0_272 = arith.constant 0 : index
    %c0_273 = arith.constant 0 : index
    %560 = vector.load %arg8[%559, %c0_272, %c0_273] : memref<8x8x32xf32, #tpu.memory_space<vmem>>, vector<1x8x32xf32>
    %561 = vector.shape_cast %560 : vector<1x8x32xf32> to vector<8x32xf32>
    %562 = vector.shape_cast %558 : vector<8x32xf32> to vector<1x8x32xf32>
    tpu.vector_store %arg8[%559, %c0_272, %c0_273], %562 {strides = array<i32>} : memref<8x8x32xf32, #tpu.memory_space<vmem>>, vector<1x8x32xf32>,
    %c2_i32_274 = arith.constant 2 : i32
    %c8_i32_275 = arith.constant 8 : i32
    %563 = arith.muli %c2_i32_274, %c8_i32_275 : i32
    %cst_276 = arith.constant dense<0.000000e+00> : vector<8x32xf32>
    %564 = tpu.matmul %558, %462, %cst_276 {dimension_numbers = #tpu.dot_dimension_numbers<[1], [0], [0], [1], [0, 0, 1, 1], [], []>} : vector<8x32xf32>, vector<32x32xf32>, vector<8x32xf32> -> vector<8x32xf32>
    %cst_277 = arith.constant dense<0.000000e+00> : vector<8x32xf32>
    %565 = tpu.matmul %558, %464, %cst_277 {dimension_numbers = #tpu.dot_dimension_numbers<[1], [0], [0], [1], [0, 0, 1, 1], [], []>} : vector<8x32xf32>, vector<32x32xf32>, vector<8x32xf32> -> vector<8x32xf32>
    %cst_278 = arith.constant dense<0.000000e+00> : vector<8x32xf32>
    %566 = tpu.matmul %558, %466, %cst_278 {dimension_numbers = #tpu.dot_dimension_numbers<[1], [0], [0], [1], [0, 0, 1, 1], [], []>} : vector<8x32xf32>, vector<32x32xf32>, vector<8x32xf32> -> vector<8x32xf32>
    %c0_279 = arith.constant 0 : index
    %567 = arith.index_cast %563 : i32 to index
    %c0_280 = arith.constant 0 : index
    %568 = vector.load %arg12[%c0_279, %567, %c0_280] : memref<3x64x32xf32, #tpu.memory_space<vmem>>, vector<1x8x32xf32>
    %569 = vector.shape_cast %568 : vector<1x8x32xf32> to vector<8x32xf32>
    %570 = arith.addf %569, %564 : vector<8x32xf32>
    %571 = vector.broadcast %468 : vector<1x32xf32> to vector<8x32xf32>
    %572 = arith.addf %570, %571 : vector<8x32xf32>
    %573 = arith.negf %572 : vector<8x32xf32>
    %574 = math.exp %573 : vector<8x32xf32>
    %cst_281 = arith.constant 1.000000e+00 : f32
    %575 = vector.broadcast %cst_281 : f32 to vector<8x32xf32>
    %576 = arith.addf %575, %574 : vector<8x32xf32>
    %577 = arith.divf %575, %576 : vector<8x32xf32>
    %c1_282 = arith.constant 1 : index
    %578 = arith.index_cast %563 : i32 to index
    %c0_283 = arith.constant 0 : index
    %579 = vector.load %arg12[%c1_282, %578, %c0_283] : memref<3x64x32xf32, #tpu.memory_space<vmem>>, vector<1x8x32xf32>
    %580 = vector.shape_cast %579 : vector<1x8x32xf32> to vector<8x32xf32>
    %581 = arith.addf %580, %565 : vector<8x32xf32>
    %582 = vector.broadcast %470 : vector<1x32xf32> to vector<8x32xf32>
    %583 = arith.addf %581, %582 : vector<8x32xf32>
    %584 = arith.negf %583 : vector<8x32xf32>
    %585 = math.exp %584 : vector<8x32xf32>
    %cst_284 = arith.constant 1.000000e+00 : f32
    %586 = vector.broadcast %cst_284 : f32 to vector<8x32xf32>
    %587 = arith.addf %586, %585 : vector<8x32xf32>
    %588 = arith.divf %586, %587 : vector<8x32xf32>
    %c2_285 = arith.constant 2 : index
    %589 = arith.index_cast %563 : i32 to index
    %c0_286 = arith.constant 0 : index
    %590 = vector.load %arg12[%c2_285, %589, %c0_286] : memref<3x64x32xf32, #tpu.memory_space<vmem>>, vector<1x8x32xf32>
    %591 = vector.shape_cast %590 : vector<1x8x32xf32> to vector<8x32xf32>
    %592 = vector.broadcast %472 : vector<1x32xf32> to vector<8x32xf32>
    %593 = arith.addf %591, %592 : vector<8x32xf32>
    %594 = vector.broadcast %474 : vector<1x32xf32> to vector<8x32xf32>
    %595 = arith.addf %566, %594 : vector<8x32xf32>
    %596 = arith.mulf %577, %595 : vector<8x32xf32>
    %597 = arith.addf %593, %596 : vector<8x32xf32>
    %598 = math.tanh %597 : vector<8x32xf32>
    %599 = arith.subf %558, %598 : vector<8x32xf32>
    %600 = arith.mulf %588, %599 : vector<8x32xf32>
    %601 = arith.addf %598, %600 : vector<8x32xf32>
    %602 = arith.index_cast %c2_i32_274 : i32 to index
    %c0_287 = arith.constant 0 : index
    %c0_288 = arith.constant 0 : index
    %603 = vector.load %arg8[%602, %c0_287, %c0_288] : memref<8x8x32xf32, #tpu.memory_space<vmem>>, vector<1x8x32xf32>
    %604 = vector.shape_cast %603 : vector<1x8x32xf32> to vector<8x32xf32>
    %605 = vector.shape_cast %601 : vector<8x32xf32> to vector<1x8x32xf32>
    tpu.vector_store %arg8[%602, %c0_287, %c0_288], %605 {strides = array<i32>} : memref<8x8x32xf32, #tpu.memory_space<vmem>>, vector<1x8x32xf32>,
    %c3_i32_289 = arith.constant 3 : i32
    %c8_i32_290 = arith.constant 8 : i32
    %606 = arith.muli %c3_i32_289, %c8_i32_290 : i32
    %cst_291 = arith.constant dense<0.000000e+00> : vector<8x32xf32>
    %607 = tpu.matmul %601, %462, %cst_291 {dimension_numbers = #tpu.dot_dimension_numbers<[1], [0], [0], [1], [0, 0, 1, 1], [], []>} : vector<8x32xf32>, vector<32x32xf32>, vector<8x32xf32> -> vector<8x32xf32>
    %cst_292 = arith.constant dense<0.000000e+00> : vector<8x32xf32>
    %608 = tpu.matmul %601, %464, %cst_292 {dimension_numbers = #tpu.dot_dimension_numbers<[1], [0], [0], [1], [0, 0, 1, 1], [], []>} : vector<8x32xf32>, vector<32x32xf32>, vector<8x32xf32> -> vector<8x32xf32>
    %cst_293 = arith.constant dense<0.000000e+00> : vector<8x32xf32>
    %609 = tpu.matmul %601, %466, %cst_293 {dimension_numbers = #tpu.dot_dimension_numbers<[1], [0], [0], [1], [0, 0, 1, 1], [], []>} : vector<8x32xf32>, vector<32x32xf32>, vector<8x32xf32> -> vector<8x32xf32>
    %c0_294 = arith.constant 0 : index
    %610 = arith.index_cast %606 : i32 to index
    %c0_295 = arith.constant 0 : index
    %611 = vector.load %arg12[%c0_294, %610, %c0_295] : memref<3x64x32xf32, #tpu.memory_space<vmem>>, vector<1x8x32xf32>
    %612 = vector.shape_cast %611 : vector<1x8x32xf32> to vector<8x32xf32>
    %613 = arith.addf %612, %607 : vector<8x32xf32>
    %614 = vector.broadcast %468 : vector<1x32xf32> to vector<8x32xf32>
    %615 = arith.addf %613, %614 : vector<8x32xf32>
    %616 = arith.negf %615 : vector<8x32xf32>
    %617 = math.exp %616 : vector<8x32xf32>
    %cst_296 = arith.constant 1.000000e+00 : f32
    %618 = vector.broadcast %cst_296 : f32 to vector<8x32xf32>
    %619 = arith.addf %618, %617 : vector<8x32xf32>
    %620 = arith.divf %618, %619 : vector<8x32xf32>
    %c1_297 = arith.constant 1 : index
    %621 = arith.index_cast %606 : i32 to index
    %c0_298 = arith.constant 0 : index
    %622 = vector.load %arg12[%c1_297, %621, %c0_298] : memref<3x64x32xf32, #tpu.memory_space<vmem>>, vector<1x8x32xf32>
    %623 = vector.shape_cast %622 : vector<1x8x32xf32> to vector<8x32xf32>
    %624 = arith.addf %623, %608 : vector<8x32xf32>
    %625 = vector.broadcast %470 : vector<1x32xf32> to vector<8x32xf32>
    %626 = arith.addf %624, %625 : vector<8x32xf32>
    %627 = arith.negf %626 : vector<8x32xf32>
    %628 = math.exp %627 : vector<8x32xf32>
    %cst_299 = arith.constant 1.000000e+00 : f32
    %629 = vector.broadcast %cst_299 : f32 to vector<8x32xf32>
    %630 = arith.addf %629, %628 : vector<8x32xf32>
    %631 = arith.divf %629, %630 : vector<8x32xf32>
    %c2_300 = arith.constant 2 : index
    %632 = arith.index_cast %606 : i32 to index
    %c0_301 = arith.constant 0 : index
    %633 = vector.load %arg12[%c2_300, %632, %c0_301] : memref<3x64x32xf32, #tpu.memory_space<vmem>>, vector<1x8x32xf32>
    %634 = vector.shape_cast %633 : vector<1x8x32xf32> to vector<8x32xf32>
    %635 = vector.broadcast %472 : vector<1x32xf32> to vector<8x32xf32>
    %636 = arith.addf %634, %635 : vector<8x32xf32>
    %637 = vector.broadcast %474 : vector<1x32xf32> to vector<8x32xf32>
    %638 = arith.addf %609, %637 : vector<8x32xf32>
    %639 = arith.mulf %620, %638 : vector<8x32xf32>
    %640 = arith.addf %636, %639 : vector<8x32xf32>
    %641 = math.tanh %640 : vector<8x32xf32>
    %642 = arith.subf %601, %641 : vector<8x32xf32>
    %643 = arith.mulf %631, %642 : vector<8x32xf32>
    %644 = arith.addf %641, %643 : vector<8x32xf32>
    %645 = arith.index_cast %c3_i32_289 : i32 to index
    %c0_302 = arith.constant 0 : index
    %c0_303 = arith.constant 0 : index
    %646 = vector.load %arg8[%645, %c0_302, %c0_303] : memref<8x8x32xf32, #tpu.memory_space<vmem>>, vector<1x8x32xf32>
    %647 = vector.shape_cast %646 : vector<1x8x32xf32> to vector<8x32xf32>
    %648 = vector.shape_cast %644 : vector<8x32xf32> to vector<1x8x32xf32>
    tpu.vector_store %arg8[%645, %c0_302, %c0_303], %648 {strides = array<i32>} : memref<8x8x32xf32, #tpu.memory_space<vmem>>, vector<1x8x32xf32>,
    %c4_i32_304 = arith.constant 4 : i32
    %c8_i32_305 = arith.constant 8 : i32
    %649 = arith.muli %c4_i32_304, %c8_i32_305 : i32
    %cst_306 = arith.constant dense<0.000000e+00> : vector<8x32xf32>
    %650 = tpu.matmul %644, %462, %cst_306 {dimension_numbers = #tpu.dot_dimension_numbers<[1], [0], [0], [1], [0, 0, 1, 1], [], []>} : vector<8x32xf32>, vector<32x32xf32>, vector<8x32xf32> -> vector<8x32xf32>
    %cst_307 = arith.constant dense<0.000000e+00> : vector<8x32xf32>
    %651 = tpu.matmul %644, %464, %cst_307 {dimension_numbers = #tpu.dot_dimension_numbers<[1], [0], [0], [1], [0, 0, 1, 1], [], []>} : vector<8x32xf32>, vector<32x32xf32>, vector<8x32xf32> -> vector<8x32xf32>
    %cst_308 = arith.constant dense<0.000000e+00> : vector<8x32xf32>
    %652 = tpu.matmul %644, %466, %cst_308 {dimension_numbers = #tpu.dot_dimension_numbers<[1], [0], [0], [1], [0, 0, 1, 1], [], []>} : vector<8x32xf32>, vector<32x32xf32>, vector<8x32xf32> -> vector<8x32xf32>
    %c0_309 = arith.constant 0 : index
    %653 = arith.index_cast %649 : i32 to index
    %c0_310 = arith.constant 0 : index
    %654 = vector.load %arg12[%c0_309, %653, %c0_310] : memref<3x64x32xf32, #tpu.memory_space<vmem>>, vector<1x8x32xf32>
    %655 = vector.shape_cast %654 : vector<1x8x32xf32> to vector<8x32xf32>
    %656 = arith.addf %655, %650 : vector<8x32xf32>
    %657 = vector.broadcast %468 : vector<1x32xf32> to vector<8x32xf32>
    %658 = arith.addf %656, %657 : vector<8x32xf32>
    %659 = arith.negf %658 : vector<8x32xf32>
    %660 = math.exp %659 : vector<8x32xf32>
    %cst_311 = arith.constant 1.000000e+00 : f32
    %661 = vector.broadcast %cst_311 : f32 to vector<8x32xf32>
    %662 = arith.addf %661, %660 : vector<8x32xf32>
    %663 = arith.divf %661, %662 : vector<8x32xf32>
    %c1_312 = arith.constant 1 : index
    %664 = arith.index_cast %649 : i32 to index
    %c0_313 = arith.constant 0 : index
    %665 = vector.load %arg12[%c1_312, %664, %c0_313] : memref<3x64x32xf32, #tpu.memory_space<vmem>>, vector<1x8x32xf32>
    %666 = vector.shape_cast %665 : vector<1x8x32xf32> to vector<8x32xf32>
    %667 = arith.addf %666, %651 : vector<8x32xf32>
    %668 = vector.broadcast %470 : vector<1x32xf32> to vector<8x32xf32>
    %669 = arith.addf %667, %668 : vector<8x32xf32>
    %670 = arith.negf %669 : vector<8x32xf32>
    %671 = math.exp %670 : vector<8x32xf32>
    %cst_314 = arith.constant 1.000000e+00 : f32
    %672 = vector.broadcast %cst_314 : f32 to vector<8x32xf32>
    %673 = arith.addf %672, %671 : vector<8x32xf32>
    %674 = arith.divf %672, %673 : vector<8x32xf32>
    %c2_315 = arith.constant 2 : index
    %675 = arith.index_cast %649 : i32 to index
    %c0_316 = arith.constant 0 : index
    %676 = vector.load %arg12[%c2_315, %675, %c0_316] : memref<3x64x32xf32, #tpu.memory_space<vmem>>, vector<1x8x32xf32>
    %677 = vector.shape_cast %676 : vector<1x8x32xf32> to vector<8x32xf32>
    %678 = vector.broadcast %472 : vector<1x32xf32> to vector<8x32xf32>
    %679 = arith.addf %677, %678 : vector<8x32xf32>
    %680 = vector.broadcast %474 : vector<1x32xf32> to vector<8x32xf32>
    %681 = arith.addf %652, %680 : vector<8x32xf32>
    %682 = arith.mulf %663, %681 : vector<8x32xf32>
    %683 = arith.addf %679, %682 : vector<8x32xf32>
    %684 = math.tanh %683 : vector<8x32xf32>
    %685 = arith.subf %644, %684 : vector<8x32xf32>
    %686 = arith.mulf %674, %685 : vector<8x32xf32>
    %687 = arith.addf %684, %686 : vector<8x32xf32>
    %688 = arith.index_cast %c4_i32_304 : i32 to index
    %c0_317 = arith.constant 0 : index
    %c0_318 = arith.constant 0 : index
    %689 = vector.load %arg8[%688, %c0_317, %c0_318] : memref<8x8x32xf32, #tpu.memory_space<vmem>>, vector<1x8x32xf32>
    %690 = vector.shape_cast %689 : vector<1x8x32xf32> to vector<8x32xf32>
    %691 = vector.shape_cast %687 : vector<8x32xf32> to vector<1x8x32xf32>
    tpu.vector_store %arg8[%688, %c0_317, %c0_318], %691 {strides = array<i32>} : memref<8x8x32xf32, #tpu.memory_space<vmem>>, vector<1x8x32xf32>,
    %c5_i32_319 = arith.constant 5 : i32
    %c8_i32_320 = arith.constant 8 : i32
    %692 = arith.muli %c5_i32_319, %c8_i32_320 : i32
    %cst_321 = arith.constant dense<0.000000e+00> : vector<8x32xf32>
    %693 = tpu.matmul %687, %462, %cst_321 {dimension_numbers = #tpu.dot_dimension_numbers<[1], [0], [0], [1], [0, 0, 1, 1], [], []>} : vector<8x32xf32>, vector<32x32xf32>, vector<8x32xf32> -> vector<8x32xf32>
    %cst_322 = arith.constant dense<0.000000e+00> : vector<8x32xf32>
    %694 = tpu.matmul %687, %464, %cst_322 {dimension_numbers = #tpu.dot_dimension_numbers<[1], [0], [0], [1], [0, 0, 1, 1], [], []>} : vector<8x32xf32>, vector<32x32xf32>, vector<8x32xf32> -> vector<8x32xf32>
    %cst_323 = arith.constant dense<0.000000e+00> : vector<8x32xf32>
    %695 = tpu.matmul %687, %466, %cst_323 {dimension_numbers = #tpu.dot_dimension_numbers<[1], [0], [0], [1], [0, 0, 1, 1], [], []>} : vector<8x32xf32>, vector<32x32xf32>, vector<8x32xf32> -> vector<8x32xf32>
    %c0_324 = arith.constant 0 : index
    %696 = arith.index_cast %692 : i32 to index
    %c0_325 = arith.constant 0 : index
    %697 = vector.load %arg12[%c0_324, %696, %c0_325] : memref<3x64x32xf32, #tpu.memory_space<vmem>>, vector<1x8x32xf32>
    %698 = vector.shape_cast %697 : vector<1x8x32xf32> to vector<8x32xf32>
    %699 = arith.addf %698, %693 : vector<8x32xf32>
    %700 = vector.broadcast %468 : vector<1x32xf32> to vector<8x32xf32>
    %701 = arith.addf %699, %700 : vector<8x32xf32>
    %702 = arith.negf %701 : vector<8x32xf32>
    %703 = math.exp %702 : vector<8x32xf32>
    %cst_326 = arith.constant 1.000000e+00 : f32
    %704 = vector.broadcast %cst_326 : f32 to vector<8x32xf32>
    %705 = arith.addf %704, %703 : vector<8x32xf32>
    %706 = arith.divf %704, %705 : vector<8x32xf32>
    %c1_327 = arith.constant 1 : index
    %707 = arith.index_cast %692 : i32 to index
    %c0_328 = arith.constant 0 : index
    %708 = vector.load %arg12[%c1_327, %707, %c0_328] : memref<3x64x32xf32, #tpu.memory_space<vmem>>, vector<1x8x32xf32>
    %709 = vector.shape_cast %708 : vector<1x8x32xf32> to vector<8x32xf32>
    %710 = arith.addf %709, %694 : vector<8x32xf32>
    %711 = vector.broadcast %470 : vector<1x32xf32> to vector<8x32xf32>
    %712 = arith.addf %710, %711 : vector<8x32xf32>
    %713 = arith.negf %712 : vector<8x32xf32>
    %714 = math.exp %713 : vector<8x32xf32>
    %cst_329 = arith.constant 1.000000e+00 : f32
    %715 = vector.broadcast %cst_329 : f32 to vector<8x32xf32>
    %716 = arith.addf %715, %714 : vector<8x32xf32>
    %717 = arith.divf %715, %716 : vector<8x32xf32>
    %c2_330 = arith.constant 2 : index
    %718 = arith.index_cast %692 : i32 to index
    %c0_331 = arith.constant 0 : index
    %719 = vector.load %arg12[%c2_330, %718, %c0_331] : memref<3x64x32xf32, #tpu.memory_space<vmem>>, vector<1x8x32xf32>
    %720 = vector.shape_cast %719 : vector<1x8x32xf32> to vector<8x32xf32>
    %721 = vector.broadcast %472 : vector<1x32xf32> to vector<8x32xf32>
    %722 = arith.addf %720, %721 : vector<8x32xf32>
    %723 = vector.broadcast %474 : vector<1x32xf32> to vector<8x32xf32>
    %724 = arith.addf %695, %723 : vector<8x32xf32>
    %725 = arith.mulf %706, %724 : vector<8x32xf32>
    %726 = arith.addf %722, %725 : vector<8x32xf32>
    %727 = math.tanh %726 : vector<8x32xf32>
    %728 = arith.subf %687, %727 : vector<8x32xf32>
    %729 = arith.mulf %717, %728 : vector<8x32xf32>
    %730 = arith.addf %727, %729 : vector<8x32xf32>
    %731 = arith.index_cast %c5_i32_319 : i32 to index
    %c0_332 = arith.constant 0 : index
    %c0_333 = arith.constant 0 : index
    %732 = vector.load %arg8[%731, %c0_332, %c0_333] : memref<8x8x32xf32, #tpu.memory_space<vmem>>, vector<1x8x32xf32>
    %733 = vector.shape_cast %732 : vector<1x8x32xf32> to vector<8x32xf32>
    %734 = vector.shape_cast %730 : vector<8x32xf32> to vector<1x8x32xf32>
    tpu.vector_store %arg8[%731, %c0_332, %c0_333], %734 {strides = array<i32>} : memref<8x8x32xf32, #tpu.memory_space<vmem>>, vector<1x8x32xf32>,
    %c6_i32_334 = arith.constant 6 : i32
    %c8_i32_335 = arith.constant 8 : i32
    %735 = arith.muli %c6_i32_334, %c8_i32_335 : i32
    %cst_336 = arith.constant dense<0.000000e+00> : vector<8x32xf32>
    %736 = tpu.matmul %730, %462, %cst_336 {dimension_numbers = #tpu.dot_dimension_numbers<[1], [0], [0], [1], [0, 0, 1, 1], [], []>} : vector<8x32xf32>, vector<32x32xf32>, vector<8x32xf32> -> vector<8x32xf32>
    %cst_337 = arith.constant dense<0.000000e+00> : vector<8x32xf32>
    %737 = tpu.matmul %730, %464, %cst_337 {dimension_numbers = #tpu.dot_dimension_numbers<[1], [0], [0], [1], [0, 0, 1, 1], [], []>} : vector<8x32xf32>, vector<32x32xf32>, vector<8x32xf32> -> vector<8x32xf32>
    %cst_338 = arith.constant dense<0.000000e+00> : vector<8x32xf32>
    %738 = tpu.matmul %730, %466, %cst_338 {dimension_numbers = #tpu.dot_dimension_numbers<[1], [0], [0], [1], [0, 0, 1, 1], [], []>} : vector<8x32xf32>, vector<32x32xf32>, vector<8x32xf32> -> vector<8x32xf32>
    %c0_339 = arith.constant 0 : index
    %739 = arith.index_cast %735 : i32 to index
    %c0_340 = arith.constant 0 : index
    %740 = vector.load %arg12[%c0_339, %739, %c0_340] : memref<3x64x32xf32, #tpu.memory_space<vmem>>, vector<1x8x32xf32>
    %741 = vector.shape_cast %740 : vector<1x8x32xf32> to vector<8x32xf32>
    %742 = arith.addf %741, %736 : vector<8x32xf32>
    %743 = vector.broadcast %468 : vector<1x32xf32> to vector<8x32xf32>
    %744 = arith.addf %742, %743 : vector<8x32xf32>
    %745 = arith.negf %744 : vector<8x32xf32>
    %746 = math.exp %745 : vector<8x32xf32>
    %cst_341 = arith.constant 1.000000e+00 : f32
    %747 = vector.broadcast %cst_341 : f32 to vector<8x32xf32>
    %748 = arith.addf %747, %746 : vector<8x32xf32>
    %749 = arith.divf %747, %748 : vector<8x32xf32>
    %c1_342 = arith.constant 1 : index
    %750 = arith.index_cast %735 : i32 to index
    %c0_343 = arith.constant 0 : index
    %751 = vector.load %arg12[%c1_342, %750, %c0_343] : memref<3x64x32xf32, #tpu.memory_space<vmem>>, vector<1x8x32xf32>
    %752 = vector.shape_cast %751 : vector<1x8x32xf32> to vector<8x32xf32>
    %753 = arith.addf %752, %737 : vector<8x32xf32>
    %754 = vector.broadcast %470 : vector<1x32xf32> to vector<8x32xf32>
    %755 = arith.addf %753, %754 : vector<8x32xf32>
    %756 = arith.negf %755 : vector<8x32xf32>
    %757 = math.exp %756 : vector<8x32xf32>
    %cst_344 = arith.constant 1.000000e+00 : f32
    %758 = vector.broadcast %cst_344 : f32 to vector<8x32xf32>
    %759 = arith.addf %758, %757 : vector<8x32xf32>
    %760 = arith.divf %758, %759 : vector<8x32xf32>
    %c2_345 = arith.constant 2 : index
    %761 = arith.index_cast %735 : i32 to index
    %c0_346 = arith.constant 0 : index
    %762 = vector.load %arg12[%c2_345, %761, %c0_346] : memref<3x64x32xf32, #tpu.memory_space<vmem>>, vector<1x8x32xf32>
    %763 = vector.shape_cast %762 : vector<1x8x32xf32> to vector<8x32xf32>
    %764 = vector.broadcast %472 : vector<1x32xf32> to vector<8x32xf32>
    %765 = arith.addf %763, %764 : vector<8x32xf32>
    %766 = vector.broadcast %474 : vector<1x32xf32> to vector<8x32xf32>
    %767 = arith.addf %738, %766 : vector<8x32xf32>
    %768 = arith.mulf %749, %767 : vector<8x32xf32>
    %769 = arith.addf %765, %768 : vector<8x32xf32>
    %770 = math.tanh %769 : vector<8x32xf32>
    %771 = arith.subf %730, %770 : vector<8x32xf32>
    %772 = arith.mulf %760, %771 : vector<8x32xf32>
    %773 = arith.addf %770, %772 : vector<8x32xf32>
    %774 = arith.index_cast %c6_i32_334 : i32 to index
    %c0_347 = arith.constant 0 : index
    %c0_348 = arith.constant 0 : index
    %775 = vector.load %arg8[%774, %c0_347, %c0_348] : memref<8x8x32xf32, #tpu.memory_space<vmem>>, vector<1x8x32xf32>
    %776 = vector.shape_cast %775 : vector<1x8x32xf32> to vector<8x32xf32>
    %777 = vector.shape_cast %773 : vector<8x32xf32> to vector<1x8x32xf32>
    tpu.vector_store %arg8[%774, %c0_347, %c0_348], %777 {strides = array<i32>} : memref<8x8x32xf32, #tpu.memory_space<vmem>>, vector<1x8x32xf32>,
    %c7_i32_349 = arith.constant 7 : i32
    %c8_i32_350 = arith.constant 8 : i32
    %778 = arith.muli %c7_i32_349, %c8_i32_350 : i32
    %cst_351 = arith.constant dense<0.000000e+00> : vector<8x32xf32>
    %779 = tpu.matmul %773, %462, %cst_351 {dimension_numbers = #tpu.dot_dimension_numbers<[1], [0], [0], [1], [0, 0, 1, 1], [], []>} : vector<8x32xf32>, vector<32x32xf32>, vector<8x32xf32> -> vector<8x32xf32>
    %cst_352 = arith.constant dense<0.000000e+00> : vector<8x32xf32>
    %780 = tpu.matmul %773, %464, %cst_352 {dimension_numbers = #tpu.dot_dimension_numbers<[1], [0], [0], [1], [0, 0, 1, 1], [], []>} : vector<8x32xf32>, vector<32x32xf32>, vector<8x32xf32> -> vector<8x32xf32>
    %cst_353 = arith.constant dense<0.000000e+00> : vector<8x32xf32>
    %781 = tpu.matmul %773, %466, %cst_353 {dimension_numbers = #tpu.dot_dimension_numbers<[1], [0], [0], [1], [0, 0, 1, 1], [], []>} : vector<8x32xf32>, vector<32x32xf32>, vector<8x32xf32> -> vector<8x32xf32>
    %c0_354 = arith.constant 0 : index
    %782 = arith.index_cast %778 : i32 to index
    %c0_355 = arith.constant 0 : index
    %783 = vector.load %arg12[%c0_354, %782, %c0_355] : memref<3x64x32xf32, #tpu.memory_space<vmem>>, vector<1x8x32xf32>
    %784 = vector.shape_cast %783 : vector<1x8x32xf32> to vector<8x32xf32>
    %785 = arith.addf %784, %779 : vector<8x32xf32>
    %786 = vector.broadcast %468 : vector<1x32xf32> to vector<8x32xf32>
    %787 = arith.addf %785, %786 : vector<8x32xf32>
    %788 = arith.negf %787 : vector<8x32xf32>
    %789 = math.exp %788 : vector<8x32xf32>
    %cst_356 = arith.constant 1.000000e+00 : f32
    %790 = vector.broadcast %cst_356 : f32 to vector<8x32xf32>
    %791 = arith.addf %790, %789 : vector<8x32xf32>
    %792 = arith.divf %790, %791 : vector<8x32xf32>
    %c1_357 = arith.constant 1 : index
    %793 = arith.index_cast %778 : i32 to index
    %c0_358 = arith.constant 0 : index
    %794 = vector.load %arg12[%c1_357, %793, %c0_358] : memref<3x64x32xf32, #tpu.memory_space<vmem>>, vector<1x8x32xf32>
    %795 = vector.shape_cast %794 : vector<1x8x32xf32> to vector<8x32xf32>
    %796 = arith.addf %795, %780 : vector<8x32xf32>
    %797 = vector.broadcast %470 : vector<1x32xf32> to vector<8x32xf32>
    %798 = arith.addf %796, %797 : vector<8x32xf32>
    %799 = arith.negf %798 : vector<8x32xf32>
    %800 = math.exp %799 : vector<8x32xf32>
    %cst_359 = arith.constant 1.000000e+00 : f32
    %801 = vector.broadcast %cst_359 : f32 to vector<8x32xf32>
    %802 = arith.addf %801, %800 : vector<8x32xf32>
    %803 = arith.divf %801, %802 : vector<8x32xf32>
    %c2_360 = arith.constant 2 : index
    %804 = arith.index_cast %778 : i32 to index
    %c0_361 = arith.constant 0 : index
    %805 = vector.load %arg12[%c2_360, %804, %c0_361] : memref<3x64x32xf32, #tpu.memory_space<vmem>>, vector<1x8x32xf32>
    %806 = vector.shape_cast %805 : vector<1x8x32xf32> to vector<8x32xf32>
    %807 = vector.broadcast %472 : vector<1x32xf32> to vector<8x32xf32>
    %808 = arith.addf %806, %807 : vector<8x32xf32>
    %809 = vector.broadcast %474 : vector<1x32xf32> to vector<8x32xf32>
    %810 = arith.addf %781, %809 : vector<8x32xf32>
    %811 = arith.mulf %792, %810 : vector<8x32xf32>
    %812 = arith.addf %808, %811 : vector<8x32xf32>
    %813 = math.tanh %812 : vector<8x32xf32>
    %814 = arith.subf %773, %813 : vector<8x32xf32>
    %815 = arith.mulf %803, %814 : vector<8x32xf32>
    %816 = arith.addf %813, %815 : vector<8x32xf32>
    %817 = arith.index_cast %c7_i32_349 : i32 to index
    %c0_362 = arith.constant 0 : index
    %c0_363 = arith.constant 0 : index
    %818 = vector.load %arg8[%817, %c0_362, %c0_363] : memref<8x8x32xf32, #tpu.memory_space<vmem>>, vector<1x8x32xf32>
    %819 = vector.shape_cast %818 : vector<1x8x32xf32> to vector<8x32xf32>
    %820 = vector.shape_cast %816 : vector<8x32xf32> to vector<1x8x32xf32>
    tpu.vector_store %arg8[%817, %c0_362, %c0_363], %820 {strides = array<i32>} : memref<8x8x32xf32, #tpu.memory_space<vmem>>, vector<1x8x32xf32>,
    %c8_i32_364 = arith.constant 8 : i32
    %c1_365 = arith.constant 1 : index
    %c0_366 = arith.constant 0 : index
    %c0_367 = arith.constant 0 : index
    %821 = vector.load %arg10[%c1_365, %c0_366, %c0_367] : memref<2x8x32xf32, #tpu.memory_space<vmem>>, vector<1x8x32xf32>
    %822 = vector.shape_cast %821 : vector<1x8x32xf32> to vector<8x32xf32>
    %823 = vector.shape_cast %816 : vector<8x32xf32> to vector<1x8x32xf32>
    tpu.vector_store %arg10[%c1_365, %c0_366, %c0_367], %823 {strides = array<i32>} : memref<2x8x32xf32, #tpu.memory_space<vmem>>, vector<1x8x32xf32>,
    %c0_i32_368 = arith.constant 0 : i32
    %824 = arith.cmpi eq, %arg1, %c0_i32_368 : i32
    %825 = arith.extui %824 : i1 to i32
    %c0_i32_369 = arith.constant 0 : i32
    %826 = arith.cmpi ne, %825, %c0_i32_369 : i32
    scf.if %826 {
      %c0_370 = arith.constant 0 : index
      %c0_371 = arith.constant 0 : index
      %c0_372 = arith.constant 0 : index
      %827 = vector.load %arg10[%c0_370, %c0_371, %c0_372] : memref<2x8x32xf32, #tpu.memory_space<vmem>>, vector<2x8x32xf32>
      %c0_373 = arith.constant 0 : index
      %c0_374 = arith.constant 0 : index
      %c0_375 = arith.constant 0 : index
      %828 = vector.load %arg9[%c0_373, %c0_374, %c0_375] : memref<2x8x32xf32, #tpu.memory_space<vmem>>, vector<2x8x32xf32>
      tpu.vector_store %arg9[%c0_373, %c0_374, %c0_375], %827 {strides = array<i32>} : memref<2x8x32xf32, #tpu.memory_space<vmem>>, vector<2x8x32xf32>,
    } else {
    }
    return
  }
  func.func @transform_0(%arg0: i32, %arg1: i32) -> i32 {
    %c0_i32 = arith.constant 0 : i32
    %c0_i32_0 = arith.constant 0 : i32
    return %c0_i32 : i32
  }
  func.func @transform_1(%arg0: i32, %arg1: i32) -> (i32, i32, i32) {
    %c0_i32 = arith.constant 0 : i32
    %c0_i32_0 = arith.constant 0 : i32
    return %arg1, %arg0, %c0_i32 : i32, i32, i32
  }
  func.func @transform_2(%arg0: i32, %arg1: i32) -> (i32, i32, i32, i32) {
    %c0_i32 = arith.constant 0 : i32
    %c0_i32_0 = arith.constant 0 : i32
    %c0_i32_1 = arith.constant 0 : i32
    %c0_i32_2 = arith.constant 0 : i32
    %c0_i32_3 = arith.constant 0 : i32
    return %c0_i32, %c0_i32_0, %c0_i32_1, %c0_i32_2 : i32, i32, i32, i32
  }
  func.func @transform_3(%arg0: i32, %arg1: i32) -> (i32, i32, i32, i32) {
    %c0_i32 = arith.constant 0 : i32
    %c0_i32_0 = arith.constant 0 : i32
    %c0_i32_1 = arith.constant 0 : i32
    %c0_i32_2 = arith.constant 0 : i32
    %c0_i32_3 = arith.constant 0 : i32
    return %c0_i32, %c0_i32_0, %c0_i32_1, %c0_i32_2 : i32, i32, i32, i32
  }
  func.func @transform_4(%arg0: i32, %arg1: i32) -> (i32, i32, i32, i32) {
    %c0_i32 = arith.constant 0 : i32
    %c0_i32_0 = arith.constant 0 : i32
    %c0_i32_1 = arith.constant 0 : i32
    %c0_i32_2 = arith.constant 0 : i32
    %c0_i32_3 = arith.constant 0 : i32
    return %c0_i32, %c0_i32_0, %c0_i32_1, %c0_i32_2 : i32, i32, i32, i32
  }
  func.func @transform_5(%arg0: i32, %arg1: i32) -> (i32, i32, i32) {
    %c0_i32 = arith.constant 0 : i32
    %c0_i32_0 = arith.constant 0 : i32
    %c0_i32_1 = arith.constant 0 : i32
    %c0_i32_2 = arith.constant 0 : i32
    return %c0_i32, %c0_i32_0, %c0_i32_1 : i32, i32, i32
  }
  func.func @transform_6(%arg0: i32, %arg1: i32) -> (i32, i32, i32) {
    %c0_i32 = arith.constant 0 : i32
    %c0_i32_0 = arith.constant 0 : i32
    return %arg1, %arg0, %c0_i32 : i32, i32, i32
  }
  func.func @transform_7(%arg0: i32, %arg1: i32) -> (i32, i32, i32) {
    %c0_i32 = arith.constant 0 : i32
    %c0_i32_0 = arith.constant 0 : i32
    %c0_i32_1 = arith.constant 0 : i32
    return %c0_i32, %arg0, %c0_i32_0 : i32, i32, i32
  }
}

</mosaic_0001>

<llo_original>
// kernel: tpu_custom_call.1
$region0: #{tpu_custom_call.1}
  #allocation0 [shape = 'u32[]', space=smem, size = 0x4, offset = 0x4, fixed_abs, tag = 'smem constant byte address 0x4 - core index']
  #allocation1 [shape = 'u32[144,128]{1,0:T(1,128)}', space=vmem, size = 0x12000, scoped, tag = 'internal scratch']
  #allocation2 [shape = 'f32[2,8,32]{2,1,0:T(8,128)}', space=vmem, size = 0x2000, scoped, tag = 'scratch operand']
  #allocation3 [shape = 'f32[64,32]{1,0:T(8,128)}', space=vmem, size = 0x8000, scoped, tag = 'scratch operand']
  #allocation4 [shape = 'f32[3,64,32]{2,1,0:T(8,128)}', space=vmem, size = 0x18000, scoped, tag = 'scratch operand']
  #allocation5 [shape = 's32[1]{0:T(128)S(6)}', space=smem, size = 0x200, scoped, tag = 'scoped memory for tpu_custom_call.1']
  %s0 = inlined_call_operand.<no memory space> [shape: s32[1], index: 0, kind: input, shape index: {}]
  %s1 = inlined_call_operand.hbm [shape: f32[8,8,32], index: 1, kind: input, shape index: {}]
  %s2 = inlined_call_operand.hbm [shape: f32[2,3,32,32], index: 2, kind: input, shape index: {}]
  %s3 = inlined_call_operand.hbm [shape: f32[2,3,32,32], index: 3, kind: input, shape index: {}]
  %s4 = inlined_call_operand.vmem [shape: f32[2,3,1,32], index: 4, kind: input, shape index: {}]
  %s5 = inlined_call_operand.vmem [shape: f32[2,1,32], index: 5, kind: input, shape index: {}]
  %s6 = inlined_call_operand.hbm [shape: f32[8,8,32], index: 6, kind: output, shape index: {0}]
  %s7 = inlined_call_operand.hbm [shape: f32[2,8,32], index: 7, kind: output, shape index: {1}]
  %8 = xla_tuple %s6, %s7
  %s9 = sld [smem:[#allocation0]]
  $region62: #{tpu_custom_call.1} parent=0
    _
  %s11 = ssub.s32 1, %s9
  %s12 = scalar_select 0, %s11, %s9
  %13 = sst [smem:[#allocation5]] %s0
  $region1: #{tpu_custom_call.1} parent=0
    #allocation6 [shape = 'u8[32768]{0}', space=vmem, size = 0x8000, scoped, tag = 'input window, operand 1, single buffered']
    #allocation7 [shape = 's32[1]{0}', space=sflag, size = 0x4, scoped, tag = 'scoped memory for tpu_custom_call.1']
    #allocation8 [shape = 's32[1]{0}', space=sflag, size = 0x4, scoped, tag = 'scoped memory for tpu_custom_call.1']
    #allocation9 [shape = 'u8[98304]{0}', space=vmem, size = 0x18000, scoped, tag = 'input window, operand 2, single buffered']
    #allocation10 [shape = 's32[1]{0}', space=sflag, size = 0x4, scoped, tag = 'scoped memory for tpu_custom_call.1']
    #allocation11 [shape = 'u8[98304]{0}', space=vmem, size = 0x18000, scoped, tag = 'input window, operand 3, single buffered']
    #allocation12 [shape = 'u8[32768]{0}', space=vmem, size = 0x8000, scoped, tag = 'output window, operand 0, single buffered']
    #allocation13 [shape = 'u8[8192]{0}', space=vmem, size = 0x2000, scoped, tag = 'output window, operand 1, single buffered']
    #allocation14 [shape = 's32[1]{0}', space=sflag, size = 0x4, scoped, tag = 'scoped memory for tpu_custom_call.1']
    %14 = vsyncpa [#allocation7], 0
    %15 = vsyncpa [#allocation10], 0
    %16 = vsyncpa [#allocation8], 0
    %17 = vsyncpa [#allocation14], 0
    // Predicated region
    $region2: #{tpu_custom_call.1} parent=1 // pred_check
      _
    $region3: #{tpu_custom_call.1} parent=1 // pred_check_branch
      %19 = sbr.rel (0) target = $region5
    $region4: #{tpu_custom_call.1} parent=1 // pred_region
      _
    $region5: #{tpu_custom_call.1} parent=1 // pred_fallthru
      _
    // Predicated region
    $region6: #{tpu_custom_call.1} parent=1 // pred_check
      _
    $region7: #{tpu_custom_call.1} parent=1 // pred_check_branch
      %21 = sbr.rel (0) target = $region9
    $region8: #{tpu_custom_call.1} parent=1 // pred_region
      %s23 = ssub.s32 1024, 1024
      %24 = vsyncadd [#allocation7], %s23
      %s25 = sshll.u32 [#allocation6], 4
      %s26 = int_to_ptr.vmem [resolvable:$true] %s25
      %31 = dma.hbm_to_vmem [thread:$0]  %s1, 1024, %s26, [#allocation7], 128, 128, 8
    $region9: #{tpu_custom_call.1} parent=1 // pred_fallthru
      _
    // Predicated region
    $region10: #{tpu_custom_call.1} parent=1 // pred_check
      _
    $region11: #{tpu_custom_call.1} parent=1 // pred_check_branch
      %33 = sbr.rel (0) target = $region13
    $region12: #{tpu_custom_call.1} parent=1 // pred_region
      %s35 = ssub.s32 3072, 3072
      %36 = vsyncadd [#allocation10], %s35
      %s37 = sshll.u32 [#allocation9], 4
      %s38 = int_to_ptr.vmem [resolvable:$true] %s37
      %43 = dma.hbm_to_vmem [thread:$0]  %s2, 3072, %s38, [#allocation10], 128, 128, 8
    $region13: #{tpu_custom_call.1} parent=1 // pred_fallthru
      _
    // Predicated region
    $region14: #{tpu_custom_call.1} parent=1 // pred_check
      _
    $region15: #{tpu_custom_call.1} parent=1 // pred_check_branch
      %45 = sbr.rel (0) target = $region17
    $region16: #{tpu_custom_call.1} parent=1 // pred_region
      %s47 = ssub.s32 3072, 3072
      %48 = vsyncadd [#allocation10], %s47
      %s49 = sshll.u32 [#allocation11], 4
      %s50 = int_to_ptr.vmem [resolvable:$true] %s49
      %55 = dma.hbm_to_vmem [thread:$0]  %s3, 3072, %s50, [#allocation10], 128, 128, 8
    $region17: #{tpu_custom_call.1} parent=1 // pred_fallthru
      _
    // Predicated region
    $region18: #{tpu_custom_call.1} parent=1 // pred_check
      _
    $region19: #{tpu_custom_call.1} parent=1 // pred_check_branch
      %57 = sbr.rel (0) target = $region21
    $region20: #{tpu_custom_call.1} parent=1 // pred_region
      _
    $region21: #{tpu_custom_call.1} parent=1 // pred_fallthru
      _
    // Predicated region
    $region22: #{tpu_custom_call.1} parent=1 // pred_check
      _
    $region23: #{tpu_custom_call.1} parent=1 // pred_check_branch
      %59 = sbr.rel (0) target = $region25
    $region24: #{tpu_custom_call.1} parent=1 // pred_region
      _
    $region25: #{tpu_custom_call.1} parent=1 // pred_fallthru
      _
    // Predicated region
    $region26: #{tpu_custom_call.1} parent=1 // pred_check
      _
    $region27: #{tpu_custom_call.1} parent=1 // pred_check_branch
      %61 = sbr.rel (0) target = $region29
    $region28: #{tpu_custom_call.1} parent=1 // pred_region
      %62 = dma.done [#allocation7], 1024
    $region29: #{tpu_custom_call.1} parent=1 // pred_fallthru
      _
    // Predicated region
    $region30: #{tpu_custom_call.1} parent=1 // pred_check
      _
    $region31: #{tpu_custom_call.1} parent=1 // pred_check_branch
      %64 = sbr.rel (0) target = $region33
    $region32: #{tpu_custom_call.1} parent=1 // pred_region
      %65 = dma.done [#allocation10], 3072
    $region33: #{tpu_custom_call.1} parent=1 // pred_fallthru
      _
    // Predicated region
    $region34: #{tpu_custom_call.1} parent=1 // pred_check
      _
    $region35: #{tpu_custom_call.1} parent=1 // pred_check_branch
      %67 = sbr.rel (0) target = $region37
    $region36: #{tpu_custom_call.1} parent=1 // pred_region
      %68 = dma.done [#allocation10], 3072
    $region37: #{tpu_custom_call.1} parent=1 // pred_fallthru
      _
    %s69 = sadd.s32 0, 0
    %p70 = scmp.eq.s32.totalorder 0, 0
    // Predicated region
    $region38: #{tpu_custom_call.1} parent=1 // pred_check
      %p71 = pneg %p70
    $region39: #{tpu_custom_call.1} parent=1 // pred_check_branch
      %73 = sbr.rel (%p71) target = $region41
    $region40: #{tpu_custom_call.1} parent=1 // pred_region
      %vm74 = vcmask 261120
      %75 = vst.msk [vmem:[#allocation2] sm:$0xff] %vm74, 0.0
      %76 = vst.msk [vmem:[#allocation2 + $0x8] sm:$0xff] %vm74, 0.0
    $region41: #{tpu_custom_call.1} parent=1 // pred_fallthru
      _
    %v77 = vld [vmem:[#allocation6] sm:$0xff]
    %v78 = vld [vmem:[#allocation6 + $0x8] sm:$0xff]
    %v79 = vld [vmem:[#allocation6 + $0x10] sm:$0xff]
    %v80 = vld [vmem:[#allocation6 + $0x18] sm:$0xff]
    %v81 = vld [vmem:[#allocation6 + $0x20] sm:$0xff]
    %v82 = vld [vmem:[#allocation6 + $0x28] sm:$0xff]
    %v83 = vld [vmem:[#allocation6 + $0x30] sm:$0xff]
    %v84 = vld [vmem:[#allocation6 + $0x38] sm:$0xff]
    %s85 = sld [smem:[#allocation5]]
    %v86 = vlaneseq
    %v87 = vshrl.u32 %v86, 7
    %v88 = vadd.s32 %v87, 8
    %v89 = vadd.s32 %v87, 16
    %v90 = vadd.s32 %v87, 24
    %v91 = vadd.s32 %v87, 32
    %v92 = vadd.s32 %v87, 40
    %v93 = vadd.s32 %v87, 48
    %v94 = vadd.s32 %v87, 56
    %v95 = vlaneseq
    %v96 = vand.u32 %v95, 127
    %s97 = smul.u32 %s69, 64
    %v98 = vstv %s97
    %v99 = vadd.s32 %v98, %v87
    %v100 = vadd.s32 %v98, %v88
    %v101 = vadd.s32 %v98, %v89
    %v102 = vadd.s32 %v98, %v90
    %v103 = vadd.s32 %v98, %v91
    %v104 = vadd.s32 %v98, %v92
    %v105 = vadd.s32 %v98, %v93
    %v106 = vadd.s32 %v98, %v94
    %v107 = vmul.u32 %v99, 32
    %v108 = vmul.u32 %v100, 32
    %v109 = vmul.u32 %v101, 32
    %v110 = vmul.u32 %v102, 32
    %v111 = vmul.u32 %v103, 32
    %v112 = vmul.u32 %v104, 32
    %v113 = vmul.u32 %v105, 32
    %v114 = vmul.u32 %v106, 32
    %v115 = vadd.s32 %v107, %v96
    %v116 = vadd.s32 %v108, %v96
    %v117 = vadd.s32 %v109, %v96
    %v118 = vadd.s32 %v110, %v96
    %v119 = vadd.s32 %v111, %v96
    %v120 = vadd.s32 %v112, %v96
    %v121 = vadd.s32 %v113, %v96
    %v122 = vadd.s32 %v114, %v96
    %v123 = vmul.u32 %v115, 2654435761
    %v124 = vmul.u32 %v116, 2654435761
    %v125 = vmul.u32 %v117, 2654435761
    %v126 = vmul.u32 %v118, 2654435761
    %v127 = vmul.u32 %v119, 2654435761
    %v128 = vmul.u32 %v120, 2654435761
    %v129 = vmul.u32 %v121, 2654435761
    %v130 = vmul.u32 %v122, 2654435761
    %v131 = vstv %s85
    %v132 = vadd.s32 %v123, %v131
    %v133 = vadd.s32 %v124, %v131
    %v134 = vadd.s32 %v125, %v131
    %v135 = vadd.s32 %v126, %v131
    %v136 = vadd.s32 %v127, %v131
    %v137 = vadd.s32 %v128, %v131
    %v138 = vadd.s32 %v129, %v131
    %v139 = vadd.s32 %v130, %v131
    %v140 = vshrl.u32 %v132, 16
    %v141 = vshrl.u32 %v133, 16
    %v142 = vshrl.u32 %v134, 16
    %v143 = vshrl.u32 %v135, 16
    %v144 = vshrl.u32 %v136, 16
    %v145 = vshrl.u32 %v137, 16
    %v146 = vshrl.u32 %v138, 16
    %v147 = vshrl.u32 %v139, 16
    %v148 = vxor.u32 %v132, %v140
    %v149 = vxor.u32 %v133, %v141
    %v150 = vxor.u32 %v134, %v142
    %v151 = vxor.u32 %v135, %v143
    %v152 = vxor.u32 %v136, %v144
    %v153 = vxor.u32 %v137, %v145
    %v154 = vxor.u32 %v138, %v146
    %v155 = vxor.u32 %v139, %v147
    %v156 = vmul.u32 %v148, 2146121005
    %v157 = vmul.u32 %v149, 2146121005
    %v158 = vmul.u32 %v150, 2146121005
    %v159 = vmul.u32 %v151, 2146121005
    %v160 = vmul.u32 %v152, 2146121005
    %v161 = vmul.u32 %v153, 2146121005
    %v162 = vmul.u32 %v154, 2146121005
    %v163 = vmul.u32 %v155, 2146121005
    %v164 = vshrl.u32 %v156, 15
    %v165 = vshrl.u32 %v157, 15
    %v166 = vshrl.u32 %v158, 15
    %v167 = vshrl.u32 %v159, 15
    %v168 = vshrl.u32 %v160, 15
    %v169 = vshrl.u32 %v161, 15
    %v170 = vshrl.u32 %v162, 15
    %v171 = vshrl.u32 %v163, 15
    %v172 = vxor.u32 %v156, %v164
    %v173 = vxor.u32 %v157, %v165
    %v174 = vxor.u32 %v158, %v166
    %v175 = vxor.u32 %v159, %v167
    %v176 = vxor.u32 %v160, %v168
    %v177 = vxor.u32 %v161, %v169
    %v178 = vxor.u32 %v162, %v170
    %v179 = vxor.u32 %v163, %v171
    %v180 = vmul.u32 %v172, 2221713035
    %v181 = vmul.u32 %v173, 2221713035
    %v182 = vmul.u32 %v174, 2221713035
    %v183 = vmul.u32 %v175, 2221713035
    %v184 = vmul.u32 %v176, 2221713035
    %v185 = vmul.u32 %v177, 2221713035
    %v186 = vmul.u32 %v178, 2221713035
    %v187 = vmul.u32 %v179, 2221713035
    %v188 = vshrl.u32 %v180, 16
    %v189 = vshrl.u32 %v181, 16
    %v190 = vshrl.u32 %v182, 16
    %v191 = vshrl.u32 %v183, 16
    %v192 = vshrl.u32 %v184, 16
    %v193 = vshrl.u32 %v185, 16
    %v194 = vshrl.u32 %v186, 16
    %v195 = vshrl.u32 %v187, 16
    %v196 = vxor.u32 %v180, %v188
    %v197 = vxor.u32 %v181, %v189
    %v198 = vxor.u32 %v182, %v190
    %v199 = vxor.u32 %v183, %v191
    %v200 = vxor.u32 %v184, %v192
    %v201 = vxor.u32 %v185, %v193
    %v202 = vxor.u32 %v186, %v194
    %v203 = vxor.u32 %v187, %v195
    %vm204 = vcmp.ge.u32.totalorder %v196, 429496729
    %vm205 = vcmp.ge.u32.totalorder %v197, 429496729
    %vm206 = vcmp.ge.u32.totalorder %v198, 429496729
    %vm207 = vcmp.ge.u32.totalorder %v199, 429496729
    %vm208 = vcmp.ge.u32.totalorder %v200, 429496729
    %vm209 = vcmp.ge.u32.totalorder %v201, 429496729
    %vm210 = vcmp.ge.u32.totalorder %v202, 429496729
    %vm211 = vcmp.ge.u32.totalorder %v203, 429496729
    %v212 = vmul.f32 %v77, 1.1111112
    %v213 = vmul.f32 %v78, 1.1111112
    %v214 = vmul.f32 %v79, 1.1111112
    %v215 = vmul.f32 %v80, 1.1111112
    %v216 = vmul.f32 %v81, 1.1111112
    %v217 = vmul.f32 %v82, 1.1111112
    %v218 = vmul.f32 %v83, 1.1111112
    %v219 = vmul.f32 %v84, 1.1111112
    %v220 = vsel %vm204, %v212, 0.0
    %v221 = vsel %vm205, %v213, 0.0
    %v222 = vsel %vm206, %v214, 0.0
    %v223 = vsel %vm207, %v215, 0.0
    %v224 = vsel %vm208, %v216, 0.0
    %v225 = vsel %vm209, %v217, 0.0
    %v226 = vsel %vm210, %v218, 0.0
    %v227 = vsel %vm211, %v219, 0.0
    %vm228 = vcmask 261120
    %229 = vst.msk [vmem:[#allocation3] sm:$0xff] %vm228, %v220
    %230 = vst.msk [vmem:[#allocation3 + $0x8] sm:$0xff] %vm228, %v221
    %231 = vst.msk [vmem:[#allocation3 + $0x10] sm:$0xff] %vm228, %v222
    %232 = vst.msk [vmem:[#allocation3 + $0x18] sm:$0xff] %vm228, %v223
    %233 = vst.msk [vmem:[#allocation3 + $0x20] sm:$0xff] %vm228, %v224
    %234 = vst.msk [vmem:[#allocation3 + $0x28] sm:$0xff] %vm228, %v225
    %235 = vst.msk [vmem:[#allocation3 + $0x30] sm:$0xff] %vm228, %v226
    %236 = vst.msk [vmem:[#allocation3 + $0x38] sm:$0xff] %vm228, %v227
    %v237 = vld [vmem:[#allocation3] sm:$0xff]
    %v238 = vld [vmem:[#allocation3 + $0x8] sm:$0xff]
    %v239 = vld [vmem:[#allocation3 + $0x10] sm:$0xff]
    %v240 = vld [vmem:[#allocation3 + $0x18] sm:$0xff]
    %v241 = vld [vmem:[#allocation3 + $0x20] sm:$0xff]
    %v242 = vld [vmem:[#allocation3 + $0x28] sm:$0xff]
    %v243 = vld [vmem:[#allocation3 + $0x30] sm:$0xff]
    %v244 = vld [vmem:[#allocation3 + $0x38] sm:$0xff]
    %v245 = vld [vmem:[#allocation9] sm:$0xff]
    %v246 = vld [vmem:[#allocation9 + $0x8] sm:$0xff]
    %v247 = vld [vmem:[#allocation9 + $0x10] sm:$0xff]
    %v248 = vld [vmem:[#allocation9 + $0x18] sm:$0xff]
    %v250 = vsel %vm228, %v237, 0
    %v253 = vsel %vm228, %v238, 0
    %v256 = vsel %vm228, %v239, 0
    %v259 = vsel %vm228, %v240, 0
    %v262 = vsel %vm228, %v241, 0
    %v265 = vsel %vm228, %v242, 0
    %v268 = vsel %vm228, %v243, 0
    %v271 = vsel %vm228, %v244, 0
    %273 = vmatprep.subr.mxu0 0.0
    %274 = vmatpush1.msra.mxu0 %v245
    %275 = vmatprep.subr.mxu0 0.0
    %276 = vmatpush1.msra.mxu0 %v246
    %277 = vmatprep.subr.mxu0 0.0
    %278 = vmatpush1.msra.mxu0 %v247
    %279 = vmatprep.subr.mxu0 0.0
    %280 = vmatpush1.msra.mxu0 %v248
    %281 = vmatprep.subr.mxu0 0.0
    %282 = vmatpush1.msra.mxu0 0.0
    %283 = vmatprep.subr.mxu0 0.0
    %284 = vmatpush1.msra.mxu0 0.0
    %285 = vmatprep.subr.mxu0 0.0
    %286 = vmatpush1.msra.mxu0 0.0
    %287 = vmatprep.subr.mxu0 0.0
    %288 = vmatpush1.msra.mxu0 0.0
    %289 = vmatprep.subr.mxu0 0.0
    %290 = vmatpush1.msra.mxu0 0.0
    %291 = vmatprep.subr.mxu0 0.0
    %292 = vmatpush1.msra.mxu0 0.0
    %293 = vmatprep.subr.mxu0 0.0
    %294 = vmatpush1.msra.mxu0 0.0
    %295 = vmatprep.subr.mxu0 0.0
    %296 = vmatpush1.msra.mxu0 0.0
    %297 = vmatprep.subr.mxu0 0.0
    %298 = vmatpush1.msra.mxu0 0.0
    %299 = vmatprep.subr.mxu0 0.0
    %300 = vmatpush1.msra.mxu0 0.0
    %301 = vmatprep.subr.mxu0 0.0
    %302 = vmatpush1.msra.mxu0 0.0
    %303 = vmatprep.subr.mxu0 0.0
    %304 = vmatpush1.msra.mxu0 0.0
    %305 = vmatprep.subr.mxu0 0.0
    %306 = vmatpush1.msra.mxu0 0.0
    %307 = vmatprep.subr.mxu0 0.0
    %308 = vmatpush1.msra.mxu0 0.0
    %309 = vmatprep.subr.mxu0 0.0
    %310 = vmatpush1.msra.mxu0 0.0
    %311 = vmatprep.subr.mxu0 0.0
    %312 = vmatpush1.msra.mxu0 0.0
    %313 = vmatprep.subr.mxu0 0.0
    %314 = vmatpush1.msra.mxu0 0.0
    %315 = vmatprep.subr.mxu0 0.0
    %316 = vmatpush1.msra.mxu0 0.0
    %317 = vmatprep.subr.mxu0 0.0
    %318 = vmatpush1.msra.mxu0 0.0
    %319 = vmatprep.subr.mxu0 0.0
    %320 = vmatpush1.msra.mxu0 0.0
    %321 = vmatprep.subr.mxu0 0.0
    %322 = vmatpush1.msra.mxu0 0.0
    %323 = vmatprep.subr.mxu0 0.0
    %324 = vmatpush1.msra.mxu0 0.0
    %325 = vmatprep.subr.mxu0 0.0
    %326 = vmatpush1.msra.mxu0 0.0
    %327 = vmatprep.subr.mxu0 0.0
    %328 = vmatpush1.msra.mxu0 0.0
    %329 = vmatprep.subr.mxu0 0.0
    %330 = vmatpush1.msra.mxu0 0.0
    %331 = vmatprep.subr.mxu0 0.0
    %332 = vmatpush1.msra.mxu0 0.0
    %333 = vmatprep.subr.mxu0 0.0
    %334 = vmatpush1.msra.mxu0 0.0
    %335 = vmatprep.subr.mxu0 0.0
    %336 = vmatpush1.msra.mxu0 0.0
    %337 = vmatprep.mubr.f32.mxu0 0.0
    %338 = vmatmul.mubr.f32.gmra.mrb[0].mxu0 %v250
    %v339 = vpop.f32.mrb[0].mxu0
    %v340 = vadd.f32 0.0, %v339
    %v341 = vpop.f32.mrb[0].mxu0
    %342 = vmatprep.mubr.f32.mxu0 0.0
    %343 = vmatmul.mubr.f32.gmra.mrb[0].mxu0 %v253
    %v344 = vpop.f32.mrb[0].mxu0
    %v345 = vadd.f32 0.0, %v344
    %v346 = vpop.f32.mrb[0].mxu0
    %347 = vmatprep.mubr.f32.mxu0 0.0
    %348 = vmatmul.mubr.f32.gmra.mrb[0].mxu0 %v256
    %v349 = vpop.f32.mrb[0].mxu0
    %v350 = vadd.f32 0.0, %v349
    %v351 = vpop.f32.mrb[0].mxu0
    %352 = vmatprep.mubr.f32.mxu0 0.0
    %353 = vmatmul.mubr.f32.gmra.mrb[0].mxu0 %v259
    %v354 = vpop.f32.mrb[0].mxu0
    %v355 = vadd.f32 0.0, %v354
    %v356 = vpop.f32.mrb[0].mxu0
    %357 = vmatprep.mubr.f32.mxu0 0.0
    %358 = vmatmul.mubr.f32.gmra.mrb[0].mxu0 %v262
    %v359 = vpop.f32.mrb[0].mxu0
    %v360 = vadd.f32 0.0, %v359
    %v361 = vpop.f32.mrb[0].mxu0
    %362 = vmatprep.mubr.f32.mxu0 0.0
    %363 = vmatmul.mubr.f32.gmra.mrb[0].mxu0 %v265
    %v364 = vpop.f32.mrb[0].mxu0
    %v365 = vadd.f32 0.0, %v364
    %v366 = vpop.f32.mrb[0].mxu0
    %367 = vmatprep.mubr.f32.mxu0 0.0
    %368 = vmatmul.mubr.f32.gmra.mrb[0].mxu0 %v268
    %v369 = vpop.f32.mrb[0].mxu0
    %v370 = vadd.f32 0.0, %v369
    %v371 = vpop.f32.mrb[0].mxu0
    %372 = vmatprep.mubr.f32.mxu0 0.0
    %373 = vmatmul.mubr.f32.gmra.mrb[0].mxu0 %v271
    %v374 = vpop.f32.mrb[0].mxu0
    %v375 = vadd.f32 0.0, %v374
    %v376 = vpop.f32.mrb[0].mxu0
    %377 = vdwg.mxu0
    %378 = vst.msk [vmem:[#allocation4] sm:$0xff] %vm228, %v340
    %379 = vst.msk [vmem:[#allocation4 + $0x8] sm:$0xff] %vm228, %v345
    %380 = vst.msk [vmem:[#allocation4 + $0x10] sm:$0xff] %vm228, %v350
    %381 = vst.msk [vmem:[#allocation4 + $0x18] sm:$0xff] %vm228, %v355
    %382 = vst.msk [vmem:[#allocation4 + $0x20] sm:$0xff] %vm228, %v360
    %383 = vst.msk [vmem:[#allocation4 + $0x28] sm:$0xff] %vm228, %v365
    %384 = vst.msk [vmem:[#allocation4 + $0x30] sm:$0xff] %vm228, %v370
    %385 = vst.msk [vmem:[#allocation4 + $0x38] sm:$0xff] %vm228, %v375
    %s386 = scalar_lea.vmem [#allocation9], 32
    %v387 = vld [vmem:[%s386] sm:$0xff]
    %v388 = vld [vmem:[%s386 + $0x8] sm:$0xff]
    %v389 = vld [vmem:[%s386 + $0x10] sm:$0xff]
    %v390 = vld [vmem:[%s386 + $0x18] sm:$0xff]
    %391 = vmatprep.subr.mxu0 0.0
    %392 = vmatpush1.msra.mxu0 %v387
    %393 = vmatprep.subr.mxu0 0.0
    %394 = vmatpush1.msra.mxu0 %v388
    %395 = vmatprep.subr.mxu0 0.0
    %396 = vmatpush1.msra.mxu0 %v389
    %397 = vmatprep.subr.mxu0 0.0
    %398 = vmatpush1.msra.mxu0 %v390
    %399 = vmatprep.subr.mxu0 0.0
    %400 = vmatpush1.msra.mxu0 0.0
    %401 = vmatprep.subr.mxu0 0.0
    %402 = vmatpush1.msra.mxu0 0.0
    %403 = vmatprep.subr.mxu0 0.0
    %404 = vmatpush1.msra.mxu0 0.0
    %405 = vmatprep.subr.mxu0 0.0
    %406 = vmatpush1.msra.mxu0 0.0
    %407 = vmatprep.subr.mxu0 0.0
    %408 = vmatpush1.msra.mxu0 0.0
    %409 = vmatprep.subr.mxu0 0.0
    %410 = vmatpush1.msra.mxu0 0.0
    %411 = vmatprep.subr.mxu0 0.0
    %412 = vmatpush1.msra.mxu0 0.0
    %413 = vmatprep.subr.mxu0 0.0
    %414 = vmatpush1.msra.mxu0 0.0
    %415 = vmatprep.subr.mxu0 0.0
    %416 = vmatpush1.msra.mxu0 0.0
    %417 = vmatprep.subr.mxu0 0.0
    %418 = vmatpush1.msra.mxu0 0.0
    %419 = vmatprep.subr.mxu0 0.0
    %420 = vmatpush1.msra.mxu0 0.0
    %421 = vmatprep.subr.mxu0 0.0
    %422 = vmatpush1.msra.mxu0 0.0
    %423 = vmatprep.subr.mxu0 0.0
    %424 = vmatpush1.msra.mxu0 0.0
    %425 = vmatprep.subr.mxu0 0.0
    %426 = vmatpush1.msra.mxu0 0.0
    %427 = vmatprep.subr.mxu0 0.0
    %428 = vmatpush1.msra.mxu0 0.0
    %429 = vmatprep.subr.mxu0 0.0
    %430 = vmatpush1.msra.mxu0 0.0
    %431 = vmatprep.subr.mxu0 0.0
    %432 = vmatpush1.msra.mxu0 0.0
    %433 = vmatprep.subr.mxu0 0.0
    %434 = vmatpush1.msra.mxu0 0.0
    %435 = vmatprep.subr.mxu0 0.0
    %436 = vmatpush1.msra.mxu0 0.0
    %437 = vmatprep.subr.mxu0 0.0
    %438 = vmatpush1.msra.mxu0 0.0
    %439 = vmatprep.subr.mxu0 0.0
    %440 = vmatpush1.msra.mxu0 0.0
    %441 = vmatprep.subr.mxu0 0.0
    %442 = vmatpush1.msra.mxu0 0.0
    %443 = vmatprep.subr.mxu0 0.0
    %444 = vmatpush1.msra.mxu0 0.0
    %445 = vmatprep.subr.mxu0 0.0
    %446 = vmatpush1.msra.mxu0 0.0
    %447 = vmatprep.subr.mxu0 0.0
    %448 = vmatpush1.msra.mxu0 0.0
    %449 = vmatprep.subr.mxu0 0.0
    %450 = vmatpush1.msra.mxu0 0.0
    %451 = vmatprep.subr.mxu0 0.0
    %452 = vmatpush1.msra.mxu0 0.0
    %453 = vmatprep.subr.mxu0 0.0
    %454 = vmatpush1.msra.mxu0 0.0
    %455 = vmatprep.mubr.f32.mxu0 0.0
    %456 = vmatmul.mubr.f32.gmra.mrb[0].mxu0 %v250
    %v457 = vpop.f32.mrb[0].mxu0
    %v458 = vadd.f32 0.0, %v457
    %v459 = vpop.f32.mrb[0].mxu0
    %460 = vmatprep.mubr.f32.mxu0 0.0
    %461 = vmatmul.mubr.f32.gmra.mrb[0].mxu0 %v253
    %v462 = vpop.f32.mrb[0].mxu0
    %v463 = vadd.f32 0.0, %v462
    %v464 = vpop.f32.mrb[0].mxu0
    %465 = vmatprep.mubr.f32.mxu0 0.0
    %466 = vmatmul.mubr.f32.gmra.mrb[0].mxu0 %v256
    %v467 = vpop.f32.mrb[0].mxu0
    %v468 = vadd.f32 0.0, %v467
    %v469 = vpop.f32.mrb[0].mxu0
    %470 = vmatprep.mubr.f32.mxu0 0.0
    %471 = vmatmul.mubr.f32.gmra.mrb[0].mxu0 %v259
    %v472 = vpop.f32.mrb[0].mxu0
    %v473 = vadd.f32 0.0, %v472
    %v474 = vpop.f32.mrb[0].mxu0
    %475 = vmatprep.mubr.f32.mxu0 0.0
    %476 = vmatmul.mubr.f32.gmra.mrb[0].mxu0 %v262
    %v477 = vpop.f32.mrb[0].mxu0
    %v478 = vadd.f32 0.0, %v477
    %v479 = vpop.f32.mrb[0].mxu0
    %480 = vmatprep.mubr.f32.mxu0 0.0
    %481 = vmatmul.mubr.f32.gmra.mrb[0].mxu0 %v265
    %v482 = vpop.f32.mrb[0].mxu0
    %v483 = vadd.f32 0.0, %v482
    %v484 = vpop.f32.mrb[0].mxu0
    %485 = vmatprep.mubr.f32.mxu0 0.0
    %486 = vmatmul.mubr.f32.gmra.mrb[0].mxu0 %v268
    %v487 = vpop.f32.mrb[0].mxu0
    %v488 = vadd.f32 0.0, %v487
    %v489 = vpop.f32.mrb[0].mxu0
    %490 = vmatprep.mubr.f32.mxu0 0.0
    %491 = vmatmul.mubr.f32.gmra.mrb[0].mxu0 %v271
    %v492 = vpop.f32.mrb[0].mxu0
    %v493 = vadd.f32 0.0, %v492
    %v494 = vpop.f32.mrb[0].mxu0
    %495 = vdwg.mxu0
    %s496 = scalar_lea.vmem [#allocation4], 64
    %497 = vst.msk [vmem:[%s496] sm:$0xff] %vm228, %v458
    %498 = vst.msk [vmem:[%s496 + $0x8] sm:$0xff] %vm228, %v463
    %499 = vst.msk [vmem:[%s496 + $0x10] sm:$0xff] %vm228, %v468
    %500 = vst.msk [vmem:[%s496 + $0x18] sm:$0xff] %vm228, %v473
    %501 = vst.msk [vmem:[%s496 + $0x20] sm:$0xff] %vm228, %v478
    %502 = vst.msk [vmem:[%s496 + $0x28] sm:$0xff] %vm228, %v483
    %503 = vst.msk [vmem:[%s496 + $0x30] sm:$0xff] %vm228, %v488
    %504 = vst.msk [vmem:[%s496 + $0x38] sm:$0xff] %vm228, %v493
    %s505 = scalar_lea.vmem [#allocation9], 64
    %v506 = vld [vmem:[%s505] sm:$0xff]
    %v507 = vld [vmem:[%s505 + $0x8] sm:$0xff]
    %v508 = vld [vmem:[%s505 + $0x10] sm:$0xff]
    %v509 = vld [vmem:[%s505 + $0x18] sm:$0xff]
    %510 = vmatprep.subr.mxu0 0.0
    %511 = vmatpush1.msra.mxu0 %v506
    %512 = vmatprep.subr.mxu0 0.0
    %513 = vmatpush1.msra.mxu0 %v507
    %514 = vmatprep.subr.mxu0 0.0
    %515 = vmatpush1.msra.mxu0 %v508
    %516 = vmatprep.subr.mxu0 0.0
    %517 = vmatpush1.msra.mxu0 %v509
    %518 = vmatprep.subr.mxu0 0.0
    %519 = vmatpush1.msra.mxu0 0.0
    %520 = vmatprep.subr.mxu0 0.0
    %521 = vmatpush1.msra.mxu0 0.0
    %522 = vmatprep.subr.mxu0 0.0
    %523 = vmatpush1.msra.mxu0 0.0
    %524 = vmatprep.subr.mxu0 0.0
    %525 = vmatpush1.msra.mxu0 0.0
    %526 = vmatprep.subr.mxu0 0.0
    %527 = vmatpush1.msra.mxu0 0.0
    %528 = vmatprep.subr.mxu0 0.0
    %529 = vmatpush1.msra.mxu0 0.0
    %530 = vmatprep.subr.mxu0 0.0
    %531 = vmatpush1.msra.mxu0 0.0
    %532 = vmatprep.subr.mxu0 0.0
    %533 = vmatpush1.msra.mxu0 0.0
    %534 = vmatprep.subr.mxu0 0.0
    %535 = vmatpush1.msra.mxu0 0.0
    %536 = vmatprep.subr.mxu0 0.0
    %537 = vmatpush1.msra.mxu0 0.0
    %538 = vmatprep.subr.mxu0 0.0
    %539 = vmatpush1.msra.mxu0 0.0
    %540 = vmatprep.subr.mxu0 0.0
    %541 = vmatpush1.msra.mxu0 0.0
    %542 = vmatprep.subr.mxu0 0.0
    %543 = vmatpush1.msra.mxu0 0.0
    %544 = vmatprep.subr.mxu0 0.0
    %545 = vmatpush1.msra.mxu0 0.0
    %546 = vmatprep.subr.mxu0 0.0
    %547 = vmatpush1.msra.mxu0 0.0
    %548 = vmatprep.subr.mxu0 0.0
    %549 = vmatpush1.msra.mxu0 0.0
    %550 = vmatprep.subr.mxu0 0.0
    %551 = vmatpush1.msra.mxu0 0.0
    %552 = vmatprep.subr.mxu0 0.0
    %553 = vmatpush1.msra.mxu0 0.0
    %554 = vmatprep.subr.mxu0 0.0
    %555 = vmatpush1.msra.mxu0 0.0
    %556 = vmatprep.subr.mxu0 0.0
    %557 = vmatpush1.msra.mxu0 0.0
    %558 = vmatprep.subr.mxu0 0.0
    %559 = vmatpush1.msra.mxu0 0.0
    %560 = vmatprep.subr.mxu0 0.0
    %561 = vmatpush1.msra.mxu0 0.0
    %562 = vmatprep.subr.mxu0 0.0
    %563 = vmatpush1.msra.mxu0 0.0
    %564 = vmatprep.subr.mxu0 0.0
    %565 = vmatpush1.msra.mxu0 0.0
    %566 = vmatprep.subr.mxu0 0.0
    %567 = vmatpush1.msra.mxu0 0.0
    %568 = vmatprep.subr.mxu0 0.0
    %569 = vmatpush1.msra.mxu0 0.0
    %570 = vmatprep.subr.mxu0 0.0
    %571 = vmatpush1.msra.mxu0 0.0
    %572 = vmatprep.subr.mxu0 0.0
    %573 = vmatpush1.msra.mxu0 0.0
    %574 = vmatprep.mubr.f32.mxu0 0.0
    %575 = vmatmul.mubr.f32.gmra.mrb[0].mxu0 %v250
    %v576 = vpop.f32.mrb[0].mxu0
    %v577 = vadd.f32 0.0, %v576
    %v578 = vpop.f32.mrb[0].mxu0
    %579 = vmatprep.mubr.f32.mxu0 0.0
    %580 = vmatmul.mubr.f32.gmra.mrb[0].mxu0 %v253
    %v581 = vpop.f32.mrb[0].mxu0
    %v582 = vadd.f32 0.0, %v581
    %v583 = vpop.f32.mrb[0].mxu0
    %584 = vmatprep.mubr.f32.mxu0 0.0
    %585 = vmatmul.mubr.f32.gmra.mrb[0].mxu0 %v256
    %v586 = vpop.f32.mrb[0].mxu0
    %v587 = vadd.f32 0.0, %v586
    %v588 = vpop.f32.mrb[0].mxu0
    %589 = vmatprep.mubr.f32.mxu0 0.0
    %590 = vmatmul.mubr.f32.gmra.mrb[0].mxu0 %v259
    %v591 = vpop.f32.mrb[0].mxu0
    %v592 = vadd.f32 0.0, %v591
    %v593 = vpop.f32.mrb[0].mxu0
    %594 = vmatprep.mubr.f32.mxu0 0.0
    %595 = vmatmul.mubr.f32.gmra.mrb[0].mxu0 %v262
    %v596 = vpop.f32.mrb[0].mxu0
    %v597 = vadd.f32 0.0, %v596
    %v598 = vpop.f32.mrb[0].mxu0
    %599 = vmatprep.mubr.f32.mxu0 0.0
    %600 = vmatmul.mubr.f32.gmra.mrb[0].mxu0 %v265
    %v601 = vpop.f32.mrb[0].mxu0
    %v602 = vadd.f32 0.0, %v601
    %v603 = vpop.f32.mrb[0].mxu0
    %604 = vmatprep.mubr.f32.mxu0 0.0
    %605 = vmatmul.mubr.f32.gmra.mrb[0].mxu0 %v268
    %v606 = vpop.f32.mrb[0].mxu0
    %v607 = vadd.f32 0.0, %v606
    %v608 = vpop.f32.mrb[0].mxu0
    %609 = vmatprep.mubr.f32.mxu0 0.0
    %610 = vmatmul.mubr.f32.gmra.mrb[0].mxu0 %v271
    %v611 = vpop.f32.mrb[0].mxu0
    %v612 = vadd.f32 0.0, %v611
    %v613 = vpop.f32.mrb[0].mxu0
    %614 = vdwg.mxu0
    %s615 = scalar_lea.vmem [#allocation4], 128
    %616 = vst.msk [vmem:[%s615] sm:$0xff] %vm228, %v577
    %617 = vst.msk [vmem:[%s615 + $0x8] sm:$0xff] %vm228, %v582
    %618 = vst.msk [vmem:[%s615 + $0x10] sm:$0xff] %vm228, %v587
    %619 = vst.msk [vmem:[%s615 + $0x18] sm:$0xff] %vm228, %v592
    %620 = vst.msk [vmem:[%s615 + $0x20] sm:$0xff] %vm228, %v597
    %621 = vst.msk [vmem:[%s615 + $0x28] sm:$0xff] %vm228, %v602
    %622 = vst.msk [vmem:[%s615 + $0x30] sm:$0xff] %vm228, %v607
    %623 = vst.msk [vmem:[%s615 + $0x38] sm:$0xff] %vm228, %v612
    %v624 = vld [vmem:[#allocation11] sm:$0xff]
    %v625 = vld [vmem:[#allocation11 + $0x8] sm:$0xff]
    %v626 = vld [vmem:[#allocation11 + $0x10] sm:$0xff]
    %v627 = vld [vmem:[#allocation11 + $0x18] sm:$0xff]
    %s628 = scalar_lea.vmem [#allocation11], 32
    %v629 = vld [vmem:[%s628] sm:$0xff]
    %v630 = vld [vmem:[%s628 + $0x8] sm:$0xff]
    %v631 = vld [vmem:[%s628 + $0x10] sm:$0xff]
    %v632 = vld [vmem:[%s628 + $0x18] sm:$0xff]
    %s633 = scalar_lea.vmem [#allocation11], 64
    %v634 = vld [vmem:[%s633] sm:$0xff]
    %v635 = vld [vmem:[%s633 + $0x8] sm:$0xff]
    %v636 = vld [vmem:[%s633 + $0x10] sm:$0xff]
    %v637 = vld [vmem:[%s633 + $0x18] sm:$0xff]
    %v638 = vld [vmem:[%s4] sm:$0x1]
    %s639 = scalar_lea.vmem %s4, 1
    %v640 = vld [vmem:[%s639] sm:$0x1]
    %s641 = scalar_lea.vmem %s4, 2
    %v642 = vld [vmem:[%s641] sm:$0x1]
    %v643 = vld [vmem:[%s5] sm:$0x1]
    %v644 = vld [vmem:[#allocation2] sm:$0xff]
    %v646 = vsel %vm228, %v644, 0
    %648 = vmatprep.subr.mxu0 0.0
    %649 = vmatpush1.msra.mxu0 %v624
    %650 = vmatprep.subr.mxu0 0.0
    %651 = vmatpush1.msra.mxu0 %v625
    %652 = vmatprep.subr.mxu0 0.0
    %653 = vmatpush1.msra.mxu0 %v626
    %654 = vmatprep.subr.mxu0 0.0
    %655 = vmatpush1.msra.mxu0 %v627
    %656 = vmatprep.subr.mxu0 0.0
    %657 = vmatpush1.msra.mxu0 0.0
    %658 = vmatprep.subr.mxu0 0.0
    %659 = vmatpush1.msra.mxu0 0.0
    %660 = vmatprep.subr.mxu0 0.0
    %661 = vmatpush1.msra.mxu0 0.0
    %662 = vmatprep.subr.mxu0 0.0
    %663 = vmatpush1.msra.mxu0 0.0
    %664 = vmatprep.subr.mxu0 0.0
    %665 = vmatpush1.msra.mxu0 0.0
    %666 = vmatprep.subr.mxu0 0.0
    %667 = vmatpush1.msra.mxu0 0.0
    %668 = vmatprep.subr.mxu0 0.0
    %669 = vmatpush1.msra.mxu0 0.0
    %670 = vmatprep.subr.mxu0 0.0
    %671 = vmatpush1.msra.mxu0 0.0
    %672 = vmatprep.subr.mxu0 0.0
    %673 = vmatpush1.msra.mxu0 0.0
    %674 = vmatprep.subr.mxu0 0.0
    %675 = vmatpush1.msra.mxu0 0.0
    %676 = vmatprep.subr.mxu0 0.0
    %677 = vmatpush1.msra.mxu0 0.0
    %678 = vmatprep.subr.mxu0 0.0
    %679 = vmatpush1.msra.mxu0 0.0
    %680 = vmatprep.subr.mxu0 0.0
    %681 = vmatpush1.msra.mxu0 0.0
    %682 = vmatprep.subr.mxu0 0.0
    %683 = vmatpush1.msra.mxu0 0.0
    %684 = vmatprep.subr.mxu0 0.0
    %685 = vmatpush1.msra.mxu0 0.0
    %686 = vmatprep.subr.mxu0 0.0
    %687 = vmatpush1.msra.mxu0 0.0
    %688 = vmatprep.subr.mxu0 0.0
    %689 = vmatpush1.msra.mxu0 0.0
    %690 = vmatprep.subr.mxu0 0.0
    %691 = vmatpush1.msra.mxu0 0.0
    %692 = vmatprep.subr.mxu0 0.0
    %693 = vmatpush1.msra.mxu0 0.0
    %694 = vmatprep.subr.mxu0 0.0
    %695 = vmatpush1.msra.mxu0 0.0
    %696 = vmatprep.subr.mxu0 0.0
    %697 = vmatpush1.msra.mxu0 0.0
    %698 = vmatprep.subr.mxu0 0.0
    %699 = vmatpush1.msra.mxu0 0.0
    %700 = vmatprep.subr.mxu0 0.0
    %701 = vmatpush1.msra.mxu0 0.0
    %702 = vmatprep.subr.mxu0 0.0
    %703 = vmatpush1.msra.mxu0 0.0
    %704 = vmatprep.subr.mxu0 0.0
    %705 = vmatpush1.msra.mxu0 0.0
    %706 = vmatprep.subr.mxu0 0.0
    %707 = vmatpush1.msra.mxu0 0.0
    %708 = vmatprep.subr.mxu0 0.0
    %709 = vmatpush1.msra.mxu0 0.0
    %710 = vmatprep.subr.mxu0 0.0
    %711 = vmatpush1.msra.mxu0 0.0
    %712 = vmatprep.mubr.f32.mxu0 0.0
    %713 = vmatmul.mubr.f32.gmra.mrb[0].mxu0 %v646
    %v714 = vpop.f32.mrb[0].mxu0
    %v715 = vadd.f32 0.0, %v714
    %v716 = vpop.f32.mrb[0].mxu0
    %717 = vdwg.mxu0
    %718 = vmatprep.subr.mxu0 0.0
    %719 = vmatpush1.msra.mxu0 %v629
    %720 = vmatprep.subr.mxu0 0.0
    %721 = vmatpush1.msra.mxu0 %v630
    %722 = vmatprep.subr.mxu0 0.0
    %723 = vmatpush1.msra.mxu0 %v631
    %724 = vmatprep.subr.mxu0 0.0
    %725 = vmatpush1.msra.mxu0 %v632
    %726 = vmatprep.subr.mxu0 0.0
    %727 = vmatpush1.msra.mxu0 0.0
    %728 = vmatprep.subr.mxu0 0.0
    %729 = vmatpush1.msra.mxu0 0.0
    %730 = vmatprep.subr.mxu0 0.0
    %731 = vmatpush1.msra.mxu0 0.0
    %732 = vmatprep.subr.mxu0 0.0
    %733 = vmatpush1.msra.mxu0 0.0
    %734 = vmatprep.subr.mxu0 0.0
    %735 = vmatpush1.msra.mxu0 0.0
    %736 = vmatprep.subr.mxu0 0.0
    %737 = vmatpush1.msra.mxu0 0.0
    %738 = vmatprep.subr.mxu0 0.0
    %739 = vmatpush1.msra.mxu0 0.0
    %740 = vmatprep.subr.mxu0 0.0
    %741 = vmatpush1.msra.mxu0 0.0
    %742 = vmatprep.subr.mxu0 0.0
    %743 = vmatpush1.msra.mxu0 0.0
    %744 = vmatprep.subr.mxu0 0.0
    %745 = vmatpush1.msra.mxu0 0.0
    %746 = vmatprep.subr.mxu0 0.0
    %747 = vmatpush1.msra.mxu0 0.0
    %748 = vmatprep.subr.mxu0 0.0
    %749 = vmatpush1.msra.mxu0 0.0
    %750 = vmatprep.subr.mxu0 0.0
    %751 = vmatpush1.msra.mxu0 0.0
    %752 = vmatprep.subr.mxu0 0.0
    %753 = vmatpush1.msra.mxu0 0.0
    %754 = vmatprep.subr.mxu0 0.0
    %755 = vmatpush1.msra.mxu0 0.0
    %756 = vmatprep.subr.mxu0 0.0
    %757 = vmatpush1.msra.mxu0 0.0
    %758 = vmatprep.subr.mxu0 0.0
    %759 = vmatpush1.msra.mxu0 0.0
    %760 = vmatprep.subr.mxu0 0.0
    %761 = vmatpush1.msra.mxu0 0.0
    %762 = vmatprep.subr.mxu0 0.0
    %763 = vmatpush1.msra.mxu0 0.0
    %764 = vmatprep.subr.mxu0 0.0
    %765 = vmatpush1.msra.mxu0 0.0
    %766 = vmatprep.subr.mxu0 0.0
    %767 = vmatpush1.msra.mxu0 0.0
    %768 = vmatprep.subr.mxu0 0.0
    %769 = vmatpush1.msra.mxu0 0.0
    %770 = vmatprep.subr.mxu0 0.0
    %771 = vmatpush1.msra.mxu0 0.0
    %772 = vmatprep.subr.mxu0 0.0
    %773 = vmatpush1.msra.mxu0 0.0
    %774 = vmatprep.subr.mxu0 0.0
    %775 = vmatpush1.msra.mxu0 0.0
    %776 = vmatprep.subr.mxu0 0.0
    %777 = vmatpush1.msra.mxu0 0.0
    %778 = vmatprep.subr.mxu0 0.0
    %779 = vmatpush1.msra.mxu0 0.0
    %780 = vmatprep.subr.mxu0 0.0
    %781 = vmatpush1.msra.mxu0 0.0
    %782 = vmatprep.mubr.f32.mxu0 0.0
    %783 = vmatmul.mubr.f32.gmra.mrb[0].mxu0 %v646
    %v784 = vpop.f32.mrb[0].mxu0
    %v785 = vadd.f32 0.0, %v784
    %v786 = vpop.f32.mrb[0].mxu0
    %787 = vdwg.mxu0
    %v788 = vld [vmem:[#allocation4] sm:$0xff]
    %v789 = vadd.f32 %v788, %v715
    %v791 = vlaneseq
    %v792 = vshrl.u32 %v791, 7
    %v793 = vsub.s32 0, %v792
    %v794 = vrot.slane %v638, %v793
    %v796 = vadd.f32 %v789, %v794
    %v797 = vxor.u32 %v796, 2147483648
    %v798 = vmul.f32 %v797, 1.442695
    %v799 = vpow.pop %v798
    %v800 = vadd.f32 %v799, 1.0
    %v801 = vrcp.pop %v800
    %v802 = vmul.f32 1.0, %v801
    %v803 = vld [vmem:[%s496] sm:$0xff]
    %v804 = vadd.f32 %v803, %v785
    %v806 = vlaneseq
    %v807 = vshrl.u32 %v806, 7
    %v808 = vsub.s32 0, %v807
    %v809 = vrot.slane %v640, %v808
    %v811 = vadd.f32 %v804, %v809
    %v812 = vxor.u32 %v811, 2147483648
    %v813 = vmul.f32 %v812, 1.442695
    %v814 = vpow.pop %v813
    %v815 = vadd.f32 %v814, 1.0
    %v816 = vrcp.pop %v815
    %v817 = vmul.f32 1.0, %v816
    %v818 = vld [vmem:[%s615] sm:$0xff]
    %v820 = vlaneseq
    %v821 = vshrl.u32 %v820, 7
    %v822 = vsub.s32 0, %v821
    %v823 = vrot.slane %v642, %v822
    %v825 = vadd.f32 %v818, %v823
    %v827 = vlaneseq
    %v828 = vshrl.u32 %v827, 7
    %v829 = vsub.s32 0, %v828
    %v830 = vrot.slane %v643, %v829
    %832 = vmatprep.subr.mxu0 0.0
    %833 = vmatpush1.msra.mxu0 %v634
    %834 = vmatprep.subr.mxu0 0.0
    %835 = vmatpush1.msra.mxu0 %v635
    %836 = vmatprep.subr.mxu0 0.0
    %837 = vmatpush1.msra.mxu0 %v636
    %838 = vmatprep.subr.mxu0 0.0
    %839 = vmatpush1.msra.mxu0 %v637
    %840 = vmatprep.subr.mxu0 0.0
    %841 = vmatpush1.msra.mxu0 0.0
    %842 = vmatprep.subr.mxu0 0.0
    %843 = vmatpush1.msra.mxu0 0.0
    %844 = vmatprep.subr.mxu0 0.0
    %845 = vmatpush1.msra.mxu0 0.0
    %846 = vmatprep.subr.mxu0 0.0
    %847 = vmatpush1.msra.mxu0 0.0
    %848 = vmatprep.subr.mxu0 0.0
    %849 = vmatpush1.msra.mxu0 0.0
    %850 = vmatprep.subr.mxu0 0.0
    %851 = vmatpush1.msra.mxu0 0.0
    %852 = vmatprep.subr.mxu0 0.0
    %853 = vmatpush1.msra.mxu0 0.0
    %854 = vmatprep.subr.mxu0 0.0
    %855 = vmatpush1.msra.mxu0 0.0
    %856 = vmatprep.subr.mxu0 0.0
    %857 = vmatpush1.msra.mxu0 0.0
    %858 = vmatprep.subr.mxu0 0.0
    %859 = vmatpush1.msra.mxu0 0.0
    %860 = vmatprep.subr.mxu0 0.0
    %861 = vmatpush1.msra.mxu0 0.0
    %862 = vmatprep.subr.mxu0 0.0
    %863 = vmatpush1.msra.mxu0 0.0
    %864 = vmatprep.subr.mxu0 0.0
    %865 = vmatpush1.msra.mxu0 0.0
    %866 = vmatprep.subr.mxu0 0.0
    %867 = vmatpush1.msra.mxu0 0.0
    %868 = vmatprep.subr.mxu0 0.0
    %869 = vmatpush1.msra.mxu0 0.0
    %870 = vmatprep.subr.mxu0 0.0
    %871 = vmatpush1.msra.mxu0 0.0
    %872 = vmatprep.subr.mxu0 0.0
    %873 = vmatpush1.msra.mxu0 0.0
    %874 = vmatprep.subr.mxu0 0.0
    %875 = vmatpush1.msra.mxu0 0.0
    %876 = vmatprep.subr.mxu0 0.0
    %877 = vmatpush1.msra.mxu0 0.0
    %878 = vmatprep.subr.mxu0 0.0
    %879 = vmatpush1.msra.mxu0 0.0
    %880 = vmatprep.subr.mxu0 0.0
    %881 = vmatpush1.msra.mxu0 0.0
    %882 = vmatprep.subr.mxu0 0.0
    %883 = vmatpush1.msra.mxu0 0.0
    %884 = vmatprep.subr.mxu0 0.0
    %885 = vmatpush1.msra.mxu0 0.0
    %886 = vmatprep.subr.mxu0 0.0
    %887 = vmatpush1.msra.mxu0 0.0
    %888 = vmatprep.subr.mxu0 0.0
    %889 = vmatpush1.msra.mxu0 0.0
    %890 = vmatprep.subr.mxu0 0.0
    %891 = vmatpush1.msra.mxu0 0.0
    %892 = vmatprep.subr.mxu0 0.0
    %893 = vmatpush1.msra.mxu0 0.0
    %894 = vmatprep.subr.mxu0 0.0
    %895 = vmatpush1.msra.mxu0 0.0
    %896 = vmatprep.mubr.f32.mxu0 0.0
    %897 = vmatmul.mubr.f32.gmra.mrb[0].mxu0 %v646
    %v898 = vpop.f32.mrb[0].mxu0
    %v899 = vadd.f32 %v830, %v898
    %v900 = vpop.f32.mrb[0].mxu0
    %901 = vdwg.mxu0
    %v902 = vmul.f32 %v802, %v899
    %v903 = vadd.f32 %v825, %v902
    %v904 = vtanh.pop %v903
    %v905 = vsub.f32 %v644, %v904
    %v906 = vmul.f32 %v817, %v905
    %v907 = vadd.f32 %v904, %v906
    %908 = vst.msk [vmem:[#allocation3] sm:$0xff] %vm228, %v907
    %v910 = vsel %vm228, %v907, 0
    %912 = vmatprep.subr.mxu0 0.0
    %913 = vmatpush1.msra.mxu0 %v624
    %914 = vmatprep.subr.mxu0 0.0
    %915 = vmatpush1.msra.mxu0 %v625
    %916 = vmatprep.subr.mxu0 0.0
    %917 = vmatpush1.msra.mxu0 %v626
    %918 = vmatprep.subr.mxu0 0.0
    %919 = vmatpush1.msra.mxu0 %v627
    %920 = vmatprep.subr.mxu0 0.0
    %921 = vmatpush1.msra.mxu0 0.0
    %922 = vmatprep.subr.mxu0 0.0
    %923 = vmatpush1.msra.mxu0 0.0
    %924 = vmatprep.subr.mxu0 0.0
    %925 = vmatpush1.msra.mxu0 0.0
    %926 = vmatprep.subr.mxu0 0.0
    %927 = vmatpush1.msra.mxu0 0.0
    %928 = vmatprep.subr.mxu0 0.0
    %929 = vmatpush1.msra.mxu0 0.0
    %930 = vmatprep.subr.mxu0 0.0
    %931 = vmatpush1.msra.mxu0 0.0
    %932 = vmatprep.subr.mxu0 0.0
    %933 = vmatpush1.msra.mxu0 0.0
    %934 = vmatprep.subr.mxu0 0.0
    %935 = vmatpush1.msra.mxu0 0.0
    %936 = vmatprep.subr.mxu0 0.0
    %937 = vmatpush1.msra.mxu0 0.0
    %938 = vmatprep.subr.mxu0 0.0
    %939 = vmatpush1.msra.mxu0 0.0
    %940 = vmatprep.subr.mxu0 0.0
    %941 = vmatpush1.msra.mxu0 0.0
    %942 = vmatprep.subr.mxu0 0.0
    %943 = vmatpush1.msra.mxu0 0.0
    %944 = vmatprep.subr.mxu0 0.0
    %945 = vmatpush1.msra.mxu0 0.0
    %946 = vmatprep.subr.mxu0 0.0
    %947 = vmatpush1.msra.mxu0 0.0
    %948 = vmatprep.subr.mxu0 0.0
    %949 = vmatpush1.msra.mxu0 0.0
    %950 = vmatprep.subr.mxu0 0.0
    %951 = vmatpush1.msra.mxu0 0.0
    %952 = vmatprep.subr.mxu0 0.0
    %953 = vmatpush1.msra.mxu0 0.0
    %954 = vmatprep.subr.mxu0 0.0
    %955 = vmatpush1.msra.mxu0 0.0
    %956 = vmatprep.subr.mxu0 0.0
    %957 = vmatpush1.msra.mxu0 0.0
    %958 = vmatprep.subr.mxu0 0.0
    %959 = vmatpush1.msra.mxu0 0.0
    %960 = vmatprep.subr.mxu0 0.0
    %961 = vmatpush1.msra.mxu0 0.0
    %962 = vmatprep.subr.mxu0 0.0
    %963 = vmatpush1.msra.mxu0 0.0
    %964 = vmatprep.subr.mxu0 0.0
    %965 = vmatpush1.msra.mxu0 0.0
    %966 = vmatprep.subr.mxu0 0.0
    %967 = vmatpush1.msra.mxu0 0.0
    %968 = vmatprep.subr.mxu0 0.0
    %969 = vmatpush1.msra.mxu0 0.0
    %970 = vmatprep.subr.mxu0 0.0
    %971 = vmatpush1.msra.mxu0 0.0
    %972 = vmatprep.subr.mxu0 0.0
    %973 = vmatpush1.msra.mxu0 0.0
    %974 = vmatprep.subr.mxu0 0.0
    %975 = vmatpush1.msra.mxu0 0.0
    %976 = vmatprep.mubr.f32.mxu0 0.0
    %977 = vmatmul.mubr.f32.gmra.mrb[0].mxu0 %v910
    %v978 = vpop.f32.mrb[0].mxu0
    %v979 = vadd.f32 0.0, %v978
    %v980 = vpop.f32.mrb[0].mxu0
    %981 = vdwg.mxu0
    %982 = vmatprep.subr.mxu0 0.0
    %983 = vmatpush1.msra.mxu0 %v629
    %984 = vmatprep.subr.mxu0 0.0
    %985 = vmatpush1.msra.mxu0 %v630
    %986 = vmatprep.subr.mxu0 0.0
    %987 = vmatpush1.msra.mxu0 %v631
    %988 = vmatprep.subr.mxu0 0.0
    %989 = vmatpush1.msra.mxu0 %v632
    %990 = vmatprep.subr.mxu0 0.0
    %991 = vmatpush1.msra.mxu0 0.0
    %992 = vmatprep.subr.mxu0 0.0
    %993 = vmatpush1.msra.mxu0 0.0
    %994 = vmatprep.subr.mxu0 0.0
    %995 = vmatpush1.msra.mxu0 0.0
    %996 = vmatprep.subr.mxu0 0.0
    %997 = vmatpush1.msra.mxu0 0.0
    %998 = vmatprep.subr.mxu0 0.0
    %999 = vmatpush1.msra.mxu0 0.0
    %1000 = vmatprep.subr.mxu0 0.0
    %1001 = vmatpush1.msra.mxu0 0.0
    %1002 = vmatprep.subr.mxu0 0.0
    %1003 = vmatpush1.msra.mxu0 0.0
    %1004 = vmatprep.subr.mxu0 0.0
    %1005 = vmatpush1.msra.mxu0 0.0
    %1006 = vmatprep.subr.mxu0 0.0
    %1007 = vmatpush1.msra.mxu0 0.0
    %1008 = vmatprep.subr.mxu0 0.0
    %1009 = vmatpush1.msra.mxu0 0.0
    %1010 = vmatprep.subr.mxu0 0.0
    %1011 = vmatpush1.msra.mxu0 0.0
    %1012 = vmatprep.subr.mxu0 0.0
    %1013 = vmatpush1.msra.mxu0 0.0
    %1014 = vmatprep.subr.mxu0 0.0
    %1015 = vmatpush1.msra.mxu0 0.0
    %1016 = vmatprep.subr.mxu0 0.0
    %1017 = vmatpush1.msra.mxu0 0.0
    %1018 = vmatprep.subr.mxu0 0.0
    %1019 = vmatpush1.msra.mxu0 0.0
    %1020 = vmatprep.subr.mxu0 0.0
    %1021 = vmatpush1.msra.mxu0 0.0
    %1022 = vmatprep.subr.mxu0 0.0
    %1023 = vmatpush1.msra.mxu0 0.0
    %1024 = vmatprep.subr.mxu0 0.0
    %1025 = vmatpush1.msra.mxu0 0.0
    %1026 = vmatprep.subr.mxu0 0.0
    %1027 = vmatpush1.msra.mxu0 0.0
    %1028 = vmatprep.subr.mxu0 0.0
    %1029 = vmatpush1.msra.mxu0 0.0
    %1030 = vmatprep.subr.mxu0 0.0
    %1031 = vmatpush1.msra.mxu0 0.0
    %1032 = vmatprep.subr.mxu0 0.0
    %1033 = vmatpush1.msra.mxu0 0.0
    %1034 = vmatprep.subr.mxu0 0.0
    %1035 = vmatpush1.msra.mxu0 0.0
    %1036 = vmatprep.subr.mxu0 0.0
    %1037 = vmatpush1.msra.mxu0 0.0
    %1038 = vmatprep.subr.mxu0 0.0
    %1039 = vmatpush1.msra.mxu0 0.0
    %1040 = vmatprep.subr.mxu0 0.0
    %1041 = vmatpush1.msra.mxu0 0.0
    %1042 = vmatprep.subr.mxu0 0.0
    %1043 = vmatpush1.msra.mxu0 0.0
    %1044 = vmatprep.subr.mxu0 0.0
    %1045 = vmatpush1.msra.mxu0 0.0
    %1046 = vmatprep.mubr.f32.mxu0 0.0
    %1047 = vmatmul.mubr.f32.gmra.mrb[0].mxu0 %v910
    %v1048 = vpop.f32.mrb[0].mxu0
    %v1049 = vadd.f32 0.0, %v1048
    %v1050 = vpop.f32.mrb[0].mxu0
    %1051 = vdwg.mxu0
    %v1052 = vld [vmem:[#allocation4 + $0x8] sm:$0xff]
    %v1053 = vadd.f32 %v1052, %v979
    %v1054 = vadd.f32 %v1053, %v794
    %v1055 = vxor.u32 %v1054, 2147483648
    %v1056 = vmul.f32 %v1055, 1.442695
    %v1057 = vpow.pop %v1056
    %v1058 = vadd.f32 %v1057, 1.0
    %v1059 = vrcp.pop %v1058
    %v1060 = vmul.f32 1.0, %v1059
    %v1061 = vld [vmem:[%s496 + $0x8] sm:$0xff]
    %v1062 = vadd.f32 %v1061, %v1049
    %v1063 = vadd.f32 %v1062, %v809
    %v1064 = vxor.u32 %v1063, 2147483648
    %v1065 = vmul.f32 %v1064, 1.442695
    %v1066 = vpow.pop %v1065
    %v1067 = vadd.f32 %v1066, 1.0
    %v1068 = vrcp.pop %v1067
    %v1069 = vmul.f32 1.0, %v1068
    %v1070 = vld [vmem:[%s615 + $0x8] sm:$0xff]
    %v1071 = vadd.f32 %v1070, %v823
    %1072 = vmatprep.subr.mxu0 0.0
    %1073 = vmatpush1.msra.mxu0 %v634
    %1074 = vmatprep.subr.mxu0 0.0
    %1075 = vmatpush1.msra.mxu0 %v635
    %1076 = vmatprep.subr.mxu0 0.0
    %1077 = vmatpush1.msra.mxu0 %v636
    %1078 = vmatprep.subr.mxu0 0.0
    %1079 = vmatpush1.msra.mxu0 %v637
    %1080 = vmatprep.subr.mxu0 0.0
    %1081 = vmatpush1.msra.mxu0 0.0
    %1082 = vmatprep.subr.mxu0 0.0
    %1083 = vmatpush1.msra.mxu0 0.0
    %1084 = vmatprep.subr.mxu0 0.0
    %1085 = vmatpush1.msra.mxu0 0.0
    %1086 = vmatprep.subr.mxu0 0.0
    %1087 = vmatpush1.msra.mxu0 0.0
    %1088 = vmatprep.subr.mxu0 0.0
    %1089 = vmatpush1.msra.mxu0 0.0
    %1090 = vmatprep.subr.mxu0 0.0
    %1091 = vmatpush1.msra.mxu0 0.0
    %1092 = vmatprep.subr.mxu0 0.0
    %1093 = vmatpush1.msra.mxu0 0.0
    %1094 = vmatprep.subr.mxu0 0.0
    %1095 = vmatpush1.msra.mxu0 0.0
    %1096 = vmatprep.subr.mxu0 0.0
    %1097 = vmatpush1.msra.mxu0 0.0
    %1098 = vmatprep.subr.mxu0 0.0
    %1099 = vmatpush1.msra.mxu0 0.0
    %1100 = vmatprep.subr.mxu0 0.0
    %1101 = vmatpush1.msra.mxu0 0.0
    %1102 = vmatprep.subr.mxu0 0.0
    %1103 = vmatpush1.msra.mxu0 0.0
    %1104 = vmatprep.subr.mxu0 0.0
    %1105 = vmatpush1.msra.mxu0 0.0
    %1106 = vmatprep.subr.mxu0 0.0
    %1107 = vmatpush1.msra.mxu0 0.0
    %1108 = vmatprep.subr.mxu0 0.0
    %1109 = vmatpush1.msra.mxu0 0.0
    %1110 = vmatprep.subr.mxu0 0.0
    %1111 = vmatpush1.msra.mxu0 0.0
    %1112 = vmatprep.subr.mxu0 0.0
    %1113 = vmatpush1.msra.mxu0 0.0
    %1114 = vmatprep.subr.mxu0 0.0
    %1115 = vmatpush1.msra.mxu0 0.0
    %1116 = vmatprep.subr.mxu0 0.0
    %1117 = vmatpush1.msra.mxu0 0.0
    %1118 = vmatprep.subr.mxu0 0.0
    %1119 = vmatpush1.msra.mxu0 0.0
    %1120 = vmatprep.subr.mxu0 0.0
    %1121 = vmatpush1.msra.mxu0 0.0
    %1122 = vmatprep.subr.mxu0 0.0
    %1123 = vmatpush1.msra.mxu0 0.0
    %1124 = vmatprep.subr.mxu0 0.0
    %1125 = vmatpush1.msra.mxu0 0.0
    %1126 = vmatprep.subr.mxu0 0.0
    %1127 = vmatpush1.msra.mxu0 0.0
    %1128 = vmatprep.subr.mxu0 0.0
    %1129 = vmatpush1.msra.mxu0 0.0
    %1130 = vmatprep.subr.mxu0 0.0
    %1131 = vmatpush1.msra.mxu0 0.0
    %1132 = vmatprep.subr.mxu0 0.0
    %1133 = vmatpush1.msra.mxu0 0.0
    %1134 = vmatprep.subr.mxu0 0.0
    %1135 = vmatpush1.msra.mxu0 0.0
    %1136 = vmatprep.mubr.f32.mxu0 0.0
    %1137 = vmatmul.mubr.f32.gmra.mrb[0].mxu0 %v910
    %v1138 = vpop.f32.mrb[0].mxu0
    %v1139 = vadd.f32 %v830, %v1138
    %v1140 = vpop.f32.mrb[0].mxu0
    %1141 = vdwg.mxu0
    %v1142 = vmul.f32 %v1060, %v1139
    %v1143 = vadd.f32 %v1071, %v1142
    %v1144 = vtanh.pop %v1143
    %v1145 = vsub.f32 %v907, %v1144
    %v1146 = vmul.f32 %v1069, %v1145
    %v1147 = vadd.f32 %v1144, %v1146
    %1148 = vst.msk [vmem:[#allocation3 + $0x8] sm:$0xff] %vm228, %v1147
    %v1150 = vsel %vm228, %v1147, 0
    %1152 = vmatprep.subr.mxu0 0.0
    %1153 = vmatpush1.msra.mxu0 %v624
    %1154 = vmatprep.subr.mxu0 0.0
    %1155 = vmatpush1.msra.mxu0 %v625
    %1156 = vmatprep.subr.mxu0 0.0
    %1157 = vmatpush1.msra.mxu0 %v626
    %1158 = vmatprep.subr.mxu0 0.0
    %1159 = vmatpush1.msra.mxu0 %v627
    %1160 = vmatprep.subr.mxu0 0.0
    %1161 = vmatpush1.msra.mxu0 0.0
    %1162 = vmatprep.subr.mxu0 0.0
    %1163 = vmatpush1.msra.mxu0 0.0
    %1164 = vmatprep.subr.mxu0 0.0
    %1165 = vmatpush1.msra.mxu0 0.0
    %1166 = vmatprep.subr.mxu0 0.0
    %1167 = vmatpush1.msra.mxu0 0.0
    %1168 = vmatprep.subr.mxu0 0.0
    %1169 = vmatpush1.msra.mxu0 0.0
    %1170 = vmatprep.subr.mxu0 0.0
    %1171 = vmatpush1.msra.mxu0 0.0
    %1172 = vmatprep.subr.mxu0 0.0
    %1173 = vmatpush1.msra.mxu0 0.0
    %1174 = vmatprep.subr.mxu0 0.0
    %1175 = vmatpush1.msra.mxu0 0.0
    %1176 = vmatprep.subr.mxu0 0.0
    %1177 = vmatpush1.msra.mxu0 0.0
    %1178 = vmatprep.subr.mxu0 0.0
    %1179 = vmatpush1.msra.mxu0 0.0
    %1180 = vmatprep.subr.mxu0 0.0
    %1181 = vmatpush1.msra.mxu0 0.0
    %1182 = vmatprep.subr.mxu0 0.0
    %1183 = vmatpush1.msra.mxu0 0.0
    %1184 = vmatprep.subr.mxu0 0.0
    %1185 = vmatpush1.msra.mxu0 0.0
    %1186 = vmatprep.subr.mxu0 0.0
    %1187 = vmatpush1.msra.mxu0 0.0
    %1188 = vmatprep.subr.mxu0 0.0
    %1189 = vmatpush1.msra.mxu0 0.0
    %1190 = vmatprep.subr.mxu0 0.0
    %1191 = vmatpush1.msra.mxu0 0.0
    %1192 = vmatprep.subr.mxu0 0.0
    %1193 = vmatpush1.msra.mxu0 0.0
    %1194 = vmatprep.subr.mxu0 0.0
    %1195 = vmatpush1.msra.mxu0 0.0
    %1196 = vmatprep.subr.mxu0 0.0
    %1197 = vmatpush1.msra.mxu0 0.0
    %1198 = vmatprep.subr.mxu0 0.0
    %1199 = vmatpush1.msra.mxu0 0.0
    %1200 = vmatprep.subr.mxu0 0.0
    %1201 = vmatpush1.msra.mxu0 0.0
    %1202 = vmatprep.subr.mxu0 0.0
    %1203 = vmatpush1.msra.mxu0 0.0
    %1204 = vmatprep.subr.mxu0 0.0
    %1205 = vmatpush1.msra.mxu0 0.0
    %1206 = vmatprep.subr.mxu0 0.0
    %1207 = vmatpush1.msra.mxu0 0.0
    %1208 = vmatprep.subr.mxu0 0.0
    %1209 = vmatpush1.msra.mxu0 0.0
    %1210 = vmatprep.subr.mxu0 0.0
    %1211 = vmatpush1.msra.mxu0 0.0
    %1212 = vmatprep.subr.mxu0 0.0
    %1213 = vmatpush1.msra.mxu0 0.0
    %1214 = vmatprep.subr.mxu0 0.0
    %1215 = vmatpush1.msra.mxu0 0.0
    %1216 = vmatprep.mubr.f32.mxu0 0.0
    %1217 = vmatmul.mubr.f32.gmra.mrb[0].mxu0 %v1150
    %v1218 = vpop.f32.mrb[0].mxu0
    %v1219 = vadd.f32 0.0, %v1218
    %v1220 = vpop.f32.mrb[0].mxu0
    %1221 = vdwg.mxu0
    %1222 = vmatprep.subr.mxu0 0.0
    %1223 = vmatpush1.msra.mxu0 %v629
    %1224 = vmatprep.subr.mxu0 0.0
    %1225 = vmatpush1.msra.mxu0 %v630
    %1226 = vmatprep.subr.mxu0 0.0
    %1227 = vmatpush1.msra.mxu0 %v631
    %1228 = vmatprep.subr.mxu0 0.0
    %1229 = vmatpush1.msra.mxu0 %v632
    %1230 = vmatprep.subr.mxu0 0.0
    %1231 = vmatpush1.msra.mxu0 0.0
    %1232 = vmatprep.subr.mxu0 0.0
    %1233 = vmatpush1.msra.mxu0 0.0
    %1234 = vmatprep.subr.mxu0 0.0
    %1235 = vmatpush1.msra.mxu0 0.0
    %1236 = vmatprep.subr.mxu0 0.0
    %1237 = vmatpush1.msra.mxu0 0.0
    %1238 = vmatprep.subr.mxu0 0.0
    %1239 = vmatpush1.msra.mxu0 0.0
    %1240 = vmatprep.subr.mxu0 0.0
    %1241 = vmatpush1.msra.mxu0 0.0
    %1242 = vmatprep.subr.mxu0 0.0
    %1243 = vmatpush1.msra.mxu0 0.0
    %1244 = vmatprep.subr.mxu0 0.0
    %1245 = vmatpush1.msra.mxu0 0.0
    %1246 = vmatprep.subr.mxu0 0.0
    %1247 = vmatpush1.msra.mxu0 0.0
    %1248 = vmatprep.subr.mxu0 0.0
    %1249 = vmatpush1.msra.mxu0 0.0
    %1250 = vmatprep.subr.mxu0 0.0
    %1251 = vmatpush1.msra.mxu0 0.0
    %1252 = vmatprep.subr.mxu0 0.0
    %1253 = vmatpush1.msra.mxu0 0.0
    %1254 = vmatprep.subr.mxu0 0.0
    %1255 = vmatpush1.msra.mxu0 0.0
    %1256 = vmatprep.subr.mxu0 0.0
    %1257 = vmatpush1.msra.mxu0 0.0
    %1258 = vmatprep.subr.mxu0 0.0
    %1259 = vmatpush1.msra.mxu0 0.0
    %1260 = vmatprep.subr.mxu0 0.0
    %1261 = vmatpush1.msra.mxu0 0.0
    %1262 = vmatprep.subr.mxu0 0.0
    %1263 = vmatpush1.msra.mxu0 0.0
    %1264 = vmatprep.subr.mxu0 0.0
    %1265 = vmatpush1.msra.mxu0 0.0
    %1266 = vmatprep.subr.mxu0 0.0
    %1267 = vmatpush1.msra.mxu0 0.0
    %1268 = vmatprep.subr.mxu0 0.0
    %1269 = vmatpush1.msra.mxu0 0.0
    %1270 = vmatprep.subr.mxu0 0.0
    %1271 = vmatpush1.msra.mxu0 0.0
    %1272 = vmatprep.subr.mxu0 0.0
    %1273 = vmatpush1.msra.mxu0 0.0
    %1274 = vmatprep.subr.mxu0 0.0
    %1275 = vmatpush1.msra.mxu0 0.0
    %1276 = vmatprep.subr.mxu0 0.0
    %1277 = vmatpush1.msra.mxu0 0.0
    %1278 = vmatprep.subr.mxu0 0.0
    %1279 = vmatpush1.msra.mxu0 0.0
    %1280 = vmatprep.subr.mxu0 0.0
    %1281 = vmatpush1.msra.mxu0 0.0
    %1282 = vmatprep.subr.mxu0 0.0
    %1283 = vmatpush1.msra.mxu0 0.0
    %1284 = vmatprep.subr.mxu0 0.0
    %1285 = vmatpush1.msra.mxu0 0.0
    %1286 = vmatprep.mubr.f32.mxu0 0.0
    %1287 = vmatmul.mubr.f32.gmra.mrb[0].mxu0 %v1150
    %v1288 = vpop.f32.mrb[0].mxu0
    %v1289 = vadd.f32 0.0, %v1288
    %v1290 = vpop.f32.mrb[0].mxu0
    %1291 = vdwg.mxu0
    %v1292 = vld [vmem:[#allocation4 + $0x10] sm:$0xff]
    %v1293 = vadd.f32 %v1292, %v1219
    %v1294 = vadd.f32 %v1293, %v794
    %v1295 = vxor.u32 %v1294, 2147483648
    %v1296 = vmul.f32 %v1295, 1.442695
    %v1297 = vpow.pop %v1296
    %v1298 = vadd.f32 %v1297, 1.0
    %v1299 = vrcp.pop %v1298
    %v1300 = vmul.f32 1.0, %v1299
    %v1301 = vld [vmem:[%s496 + $0x10] sm:$0xff]
    %v1302 = vadd.f32 %v1301, %v1289
    %v1303 = vadd.f32 %v1302, %v809
    %v1304 = vxor.u32 %v1303, 2147483648
    %v1305 = vmul.f32 %v1304, 1.442695
    %v1306 = vpow.pop %v1305
    %v1307 = vadd.f32 %v1306, 1.0
    %v1308 = vrcp.pop %v1307
    %v1309 = vmul.f32 1.0, %v1308
    %v1310 = vld [vmem:[%s615 + $0x10] sm:$0xff]
    %v1311 = vadd.f32 %v1310, %v823
    %1312 = vmatprep.subr.mxu0 0.0
    %1313 = vmatpush1.msra.mxu0 %v634
    %1314 = vmatprep.subr.mxu0 0.0
    %1315 = vmatpush1.msra.mxu0 %v635
    %1316 = vmatprep.subr.mxu0 0.0
    %1317 = vmatpush1.msra.mxu0 %v636
    %1318 = vmatprep.subr.mxu0 0.0
    %1319 = vmatpush1.msra.mxu0 %v637
    %1320 = vmatprep.subr.mxu0 0.0
    %1321 = vmatpush1.msra.mxu0 0.0
    %1322 = vmatprep.subr.mxu0 0.0
    %1323 = vmatpush1.msra.mxu0 0.0
    %1324 = vmatprep.subr.mxu0 0.0
    %1325 = vmatpush1.msra.mxu0 0.0
    %1326 = vmatprep.subr.mxu0 0.0
    %1327 = vmatpush1.msra.mxu0 0.0
    %1328 = vmatprep.subr.mxu0 0.0
    %1329 = vmatpush1.msra.mxu0 0.0
    %1330 = vmatprep.subr.mxu0 0.0
    %1331 = vmatpush1.msra.mxu0 0.0
    %1332 = vmatprep.subr.mxu0 0.0
    %1333 = vmatpush1.msra.mxu0 0.0
    %1334 = vmatprep.subr.mxu0 0.0
    %1335 = vmatpush1.msra.mxu0 0.0
    %1336 = vmatprep.subr.mxu0 0.0
    %1337 = vmatpush1.msra.mxu0 0.0
    %1338 = vmatprep.subr.mxu0 0.0
    %1339 = vmatpush1.msra.mxu0 0.0
    %1340 = vmatprep.subr.mxu0 0.0
    %1341 = vmatpush1.msra.mxu0 0.0
    %1342 = vmatprep.subr.mxu0 0.0
    %1343 = vmatpush1.msra.mxu0 0.0
    %1344 = vmatprep.subr.mxu0 0.0
    %1345 = vmatpush1.msra.mxu0 0.0
    %1346 = vmatprep.subr.mxu0 0.0
    %1347 = vmatpush1.msra.mxu0 0.0
    %1348 = vmatprep.subr.mxu0 0.0
    %1349 = vmatpush1.msra.mxu0 0.0
    %1350 = vmatprep.subr.mxu0 0.0
    %1351 = vmatpush1.msra.mxu0 0.0
    %1352 = vmatprep.subr.mxu0 0.0
    %1353 = vmatpush1.msra.mxu0 0.0
    %1354 = vmatprep.subr.mxu0 0.0
    %1355 = vmatpush1.msra.mxu0 0.0
    %1356 = vmatprep.subr.mxu0 0.0
    %1357 = vmatpush1.msra.mxu0 0.0
    %1358 = vmatprep.subr.mxu0 0.0
    %1359 = vmatpush1.msra.mxu0 0.0
    %1360 = vmatprep.subr.mxu0 0.0
    %1361 = vmatpush1.msra.mxu0 0.0
    %1362 = vmatprep.subr.mxu0 0.0
    %1363 = vmatpush1.msra.mxu0 0.0
    %1364 = vmatprep.subr.mxu0 0.0
    %1365 = vmatpush1.msra.mxu0 0.0
    %1366 = vmatprep.subr.mxu0 0.0
    %1367 = vmatpush1.msra.mxu0 0.0
    %1368 = vmatprep.subr.mxu0 0.0
    %1369 = vmatpush1.msra.mxu0 0.0
    %1370 = vmatprep.subr.mxu0 0.0
    %1371 = vmatpush1.msra.mxu0 0.0
    %1372 = vmatprep.subr.mxu0 0.0
    %1373 = vmatpush1.msra.mxu0 0.0
    %1374 = vmatprep.subr.mxu0 0.0
    %1375 = vmatpush1.msra.mxu0 0.0
    %1376 = vmatprep.mubr.f32.mxu0 0.0
    %1377 = vmatmul.mubr.f32.gmra.mrb[0].mxu0 %v1150
    %v1378 = vpop.f32.mrb[0].mxu0
    %v1379 = vadd.f32 %v830, %v1378
    %v1380 = vpop.f32.mrb[0].mxu0
    %1381 = vdwg.mxu0
    %v1382 = vmul.f32 %v1300, %v1379
    %v1383 = vadd.f32 %v1311, %v1382
    %v1384 = vtanh.pop %v1383
    %v1385 = vsub.f32 %v1147, %v1384
    %v1386 = vmul.f32 %v1309, %v1385
    %v1387 = vadd.f32 %v1384, %v1386
    %1388 = vst.msk [vmem:[#allocation3 + $0x10] sm:$0xff] %vm228, %v1387
    %v1390 = vsel %vm228, %v1387, 0
    %1392 = vmatprep.subr.mxu0 0.0
    %1393 = vmatpush1.msra.mxu0 %v624
    %1394 = vmatprep.subr.mxu0 0.0
    %1395 = vmatpush1.msra.mxu0 %v625
    %1396 = vmatprep.subr.mxu0 0.0
    %1397 = vmatpush1.msra.mxu0 %v626
    %1398 = vmatprep.subr.mxu0 0.0
    %1399 = vmatpush1.msra.mxu0 %v627
    %1400 = vmatprep.subr.mxu0 0.0
    %1401 = vmatpush1.msra.mxu0 0.0
    %1402 = vmatprep.subr.mxu0 0.0
    %1403 = vmatpush1.msra.mxu0 0.0
    %1404 = vmatprep.subr.mxu0 0.0
    %1405 = vmatpush1.msra.mxu0 0.0
    %1406 = vmatprep.subr.mxu0 0.0
    %1407 = vmatpush1.msra.mxu0 0.0
    %1408 = vmatprep.subr.mxu0 0.0
    %1409 = vmatpush1.msra.mxu0 0.0
    %1410 = vmatprep.subr.mxu0 0.0
    %1411 = vmatpush1.msra.mxu0 0.0
    %1412 = vmatprep.subr.mxu0 0.0
    %1413 = vmatpush1.msra.mxu0 0.0
    %1414 = vmatprep.subr.mxu0 0.0
    %1415 = vmatpush1.msra.mxu0 0.0
    %1416 = vmatprep.subr.mxu0 0.0
    %1417 = vmatpush1.msra.mxu0 0.0
    %1418 = vmatprep.subr.mxu0 0.0
    %1419 = vmatpush1.msra.mxu0 0.0
    %1420 = vmatprep.subr.mxu0 0.0
    %1421 = vmatpush1.msra.mxu0 0.0
    %1422 = vmatprep.subr.mxu0 0.0
    %1423 = vmatpush1.msra.mxu0 0.0
    %1424 = vmatprep.subr.mxu0 0.0
    %1425 = vmatpush1.msra.mxu0 0.0
    %1426 = vmatprep.subr.mxu0 0.0
    %1427 = vmatpush1.msra.mxu0 0.0
    %1428 = vmatprep.subr.mxu0 0.0
    %1429 = vmatpush1.msra.mxu0 0.0
    %1430 = vmatprep.subr.mxu0 0.0
    %1431 = vmatpush1.msra.mxu0 0.0
    %1432 = vmatprep.subr.mxu0 0.0
    %1433 = vmatpush1.msra.mxu0 0.0
    %1434 = vmatprep.subr.mxu0 0.0
    %1435 = vmatpush1.msra.mxu0 0.0
    %1436 = vmatprep.subr.mxu0 0.0
    %1437 = vmatpush1.msra.mxu0 0.0
    %1438 = vmatprep.subr.mxu0 0.0
    %1439 = vmatpush1.msra.mxu0 0.0
    %1440 = vmatprep.subr.mxu0 0.0
    %1441 = vmatpush1.msra.mxu0 0.0
    %1442 = vmatprep.subr.mxu0 0.0
    %1443 = vmatpush1.msra.mxu0 0.0
    %1444 = vmatprep.subr.mxu0 0.0
    %1445 = vmatpush1.msra.mxu0 0.0
    %1446 = vmatprep.subr.mxu0 0.0
    %1447 = vmatpush1.msra.mxu0 0.0
    %1448 = vmatprep.subr.mxu0 0.0
    %1449 = vmatpush1.msra.mxu0 0.0
    %1450 = vmatprep.subr.mxu0 0.0
    %1451 = vmatpush1.msra.mxu0 0.0
    %1452 = vmatprep.subr.mxu0 0.0
    %1453 = vmatpush1.msra.mxu0 0.0
    %1454 = vmatprep.subr.mxu0 0.0
    %1455 = vmatpush1.msra.mxu0 0.0
    %1456 = vmatprep.mubr.f32.mxu0 0.0
    %1457 = vmatmul.mubr.f32.gmra.mrb[0].mxu0 %v1390
    %v1458 = vpop.f32.mrb[0].mxu0
    %v1459 = vadd.f32 0.0, %v1458
    %v1460 = vpop.f32.mrb[0].mxu0
    %1461 = vdwg.mxu0
    %1462 = vmatprep.subr.mxu0 0.0
    %1463 = vmatpush1.msra.mxu0 %v629
    %1464 = vmatprep.subr.mxu0 0.0
    %1465 = vmatpush1.msra.mxu0 %v630
    %1466 = vmatprep.subr.mxu0 0.0
    %1467 = vmatpush1.msra.mxu0 %v631
    %1468 = vmatprep.subr.mxu0 0.0
    %1469 = vmatpush1.msra.mxu0 %v632
    %1470 = vmatprep.subr.mxu0 0.0
    %1471 = vmatpush1.msra.mxu0 0.0
    %1472 = vmatprep.subr.mxu0 0.0
    %1473 = vmatpush1.msra.mxu0 0.0
    %1474 = vmatprep.subr.mxu0 0.0
    %1475 = vmatpush1.msra.mxu0 0.0
    %1476 = vmatprep.subr.mxu0 0.0
    %1477 = vmatpush1.msra.mxu0 0.0
    %1478 = vmatprep.subr.mxu0 0.0
    %1479 = vmatpush1.msra.mxu0 0.0
    %1480 = vmatprep.subr.mxu0 0.0
    %1481 = vmatpush1.msra.mxu0 0.0
    %1482 = vmatprep.subr.mxu0 0.0
    %1483 = vmatpush1.msra.mxu0 0.0
    %1484 = vmatprep.subr.mxu0 0.0
    %1485 = vmatpush1.msra.mxu0 0.0
    %1486 = vmatprep.subr.mxu0 0.0
    %1487 = vmatpush1.msra.mxu0 0.0
    %1488 = vmatprep.subr.mxu0 0.0
    %1489 = vmatpush1.msra.mxu0 0.0
    %1490 = vmatprep.subr.mxu0 0.0
    %1491 = vmatpush1.msra.mxu0 0.0
    %1492 = vmatprep.subr.mxu0 0.0
    %1493 = vmatpush1.msra.mxu0 0.0
    %1494 = vmatprep.subr.mxu0 0.0
    %1495 = vmatpush1.msra.mxu0 0.0
    %1496 = vmatprep.subr.mxu0 0.0
    %1497 = vmatpush1.msra.mxu0 0.0
    %1498 = vmatprep.subr.mxu0 0.0
    %1499 = vmatpush1.msra.mxu0 0.0
    %1500 = vmatprep.subr.mxu0 0.0
    %1501 = vmatpush1.msra.mxu0 0.0
    %1502 = vmatprep.subr.mxu0 0.0
    %1503 = vmatpush1.msra.mxu0 0.0
    %1504 = vmatprep.subr.mxu0 0.0
    %1505 = vmatpush1.msra.mxu0 0.0
    %1506 = vmatprep.subr.mxu0 0.0
    %1507 = vmatpush1.msra.mxu0 0.0
    %1508 = vmatprep.subr.mxu0 0.0
    %1509 = vmatpush1.msra.mxu0 0.0
    %1510 = vmatprep.subr.mxu0 0.0
    %1511 = vmatpush1.msra.mxu0 0.0
    %1512 = vmatprep.subr.mxu0 0.0
    %1513 = vmatpush1.msra.mxu0 0.0
    %1514 = vmatprep.subr.mxu0 0.0
    %1515 = vmatpush1.msra.mxu0 0.0
    %1516 = vmatprep.subr.mxu0 0.0
    %1517 = vmatpush1.msra.mxu0 0.0
    %1518 = vmatprep.subr.mxu0 0.0
    %1519 = vmatpush1.msra.mxu0 0.0
    %1520 = vmatprep.subr.mxu0 0.0
    %1521 = vmatpush1.msra.mxu0 0.0
    %1522 = vmatprep.subr.mxu0 0.0
    %1523 = vmatpush1.msra.mxu0 0.0
    %1524 = vmatprep.subr.mxu0 0.0
    %1525 = vmatpush1.msra.mxu0 0.0
    %1526 = vmatprep.mubr.f32.mxu0 0.0
    %1527 = vmatmul.mubr.f32.gmra.mrb[0].mxu0 %v1390
    %v1528 = vpop.f32.mrb[0].mxu0
    %v1529 = vadd.f32 0.0, %v1528
    %v1530 = vpop.f32.mrb[0].mxu0
    %1531 = vdwg.mxu0
    %v1532 = vld [vmem:[#allocation4 + $0x18] sm:$0xff]
    %v1533 = vadd.f32 %v1532, %v1459
    %v1534 = vadd.f32 %v1533, %v794
    %v1535 = vxor.u32 %v1534, 2147483648
    %v1536 = vmul.f32 %v1535, 1.442695
    %v1537 = vpow.pop %v1536
    %v1538 = vadd.f32 %v1537, 1.0
    %v1539 = vrcp.pop %v1538
    %v1540 = vmul.f32 1.0, %v1539
    %v1541 = vld [vmem:[%s496 + $0x18] sm:$0xff]
    %v1542 = vadd.f32 %v1541, %v1529
    %v1543 = vadd.f32 %v1542, %v809
    %v1544 = vxor.u32 %v1543, 2147483648
    %v1545 = vmul.f32 %v1544, 1.442695
    %v1546 = vpow.pop %v1545
    %v1547 = vadd.f32 %v1546, 1.0
    %v1548 = vrcp.pop %v1547
    %v1549 = vmul.f32 1.0, %v1548
    %v1550 = vld [vmem:[%s615 + $0x18] sm:$0xff]
    %v1551 = vadd.f32 %v1550, %v823
    %1552 = vmatprep.subr.mxu0 0.0
    %1553 = vmatpush1.msra.mxu0 %v634
    %1554 = vmatprep.subr.mxu0 0.0
    %1555 = vmatpush1.msra.mxu0 %v635
    %1556 = vmatprep.subr.mxu0 0.0
    %1557 = vmatpush1.msra.mxu0 %v636
    %1558 = vmatprep.subr.mxu0 0.0
    %1559 = vmatpush1.msra.mxu0 %v637
    %1560 = vmatprep.subr.mxu0 0.0
    %1561 = vmatpush1.msra.mxu0 0.0
    %1562 = vmatprep.subr.mxu0 0.0
    %1563 = vmatpush1.msra.mxu0 0.0
    %1564 = vmatprep.subr.mxu0 0.0
    %1565 = vmatpush1.msra.mxu0 0.0
    %1566 = vmatprep.subr.mxu0 0.0
    %1567 = vmatpush1.msra.mxu0 0.0
    %1568 = vmatprep.subr.mxu0 0.0
    %1569 = vmatpush1.msra.mxu0 0.0
    %1570 = vmatprep.subr.mxu0 0.0
    %1571 = vmatpush1.msra.mxu0 0.0
    %1572 = vmatprep.subr.mxu0 0.0
    %1573 = vmatpush1.msra.mxu0 0.0
    %1574 = vmatprep.subr.mxu0 0.0
    %1575 = vmatpush1.msra.mxu0 0.0
    %1576 = vmatprep.subr.mxu0 0.0
    %1577 = vmatpush1.msra.mxu0 0.0
    %1578 = vmatprep.subr.mxu0 0.0
    %1579 = vmatpush1.msra.mxu0 0.0
    %1580 = vmatprep.subr.mxu0 0.0
    %1581 = vmatpush1.msra.mxu0 0.0
    %1582 = vmatprep.subr.mxu0 0.0
    %1583 = vmatpush1.msra.mxu0 0.0
    %1584 = vmatprep.subr.mxu0 0.0
    %1585 = vmatpush1.msra.mxu0 0.0
    %1586 = vmatprep.subr.mxu0 0.0
    %1587 = vmatpush1.msra.mxu0 0.0
    %1588 = vmatprep.subr.mxu0 0.0
    %1589 = vmatpush1.msra.mxu0 0.0
    %1590 = vmatprep.subr.mxu0 0.0
    %1591 = vmatpush1.msra.mxu0 0.0
    %1592 = vmatprep.subr.mxu0 0.0
    %1593 = vmatpush1.msra.mxu0 0.0
    %1594 = vmatprep.subr.mxu0 0.0
    %1595 = vmatpush1.msra.mxu0 0.0
    %1596 = vmatprep.subr.mxu0 0.0
    %1597 = vmatpush1.msra.mxu0 0.0
    %1598 = vmatprep.subr.mxu0 0.0
    %1599 = vmatpush1.msra.mxu0 0.0
    %1600 = vmatprep.subr.mxu0 0.0
    %1601 = vmatpush1.msra.mxu0 0.0
    %1602 = vmatprep.subr.mxu0 0.0
    %1603 = vmatpush1.msra.mxu0 0.0
    %1604 = vmatprep.subr.mxu0 0.0
    %1605 = vmatpush1.msra.mxu0 0.0
    %1606 = vmatprep.subr.mxu0 0.0
    %1607 = vmatpush1.msra.mxu0 0.0
    %1608 = vmatprep.subr.mxu0 0.0
    %1609 = vmatpush1.msra.mxu0 0.0
    %1610 = vmatprep.subr.mxu0 0.0
    %1611 = vmatpush1.msra.mxu0 0.0
    %1612 = vmatprep.subr.mxu0 0.0
    %1613 = vmatpush1.msra.mxu0 0.0
    %1614 = vmatprep.subr.mxu0 0.0
    %1615 = vmatpush1.msra.mxu0 0.0
    %1616 = vmatprep.mubr.f32.mxu0 0.0
    %1617 = vmatmul.mubr.f32.gmra.mrb[0].mxu0 %v1390
    %v1618 = vpop.f32.mrb[0].mxu0
    %v1619 = vadd.f32 %v830, %v1618
    %v1620 = vpop.f32.mrb[0].mxu0
    %1621 = vdwg.mxu0
    %v1622 = vmul.f32 %v1540, %v1619
    %v1623 = vadd.f32 %v1551, %v1622
    %v1624 = vtanh.pop %v1623
    %v1625 = vsub.f32 %v1387, %v1624
    %v1626 = vmul.f32 %v1549, %v1625
    %v1627 = vadd.f32 %v1624, %v1626
    %1628 = vst.msk [vmem:[#allocation3 + $0x18] sm:$0xff] %vm228, %v1627
    %v1630 = vsel %vm228, %v1627, 0
    %1632 = vmatprep.subr.mxu0 0.0
    %1633 = vmatpush1.msra.mxu0 %v624
    %1634 = vmatprep.subr.mxu0 0.0
    %1635 = vmatpush1.msra.mxu0 %v625
    %1636 = vmatprep.subr.mxu0 0.0
    %1637 = vmatpush1.msra.mxu0 %v626
    %1638 = vmatprep.subr.mxu0 0.0
    %1639 = vmatpush1.msra.mxu0 %v627
    %1640 = vmatprep.subr.mxu0 0.0
    %1641 = vmatpush1.msra.mxu0 0.0
    %1642 = vmatprep.subr.mxu0 0.0
    %1643 = vmatpush1.msra.mxu0 0.0
    %1644 = vmatprep.subr.mxu0 0.0
    %1645 = vmatpush1.msra.mxu0 0.0
    %1646 = vmatprep.subr.mxu0 0.0
    %1647 = vmatpush1.msra.mxu0 0.0
    %1648 = vmatprep.subr.mxu0 0.0
    %1649 = vmatpush1.msra.mxu0 0.0
    %1650 = vmatprep.subr.mxu0 0.0
    %1651 = vmatpush1.msra.mxu0 0.0
    %1652 = vmatprep.subr.mxu0 0.0
    %1653 = vmatpush1.msra.mxu0 0.0
    %1654 = vmatprep.subr.mxu0 0.0
    %1655 = vmatpush1.msra.mxu0 0.0
    %1656 = vmatprep.subr.mxu0 0.0
    %1657 = vmatpush1.msra.mxu0 0.0
    %1658 = vmatprep.subr.mxu0 0.0
    %1659 = vmatpush1.msra.mxu0 0.0
    %1660 = vmatprep.subr.mxu0 0.0
    %1661 = vmatpush1.msra.mxu0 0.0
    %1662 = vmatprep.subr.mxu0 0.0
    %1663 = vmatpush1.msra.mxu0 0.0
    %1664 = vmatprep.subr.mxu0 0.0
    %1665 = vmatpush1.msra.mxu0 0.0
    %1666 = vmatprep.subr.mxu0 0.0
    %1667 = vmatpush1.msra.mxu0 0.0
    %1668 = vmatprep.subr.mxu0 0.0
    %1669 = vmatpush1.msra.mxu0 0.0
    %1670 = vmatprep.subr.mxu0 0.0
    %1671 = vmatpush1.msra.mxu0 0.0
    %1672 = vmatprep.subr.mxu0 0.0
    %1673 = vmatpush1.msra.mxu0 0.0
    %1674 = vmatprep.subr.mxu0 0.0
    %1675 = vmatpush1.msra.mxu0 0.0
    %1676 = vmatprep.subr.mxu0 0.0
    %1677 = vmatpush1.msra.mxu0 0.0
    %1678 = vmatprep.subr.mxu0 0.0
    %1679 = vmatpush1.msra.mxu0 0.0
    %1680 = vmatprep.subr.mxu0 0.0
    %1681 = vmatpush1.msra.mxu0 0.0
    %1682 = vmatprep.subr.mxu0 0.0
    %1683 = vmatpush1.msra.mxu0 0.0
    %1684 = vmatprep.subr.mxu0 0.0
    %1685 = vmatpush1.msra.mxu0 0.0
    %1686 = vmatprep.subr.mxu0 0.0
    %1687 = vmatpush1.msra.mxu0 0.0
    %1688 = vmatprep.subr.mxu0 0.0
    %1689 = vmatpush1.msra.mxu0 0.0
    %1690 = vmatprep.subr.mxu0 0.0
    %1691 = vmatpush1.msra.mxu0 0.0
    %1692 = vmatprep.subr.mxu0 0.0
    %1693 = vmatpush1.msra.mxu0 0.0
    %1694 = vmatprep.subr.mxu0 0.0
    %1695 = vmatpush1.msra.mxu0 0.0
    %1696 = vmatprep.mubr.f32.mxu0 0.0
    %1697 = vmatmul.mubr.f32.gmra.mrb[0].mxu0 %v1630
    %v1698 = vpop.f32.mrb[0].mxu0
    %v1699 = vadd.f32 0.0, %v1698
    %v1700 = vpop.f32.mrb[0].mxu0
    %1701 = vdwg.mxu0
    %1702 = vmatprep.subr.mxu0 0.0
    %1703 = vmatpush1.msra.mxu0 %v629
    %1704 = vmatprep.subr.mxu0 0.0
    %1705 = vmatpush1.msra.mxu0 %v630
    %1706 = vmatprep.subr.mxu0 0.0
    %1707 = vmatpush1.msra.mxu0 %v631
    %1708 = vmatprep.subr.mxu0 0.0
    %1709 = vmatpush1.msra.mxu0 %v632
    %1710 = vmatprep.subr.mxu0 0.0
    %1711 = vmatpush1.msra.mxu0 0.0
    %1712 = vmatprep.subr.mxu0 0.0
    %1713 = vmatpush1.msra.mxu0 0.0
    %1714 = vmatprep.subr.mxu0 0.0
    %1715 = vmatpush1.msra.mxu0 0.0
    %1716 = vmatprep.subr.mxu0 0.0
    %1717 = vmatpush1.msra.mxu0 0.0
    %1718 = vmatprep.subr.mxu0 0.0
    %1719 = vmatpush1.msra.mxu0 0.0
    %1720 = vmatprep.subr.mxu0 0.0
    %1721 = vmatpush1.msra.mxu0 0.0
    %1722 = vmatprep.subr.mxu0 0.0
    %1723 = vmatpush1.msra.mxu0 0.0
    %1724 = vmatprep.subr.mxu0 0.0
    %1725 = vmatpush1.msra.mxu0 0.0
    %1726 = vmatprep.subr.mxu0 0.0
    %1727 = vmatpush1.msra.mxu0 0.0
    %1728 = vmatprep.subr.mxu0 0.0
    %1729 = vmatpush1.msra.mxu0 0.0
    %1730 = vmatprep.subr.mxu0 0.0
    %1731 = vmatpush1.msra.mxu0 0.0
    %1732 = vmatprep.subr.mxu0 0.0
    %1733 = vmatpush1.msra.mxu0 0.0
    %1734 = vmatprep.subr.mxu0 0.0
    %1735 = vmatpush1.msra.mxu0 0.0
    %1736 = vmatprep.subr.mxu0 0.0
    %1737 = vmatpush1.msra.mxu0 0.0
    %1738 = vmatprep.subr.mxu0 0.0
    %1739 = vmatpush1.msra.mxu0 0.0
    %1740 = vmatprep.subr.mxu0 0.0
    %1741 = vmatpush1.msra.mxu0 0.0
    %1742 = vmatprep.subr.mxu0 0.0
    %1743 = vmatpush1.msra.mxu0 0.0
    %1744 = vmatprep.subr.mxu0 0.0
    %1745 = vmatpush1.msra.mxu0 0.0
    %1746 = vmatprep.subr.mxu0 0.0
    %1747 = vmatpush1.msra.mxu0 0.0
    %1748 = vmatprep.subr.mxu0 0.0
    %1749 = vmatpush1.msra.mxu0 0.0
    %1750 = vmatprep.subr.mxu0 0.0
    %1751 = vmatpush1.msra.mxu0 0.0
    %1752 = vmatprep.subr.mxu0 0.0
    %1753 = vmatpush1.msra.mxu0 0.0
    %1754 = vmatprep.subr.mxu0 0.0
    %1755 = vmatpush1.msra.mxu0 0.0
    %1756 = vmatprep.subr.mxu0 0.0
    %1757 = vmatpush1.msra.mxu0 0.0
    %1758 = vmatprep.subr.mxu0 0.0
    %1759 = vmatpush1.msra.mxu0 0.0
    %1760 = vmatprep.subr.mxu0 0.0
    %1761 = vmatpush1.msra.mxu0 0.0
    %1762 = vmatprep.subr.mxu0 0.0
    %1763 = vmatpush1.msra.mxu0 0.0
    %1764 = vmatprep.subr.mxu0 0.0
    %1765 = vmatpush1.msra.mxu0 0.0
    %1766 = vmatprep.mubr.f32.mxu0 0.0
    %1767 = vmatmul.mubr.f32.gmra.mrb[0].mxu0 %v1630
    %v1768 = vpop.f32.mrb[0].mxu0
    %v1769 = vadd.f32 0.0, %v1768
    %v1770 = vpop.f32.mrb[0].mxu0
    %1771 = vdwg.mxu0
    %v1772 = vld [vmem:[#allocation4 + $0x20] sm:$0xff]
    %v1773 = vadd.f32 %v1772, %v1699
    %v1774 = vadd.f32 %v1773, %v794
    %v1775 = vxor.u32 %v1774, 2147483648
    %v1776 = vmul.f32 %v1775, 1.442695
    %v1777 = vpow.pop %v1776
    %v1778 = vadd.f32 %v1777, 1.0
    %v1779 = vrcp.pop %v1778
    %v1780 = vmul.f32 1.0, %v1779
    %v1781 = vld [vmem:[%s496 + $0x20] sm:$0xff]
    %v1782 = vadd.f32 %v1781, %v1769
    %v1783 = vadd.f32 %v1782, %v809
    %v1784 = vxor.u32 %v1783, 2147483648
    %v1785 = vmul.f32 %v1784, 1.442695
    %v1786 = vpow.pop %v1785
    %v1787 = vadd.f32 %v1786, 1.0
    %v1788 = vrcp.pop %v1787
    %v1789 = vmul.f32 1.0, %v1788
    %v1790 = vld [vmem:[%s615 + $0x20] sm:$0xff]
    %v1791 = vadd.f32 %v1790, %v823
    %1792 = vmatprep.subr.mxu0 0.0
    %1793 = vmatpush1.msra.mxu0 %v634
    %1794 = vmatprep.subr.mxu0 0.0
    %1795 = vmatpush1.msra.mxu0 %v635
    %1796 = vmatprep.subr.mxu0 0.0
    %1797 = vmatpush1.msra.mxu0 %v636
    %1798 = vmatprep.subr.mxu0 0.0
    %1799 = vmatpush1.msra.mxu0 %v637
    %1800 = vmatprep.subr.mxu0 0.0
    %1801 = vmatpush1.msra.mxu0 0.0
    %1802 = vmatprep.subr.mxu0 0.0
    %1803 = vmatpush1.msra.mxu0 0.0
    %1804 = vmatprep.subr.mxu0 0.0
    %1805 = vmatpush1.msra.mxu0 0.0
    %1806 = vmatprep.subr.mxu0 0.0
    %1807 = vmatpush1.msra.mxu0 0.0
    %1808 = vmatprep.subr.mxu0 0.0
    %1809 = vmatpush1.msra.mxu0 0.0
    %1810 = vmatprep.subr.mxu0 0.0
    %1811 = vmatpush1.msra.mxu0 0.0
    %1812 = vmatprep.subr.mxu0 0.0
    %1813 = vmatpush1.msra.mxu0 0.0
    %1814 = vmatprep.subr.mxu0 0.0
    %1815 = vmatpush1.msra.mxu0 0.0
    %1816 = vmatprep.subr.mxu0 0.0
    %1817 = vmatpush1.msra.mxu0 0.0
    %1818 = vmatprep.subr.mxu0 0.0
    %1819 = vmatpush1.msra.mxu0 0.0
    %1820 = vmatprep.subr.mxu0 0.0
    %1821 = vmatpush1.msra.mxu0 0.0
    %1822 = vmatprep.subr.mxu0 0.0
    %1823 = vmatpush1.msra.mxu0 0.0
    %1824 = vmatprep.subr.mxu0 0.0
    %1825 = vmatpush1.msra.mxu0 0.0
    %1826 = vmatprep.subr.mxu0 0.0
    %1827 = vmatpush1.msra.mxu0 0.0
    %1828 = vmatprep.subr.mxu0 0.0
    %1829 = vmatpush1.msra.mxu0 0.0
    %1830 = vmatprep.subr.mxu0 0.0
    %1831 = vmatpush1.msra.mxu0 0.0
    %1832 = vmatprep.subr.mxu0 0.0
    %1833 = vmatpush1.msra.mxu0 0.0
    %1834 = vmatprep.subr.mxu0 0.0
    %1835 = vmatpush1.msra.mxu0 0.0
    %1836 = vmatprep.subr.mxu0 0.0
    %1837 = vmatpush1.msra.mxu0 0.0
    %1838 = vmatprep.subr.mxu0 0.0
    %1839 = vmatpush1.msra.mxu0 0.0
    %1840 = vmatprep.subr.mxu0 0.0
    %1841 = vmatpush1.msra.mxu0 0.0
    %1842 = vmatprep.subr.mxu0 0.0
    %1843 = vmatpush1.msra.mxu0 0.0
    %1844 = vmatprep.subr.mxu0 0.0
    %1845 = vmatpush1.msra.mxu0 0.0
    %1846 = vmatprep.subr.mxu0 0.0
    %1847 = vmatpush1.msra.mxu0 0.0
    %1848 = vmatprep.subr.mxu0 0.0
    %1849 = vmatpush1.msra.mxu0 0.0
    %1850 = vmatprep.subr.mxu0 0.0
    %1851 = vmatpush1.msra.mxu0 0.0
    %1852 = vmatprep.subr.mxu0 0.0
    %1853 = vmatpush1.msra.mxu0 0.0
    %1854 = vmatprep.subr.mxu0 0.0
    %1855 = vmatpush1.msra.mxu0 0.0
    %1856 = vmatprep.mubr.f32.mxu0 0.0
    %1857 = vmatmul.mubr.f32.gmra.mrb[0].mxu0 %v1630
    %v1858 = vpop.f32.mrb[0].mxu0
    %v1859 = vadd.f32 %v830, %v1858
    %v1860 = vpop.f32.mrb[0].mxu0
    %1861 = vdwg.mxu0
    %v1862 = vmul.f32 %v1780, %v1859
    %v1863 = vadd.f32 %v1791, %v1862
    %v1864 = vtanh.pop %v1863
    %v1865 = vsub.f32 %v1627, %v1864
    %v1866 = vmul.f32 %v1789, %v1865
    %v1867 = vadd.f32 %v1864, %v1866
    %1868 = vst.msk [vmem:[#allocation3 + $0x20] sm:$0xff] %vm228, %v1867
    %v1870 = vsel %vm228, %v1867, 0
    %1872 = vmatprep.subr.mxu0 0.0
    %1873 = vmatpush1.msra.mxu0 %v624
    %1874 = vmatprep.subr.mxu0 0.0
    %1875 = vmatpush1.msra.mxu0 %v625
    %1876 = vmatprep.subr.mxu0 0.0
    %1877 = vmatpush1.msra.mxu0 %v626
    %1878 = vmatprep.subr.mxu0 0.0
    %1879 = vmatpush1.msra.mxu0 %v627
    %1880 = vmatprep.subr.mxu0 0.0
    %1881 = vmatpush1.msra.mxu0 0.0
    %1882 = vmatprep.subr.mxu0 0.0
    %1883 = vmatpush1.msra.mxu0 0.0
    %1884 = vmatprep.subr.mxu0 0.0
    %1885 = vmatpush1.msra.mxu0 0.0
    %1886 = vmatprep.subr.mxu0 0.0
    %1887 = vmatpush1.msra.mxu0 0.0
    %1888 = vmatprep.subr.mxu0 0.0
    %1889 = vmatpush1.msra.mxu0 0.0
    %1890 = vmatprep.subr.mxu0 0.0
    %1891 = vmatpush1.msra.mxu0 0.0
    %1892 = vmatprep.subr.mxu0 0.0
    %1893 = vmatpush1.msra.mxu0 0.0
    %1894 = vmatprep.subr.mxu0 0.0
    %1895 = vmatpush1.msra.mxu0 0.0
    %1896 = vmatprep.subr.mxu0 0.0
    %1897 = vmatpush1.msra.mxu0 0.0
    %1898 = vmatprep.subr.mxu0 0.0
    %1899 = vmatpush1.msra.mxu0 0.0
    %1900 = vmatprep.subr.mxu0 0.0
    %1901 = vmatpush1.msra.mxu0 0.0
    %1902 = vmatprep.subr.mxu0 0.0
    %1903 = vmatpush1.msra.mxu0 0.0
    %1904 = vmatprep.subr.mxu0 0.0
    %1905 = vmatpush1.msra.mxu0 0.0
    %1906 = vmatprep.subr.mxu0 0.0
    %1907 = vmatpush1.msra.mxu0 0.0
    %1908 = vmatprep.subr.mxu0 0.0
    %1909 = vmatpush1.msra.mxu0 0.0
    %1910 = vmatprep.subr.mxu0 0.0
    %1911 = vmatpush1.msra.mxu0 0.0
    %1912 = vmatprep.subr.mxu0 0.0
    %1913 = vmatpush1.msra.mxu0 0.0
    %1914 = vmatprep.subr.mxu0 0.0
    %1915 = vmatpush1.msra.mxu0 0.0
    %1916 = vmatprep.subr.mxu0 0.0
    %1917 = vmatpush1.msra.mxu0 0.0
    %1918 = vmatprep.subr.mxu0 0.0
    %1919 = vmatpush1.msra.mxu0 0.0
    %1920 = vmatprep.subr.mxu0 0.0
    %1921 = vmatpush1.msra.mxu0 0.0
    %1922 = vmatprep.subr.mxu0 0.0
    %1923 = vmatpush1.msra.mxu0 0.0
    %1924 = vmatprep.subr.mxu0 0.0
    %1925 = vmatpush1.msra.mxu0 0.0
    %1926 = vmatprep.subr.mxu0 0.0
    %1927 = vmatpush1.msra.mxu0 0.0
    %1928 = vmatprep.subr.mxu0 0.0
    %1929 = vmatpush1.msra.mxu0 0.0
    %1930 = vmatprep.subr.mxu0 0.0
    %1931 = vmatpush1.msra.mxu0 0.0
    %1932 = vmatprep.subr.mxu0 0.0
    %1933 = vmatpush1.msra.mxu0 0.0
    %1934 = vmatprep.subr.mxu0 0.0
    %1935 = vmatpush1.msra.mxu0 0.0
    %1936 = vmatprep.mubr.f32.mxu0 0.0
    %1937 = vmatmul.mubr.f32.gmra.mrb[0].mxu0 %v1870
    %v1938 = vpop.f32.mrb[0].mxu0
    %v1939 = vadd.f32 0.0, %v1938
    %v1940 = vpop.f32.mrb[0].mxu0
    %1941 = vdwg.mxu0
    %1942 = vmatprep.subr.mxu0 0.0
    %1943 = vmatpush1.msra.mxu0 %v629
    %1944 = vmatprep.subr.mxu0 0.0
    %1945 = vmatpush1.msra.mxu0 %v630
    %1946 = vmatprep.subr.mxu0 0.0
    %1947 = vmatpush1.msra.mxu0 %v631
    %1948 = vmatprep.subr.mxu0 0.0
    %1949 = vmatpush1.msra.mxu0 %v632
    %1950 = vmatprep.subr.mxu0 0.0
    %1951 = vmatpush1.msra.mxu0 0.0
    %1952 = vmatprep.subr.mxu0 0.0
    %1953 = vmatpush1.msra.mxu0 0.0
    %1954 = vmatprep.subr.mxu0 0.0
    %1955 = vmatpush1.msra.mxu0 0.0
    %1956 = vmatprep.subr.mxu0 0.0
    %1957 = vmatpush1.msra.mxu0 0.0
    %1958 = vmatprep.subr.mxu0 0.0
    %1959 = vmatpush1.msra.mxu0 0.0
    %1960 = vmatprep.subr.mxu0 0.0
    %1961 = vmatpush1.msra.mxu0 0.0
    %1962 = vmatprep.subr.mxu0 0.0
    %1963 = vmatpush1.msra.mxu0 0.0
    %1964 = vmatprep.subr.mxu0 0.0
    %1965 = vmatpush1.msra.mxu0 0.0
    %1966 = vmatprep.subr.mxu0 0.0
    %1967 = vmatpush1.msra.mxu0 0.0
    %1968 = vmatprep.subr.mxu0 0.0
    %1969 = vmatpush1.msra.mxu0 0.0
    %1970 = vmatprep.subr.mxu0 0.0
    %1971 = vmatpush1.msra.mxu0 0.0
    %1972 = vmatprep.subr.mxu0 0.0
    %1973 = vmatpush1.msra.mxu0 0.0
    %1974 = vmatprep.subr.mxu0 0.0
    %1975 = vmatpush1.msra.mxu0 0.0
    %1976 = vmatprep.subr.mxu0 0.0
    %1977 = vmatpush1.msra.mxu0 0.0
    %1978 = vmatprep.subr.mxu0 0.0
    %1979 = vmatpush1.msra.mxu0 0.0
    %1980 = vmatprep.subr.mxu0 0.0
    %1981 = vmatpush1.msra.mxu0 0.0
    %1982 = vmatprep.subr.mxu0 0.0
    %1983 = vmatpush1.msra.mxu0 0.0
    %1984 = vmatprep.subr.mxu0 0.0
    %1985 = vmatpush1.msra.mxu0 0.0
    %1986 = vmatprep.subr.mxu0 0.0
    %1987 = vmatpush1.msra.mxu0 0.0
    %1988 = vmatprep.subr.mxu0 0.0
    %1989 = vmatpush1.msra.mxu0 0.0
    %1990 = vmatprep.subr.mxu0 0.0
    %1991 = vmatpush1.msra.mxu0 0.0
    %1992 = vmatprep.subr.mxu0 0.0
    %1993 = vmatpush1.msra.mxu0 0.0
    %1994 = vmatprep.subr.mxu0 0.0
    %1995 = vmatpush1.msra.mxu0 0.0
    %1996 = vmatprep.subr.mxu0 0.0
    %1997 = vmatpush1.msra.mxu0 0.0
    %1998 = vmatprep.subr.mxu0 0.0
    %1999 = vmatpush1.msra.mxu0 0.0
    %2000 = vmatprep.subr.mxu0 0.0
    %2001 = vmatpush1.msra.mxu0 0.0
    %2002 = vmatprep.subr.mxu0 0.0
    %2003 = vmatpush1.msra.mxu0 0.0
    %2004 = vmatprep.subr.mxu0 0.0
    %2005 = vmatpush1.msra.mxu0 0.0
    %2006 = vmatprep.mubr.f32.mxu0 0.0
    %2007 = vmatmul.mubr.f32.gmra.mrb[0].mxu0 %v1870
    %v2008 = vpop.f32.mrb[0].mxu0
    %v2009 = vadd.f32 0.0, %v2008
    %v2010 = vpop.f32.mrb[0].mxu0
    %2011 = vdwg.mxu0
    %v2012 = vld [vmem:[#allocation4 + $0x28] sm:$0xff]
    %v2013 = vadd.f32 %v2012, %v1939
    %v2014 = vadd.f32 %v2013, %v794
    %v2015 = vxor.u32 %v2014, 2147483648
    %v2016 = vmul.f32 %v2015, 1.442695
    %v2017 = vpow.pop %v2016
    %v2018 = vadd.f32 %v2017, 1.0
    %v2019 = vrcp.pop %v2018
    %v2020 = vmul.f32 1.0, %v2019
    %v2021 = vld [vmem:[%s496 + $0x28] sm:$0xff]
    %v2022 = vadd.f32 %v2021, %v2009
    %v2023 = vadd.f32 %v2022, %v809
    %v2024 = vxor.u32 %v2023, 2147483648
    %v2025 = vmul.f32 %v2024, 1.442695
    %v2026 = vpow.pop %v2025
    %v2027 = vadd.f32 %v2026, 1.0
    %v2028 = vrcp.pop %v2027
    %v2029 = vmul.f32 1.0, %v2028
    %v2030 = vld [vmem:[%s615 + $0x28] sm:$0xff]
    %v2031 = vadd.f32 %v2030, %v823
    %2032 = vmatprep.subr.mxu0 0.0
    %2033 = vmatpush1.msra.mxu0 %v634
    %2034 = vmatprep.subr.mxu0 0.0
    %2035 = vmatpush1.msra.mxu0 %v635
    %2036 = vmatprep.subr.mxu0 0.0
    %2037 = vmatpush1.msra.mxu0 %v636
    %2038 = vmatprep.subr.mxu0 0.0
    %2039 = vmatpush1.msra.mxu0 %v637
    %2040 = vmatprep.subr.mxu0 0.0
    %2041 = vmatpush1.msra.mxu0 0.0
    %2042 = vmatprep.subr.mxu0 0.0
    %2043 = vmatpush1.msra.mxu0 0.0
    %2044 = vmatprep.subr.mxu0 0.0
    %2045 = vmatpush1.msra.mxu0 0.0
    %2046 = vmatprep.subr.mxu0 0.0
    %2047 = vmatpush1.msra.mxu0 0.0
    %2048 = vmatprep.subr.mxu0 0.0
    %2049 = vmatpush1.msra.mxu0 0.0
    %2050 = vmatprep.subr.mxu0 0.0
    %2051 = vmatpush1.msra.mxu0 0.0
    %2052 = vmatprep.subr.mxu0 0.0
    %2053 = vmatpush1.msra.mxu0 0.0
    %2054 = vmatprep.subr.mxu0 0.0
    %2055 = vmatpush1.msra.mxu0 0.0
    %2056 = vmatprep.subr.mxu0 0.0
    %2057 = vmatpush1.msra.mxu0 0.0
    %2058 = vmatprep.subr.mxu0 0.0
    %2059 = vmatpush1.msra.mxu0 0.0
    %2060 = vmatprep.subr.mxu0 0.0
    %2061 = vmatpush1.msra.mxu0 0.0
    %2062 = vmatprep.subr.mxu0 0.0
    %2063 = vmatpush1.msra.mxu0 0.0
    %2064 = vmatprep.subr.mxu0 0.0
    %2065 = vmatpush1.msra.mxu0 0.0
    %2066 = vmatprep.subr.mxu0 0.0
    %2067 = vmatpush1.msra.mxu0 0.0
    %2068 = vmatprep.subr.mxu0 0.0
    %2069 = vmatpush1.msra.mxu0 0.0
    %2070 = vmatprep.subr.mxu0 0.0
    %2071 = vmatpush1.msra.mxu0 0.0
    %2072 = vmatprep.subr.mxu0 0.0
    %2073 = vmatpush1.msra.mxu0 0.0
    %2074 = vmatprep.subr.mxu0 0.0
    %2075 = vmatpush1.msra.mxu0 0.0
    %2076 = vmatprep.subr.mxu0 0.0
    %2077 = vmatpush1.msra.mxu0 0.0
    %2078 = vmatprep.subr.mxu0 0.0
    %2079 = vmatpush1.msra.mxu0 0.0
    %2080 = vmatprep.subr.mxu0 0.0
    %2081 = vmatpush1.msra.mxu0 0.0
    %2082 = vmatprep.subr.mxu0 0.0
    %2083 = vmatpush1.msra.mxu0 0.0
    %2084 = vmatprep.subr.mxu0 0.0
    %2085 = vmatpush1.msra.mxu0 0.0
    %2086 = vmatprep.subr.mxu0 0.0
    %2087 = vmatpush1.msra.mxu0 0.0
    %2088 = vmatprep.subr.mxu0 0.0
    %2089 = vmatpush1.msra.mxu0 0.0
    %2090 = vmatprep.subr.mxu0 0.0
    %2091 = vmatpush1.msra.mxu0 0.0
    %2092 = vmatprep.subr.mxu0 0.0
    %2093 = vmatpush1.msra.mxu0 0.0
    %2094 = vmatprep.subr.mxu0 0.0
    %2095 = vmatpush1.msra.mxu0 0.0
    %2096 = vmatprep.mubr.f32.mxu0 0.0
    %2097 = vmatmul.mubr.f32.gmra.mrb[0].mxu0 %v1870
    %v2098 = vpop.f32.mrb[0].mxu0
    %v2099 = vadd.f32 %v830, %v2098
    %v2100 = vpop.f32.mrb[0].mxu0
    %2101 = vdwg.mxu0
    %v2102 = vmul.f32 %v2020, %v2099
    %v2103 = vadd.f32 %v2031, %v2102
    %v2104 = vtanh.pop %v2103
    %v2105 = vsub.f32 %v1867, %v2104
    %v2106 = vmul.f32 %v2029, %v2105
    %v2107 = vadd.f32 %v2104, %v2106
    %2108 = vst.msk [vmem:[#allocation3 + $0x28] sm:$0xff] %vm228, %v2107
    %v2110 = vsel %vm228, %v2107, 0
    %2112 = vmatprep.subr.mxu0 0.0
    %2113 = vmatpush1.msra.mxu0 %v624
    %2114 = vmatprep.subr.mxu0 0.0
    %2115 = vmatpush1.msra.mxu0 %v625
    %2116 = vmatprep.subr.mxu0 0.0
    %2117 = vmatpush1.msra.mxu0 %v626
    %2118 = vmatprep.subr.mxu0 0.0
    %2119 = vmatpush1.msra.mxu0 %v627
    %2120 = vmatprep.subr.mxu0 0.0
    %2121 = vmatpush1.msra.mxu0 0.0
    %2122 = vmatprep.subr.mxu0 0.0
    %2123 = vmatpush1.msra.mxu0 0.0
    %2124 = vmatprep.subr.mxu0 0.0
    %2125 = vmatpush1.msra.mxu0 0.0
    %2126 = vmatprep.subr.mxu0 0.0
    %2127 = vmatpush1.msra.mxu0 0.0
    %2128 = vmatprep.subr.mxu0 0.0
    %2129 = vmatpush1.msra.mxu0 0.0
    %2130 = vmatprep.subr.mxu0 0.0
    %2131 = vmatpush1.msra.mxu0 0.0
    %2132 = vmatprep.subr.mxu0 0.0
    %2133 = vmatpush1.msra.mxu0 0.0
    %2134 = vmatprep.subr.mxu0 0.0
    %2135 = vmatpush1.msra.mxu0 0.0
    %2136 = vmatprep.subr.mxu0 0.0
    %2137 = vmatpush1.msra.mxu0 0.0
    %2138 = vmatprep.subr.mxu0 0.0
    %2139 = vmatpush1.msra.mxu0 0.0
    %2140 = vmatprep.subr.mxu0 0.0
    %2141 = vmatpush1.msra.mxu0 0.0
    %2142 = vmatprep.subr.mxu0 0.0
    %2143 = vmatpush1.msra.mxu0 0.0
    %2144 = vmatprep.subr.mxu0 0.0
    %2145 = vmatpush1.msra.mxu0 0.0
    %2146 = vmatprep.subr.mxu0 0.0
    %2147 = vmatpush1.msra.mxu0 0.0
    %2148 = vmatprep.subr.mxu0 0.0
    %2149 = vmatpush1.msra.mxu0 0.0
    %2150 = vmatprep.subr.mxu0 0.0
    %2151 = vmatpush1.msra.mxu0 0.0
    %2152 = vmatprep.subr.mxu0 0.0
    %2153 = vmatpush1.msra.mxu0 0.0
    %2154 = vmatprep.subr.mxu0 0.0
    %2155 = vmatpush1.msra.mxu0 0.0
    %2156 = vmatprep.subr.mxu0 0.0
    %2157 = vmatpush1.msra.mxu0 0.0
    %2158 = vmatprep.subr.mxu0 0.0
    %2159 = vmatpush1.msra.mxu0 0.0
    %2160 = vmatprep.subr.mxu0 0.0
    %2161 = vmatpush1.msra.mxu0 0.0
    %2162 = vmatprep.subr.mxu0 0.0
    %2163 = vmatpush1.msra.mxu0 0.0
    %2164 = vmatprep.subr.mxu0 0.0
    %2165 = vmatpush1.msra.mxu0 0.0
    %2166 = vmatprep.subr.mxu0 0.0
    %2167 = vmatpush1.msra.mxu0 0.0
    %2168 = vmatprep.subr.mxu0 0.0
    %2169 = vmatpush1.msra.mxu0 0.0
    %2170 = vmatprep.subr.mxu0 0.0
    %2171 = vmatpush1.msra.mxu0 0.0
    %2172 = vmatprep.subr.mxu0 0.0
    %2173 = vmatpush1.msra.mxu0 0.0
    %2174 = vmatprep.subr.mxu0 0.0
    %2175 = vmatpush1.msra.mxu0 0.0
    %2176 = vmatprep.mubr.f32.mxu0 0.0
    %2177 = vmatmul.mubr.f32.gmra.mrb[0].mxu0 %v2110
    %v2178 = vpop.f32.mrb[0].mxu0
    %v2179 = vadd.f32 0.0, %v2178
    %v2180 = vpop.f32.mrb[0].mxu0
    %2181 = vdwg.mxu0
    %2182 = vmatprep.subr.mxu0 0.0
    %2183 = vmatpush1.msra.mxu0 %v629
    %2184 = vmatprep.subr.mxu0 0.0
    %2185 = vmatpush1.msra.mxu0 %v630
    %2186 = vmatprep.subr.mxu0 0.0
    %2187 = vmatpush1.msra.mxu0 %v631
    %2188 = vmatprep.subr.mxu0 0.0
    %2189 = vmatpush1.msra.mxu0 %v632
    %2190 = vmatprep.subr.mxu0 0.0
    %2191 = vmatpush1.msra.mxu0 0.0
    %2192 = vmatprep.subr.mxu0 0.0
    %2193 = vmatpush1.msra.mxu0 0.0
    %2194 = vmatprep.subr.mxu0 0.0
    %2195 = vmatpush1.msra.mxu0 0.0
    %2196 = vmatprep.subr.mxu0 0.0
    %2197 = vmatpush1.msra.mxu0 0.0
    %2198 = vmatprep.subr.mxu0 0.0
    %2199 = vmatpush1.msra.mxu0 0.0
    %2200 = vmatprep.subr.mxu0 0.0
    %2201 = vmatpush1.msra.mxu0 0.0
    %2202 = vmatprep.subr.mxu0 0.0
    %2203 = vmatpush1.msra.mxu0 0.0
    %2204 = vmatprep.subr.mxu0 0.0
    %2205 = vmatpush1.msra.mxu0 0.0
    %2206 = vmatprep.subr.mxu0 0.0
    %2207 = vmatpush1.msra.mxu0 0.0
    %2208 = vmatprep.subr.mxu0 0.0
    %2209 = vmatpush1.msra.mxu0 0.0
    %2210 = vmatprep.subr.mxu0 0.0
    %2211 = vmatpush1.msra.mxu0 0.0
    %2212 = vmatprep.subr.mxu0 0.0
    %2213 = vmatpush1.msra.mxu0 0.0
    %2214 = vmatprep.subr.mxu0 0.0
    %2215 = vmatpush1.msra.mxu0 0.0
    %2216 = vmatprep.subr.mxu0 0.0
    %2217 = vmatpush1.msra.mxu0 0.0
    %2218 = vmatprep.subr.mxu0 0.0
    %2219 = vmatpush1.msra.mxu0 0.0
    %2220 = vmatprep.subr.mxu0 0.0
    %2221 = vmatpush1.msra.mxu0 0.0
    %2222 = vmatprep.subr.mxu0 0.0
    %2223 = vmatpush1.msra.mxu0 0.0
    %2224 = vmatprep.subr.mxu0 0.0
    %2225 = vmatpush1.msra.mxu0 0.0
    %2226 = vmatprep.subr.mxu0 0.0
    %2227 = vmatpush1.msra.mxu0 0.0
    %2228 = vmatprep.subr.mxu0 0.0
    %2229 = vmatpush1.msra.mxu0 0.0
    %2230 = vmatprep.subr.mxu0 0.0
    %2231 = vmatpush1.msra.mxu0 0.0
    %2232 = vmatprep.subr.mxu0 0.0
    %2233 = vmatpush1.msra.mxu0 0.0
    %2234 = vmatprep.subr.mxu0 0.0
    %2235 = vmatpush1.msra.mxu0 0.0
    %2236 = vmatprep.subr.mxu0 0.0
    %2237 = vmatpush1.msra.mxu0 0.0
    %2238 = vmatprep.subr.mxu0 0.0
    %2239 = vmatpush1.msra.mxu0 0.0
    %2240 = vmatprep.subr.mxu0 0.0
    %2241 = vmatpush1.msra.mxu0 0.0
    %2242 = vmatprep.subr.mxu0 0.0
    %2243 = vmatpush1.msra.mxu0 0.0
    %2244 = vmatprep.subr.mxu0 0.0
    %2245 = vmatpush1.msra.mxu0 0.0
    %2246 = vmatprep.mubr.f32.mxu0 0.0
    %2247 = vmatmul.mubr.f32.gmra.mrb[0].mxu0 %v2110
    %v2248 = vpop.f32.mrb[0].mxu0
    %v2249 = vadd.f32 0.0, %v2248
    %v2250 = vpop.f32.mrb[0].mxu0
    %2251 = vdwg.mxu0
    %v2252 = vld [vmem:[#allocation4 + $0x30] sm:$0xff]
    %v2253 = vadd.f32 %v2252, %v2179
    %v2254 = vadd.f32 %v2253, %v794
    %v2255 = vxor.u32 %v2254, 2147483648
    %v2256 = vmul.f32 %v2255, 1.442695
    %v2257 = vpow.pop %v2256
    %v2258 = vadd.f32 %v2257, 1.0
    %v2259 = vrcp.pop %v2258
    %v2260 = vmul.f32 1.0, %v2259
    %v2261 = vld [vmem:[%s496 + $0x30] sm:$0xff]
    %v2262 = vadd.f32 %v2261, %v2249
    %v2263 = vadd.f32 %v2262, %v809
    %v2264 = vxor.u32 %v2263, 2147483648
    %v2265 = vmul.f32 %v2264, 1.442695
    %v2266 = vpow.pop %v2265
    %v2267 = vadd.f32 %v2266, 1.0
    %v2268 = vrcp.pop %v2267
    %v2269 = vmul.f32 1.0, %v2268
    %v2270 = vld [vmem:[%s615 + $0x30] sm:$0xff]
    %v2271 = vadd.f32 %v2270, %v823
    %2272 = vmatprep.subr.mxu0 0.0
    %2273 = vmatpush1.msra.mxu0 %v634
    %2274 = vmatprep.subr.mxu0 0.0
    %2275 = vmatpush1.msra.mxu0 %v635
    %2276 = vmatprep.subr.mxu0 0.0
    %2277 = vmatpush1.msra.mxu0 %v636
    %2278 = vmatprep.subr.mxu0 0.0
    %2279 = vmatpush1.msra.mxu0 %v637
    %2280 = vmatprep.subr.mxu0 0.0
    %2281 = vmatpush1.msra.mxu0 0.0
    %2282 = vmatprep.subr.mxu0 0.0
    %2283 = vmatpush1.msra.mxu0 0.0
    %2284 = vmatprep.subr.mxu0 0.0
    %2285 = vmatpush1.msra.mxu0 0.0
    %2286 = vmatprep.subr.mxu0 0.0
    %2287 = vmatpush1.msra.mxu0 0.0
    %2288 = vmatprep.subr.mxu0 0.0
    %2289 = vmatpush1.msra.mxu0 0.0
    %2290 = vmatprep.subr.mxu0 0.0
    %2291 = vmatpush1.msra.mxu0 0.0
    %2292 = vmatprep.subr.mxu0 0.0
    %2293 = vmatpush1.msra.mxu0 0.0
    %2294 = vmatprep.subr.mxu0 0.0
    %2295 = vmatpush1.msra.mxu0 0.0
    %2296 = vmatprep.subr.mxu0 0.0
    %2297 = vmatpush1.msra.mxu0 0.0
    %2298 = vmatprep.subr.mxu0 0.0
    %2299 = vmatpush1.msra.mxu0 0.0
    %2300 = vmatprep.subr.mxu0 0.0
    %2301 = vmatpush1.msra.mxu0 0.0
    %2302 = vmatprep.subr.mxu0 0.0
    %2303 = vmatpush1.msra.mxu0 0.0
    %2304 = vmatprep.subr.mxu0 0.0
    %2305 = vmatpush1.msra.mxu0 0.0
    %2306 = vmatprep.subr.mxu0 0.0
    %2307 = vmatpush1.msra.mxu0 0.0
    %2308 = vmatprep.subr.mxu0 0.0
    %2309 = vmatpush1.msra.mxu0 0.0
    %2310 = vmatprep.subr.mxu0 0.0
    %2311 = vmatpush1.msra.mxu0 0.0
    %2312 = vmatprep.subr.mxu0 0.0
    %2313 = vmatpush1.msra.mxu0 0.0
    %2314 = vmatprep.subr.mxu0 0.0
    %2315 = vmatpush1.msra.mxu0 0.0
    %2316 = vmatprep.subr.mxu0 0.0
    %2317 = vmatpush1.msra.mxu0 0.0
    %2318 = vmatprep.subr.mxu0 0.0
    %2319 = vmatpush1.msra.mxu0 0.0
    %2320 = vmatprep.subr.mxu0 0.0
    %2321 = vmatpush1.msra.mxu0 0.0
    %2322 = vmatprep.subr.mxu0 0.0
    %2323 = vmatpush1.msra.mxu0 0.0
    %2324 = vmatprep.subr.mxu0 0.0
    %2325 = vmatpush1.msra.mxu0 0.0
    %2326 = vmatprep.subr.mxu0 0.0
    %2327 = vmatpush1.msra.mxu0 0.0
    %2328 = vmatprep.subr.mxu0 0.0
    %2329 = vmatpush1.msra.mxu0 0.0
    %2330 = vmatprep.subr.mxu0 0.0
    %2331 = vmatpush1.msra.mxu0 0.0
    %2332 = vmatprep.subr.mxu0 0.0
    %2333 = vmatpush1.msra.mxu0 0.0
    %2334 = vmatprep.subr.mxu0 0.0
    %2335 = vmatpush1.msra.mxu0 0.0
    %2336 = vmatprep.mubr.f32.mxu0 0.0
    %2337 = vmatmul.mubr.f32.gmra.mrb[0].mxu0 %v2110
    %v2338 = vpop.f32.mrb[0].mxu0
    %v2339 = vadd.f32 %v830, %v2338
    %v2340 = vpop.f32.mrb[0].mxu0
    %2341 = vdwg.mxu0
    %v2342 = vmul.f32 %v2260, %v2339
    %v2343 = vadd.f32 %v2271, %v2342
    %v2344 = vtanh.pop %v2343
    %v2345 = vsub.f32 %v2107, %v2344
    %v2346 = vmul.f32 %v2269, %v2345
    %v2347 = vadd.f32 %v2344, %v2346
    %2348 = vst.msk [vmem:[#allocation3 + $0x30] sm:$0xff] %vm228, %v2347
    %v2350 = vsel %vm228, %v2347, 0
    %2352 = vmatprep.subr.mxu0 0.0
    %2353 = vmatpush1.msra.mxu0 %v624
    %2354 = vmatprep.subr.mxu0 0.0
    %2355 = vmatpush1.msra.mxu0 %v625
    %2356 = vmatprep.subr.mxu0 0.0
    %2357 = vmatpush1.msra.mxu0 %v626
    %2358 = vmatprep.subr.mxu0 0.0
    %2359 = vmatpush1.msra.mxu0 %v627
    %2360 = vmatprep.subr.mxu0 0.0
    %2361 = vmatpush1.msra.mxu0 0.0
    %2362 = vmatprep.subr.mxu0 0.0
    %2363 = vmatpush1.msra.mxu0 0.0
    %2364 = vmatprep.subr.mxu0 0.0
    %2365 = vmatpush1.msra.mxu0 0.0
    %2366 = vmatprep.subr.mxu0 0.0
    %2367 = vmatpush1.msra.mxu0 0.0
    %2368 = vmatprep.subr.mxu0 0.0
    %2369 = vmatpush1.msra.mxu0 0.0
    %2370 = vmatprep.subr.mxu0 0.0
    %2371 = vmatpush1.msra.mxu0 0.0
    %2372 = vmatprep.subr.mxu0 0.0
    %2373 = vmatpush1.msra.mxu0 0.0
    %2374 = vmatprep.subr.mxu0 0.0
    %2375 = vmatpush1.msra.mxu0 0.0
    %2376 = vmatprep.subr.mxu0 0.0
    %2377 = vmatpush1.msra.mxu0 0.0
    %2378 = vmatprep.subr.mxu0 0.0
    %2379 = vmatpush1.msra.mxu0 0.0
    %2380 = vmatprep.subr.mxu0 0.0
    %2381 = vmatpush1.msra.mxu0 0.0
    %2382 = vmatprep.subr.mxu0 0.0
    %2383 = vmatpush1.msra.mxu0 0.0
    %2384 = vmatprep.subr.mxu0 0.0
    %2385 = vmatpush1.msra.mxu0 0.0
    %2386 = vmatprep.subr.mxu0 0.0
    %2387 = vmatpush1.msra.mxu0 0.0
    %2388 = vmatprep.subr.mxu0 0.0
    %2389 = vmatpush1.msra.mxu0 0.0
    %2390 = vmatprep.subr.mxu0 0.0
    %2391 = vmatpush1.msra.mxu0 0.0
    %2392 = vmatprep.subr.mxu0 0.0
    %2393 = vmatpush1.msra.mxu0 0.0
    %2394 = vmatprep.subr.mxu0 0.0
    %2395 = vmatpush1.msra.mxu0 0.0
    %2396 = vmatprep.subr.mxu0 0.0
    %2397 = vmatpush1.msra.mxu0 0.0
    %2398 = vmatprep.subr.mxu0 0.0
    %2399 = vmatpush1.msra.mxu0 0.0
    %2400 = vmatprep.subr.mxu0 0.0
    %2401 = vmatpush1.msra.mxu0 0.0
    %2402 = vmatprep.subr.mxu0 0.0
    %2403 = vmatpush1.msra.mxu0 0.0
    %2404 = vmatprep.subr.mxu0 0.0
    %2405 = vmatpush1.msra.mxu0 0.0
    %2406 = vmatprep.subr.mxu0 0.0
    %2407 = vmatpush1.msra.mxu0 0.0
    %2408 = vmatprep.subr.mxu0 0.0
    %2409 = vmatpush1.msra.mxu0 0.0
    %2410 = vmatprep.subr.mxu0 0.0
    %2411 = vmatpush1.msra.mxu0 0.0
    %2412 = vmatprep.subr.mxu0 0.0
    %2413 = vmatpush1.msra.mxu0 0.0
    %2414 = vmatprep.subr.mxu0 0.0
    %2415 = vmatpush1.msra.mxu0 0.0
    %2416 = vmatprep.mubr.f32.mxu0 0.0
    %2417 = vmatmul.mubr.f32.gmra.mrb[0].mxu0 %v2350
    %v2418 = vpop.f32.mrb[0].mxu0
    %v2419 = vadd.f32 0.0, %v2418
    %v2420 = vpop.f32.mrb[0].mxu0
    %2421 = vdwg.mxu0
    %2422 = vmatprep.subr.mxu0 0.0
    %2423 = vmatpush1.msra.mxu0 %v629
    %2424 = vmatprep.subr.mxu0 0.0
    %2425 = vmatpush1.msra.mxu0 %v630
    %2426 = vmatprep.subr.mxu0 0.0
    %2427 = vmatpush1.msra.mxu0 %v631
    %2428 = vmatprep.subr.mxu0 0.0
    %2429 = vmatpush1.msra.mxu0 %v632
    %2430 = vmatprep.subr.mxu0 0.0
    %2431 = vmatpush1.msra.mxu0 0.0
    %2432 = vmatprep.subr.mxu0 0.0
    %2433 = vmatpush1.msra.mxu0 0.0
    %2434 = vmatprep.subr.mxu0 0.0
    %2435 = vmatpush1.msra.mxu0 0.0
    %2436 = vmatprep.subr.mxu0 0.0
    %2437 = vmatpush1.msra.mxu0 0.0
    %2438 = vmatprep.subr.mxu0 0.0
    %2439 = vmatpush1.msra.mxu0 0.0
    %2440 = vmatprep.subr.mxu0 0.0
    %2441 = vmatpush1.msra.mxu0 0.0
    %2442 = vmatprep.subr.mxu0 0.0
    %2443 = vmatpush1.msra.mxu0 0.0
    %2444 = vmatprep.subr.mxu0 0.0
    %2445 = vmatpush1.msra.mxu0 0.0
    %2446 = vmatprep.subr.mxu0 0.0
    %2447 = vmatpush1.msra.mxu0 0.0
    %2448 = vmatprep.subr.mxu0 0.0
    %2449 = vmatpush1.msra.mxu0 0.0
    %2450 = vmatprep.subr.mxu0 0.0
    %2451 = vmatpush1.msra.mxu0 0.0
    %2452 = vmatprep.subr.mxu0 0.0
    %2453 = vmatpush1.msra.mxu0 0.0
    %2454 = vmatprep.subr.mxu0 0.0
    %2455 = vmatpush1.msra.mxu0 0.0
    %2456 = vmatprep.subr.mxu0 0.0
    %2457 = vmatpush1.msra.mxu0 0.0
    %2458 = vmatprep.subr.mxu0 0.0
    %2459 = vmatpush1.msra.mxu0 0.0
    %2460 = vmatprep.subr.mxu0 0.0
    %2461 = vmatpush1.msra.mxu0 0.0
    %2462 = vmatprep.subr.mxu0 0.0
    %2463 = vmatpush1.msra.mxu0 0.0
    %2464 = vmatprep.subr.mxu0 0.0
    %2465 = vmatpush1.msra.mxu0 0.0
    %2466 = vmatprep.subr.mxu0 0.0
    %2467 = vmatpush1.msra.mxu0 0.0
    %2468 = vmatprep.subr.mxu0 0.0
    %2469 = vmatpush1.msra.mxu0 0.0
    %2470 = vmatprep.subr.mxu0 0.0
    %2471 = vmatpush1.msra.mxu0 0.0
    %2472 = vmatprep.subr.mxu0 0.0
    %2473 = vmatpush1.msra.mxu0 0.0
    %2474 = vmatprep.subr.mxu0 0.0
    %2475 = vmatpush1.msra.mxu0 0.0
    %2476 = vmatprep.subr.mxu0 0.0
    %2477 = vmatpush1.msra.mxu0 0.0
    %2478 = vmatprep.subr.mxu0 0.0
    %2479 = vmatpush1.msra.mxu0 0.0
    %2480 = vmatprep.subr.mxu0 0.0
    %2481 = vmatpush1.msra.mxu0 0.0
    %2482 = vmatprep.subr.mxu0 0.0
    %2483 = vmatpush1.msra.mxu0 0.0
    %2484 = vmatprep.subr.mxu0 0.0
    %2485 = vmatpush1.msra.mxu0 0.0
    %2486 = vmatprep.mubr.f32.mxu0 0.0
    %2487 = vmatmul.mubr.f32.gmra.mrb[0].mxu0 %v2350
    %v2488 = vpop.f32.mrb[0].mxu0
    %v2489 = vadd.f32 0.0, %v2488
    %v2490 = vpop.f32.mrb[0].mxu0
    %2491 = vdwg.mxu0
    %v2492 = vld [vmem:[#allocation4 + $0x38] sm:$0xff]
    %v2493 = vadd.f32 %v2492, %v2419
    %v2494 = vadd.f32 %v2493, %v794
    %v2495 = vxor.u32 %v2494, 2147483648
    %v2496 = vmul.f32 %v2495, 1.442695
    %v2497 = vpow.pop %v2496
    %v2498 = vadd.f32 %v2497, 1.0
    %v2499 = vrcp.pop %v2498
    %v2500 = vmul.f32 1.0, %v2499
    %v2501 = vld [vmem:[%s496 + $0x38] sm:$0xff]
    %v2502 = vadd.f32 %v2501, %v2489
    %v2503 = vadd.f32 %v2502, %v809
    %v2504 = vxor.u32 %v2503, 2147483648
    %v2505 = vmul.f32 %v2504, 1.442695
    %v2506 = vpow.pop %v2505
    %v2507 = vadd.f32 %v2506, 1.0
    %v2508 = vrcp.pop %v2507
    %v2509 = vmul.f32 1.0, %v2508
    %v2510 = vld [vmem:[%s615 + $0x38] sm:$0xff]
    %v2511 = vadd.f32 %v2510, %v823
    %2512 = vmatprep.subr.mxu0 0.0
    %2513 = vmatpush1.msra.mxu0 %v634
    %2514 = vmatprep.subr.mxu0 0.0
    %2515 = vmatpush1.msra.mxu0 %v635
    %2516 = vmatprep.subr.mxu0 0.0
    %2517 = vmatpush1.msra.mxu0 %v636
    %2518 = vmatprep.subr.mxu0 0.0
    %2519 = vmatpush1.msra.mxu0 %v637
    %2520 = vmatprep.subr.mxu0 0.0
    %2521 = vmatpush1.msra.mxu0 0.0
    %2522 = vmatprep.subr.mxu0 0.0
    %2523 = vmatpush1.msra.mxu0 0.0
    %2524 = vmatprep.subr.mxu0 0.0
    %2525 = vmatpush1.msra.mxu0 0.0
    %2526 = vmatprep.subr.mxu0 0.0
    %2527 = vmatpush1.msra.mxu0 0.0
    %2528 = vmatprep.subr.mxu0 0.0
    %2529 = vmatpush1.msra.mxu0 0.0
    %2530 = vmatprep.subr.mxu0 0.0
    %2531 = vmatpush1.msra.mxu0 0.0
    %2532 = vmatprep.subr.mxu0 0.0
    %2533 = vmatpush1.msra.mxu0 0.0
    %2534 = vmatprep.subr.mxu0 0.0
    %2535 = vmatpush1.msra.mxu0 0.0
    %2536 = vmatprep.subr.mxu0 0.0
    %2537 = vmatpush1.msra.mxu0 0.0
    %2538 = vmatprep.subr.mxu0 0.0
    %2539 = vmatpush1.msra.mxu0 0.0
    %2540 = vmatprep.subr.mxu0 0.0
    %2541 = vmatpush1.msra.mxu0 0.0
    %2542 = vmatprep.subr.mxu0 0.0
    %2543 = vmatpush1.msra.mxu0 0.0
    %2544 = vmatprep.subr.mxu0 0.0
    %2545 = vmatpush1.msra.mxu0 0.0
    %2546 = vmatprep.subr.mxu0 0.0
    %2547 = vmatpush1.msra.mxu0 0.0
    %2548 = vmatprep.subr.mxu0 0.0
    %2549 = vmatpush1.msra.mxu0 0.0
    %2550 = vmatprep.subr.mxu0 0.0
    %2551 = vmatpush1.msra.mxu0 0.0
    %2552 = vmatprep.subr.mxu0 0.0
    %2553 = vmatpush1.msra.mxu0 0.0
    %2554 = vmatprep.subr.mxu0 0.0
    %2555 = vmatpush1.msra.mxu0 0.0
    %2556 = vmatprep.subr.mxu0 0.0
    %2557 = vmatpush1.msra.mxu0 0.0
    %2558 = vmatprep.subr.mxu0 0.0
    %2559 = vmatpush1.msra.mxu0 0.0
    %2560 = vmatprep.subr.mxu0 0.0
    %2561 = vmatpush1.msra.mxu0 0.0
    %2562 = vmatprep.subr.mxu0 0.0
    %2563 = vmatpush1.msra.mxu0 0.0
    %2564 = vmatprep.subr.mxu0 0.0
    %2565 = vmatpush1.msra.mxu0 0.0
    %2566 = vmatprep.subr.mxu0 0.0
    %2567 = vmatpush1.msra.mxu0 0.0
    %2568 = vmatprep.subr.mxu0 0.0
    %2569 = vmatpush1.msra.mxu0 0.0
    %2570 = vmatprep.subr.mxu0 0.0
    %2571 = vmatpush1.msra.mxu0 0.0
    %2572 = vmatprep.subr.mxu0 0.0
    %2573 = vmatpush1.msra.mxu0 0.0
    %2574 = vmatprep.subr.mxu0 0.0
    %2575 = vmatpush1.msra.mxu0 0.0
    %2576 = vmatprep.mubr.f32.mxu0 0.0
    %2577 = vmatmul.mubr.f32.gmra.mrb[0].mxu0 %v2350
    %v2578 = vpop.f32.mrb[0].mxu0
    %v2579 = vadd.f32 %v830, %v2578
    %v2580 = vpop.f32.mrb[0].mxu0
    %2581 = vdwg.mxu0
    %v2582 = vmul.f32 %v2500, %v2579
    %v2583 = vadd.f32 %v2511, %v2582
    %v2584 = vtanh.pop %v2583
    %v2585 = vsub.f32 %v2347, %v2584
    %v2586 = vmul.f32 %v2509, %v2585
    %v2587 = vadd.f32 %v2584, %v2586
    %2588 = vst.msk [vmem:[#allocation3 + $0x38] sm:$0xff] %vm228, %v2587
    %2589 = vst.msk [vmem:[#allocation2] sm:$0xff] %vm228, %v2587
    %v2590 = vld [vmem:[#allocation3] sm:$0xff]
    %v2591 = vld [vmem:[#allocation3 + $0x8] sm:$0xff]
    %v2592 = vld [vmem:[#allocation3 + $0x10] sm:$0xff]
    %v2593 = vld [vmem:[#allocation3 + $0x18] sm:$0xff]
    %v2594 = vld [vmem:[#allocation3 + $0x20] sm:$0xff]
    %v2595 = vld [vmem:[#allocation3 + $0x28] sm:$0xff]
    %v2596 = vld [vmem:[#allocation3 + $0x30] sm:$0xff]
    %v2597 = vld [vmem:[#allocation3 + $0x38] sm:$0xff]
    %s2598 = sld [smem:[#allocation5]]
    %s2599 = sadd.s32 %s2598, 2654435769
    %v2600 = vstv %s2599
    %v2601 = vadd.s32 %v123, %v2600
    %v2602 = vadd.s32 %v124, %v2600
    %v2603 = vadd.s32 %v125, %v2600
    %v2604 = vadd.s32 %v126, %v2600
    %v2605 = vadd.s32 %v127, %v2600
    %v2606 = vadd.s32 %v128, %v2600
    %v2607 = vadd.s32 %v129, %v2600
    %v2608 = vadd.s32 %v130, %v2600
    %v2609 = vshrl.u32 %v2601, 16
    %v2610 = vshrl.u32 %v2602, 16
    %v2611 = vshrl.u32 %v2603, 16
    %v2612 = vshrl.u32 %v2604, 16
    %v2613 = vshrl.u32 %v2605, 16
    %v2614 = vshrl.u32 %v2606, 16
    %v2615 = vshrl.u32 %v2607, 16
    %v2616 = vshrl.u32 %v2608, 16
    %v2617 = vxor.u32 %v2601, %v2609
    %v2618 = vxor.u32 %v2602, %v2610
    %v2619 = vxor.u32 %v2603, %v2611
    %v2620 = vxor.u32 %v2604, %v2612
    %v2621 = vxor.u32 %v2605, %v2613
    %v2622 = vxor.u32 %v2606, %v2614
    %v2623 = vxor.u32 %v2607, %v2615
    %v2624 = vxor.u32 %v2608, %v2616
    %v2625 = vmul.u32 %v2617, 2146121005
    %v2626 = vmul.u32 %v2618, 2146121005
    %v2627 = vmul.u32 %v2619, 2146121005
    %v2628 = vmul.u32 %v2620, 2146121005
    %v2629 = vmul.u32 %v2621, 2146121005
    %v2630 = vmul.u32 %v2622, 2146121005
    %v2631 = vmul.u32 %v2623, 2146121005
    %v2632 = vmul.u32 %v2624, 2146121005
    %v2633 = vshrl.u32 %v2625, 15
    %v2634 = vshrl.u32 %v2626, 15
    %v2635 = vshrl.u32 %v2627, 15
    %v2636 = vshrl.u32 %v2628, 15
    %v2637 = vshrl.u32 %v2629, 15
    %v2638 = vshrl.u32 %v2630, 15
    %v2639 = vshrl.u32 %v2631, 15
    %v2640 = vshrl.u32 %v2632, 15
    %v2641 = vxor.u32 %v2625, %v2633
    %v2642 = vxor.u32 %v2626, %v2634
    %v2643 = vxor.u32 %v2627, %v2635
    %v2644 = vxor.u32 %v2628, %v2636
    %v2645 = vxor.u32 %v2629, %v2637
    %v2646 = vxor.u32 %v2630, %v2638
    %v2647 = vxor.u32 %v2631, %v2639
    %v2648 = vxor.u32 %v2632, %v2640
    %v2649 = vmul.u32 %v2641, 2221713035
    %v2650 = vmul.u32 %v2642, 2221713035
    %v2651 = vmul.u32 %v2643, 2221713035
    %v2652 = vmul.u32 %v2644, 2221713035
    %v2653 = vmul.u32 %v2645, 2221713035
    %v2654 = vmul.u32 %v2646, 2221713035
    %v2655 = vmul.u32 %v2647, 2221713035
    %v2656 = vmul.u32 %v2648, 2221713035
    %v2657 = vshrl.u32 %v2649, 16
    %v2658 = vshrl.u32 %v2650, 16
    %v2659 = vshrl.u32 %v2651, 16
    %v2660 = vshrl.u32 %v2652, 16
    %v2661 = vshrl.u32 %v2653, 16
    %v2662 = vshrl.u32 %v2654, 16
    %v2663 = vshrl.u32 %v2655, 16
    %v2664 = vshrl.u32 %v2656, 16
    %v2665 = vxor.u32 %v2649, %v2657
    %v2666 = vxor.u32 %v2650, %v2658
    %v2667 = vxor.u32 %v2651, %v2659
    %v2668 = vxor.u32 %v2652, %v2660
    %v2669 = vxor.u32 %v2653, %v2661
    %v2670 = vxor.u32 %v2654, %v2662
    %v2671 = vxor.u32 %v2655, %v2663
    %v2672 = vxor.u32 %v2656, %v2664
    %vm2673 = vcmp.ge.u32.totalorder %v2665, 429496729
    %vm2674 = vcmp.ge.u32.totalorder %v2666, 429496729
    %vm2675 = vcmp.ge.u32.totalorder %v2667, 429496729
    %vm2676 = vcmp.ge.u32.totalorder %v2668, 429496729
    %vm2677 = vcmp.ge.u32.totalorder %v2669, 429496729
    %vm2678 = vcmp.ge.u32.totalorder %v2670, 429496729
    %vm2679 = vcmp.ge.u32.totalorder %v2671, 429496729
    %vm2680 = vcmp.ge.u32.totalorder %v2672, 429496729
    %v2681 = vmul.f32 %v2590, 1.1111112
    %v2682 = vmul.f32 %v2591, 1.1111112
    %v2683 = vmul.f32 %v2592, 1.1111112
    %v2684 = vmul.f32 %v2593, 1.1111112
    %v2685 = vmul.f32 %v2594, 1.1111112
    %v2686 = vmul.f32 %v2595, 1.1111112
    %v2687 = vmul.f32 %v2596, 1.1111112
    %v2688 = vmul.f32 %v2597, 1.1111112
    %v2689 = vsel %vm2673, %v2681, 0.0
    %v2690 = vsel %vm2674, %v2682, 0.0
    %v2691 = vsel %vm2675, %v2683, 0.0
    %v2692 = vsel %vm2676, %v2684, 0.0
    %v2693 = vsel %vm2677, %v2685, 0.0
    %v2694 = vsel %vm2678, %v2686, 0.0
    %v2695 = vsel %vm2679, %v2687, 0.0
    %v2696 = vsel %vm2680, %v2688, 0.0
    %2697 = vst.msk [vmem:[#allocation3] sm:$0xff] %vm228, %v2689
    %2698 = vst.msk [vmem:[#allocation3 + $0x8] sm:$0xff] %vm228, %v2690
    %2699 = vst.msk [vmem:[#allocation3 + $0x10] sm:$0xff] %vm228, %v2691
    %2700 = vst.msk [vmem:[#allocation3 + $0x18] sm:$0xff] %vm228, %v2692
    %2701 = vst.msk [vmem:[#allocation3 + $0x20] sm:$0xff] %vm228, %v2693
    %2702 = vst.msk [vmem:[#allocation3 + $0x28] sm:$0xff] %vm228, %v2694
    %2703 = vst.msk [vmem:[#allocation3 + $0x30] sm:$0xff] %vm228, %v2695
    %2704 = vst.msk [vmem:[#allocation3 + $0x38] sm:$0xff] %vm228, %v2696
    %v2705 = vld [vmem:[#allocation3] sm:$0xff]
    %v2706 = vld [vmem:[#allocation3 + $0x8] sm:$0xff]
    %v2707 = vld [vmem:[#allocation3 + $0x10] sm:$0xff]
    %v2708 = vld [vmem:[#allocation3 + $0x18] sm:$0xff]
    %v2709 = vld [vmem:[#allocation3 + $0x20] sm:$0xff]
    %v2710 = vld [vmem:[#allocation3 + $0x28] sm:$0xff]
    %v2711 = vld [vmem:[#allocation3 + $0x30] sm:$0xff]
    %v2712 = vld [vmem:[#allocation3 + $0x38] sm:$0xff]
    %s2713 = scalar_lea.vmem [#allocation9], 96
    %v2714 = vld [vmem:[%s2713] sm:$0xff]
    %v2715 = vld [vmem:[%s2713 + $0x8] sm:$0xff]
    %v2716 = vld [vmem:[%s2713 + $0x10] sm:$0xff]
    %v2717 = vld [vmem:[%s2713 + $0x18] sm:$0xff]
    %v2719 = vsel %vm228, %v2705, 0
    %v2722 = vsel %vm228, %v2706, 0
    %v2725 = vsel %vm228, %v2707, 0
    %v2728 = vsel %vm228, %v2708, 0
    %v2731 = vsel %vm228, %v2709, 0
    %v2734 = vsel %vm228, %v2710, 0
    %v2737 = vsel %vm228, %v2711, 0
    %v2740 = vsel %vm228, %v2712, 0
    %2742 = vmatprep.subr.mxu0 0.0
    %2743 = vmatpush1.msra.mxu0 %v2714
    %2744 = vmatprep.subr.mxu0 0.0
    %2745 = vmatpush1.msra.mxu0 %v2715
    %2746 = vmatprep.subr.mxu0 0.0
    %2747 = vmatpush1.msra.mxu0 %v2716
    %2748 = vmatprep.subr.mxu0 0.0
    %2749 = vmatpush1.msra.mxu0 %v2717
    %2750 = vmatprep.subr.mxu0 0.0
    %2751 = vmatpush1.msra.mxu0 0.0
    %2752 = vmatprep.subr.mxu0 0.0
    %2753 = vmatpush1.msra.mxu0 0.0
    %2754 = vmatprep.subr.mxu0 0.0
    %2755 = vmatpush1.msra.mxu0 0.0
    %2756 = vmatprep.subr.mxu0 0.0
    %2757 = vmatpush1.msra.mxu0 0.0
    %2758 = vmatprep.subr.mxu0 0.0
    %2759 = vmatpush1.msra.mxu0 0.0
    %2760 = vmatprep.subr.mxu0 0.0
    %2761 = vmatpush1.msra.mxu0 0.0
    %2762 = vmatprep.subr.mxu0 0.0
    %2763 = vmatpush1.msra.mxu0 0.0
    %2764 = vmatprep.subr.mxu0 0.0
    %2765 = vmatpush1.msra.mxu0 0.0
    %2766 = vmatprep.subr.mxu0 0.0
    %2767 = vmatpush1.msra.mxu0 0.0
    %2768 = vmatprep.subr.mxu0 0.0
    %2769 = vmatpush1.msra.mxu0 0.0
    %2770 = vmatprep.subr.mxu0 0.0
    %2771 = vmatpush1.msra.mxu0 0.0
    %2772 = vmatprep.subr.mxu0 0.0
    %2773 = vmatpush1.msra.mxu0 0.0
    %2774 = vmatprep.subr.mxu0 0.0
    %2775 = vmatpush1.msra.mxu0 0.0
    %2776 = vmatprep.subr.mxu0 0.0
    %2777 = vmatpush1.msra.mxu0 0.0
    %2778 = vmatprep.subr.mxu0 0.0
    %2779 = vmatpush1.msra.mxu0 0.0
    %2780 = vmatprep.subr.mxu0 0.0
    %2781 = vmatpush1.msra.mxu0 0.0
    %2782 = vmatprep.subr.mxu0 0.0
    %2783 = vmatpush1.msra.mxu0 0.0
    %2784 = vmatprep.subr.mxu0 0.0
    %2785 = vmatpush1.msra.mxu0 0.0
    %2786 = vmatprep.subr.mxu0 0.0
    %2787 = vmatpush1.msra.mxu0 0.0
    %2788 = vmatprep.subr.mxu0 0.0
    %2789 = vmatpush1.msra.mxu0 0.0
    %2790 = vmatprep.subr.mxu0 0.0
    %2791 = vmatpush1.msra.mxu0 0.0
    %2792 = vmatprep.subr.mxu0 0.0
    %2793 = vmatpush1.msra.mxu0 0.0
    %2794 = vmatprep.subr.mxu0 0.0
    %2795 = vmatpush1.msra.mxu0 0.0
    %2796 = vmatprep.subr.mxu0 0.0
    %2797 = vmatpush1.msra.mxu0 0.0
    %2798 = vmatprep.subr.mxu0 0.0
    %2799 = vmatpush1.msra.mxu0 0.0
    %2800 = vmatprep.subr.mxu0 0.0
    %2801 = vmatpush1.msra.mxu0 0.0
    %2802 = vmatprep.subr.mxu0 0.0
    %2803 = vmatpush1.msra.mxu0 0.0
    %2804 = vmatprep.subr.mxu0 0.0
    %2805 = vmatpush1.msra.mxu0 0.0
    %2806 = vmatprep.mubr.f32.mxu0 0.0
    %2807 = vmatmul.mubr.f32.gmra.mrb[0].mxu0 %v2719
    %v2808 = vpop.f32.mrb[0].mxu0
    %v2809 = vadd.f32 0.0, %v2808
    %v2810 = vpop.f32.mrb[0].mxu0
    %2811 = vmatprep.mubr.f32.mxu0 0.0
    %2812 = vmatmul.mubr.f32.gmra.mrb[0].mxu0 %v2722
    %v2813 = vpop.f32.mrb[0].mxu0
    %v2814 = vadd.f32 0.0, %v2813
    %v2815 = vpop.f32.mrb[0].mxu0
    %2816 = vmatprep.mubr.f32.mxu0 0.0
    %2817 = vmatmul.mubr.f32.gmra.mrb[0].mxu0 %v2725
    %v2818 = vpop.f32.mrb[0].mxu0
    %v2819 = vadd.f32 0.0, %v2818
    %v2820 = vpop.f32.mrb[0].mxu0
    %2821 = vmatprep.mubr.f32.mxu0 0.0
    %2822 = vmatmul.mubr.f32.gmra.mrb[0].mxu0 %v2728
    %v2823 = vpop.f32.mrb[0].mxu0
    %v2824 = vadd.f32 0.0, %v2823
    %v2825 = vpop.f32.mrb[0].mxu0
    %2826 = vmatprep.mubr.f32.mxu0 0.0
    %2827 = vmatmul.mubr.f32.gmra.mrb[0].mxu0 %v2731
    %v2828 = vpop.f32.mrb[0].mxu0
    %v2829 = vadd.f32 0.0, %v2828
    %v2830 = vpop.f32.mrb[0].mxu0
    %2831 = vmatprep.mubr.f32.mxu0 0.0
    %2832 = vmatmul.mubr.f32.gmra.mrb[0].mxu0 %v2734
    %v2833 = vpop.f32.mrb[0].mxu0
    %v2834 = vadd.f32 0.0, %v2833
    %v2835 = vpop.f32.mrb[0].mxu0
    %2836 = vmatprep.mubr.f32.mxu0 0.0
    %2837 = vmatmul.mubr.f32.gmra.mrb[0].mxu0 %v2737
    %v2838 = vpop.f32.mrb[0].mxu0
    %v2839 = vadd.f32 0.0, %v2838
    %v2840 = vpop.f32.mrb[0].mxu0
    %2841 = vmatprep.mubr.f32.mxu0 0.0
    %2842 = vmatmul.mubr.f32.gmra.mrb[0].mxu0 %v2740
    %v2843 = vpop.f32.mrb[0].mxu0
    %v2844 = vadd.f32 0.0, %v2843
    %v2845 = vpop.f32.mrb[0].mxu0
    %2846 = vdwg.mxu0
    %2847 = vst.msk [vmem:[#allocation4] sm:$0xff] %vm228, %v2809
    %2848 = vst.msk [vmem:[#allocation4 + $0x8] sm:$0xff] %vm228, %v2814
    %2849 = vst.msk [vmem:[#allocation4 + $0x10] sm:$0xff] %vm228, %v2819
    %2850 = vst.msk [vmem:[#allocation4 + $0x18] sm:$0xff] %vm228, %v2824
    %2851 = vst.msk [vmem:[#allocation4 + $0x20] sm:$0xff] %vm228, %v2829
    %2852 = vst.msk [vmem:[#allocation4 + $0x28] sm:$0xff] %vm228, %v2834
    %2853 = vst.msk [vmem:[#allocation4 + $0x30] sm:$0xff] %vm228, %v2839
    %2854 = vst.msk [vmem:[#allocation4 + $0x38] sm:$0xff] %vm228, %v2844
    %s2855 = scalar_lea.vmem [#allocation9], 128
    %v2856 = vld [vmem:[%s2855] sm:$0xff]
    %v2857 = vld [vmem:[%s2855 + $0x8] sm:$0xff]
    %v2858 = vld [vmem:[%s2855 + $0x10] sm:$0xff]
    %v2859 = vld [vmem:[%s2855 + $0x18] sm:$0xff]
    %2860 = vmatprep.subr.mxu0 0.0
    %2861 = vmatpush1.msra.mxu0 %v2856
    %2862 = vmatprep.subr.mxu0 0.0
    %2863 = vmatpush1.msra.mxu0 %v2857
    %2864 = vmatprep.subr.mxu0 0.0
    %2865 = vmatpush1.msra.mxu0 %v2858
    %2866 = vmatprep.subr.mxu0 0.0
    %2867 = vmatpush1.msra.mxu0 %v2859
    %2868 = vmatprep.subr.mxu0 0.0
    %2869 = vmatpush1.msra.mxu0 0.0
    %2870 = vmatprep.subr.mxu0 0.0
    %2871 = vmatpush1.msra.mxu0 0.0
    %2872 = vmatprep.subr.mxu0 0.0
    %2873 = vmatpush1.msra.mxu0 0.0
    %2874 = vmatprep.subr.mxu0 0.0
    %2875 = vmatpush1.msra.mxu0 0.0
    %2876 = vmatprep.subr.mxu0 0.0
    %2877 = vmatpush1.msra.mxu0 0.0
    %2878 = vmatprep.subr.mxu0 0.0
    %2879 = vmatpush1.msra.mxu0 0.0
    %2880 = vmatprep.subr.mxu0 0.0
    %2881 = vmatpush1.msra.mxu0 0.0
    %2882 = vmatprep.subr.mxu0 0.0
    %2883 = vmatpush1.msra.mxu0 0.0
    %2884 = vmatprep.subr.mxu0 0.0
    %2885 = vmatpush1.msra.mxu0 0.0
    %2886 = vmatprep.subr.mxu0 0.0
    %2887 = vmatpush1.msra.mxu0 0.0
    %2888 = vmatprep.subr.mxu0 0.0
    %2889 = vmatpush1.msra.mxu0 0.0
    %2890 = vmatprep.subr.mxu0 0.0
    %2891 = vmatpush1.msra.mxu0 0.0
    %2892 = vmatprep.subr.mxu0 0.0
    %2893 = vmatpush1.msra.mxu0 0.0
    %2894 = vmatprep.subr.mxu0 0.0
    %2895 = vmatpush1.msra.mxu0 0.0
    %2896 = vmatprep.subr.mxu0 0.0
    %2897 = vmatpush1.msra.mxu0 0.0
    %2898 = vmatprep.subr.mxu0 0.0
    %2899 = vmatpush1.msra.mxu0 0.0
    %2900 = vmatprep.subr.mxu0 0.0
    %2901 = vmatpush1.msra.mxu0 0.0
    %2902 = vmatprep.subr.mxu0 0.0
    %2903 = vmatpush1.msra.mxu0 0.0
    %2904 = vmatprep.subr.mxu0 0.0
    %2905 = vmatpush1.msra.mxu0 0.0
    %2906 = vmatprep.subr.mxu0 0.0
    %2907 = vmatpush1.msra.mxu0 0.0
    %2908 = vmatprep.subr.mxu0 0.0
    %2909 = vmatpush1.msra.mxu0 0.0
    %2910 = vmatprep.subr.mxu0 0.0
    %2911 = vmatpush1.msra.mxu0 0.0
    %2912 = vmatprep.subr.mxu0 0.0
    %2913 = vmatpush1.msra.mxu0 0.0
    %2914 = vmatprep.subr.mxu0 0.0
    %2915 = vmatpush1.msra.mxu0 0.0
    %2916 = vmatprep.subr.mxu0 0.0
    %2917 = vmatpush1.msra.mxu0 0.0
    %2918 = vmatprep.subr.mxu0 0.0
    %2919 = vmatpush1.msra.mxu0 0.0
    %2920 = vmatprep.subr.mxu0 0.0
    %2921 = vmatpush1.msra.mxu0 0.0
    %2922 = vmatprep.subr.mxu0 0.0
    %2923 = vmatpush1.msra.mxu0 0.0
    %2924 = vmatprep.mubr.f32.mxu0 0.0
    %2925 = vmatmul.mubr.f32.gmra.mrb[0].mxu0 %v2719
    %v2926 = vpop.f32.mrb[0].mxu0
    %v2927 = vadd.f32 0.0, %v2926
    %v2928 = vpop.f32.mrb[0].mxu0
    %2929 = vmatprep.mubr.f32.mxu0 0.0
    %2930 = vmatmul.mubr.f32.gmra.mrb[0].mxu0 %v2722
    %v2931 = vpop.f32.mrb[0].mxu0
    %v2932 = vadd.f32 0.0, %v2931
    %v2933 = vpop.f32.mrb[0].mxu0
    %2934 = vmatprep.mubr.f32.mxu0 0.0
    %2935 = vmatmul.mubr.f32.gmra.mrb[0].mxu0 %v2725
    %v2936 = vpop.f32.mrb[0].mxu0
    %v2937 = vadd.f32 0.0, %v2936
    %v2938 = vpop.f32.mrb[0].mxu0
    %2939 = vmatprep.mubr.f32.mxu0 0.0
    %2940 = vmatmul.mubr.f32.gmra.mrb[0].mxu0 %v2728
    %v2941 = vpop.f32.mrb[0].mxu0
    %v2942 = vadd.f32 0.0, %v2941
    %v2943 = vpop.f32.mrb[0].mxu0
    %2944 = vmatprep.mubr.f32.mxu0 0.0
    %2945 = vmatmul.mubr.f32.gmra.mrb[0].mxu0 %v2731
    %v2946 = vpop.f32.mrb[0].mxu0
    %v2947 = vadd.f32 0.0, %v2946
    %v2948 = vpop.f32.mrb[0].mxu0
    %2949 = vmatprep.mubr.f32.mxu0 0.0
    %2950 = vmatmul.mubr.f32.gmra.mrb[0].mxu0 %v2734
    %v2951 = vpop.f32.mrb[0].mxu0
    %v2952 = vadd.f32 0.0, %v2951
    %v2953 = vpop.f32.mrb[0].mxu0
    %2954 = vmatprep.mubr.f32.mxu0 0.0
    %2955 = vmatmul.mubr.f32.gmra.mrb[0].mxu0 %v2737
    %v2956 = vpop.f32.mrb[0].mxu0
    %v2957 = vadd.f32 0.0, %v2956
    %v2958 = vpop.f32.mrb[0].mxu0
    %2959 = vmatprep.mubr.f32.mxu0 0.0
    %2960 = vmatmul.mubr.f32.gmra.mrb[0].mxu0 %v2740
    %v2961 = vpop.f32.mrb[0].mxu0
    %v2962 = vadd.f32 0.0, %v2961
    %v2963 = vpop.f32.mrb[0].mxu0
    %2964 = vdwg.mxu0
    %2965 = vst.msk [vmem:[%s496] sm:$0xff] %vm228, %v2927
    %2966 = vst.msk [vmem:[%s496 + $0x8] sm:$0xff] %vm228, %v2932
    %2967 = vst.msk [vmem:[%s496 + $0x10] sm:$0xff] %vm228, %v2937
    %2968 = vst.msk [vmem:[%s496 + $0x18] sm:$0xff] %vm228, %v2942
    %2969 = vst.msk [vmem:[%s496 + $0x20] sm:$0xff] %vm228, %v2947
    %2970 = vst.msk [vmem:[%s496 + $0x28] sm:$0xff] %vm228, %v2952
    %2971 = vst.msk [vmem:[%s496 + $0x30] sm:$0xff] %vm228, %v2957
    %2972 = vst.msk [vmem:[%s496 + $0x38] sm:$0xff] %vm228, %v2962
    %s2973 = scalar_lea.vmem [#allocation9], 160
    %v2974 = vld [vmem:[%s2973] sm:$0xff]
    %v2975 = vld [vmem:[%s2973 + $0x8] sm:$0xff]
    %v2976 = vld [vmem:[%s2973 + $0x10] sm:$0xff]
    %v2977 = vld [vmem:[%s2973 + $0x18] sm:$0xff]
    %2978 = vmatprep.subr.mxu0 0.0
    %2979 = vmatpush1.msra.mxu0 %v2974
    %2980 = vmatprep.subr.mxu0 0.0
    %2981 = vmatpush1.msra.mxu0 %v2975
    %2982 = vmatprep.subr.mxu0 0.0
    %2983 = vmatpush1.msra.mxu0 %v2976
    %2984 = vmatprep.subr.mxu0 0.0
    %2985 = vmatpush1.msra.mxu0 %v2977
    %2986 = vmatprep.subr.mxu0 0.0
    %2987 = vmatpush1.msra.mxu0 0.0
    %2988 = vmatprep.subr.mxu0 0.0
    %2989 = vmatpush1.msra.mxu0 0.0
    %2990 = vmatprep.subr.mxu0 0.0
    %2991 = vmatpush1.msra.mxu0 0.0
    %2992 = vmatprep.subr.mxu0 0.0
    %2993 = vmatpush1.msra.mxu0 0.0
    %2994 = vmatprep.subr.mxu0 0.0
    %2995 = vmatpush1.msra.mxu0 0.0
    %2996 = vmatprep.subr.mxu0 0.0
    %2997 = vmatpush1.msra.mxu0 0.0
    %2998 = vmatprep.subr.mxu0 0.0
    %2999 = vmatpush1.msra.mxu0 0.0
    %3000 = vmatprep.subr.mxu0 0.0
    %3001 = vmatpush1.msra.mxu0 0.0
    %3002 = vmatprep.subr.mxu0 0.0
    %3003 = vmatpush1.msra.mxu0 0.0
    %3004 = vmatprep.subr.mxu0 0.0
    %3005 = vmatpush1.msra.mxu0 0.0
    %3006 = vmatprep.subr.mxu0 0.0
    %3007 = vmatpush1.msra.mxu0 0.0
    %3008 = vmatprep.subr.mxu0 0.0
    %3009 = vmatpush1.msra.mxu0 0.0
    %3010 = vmatprep.subr.mxu0 0.0
    %3011 = vmatpush1.msra.mxu0 0.0
    %3012 = vmatprep.subr.mxu0 0.0
    %3013 = vmatpush1.msra.mxu0 0.0
    %3014 = vmatprep.subr.mxu0 0.0
    %3015 = vmatpush1.msra.mxu0 0.0
    %3016 = vmatprep.subr.mxu0 0.0
    %3017 = vmatpush1.msra.mxu0 0.0
    %3018 = vmatprep.subr.mxu0 0.0
    %3019 = vmatpush1.msra.mxu0 0.0
    %3020 = vmatprep.subr.mxu0 0.0
    %3021 = vmatpush1.msra.mxu0 0.0
    %3022 = vmatprep.subr.mxu0 0.0
    %3023 = vmatpush1.msra.mxu0 0.0
    %3024 = vmatprep.subr.mxu0 0.0
    %3025 = vmatpush1.msra.mxu0 0.0
    %3026 = vmatprep.subr.mxu0 0.0
    %3027 = vmatpush1.msra.mxu0 0.0
    %3028 = vmatprep.subr.mxu0 0.0
    %3029 = vmatpush1.msra.mxu0 0.0
    %3030 = vmatprep.subr.mxu0 0.0
    %3031 = vmatpush1.msra.mxu0 0.0
    %3032 = vmatprep.subr.mxu0 0.0
    %3033 = vmatpush1.msra.mxu0 0.0
    %3034 = vmatprep.subr.mxu0 0.0
    %3035 = vmatpush1.msra.mxu0 0.0
    %3036 = vmatprep.subr.mxu0 0.0
    %3037 = vmatpush1.msra.mxu0 0.0
    %3038 = vmatprep.subr.mxu0 0.0
    %3039 = vmatpush1.msra.mxu0 0.0
    %3040 = vmatprep.subr.mxu0 0.0
    %3041 = vmatpush1.msra.mxu0 0.0
    %3042 = vmatprep.mubr.f32.mxu0 0.0
    %3043 = vmatmul.mubr.f32.gmra.mrb[0].mxu0 %v2719
    %v3044 = vpop.f32.mrb[0].mxu0
    %v3045 = vadd.f32 0.0, %v3044
    %v3046 = vpop.f32.mrb[0].mxu0
    %3047 = vmatprep.mubr.f32.mxu0 0.0
    %3048 = vmatmul.mubr.f32.gmra.mrb[0].mxu0 %v2722
    %v3049 = vpop.f32.mrb[0].mxu0
    %v3050 = vadd.f32 0.0, %v3049
    %v3051 = vpop.f32.mrb[0].mxu0
    %3052 = vmatprep.mubr.f32.mxu0 0.0
    %3053 = vmatmul.mubr.f32.gmra.mrb[0].mxu0 %v2725
    %v3054 = vpop.f32.mrb[0].mxu0
    %v3055 = vadd.f32 0.0, %v3054
    %v3056 = vpop.f32.mrb[0].mxu0
    %3057 = vmatprep.mubr.f32.mxu0 0.0
    %3058 = vmatmul.mubr.f32.gmra.mrb[0].mxu0 %v2728
    %v3059 = vpop.f32.mrb[0].mxu0
    %v3060 = vadd.f32 0.0, %v3059
    %v3061 = vpop.f32.mrb[0].mxu0
    %3062 = vmatprep.mubr.f32.mxu0 0.0
    %3063 = vmatmul.mubr.f32.gmra.mrb[0].mxu0 %v2731
    %v3064 = vpop.f32.mrb[0].mxu0
    %v3065 = vadd.f32 0.0, %v3064
    %v3066 = vpop.f32.mrb[0].mxu0
    %3067 = vmatprep.mubr.f32.mxu0 0.0
    %3068 = vmatmul.mubr.f32.gmra.mrb[0].mxu0 %v2734
    %v3069 = vpop.f32.mrb[0].mxu0
    %v3070 = vadd.f32 0.0, %v3069
    %v3071 = vpop.f32.mrb[0].mxu0
    %3072 = vmatprep.mubr.f32.mxu0 0.0
    %3073 = vmatmul.mubr.f32.gmra.mrb[0].mxu0 %v2737
    %v3074 = vpop.f32.mrb[0].mxu0
    %v3075 = vadd.f32 0.0, %v3074
    %v3076 = vpop.f32.mrb[0].mxu0
    %3077 = vmatprep.mubr.f32.mxu0 0.0
    %3078 = vmatmul.mubr.f32.gmra.mrb[0].mxu0 %v2740
    %v3079 = vpop.f32.mrb[0].mxu0
    %v3080 = vadd.f32 0.0, %v3079
    %v3081 = vpop.f32.mrb[0].mxu0
    %3082 = vdwg.mxu0
    %3083 = vst.msk [vmem:[%s615] sm:$0xff] %vm228, %v3045
    %3084 = vst.msk [vmem:[%s615 + $0x8] sm:$0xff] %vm228, %v3050
    %3085 = vst.msk [vmem:[%s615 + $0x10] sm:$0xff] %vm228, %v3055
    %3086 = vst.msk [vmem:[%s615 + $0x18] sm:$0xff] %vm228, %v3060
    %3087 = vst.msk [vmem:[%s615 + $0x20] sm:$0xff] %vm228, %v3065
    %3088 = vst.msk [vmem:[%s615 + $0x28] sm:$0xff] %vm228, %v3070
    %3089 = vst.msk [vmem:[%s615 + $0x30] sm:$0xff] %vm228, %v3075
    %3090 = vst.msk [vmem:[%s615 + $0x38] sm:$0xff] %vm228, %v3080
    %s3091 = scalar_lea.vmem [#allocation11], 96
    %v3092 = vld [vmem:[%s3091] sm:$0xff]
    %v3093 = vld [vmem:[%s3091 + $0x8] sm:$0xff]
    %v3094 = vld [vmem:[%s3091 + $0x10] sm:$0xff]
    %v3095 = vld [vmem:[%s3091 + $0x18] sm:$0xff]
    %s3096 = scalar_lea.vmem [#allocation11], 128
    %v3097 = vld [vmem:[%s3096] sm:$0xff]
    %v3098 = vld [vmem:[%s3096 + $0x8] sm:$0xff]
    %v3099 = vld [vmem:[%s3096 + $0x10] sm:$0xff]
    %v3100 = vld [vmem:[%s3096 + $0x18] sm:$0xff]
    %s3101 = scalar_lea.vmem [#allocation11], 160
    %v3102 = vld [vmem:[%s3101] sm:$0xff]
    %v3103 = vld [vmem:[%s3101 + $0x8] sm:$0xff]
    %v3104 = vld [vmem:[%s3101 + $0x10] sm:$0xff]
    %v3105 = vld [vmem:[%s3101 + $0x18] sm:$0xff]
    %s3106 = scalar_lea.vmem %s4, 3
    %v3107 = vld [vmem:[%s3106] sm:$0x1]
    %s3108 = scalar_lea.vmem %s4, 4
    %v3109 = vld [vmem:[%s3108] sm:$0x1]
    %s3110 = scalar_lea.vmem %s4, 5
    %v3111 = vld [vmem:[%s3110] sm:$0x1]
    %s3112 = scalar_lea.vmem %s5, 1
    %v3113 = vld [vmem:[%s3112] sm:$0x1]
    %s3114 = scalar_lea.vmem [#allocation2], 8
    %v3115 = vld [vmem:[%s3114] sm:$0xff]
    %v3117 = vsel %vm228, %v3115, 0
    %3119 = vmatprep.subr.mxu0 0.0
    %3120 = vmatpush1.msra.mxu0 %v3092
    %3121 = vmatprep.subr.mxu0 0.0
    %3122 = vmatpush1.msra.mxu0 %v3093
    %3123 = vmatprep.subr.mxu0 0.0
    %3124 = vmatpush1.msra.mxu0 %v3094
    %3125 = vmatprep.subr.mxu0 0.0
    %3126 = vmatpush1.msra.mxu0 %v3095
    %3127 = vmatprep.subr.mxu0 0.0
    %3128 = vmatpush1.msra.mxu0 0.0
    %3129 = vmatprep.subr.mxu0 0.0
    %3130 = vmatpush1.msra.mxu0 0.0
    %3131 = vmatprep.subr.mxu0 0.0
    %3132 = vmatpush1.msra.mxu0 0.0
    %3133 = vmatprep.subr.mxu0 0.0
    %3134 = vmatpush1.msra.mxu0 0.0
    %3135 = vmatprep.subr.mxu0 0.0
    %3136 = vmatpush1.msra.mxu0 0.0
    %3137 = vmatprep.subr.mxu0 0.0
    %3138 = vmatpush1.msra.mxu0 0.0
    %3139 = vmatprep.subr.mxu0 0.0
    %3140 = vmatpush1.msra.mxu0 0.0
    %3141 = vmatprep.subr.mxu0 0.0
    %3142 = vmatpush1.msra.mxu0 0.0
    %3143 = vmatprep.subr.mxu0 0.0
    %3144 = vmatpush1.msra.mxu0 0.0
    %3145 = vmatprep.subr.mxu0 0.0
    %3146 = vmatpush1.msra.mxu0 0.0
    %3147 = vmatprep.subr.mxu0 0.0
    %3148 = vmatpush1.msra.mxu0 0.0
    %3149 = vmatprep.subr.mxu0 0.0
    %3150 = vmatpush1.msra.mxu0 0.0
    %3151 = vmatprep.subr.mxu0 0.0
    %3152 = vmatpush1.msra.mxu0 0.0
    %3153 = vmatprep.subr.mxu0 0.0
    %3154 = vmatpush1.msra.mxu0 0.0
    %3155 = vmatprep.subr.mxu0 0.0
    %3156 = vmatpush1.msra.mxu0 0.0
    %3157 = vmatprep.subr.mxu0 0.0
    %3158 = vmatpush1.msra.mxu0 0.0
    %3159 = vmatprep.subr.mxu0 0.0
    %3160 = vmatpush1.msra.mxu0 0.0
    %3161 = vmatprep.subr.mxu0 0.0
    %3162 = vmatpush1.msra.mxu0 0.0
    %3163 = vmatprep.subr.mxu0 0.0
    %3164 = vmatpush1.msra.mxu0 0.0
    %3165 = vmatprep.subr.mxu0 0.0
    %3166 = vmatpush1.msra.mxu0 0.0
    %3167 = vmatprep.subr.mxu0 0.0
    %3168 = vmatpush1.msra.mxu0 0.0
    %3169 = vmatprep.subr.mxu0 0.0
    %3170 = vmatpush1.msra.mxu0 0.0
    %3171 = vmatprep.subr.mxu0 0.0
    %3172 = vmatpush1.msra.mxu0 0.0
    %3173 = vmatprep.subr.mxu0 0.0
    %3174 = vmatpush1.msra.mxu0 0.0
    %3175 = vmatprep.subr.mxu0 0.0
    %3176 = vmatpush1.msra.mxu0 0.0
    %3177 = vmatprep.subr.mxu0 0.0
    %3178 = vmatpush1.msra.mxu0 0.0
    %3179 = vmatprep.subr.mxu0 0.0
    %3180 = vmatpush1.msra.mxu0 0.0
    %3181 = vmatprep.subr.mxu0 0.0
    %3182 = vmatpush1.msra.mxu0 0.0
    %3183 = vmatprep.mubr.f32.mxu0 0.0
    %3184 = vmatmul.mubr.f32.gmra.mrb[0].mxu0 %v3117
    %v3185 = vpop.f32.mrb[0].mxu0
    %v3186 = vadd.f32 0.0, %v3185
    %v3187 = vpop.f32.mrb[0].mxu0
    %3188 = vdwg.mxu0
    %3189 = vmatprep.subr.mxu0 0.0
    %3190 = vmatpush1.msra.mxu0 %v3097
    %3191 = vmatprep.subr.mxu0 0.0
    %3192 = vmatpush1.msra.mxu0 %v3098
    %3193 = vmatprep.subr.mxu0 0.0
    %3194 = vmatpush1.msra.mxu0 %v3099
    %3195 = vmatprep.subr.mxu0 0.0
    %3196 = vmatpush1.msra.mxu0 %v3100
    %3197 = vmatprep.subr.mxu0 0.0
    %3198 = vmatpush1.msra.mxu0 0.0
    %3199 = vmatprep.subr.mxu0 0.0
    %3200 = vmatpush1.msra.mxu0 0.0
    %3201 = vmatprep.subr.mxu0 0.0
    %3202 = vmatpush1.msra.mxu0 0.0
    %3203 = vmatprep.subr.mxu0 0.0
    %3204 = vmatpush1.msra.mxu0 0.0
    %3205 = vmatprep.subr.mxu0 0.0
    %3206 = vmatpush1.msra.mxu0 0.0
    %3207 = vmatprep.subr.mxu0 0.0
    %3208 = vmatpush1.msra.mxu0 0.0
    %3209 = vmatprep.subr.mxu0 0.0
    %3210 = vmatpush1.msra.mxu0 0.0
    %3211 = vmatprep.subr.mxu0 0.0
    %3212 = vmatpush1.msra.mxu0 0.0
    %3213 = vmatprep.subr.mxu0 0.0
    %3214 = vmatpush1.msra.mxu0 0.0
    %3215 = vmatprep.subr.mxu0 0.0
    %3216 = vmatpush1.msra.mxu0 0.0
    %3217 = vmatprep.subr.mxu0 0.0
    %3218 = vmatpush1.msra.mxu0 0.0
    %3219 = vmatprep.subr.mxu0 0.0
    %3220 = vmatpush1.msra.mxu0 0.0
    %3221 = vmatprep.subr.mxu0 0.0
    %3222 = vmatpush1.msra.mxu0 0.0
    %3223 = vmatprep.subr.mxu0 0.0
    %3224 = vmatpush1.msra.mxu0 0.0
    %3225 = vmatprep.subr.mxu0 0.0
    %3226 = vmatpush1.msra.mxu0 0.0
    %3227 = vmatprep.subr.mxu0 0.0
    %3228 = vmatpush1.msra.mxu0 0.0
    %3229 = vmatprep.subr.mxu0 0.0
    %3230 = vmatpush1.msra.mxu0 0.0
    %3231 = vmatprep.subr.mxu0 0.0
    %3232 = vmatpush1.msra.mxu0 0.0
    %3233 = vmatprep.subr.mxu0 0.0
    %3234 = vmatpush1.msra.mxu0 0.0
    %3235 = vmatprep.subr.mxu0 0.0
    %3236 = vmatpush1.msra.mxu0 0.0
    %3237 = vmatprep.subr.mxu0 0.0
    %3238 = vmatpush1.msra.mxu0 0.0
    %3239 = vmatprep.subr.mxu0 0.0
    %3240 = vmatpush1.msra.mxu0 0.0
    %3241 = vmatprep.subr.mxu0 0.0
    %3242 = vmatpush1.msra.mxu0 0.0
    %3243 = vmatprep.subr.mxu0 0.0
    %3244 = vmatpush1.msra.mxu0 0.0
    %3245 = vmatprep.subr.mxu0 0.0
    %3246 = vmatpush1.msra.mxu0 0.0
    %3247 = vmatprep.subr.mxu0 0.0
    %3248 = vmatpush1.msra.mxu0 0.0
    %3249 = vmatprep.subr.mxu0 0.0
    %3250 = vmatpush1.msra.mxu0 0.0
    %3251 = vmatprep.subr.mxu0 0.0
    %3252 = vmatpush1.msra.mxu0 0.0
    %3253 = vmatprep.mubr.f32.mxu0 0.0
    %3254 = vmatmul.mubr.f32.gmra.mrb[0].mxu0 %v3117
    %v3255 = vpop.f32.mrb[0].mxu0
    %v3256 = vadd.f32 0.0, %v3255
    %v3257 = vpop.f32.mrb[0].mxu0
    %3258 = vdwg.mxu0
    %v3259 = vld [vmem:[#allocation4] sm:$0xff]
    %v3260 = vadd.f32 %v3259, %v3186
    %v3262 = vlaneseq
    %v3263 = vshrl.u32 %v3262, 7
    %v3264 = vsub.s32 0, %v3263
    %v3265 = vrot.slane %v3107, %v3264
    %v3267 = vadd.f32 %v3260, %v3265
    %v3268 = vxor.u32 %v3267, 2147483648
    %v3269 = vmul.f32 %v3268, 1.442695
    %v3270 = vpow.pop %v3269
    %v3271 = vadd.f32 %v3270, 1.0
    %v3272 = vrcp.pop %v3271
    %v3273 = vmul.f32 1.0, %v3272
    %v3274 = vld [vmem:[%s496] sm:$0xff]
    %v3275 = vadd.f32 %v3274, %v3256
    %v3277 = vlaneseq
    %v3278 = vshrl.u32 %v3277, 7
    %v3279 = vsub.s32 0, %v3278
    %v3280 = vrot.slane %v3109, %v3279
    %v3282 = vadd.f32 %v3275, %v3280
    %v3283 = vxor.u32 %v3282, 2147483648
    %v3284 = vmul.f32 %v3283, 1.442695
    %v3285 = vpow.pop %v3284
    %v3286 = vadd.f32 %v3285, 1.0
    %v3287 = vrcp.pop %v3286
    %v3288 = vmul.f32 1.0, %v3287
    %v3289 = vld [vmem:[%s615] sm:$0xff]
    %v3291 = vlaneseq
    %v3292 = vshrl.u32 %v3291, 7
    %v3293 = vsub.s32 0, %v3292
    %v3294 = vrot.slane %v3111, %v3293
    %v3296 = vadd.f32 %v3289, %v3294
    %v3298 = vlaneseq
    %v3299 = vshrl.u32 %v3298, 7
    %v3300 = vsub.s32 0, %v3299
    %v3301 = vrot.slane %v3113, %v3300
    %3303 = vmatprep.subr.mxu0 0.0
    %3304 = vmatpush1.msra.mxu0 %v3102
    %3305 = vmatprep.subr.mxu0 0.0
    %3306 = vmatpush1.msra.mxu0 %v3103
    %3307 = vmatprep.subr.mxu0 0.0
    %3308 = vmatpush1.msra.mxu0 %v3104
    %3309 = vmatprep.subr.mxu0 0.0
    %3310 = vmatpush1.msra.mxu0 %v3105
    %3311 = vmatprep.subr.mxu0 0.0
    %3312 = vmatpush1.msra.mxu0 0.0
    %3313 = vmatprep.subr.mxu0 0.0
    %3314 = vmatpush1.msra.mxu0 0.0
    %3315 = vmatprep.subr.mxu0 0.0
    %3316 = vmatpush1.msra.mxu0 0.0
    %3317 = vmatprep.subr.mxu0 0.0
    %3318 = vmatpush1.msra.mxu0 0.0
    %3319 = vmatprep.subr.mxu0 0.0
    %3320 = vmatpush1.msra.mxu0 0.0
    %3321 = vmatprep.subr.mxu0 0.0
    %3322 = vmatpush1.msra.mxu0 0.0
    %3323 = vmatprep.subr.mxu0 0.0
    %3324 = vmatpush1.msra.mxu0 0.0
    %3325 = vmatprep.subr.mxu0 0.0
    %3326 = vmatpush1.msra.mxu0 0.0
    %3327 = vmatprep.subr.mxu0 0.0
    %3328 = vmatpush1.msra.mxu0 0.0
    %3329 = vmatprep.subr.mxu0 0.0
    %3330 = vmatpush1.msra.mxu0 0.0
    %3331 = vmatprep.subr.mxu0 0.0
    %3332 = vmatpush1.msra.mxu0 0.0
    %3333 = vmatprep.subr.mxu0 0.0
    %3334 = vmatpush1.msra.mxu0 0.0
    %3335 = vmatprep.subr.mxu0 0.0
    %3336 = vmatpush1.msra.mxu0 0.0
    %3337 = vmatprep.subr.mxu0 0.0
    %3338 = vmatpush1.msra.mxu0 0.0
    %3339 = vmatprep.subr.mxu0 0.0
    %3340 = vmatpush1.msra.mxu0 0.0
    %3341 = vmatprep.subr.mxu0 0.0
    %3342 = vmatpush1.msra.mxu0 0.0
    %3343 = vmatprep.subr.mxu0 0.0
    %3344 = vmatpush1.msra.mxu0 0.0
    %3345 = vmatprep.subr.mxu0 0.0
    %3346 = vmatpush1.msra.mxu0 0.0
    %3347 = vmatprep.subr.mxu0 0.0
    %3348 = vmatpush1.msra.mxu0 0.0
    %3349 = vmatprep.subr.mxu0 0.0
    %3350 = vmatpush1.msra.mxu0 0.0
    %3351 = vmatprep.subr.mxu0 0.0
    %3352 = vmatpush1.msra.mxu0 0.0
    %3353 = vmatprep.subr.mxu0 0.0
    %3354 = vmatpush1.msra.mxu0 0.0
    %3355 = vmatprep.subr.mxu0 0.0
    %3356 = vmatpush1.msra.mxu0 0.0
    %3357 = vmatprep.subr.mxu0 0.0
    %3358 = vmatpush1.msra.mxu0 0.0
    %3359 = vmatprep.subr.mxu0 0.0
    %3360 = vmatpush1.msra.mxu0 0.0
    %3361 = vmatprep.subr.mxu0 0.0
    %3362 = vmatpush1.msra.mxu0 0.0
    %3363 = vmatprep.subr.mxu0 0.0
    %3364 = vmatpush1.msra.mxu0 0.0
    %3365 = vmatprep.subr.mxu0 0.0
    %3366 = vmatpush1.msra.mxu0 0.0
    %3367 = vmatprep.mubr.f32.mxu0 0.0
    %3368 = vmatmul.mubr.f32.gmra.mrb[0].mxu0 %v3117
    %v3369 = vpop.f32.mrb[0].mxu0
    %v3370 = vadd.f32 %v3301, %v3369
    %v3371 = vpop.f32.mrb[0].mxu0
    %3372 = vdwg.mxu0
    %v3373 = vmul.f32 %v3273, %v3370
    %v3374 = vadd.f32 %v3296, %v3373
    %v3375 = vtanh.pop %v3374
    %v3376 = vsub.f32 %v3115, %v3375
    %v3377 = vmul.f32 %v3288, %v3376
    %v3378 = vadd.f32 %v3375, %v3377
    %3379 = vst.msk [vmem:[#allocation12] sm:$0xff] %vm228, %v3378
    %v3381 = vsel %vm228, %v3378, 0
    %3383 = vmatprep.subr.mxu0 0.0
    %3384 = vmatpush1.msra.mxu0 %v3092
    %3385 = vmatprep.subr.mxu0 0.0
    %3386 = vmatpush1.msra.mxu0 %v3093
    %3387 = vmatprep.subr.mxu0 0.0
    %3388 = vmatpush1.msra.mxu0 %v3094
    %3389 = vmatprep.subr.mxu0 0.0
    %3390 = vmatpush1.msra.mxu0 %v3095
    %3391 = vmatprep.subr.mxu0 0.0
    %3392 = vmatpush1.msra.mxu0 0.0
    %3393 = vmatprep.subr.mxu0 0.0
    %3394 = vmatpush1.msra.mxu0 0.0
    %3395 = vmatprep.subr.mxu0 0.0
    %3396 = vmatpush1.msra.mxu0 0.0
    %3397 = vmatprep.subr.mxu0 0.0
    %3398 = vmatpush1.msra.mxu0 0.0
    %3399 = vmatprep.subr.mxu0 0.0
    %3400 = vmatpush1.msra.mxu0 0.0
    %3401 = vmatprep.subr.mxu0 0.0
    %3402 = vmatpush1.msra.mxu0 0.0
    %3403 = vmatprep.subr.mxu0 0.0
    %3404 = vmatpush1.msra.mxu0 0.0
    %3405 = vmatprep.subr.mxu0 0.0
    %3406 = vmatpush1.msra.mxu0 0.0
    %3407 = vmatprep.subr.mxu0 0.0
    %3408 = vmatpush1.msra.mxu0 0.0
    %3409 = vmatprep.subr.mxu0 0.0
    %3410 = vmatpush1.msra.mxu0 0.0
    %3411 = vmatprep.subr.mxu0 0.0
    %3412 = vmatpush1.msra.mxu0 0.0
    %3413 = vmatprep.subr.mxu0 0.0
    %3414 = vmatpush1.msra.mxu0 0.0
    %3415 = vmatprep.subr.mxu0 0.0
    %3416 = vmatpush1.msra.mxu0 0.0
    %3417 = vmatprep.subr.mxu0 0.0
    %3418 = vmatpush1.msra.mxu0 0.0
    %3419 = vmatprep.subr.mxu0 0.0
    %3420 = vmatpush1.msra.mxu0 0.0
    %3421 = vmatprep.subr.mxu0 0.0
    %3422 = vmatpush1.msra.mxu0 0.0
    %3423 = vmatprep.subr.mxu0 0.0
    %3424 = vmatpush1.msra.mxu0 0.0
    %3425 = vmatprep.subr.mxu0 0.0
    %3426 = vmatpush1.msra.mxu0 0.0
    %3427 = vmatprep.subr.mxu0 0.0
    %3428 = vmatpush1.msra.mxu0 0.0
    %3429 = vmatprep.subr.mxu0 0.0
    %3430 = vmatpush1.msra.mxu0 0.0
    %3431 = vmatprep.subr.mxu0 0.0
    %3432 = vmatpush1.msra.mxu0 0.0
    %3433 = vmatprep.subr.mxu0 0.0
    %3434 = vmatpush1.msra.mxu0 0.0
    %3435 = vmatprep.subr.mxu0 0.0
    %3436 = vmatpush1.msra.mxu0 0.0
    %3437 = vmatprep.subr.mxu0 0.0
    %3438 = vmatpush1.msra.mxu0 0.0
    %3439 = vmatprep.subr.mxu0 0.0
    %3440 = vmatpush1.msra.mxu0 0.0
    %3441 = vmatprep.subr.mxu0 0.0
    %3442 = vmatpush1.msra.mxu0 0.0
    %3443 = vmatprep.subr.mxu0 0.0
    %3444 = vmatpush1.msra.mxu0 0.0
    %3445 = vmatprep.subr.mxu0 0.0
    %3446 = vmatpush1.msra.mxu0 0.0
    %3447 = vmatprep.mubr.f32.mxu0 0.0
    %3448 = vmatmul.mubr.f32.gmra.mrb[0].mxu0 %v3381
    %v3449 = vpop.f32.mrb[0].mxu0
    %v3450 = vadd.f32 0.0, %v3449
    %v3451 = vpop.f32.mrb[0].mxu0
    %3452 = vdwg.mxu0
    %3453 = vmatprep.subr.mxu0 0.0
    %3454 = vmatpush1.msra.mxu0 %v3097
    %3455 = vmatprep.subr.mxu0 0.0
    %3456 = vmatpush1.msra.mxu0 %v3098
    %3457 = vmatprep.subr.mxu0 0.0
    %3458 = vmatpush1.msra.mxu0 %v3099
    %3459 = vmatprep.subr.mxu0 0.0
    %3460 = vmatpush1.msra.mxu0 %v3100
    %3461 = vmatprep.subr.mxu0 0.0
    %3462 = vmatpush1.msra.mxu0 0.0
    %3463 = vmatprep.subr.mxu0 0.0
    %3464 = vmatpush1.msra.mxu0 0.0
    %3465 = vmatprep.subr.mxu0 0.0
    %3466 = vmatpush1.msra.mxu0 0.0
    %3467 = vmatprep.subr.mxu0 0.0
    %3468 = vmatpush1.msra.mxu0 0.0
    %3469 = vmatprep.subr.mxu0 0.0
    %3470 = vmatpush1.msra.mxu0 0.0
    %3471 = vmatprep.subr.mxu0 0.0
    %3472 = vmatpush1.msra.mxu0 0.0
    %3473 = vmatprep.subr.mxu0 0.0
    %3474 = vmatpush1.msra.mxu0 0.0
    %3475 = vmatprep.subr.mxu0 0.0
    %3476 = vmatpush1.msra.mxu0 0.0
    %3477 = vmatprep.subr.mxu0 0.0
    %3478 = vmatpush1.msra.mxu0 0.0
    %3479 = vmatprep.subr.mxu0 0.0
    %3480 = vmatpush1.msra.mxu0 0.0
    %3481 = vmatprep.subr.mxu0 0.0
    %3482 = vmatpush1.msra.mxu0 0.0
    %3483 = vmatprep.subr.mxu0 0.0
    %3484 = vmatpush1.msra.mxu0 0.0
    %3485 = vmatprep.subr.mxu0 0.0
    %3486 = vmatpush1.msra.mxu0 0.0
    %3487 = vmatprep.subr.mxu0 0.0
    %3488 = vmatpush1.msra.mxu0 0.0
    %3489 = vmatprep.subr.mxu0 0.0
    %3490 = vmatpush1.msra.mxu0 0.0
    %3491 = vmatprep.subr.mxu0 0.0
    %3492 = vmatpush1.msra.mxu0 0.0
    %3493 = vmatprep.subr.mxu0 0.0
    %3494 = vmatpush1.msra.mxu0 0.0
    %3495 = vmatprep.subr.mxu0 0.0
    %3496 = vmatpush1.msra.mxu0 0.0
    %3497 = vmatprep.subr.mxu0 0.0
    %3498 = vmatpush1.msra.mxu0 0.0
    %3499 = vmatprep.subr.mxu0 0.0
    %3500 = vmatpush1.msra.mxu0 0.0
    %3501 = vmatprep.subr.mxu0 0.0
    %3502 = vmatpush1.msra.mxu0 0.0
    %3503 = vmatprep.subr.mxu0 0.0
    %3504 = vmatpush1.msra.mxu0 0.0
    %3505 = vmatprep.subr.mxu0 0.0
    %3506 = vmatpush1.msra.mxu0 0.0
    %3507 = vmatprep.subr.mxu0 0.0
    %3508 = vmatpush1.msra.mxu0 0.0
    %3509 = vmatprep.subr.mxu0 0.0
    %3510 = vmatpush1.msra.mxu0 0.0
    %3511 = vmatprep.subr.mxu0 0.0
    %3512 = vmatpush1.msra.mxu0 0.0
    %3513 = vmatprep.subr.mxu0 0.0
    %3514 = vmatpush1.msra.mxu0 0.0
    %3515 = vmatprep.subr.mxu0 0.0
    %3516 = vmatpush1.msra.mxu0 0.0
    %3517 = vmatprep.mubr.f32.mxu0 0.0
    %3518 = vmatmul.mubr.f32.gmra.mrb[0].mxu0 %v3381
    %v3519 = vpop.f32.mrb[0].mxu0
    %v3520 = vadd.f32 0.0, %v3519
    %v3521 = vpop.f32.mrb[0].mxu0
    %3522 = vdwg.mxu0
    %v3523 = vld [vmem:[#allocation4 + $0x8] sm:$0xff]
    %v3524 = vadd.f32 %v3523, %v3450
    %v3525 = vadd.f32 %v3524, %v3265
    %v3526 = vxor.u32 %v3525, 2147483648
    %v3527 = vmul.f32 %v3526, 1.442695
    %v3528 = vpow.pop %v3527
    %v3529 = vadd.f32 %v3528, 1.0
    %v3530 = vrcp.pop %v3529
    %v3531 = vmul.f32 1.0, %v3530
    %v3532 = vld [vmem:[%s496 + $0x8] sm:$0xff]
    %v3533 = vadd.f32 %v3532, %v3520
    %v3534 = vadd.f32 %v3533, %v3280
    %v3535 = vxor.u32 %v3534, 2147483648
    %v3536 = vmul.f32 %v3535, 1.442695
    %v3537 = vpow.pop %v3536
    %v3538 = vadd.f32 %v3537, 1.0
    %v3539 = vrcp.pop %v3538
    %v3540 = vmul.f32 1.0, %v3539
    %v3541 = vld [vmem:[%s615 + $0x8] sm:$0xff]
    %v3542 = vadd.f32 %v3541, %v3294
    %3543 = vmatprep.subr.mxu0 0.0
    %3544 = vmatpush1.msra.mxu0 %v3102
    %3545 = vmatprep.subr.mxu0 0.0
    %3546 = vmatpush1.msra.mxu0 %v3103
    %3547 = vmatprep.subr.mxu0 0.0
    %3548 = vmatpush1.msra.mxu0 %v3104
    %3549 = vmatprep.subr.mxu0 0.0
    %3550 = vmatpush1.msra.mxu0 %v3105
    %3551 = vmatprep.subr.mxu0 0.0
    %3552 = vmatpush1.msra.mxu0 0.0
    %3553 = vmatprep.subr.mxu0 0.0
    %3554 = vmatpush1.msra.mxu0 0.0
    %3555 = vmatprep.subr.mxu0 0.0
    %3556 = vmatpush1.msra.mxu0 0.0
    %3557 = vmatprep.subr.mxu0 0.0
    %3558 = vmatpush1.msra.mxu0 0.0
    %3559 = vmatprep.subr.mxu0 0.0
    %3560 = vmatpush1.msra.mxu0 0.0
    %3561 = vmatprep.subr.mxu0 0.0
    %3562 = vmatpush1.msra.mxu0 0.0
    %3563 = vmatprep.subr.mxu0 0.0
    %3564 = vmatpush1.msra.mxu0 0.0
    %3565 = vmatprep.subr.mxu0 0.0
    %3566 = vmatpush1.msra.mxu0 0.0
    %3567 = vmatprep.subr.mxu0 0.0
    %3568 = vmatpush1.msra.mxu0 0.0
    %3569 = vmatprep.subr.mxu0 0.0
    %3570 = vmatpush1.msra.mxu0 0.0
    %3571 = vmatprep.subr.mxu0 0.0
    %3572 = vmatpush1.msra.mxu0 0.0
    %3573 = vmatprep.subr.mxu0 0.0
    %3574 = vmatpush1.msra.mxu0 0.0
    %3575 = vmatprep.subr.mxu0 0.0
    %3576 = vmatpush1.msra.mxu0 0.0
    %3577 = vmatprep.subr.mxu0 0.0
    %3578 = vmatpush1.msra.mxu0 0.0
    %3579 = vmatprep.subr.mxu0 0.0
    %3580 = vmatpush1.msra.mxu0 0.0
    %3581 = vmatprep.subr.mxu0 0.0
    %3582 = vmatpush1.msra.mxu0 0.0
    %3583 = vmatprep.subr.mxu0 0.0
    %3584 = vmatpush1.msra.mxu0 0.0
    %3585 = vmatprep.subr.mxu0 0.0
    %3586 = vmatpush1.msra.mxu0 0.0
    %3587 = vmatprep.subr.mxu0 0.0
    %3588 = vmatpush1.msra.mxu0 0.0
    %3589 = vmatprep.subr.mxu0 0.0
    %3590 = vmatpush1.msra.mxu0 0.0
    %3591 = vmatprep.subr.mxu0 0.0
    %3592 = vmatpush1.msra.mxu0 0.0
    %3593 = vmatprep.subr.mxu0 0.0
    %3594 = vmatpush1.msra.mxu0 0.0
    %3595 = vmatprep.subr.mxu0 0.0
    %3596 = vmatpush1.msra.mxu0 0.0
    %3597 = vmatprep.subr.mxu0 0.0
    %3598 = vmatpush1.msra.mxu0 0.0
    %3599 = vmatprep.subr.mxu0 0.0
    %3600 = vmatpush1.msra.mxu0 0.0
    %3601 = vmatprep.subr.mxu0 0.0
    %3602 = vmatpush1.msra.mxu0 0.0
    %3603 = vmatprep.subr.mxu0 0.0
    %3604 = vmatpush1.msra.mxu0 0.0
    %3605 = vmatprep.subr.mxu0 0.0
    %3606 = vmatpush1.msra.mxu0 0.0
    %3607 = vmatprep.mubr.f32.mxu0 0.0
    %3608 = vmatmul.mubr.f32.gmra.mrb[0].mxu0 %v3381
    %v3609 = vpop.f32.mrb[0].mxu0
    %v3610 = vadd.f32 %v3301, %v3609
    %v3611 = vpop.f32.mrb[0].mxu0
    %3612 = vdwg.mxu0
    %v3613 = vmul.f32 %v3531, %v3610
    %v3614 = vadd.f32 %v3542, %v3613
    %v3615 = vtanh.pop %v3614
    %v3616 = vsub.f32 %v3378, %v3615
    %v3617 = vmul.f32 %v3540, %v3616
    %v3618 = vadd.f32 %v3615, %v3617
    %s3619 = scalar_lea.vmem [#allocation12], 8
    %3620 = vst.msk [vmem:[%s3619] sm:$0xff] %vm228, %v3618
    %v3622 = vsel %vm228, %v3618, 0
    %3624 = vmatprep.subr.mxu0 0.0
    %3625 = vmatpush1.msra.mxu0 %v3092
    %3626 = vmatprep.subr.mxu0 0.0
    %3627 = vmatpush1.msra.mxu0 %v3093
    %3628 = vmatprep.subr.mxu0 0.0
    %3629 = vmatpush1.msra.mxu0 %v3094
    %3630 = vmatprep.subr.mxu0 0.0
    %3631 = vmatpush1.msra.mxu0 %v3095
    %3632 = vmatprep.subr.mxu0 0.0
    %3633 = vmatpush1.msra.mxu0 0.0
    %3634 = vmatprep.subr.mxu0 0.0
    %3635 = vmatpush1.msra.mxu0 0.0
    %3636 = vmatprep.subr.mxu0 0.0
    %3637 = vmatpush1.msra.mxu0 0.0
    %3638 = vmatprep.subr.mxu0 0.0
    %3639 = vmatpush1.msra.mxu0 0.0
    %3640 = vmatprep.subr.mxu0 0.0
    %3641 = vmatpush1.msra.mxu0 0.0
    %3642 = vmatprep.subr.mxu0 0.0
    %3643 = vmatpush1.msra.mxu0 0.0
    %3644 = vmatprep.subr.mxu0 0.0
    %3645 = vmatpush1.msra.mxu0 0.0
    %3646 = vmatprep.subr.mxu0 0.0
    %3647 = vmatpush1.msra.mxu0 0.0
    %3648 = vmatprep.subr.mxu0 0.0
    %3649 = vmatpush1.msra.mxu0 0.0
    %3650 = vmatprep.subr.mxu0 0.0
    %3651 = vmatpush1.msra.mxu0 0.0
    %3652 = vmatprep.subr.mxu0 0.0
    %3653 = vmatpush1.msra.mxu0 0.0
    %3654 = vmatprep.subr.mxu0 0.0
    %3655 = vmatpush1.msra.mxu0 0.0
    %3656 = vmatprep.subr.mxu0 0.0
    %3657 = vmatpush1.msra.mxu0 0.0
    %3658 = vmatprep.subr.mxu0 0.0
    %3659 = vmatpush1.msra.mxu0 0.0
    %3660 = vmatprep.subr.mxu0 0.0
    %3661 = vmatpush1.msra.mxu0 0.0
    %3662 = vmatprep.subr.mxu0 0.0
    %3663 = vmatpush1.msra.mxu0 0.0
    %3664 = vmatprep.subr.mxu0 0.0
    %3665 = vmatpush1.msra.mxu0 0.0
    %3666 = vmatprep.subr.mxu0 0.0
    %3667 = vmatpush1.msra.mxu0 0.0
    %3668 = vmatprep.subr.mxu0 0.0
    %3669 = vmatpush1.msra.mxu0 0.0
    %3670 = vmatprep.subr.mxu0 0.0
    %3671 = vmatpush1.msra.mxu0 0.0
    %3672 = vmatprep.subr.mxu0 0.0
    %3673 = vmatpush1.msra.mxu0 0.0
    %3674 = vmatprep.subr.mxu0 0.0
    %3675 = vmatpush1.msra.mxu0 0.0
    %3676 = vmatprep.subr.mxu0 0.0
    %3677 = vmatpush1.msra.mxu0 0.0
    %3678 = vmatprep.subr.mxu0 0.0
    %3679 = vmatpush1.msra.mxu0 0.0
    %3680 = vmatprep.subr.mxu0 0.0
    %3681 = vmatpush1.msra.mxu0 0.0
    %3682 = vmatprep.subr.mxu0 0.0
    %3683 = vmatpush1.msra.mxu0 0.0
    %3684 = vmatprep.subr.mxu0 0.0
    %3685 = vmatpush1.msra.mxu0 0.0
    %3686 = vmatprep.subr.mxu0 0.0
    %3687 = vmatpush1.msra.mxu0 0.0
    %3688 = vmatprep.mubr.f32.mxu0 0.0
    %3689 = vmatmul.mubr.f32.gmra.mrb[0].mxu0 %v3622
    %v3690 = vpop.f32.mrb[0].mxu0
    %v3691 = vadd.f32 0.0, %v3690
    %v3692 = vpop.f32.mrb[0].mxu0
    %3693 = vdwg.mxu0
    %3694 = vmatprep.subr.mxu0 0.0
    %3695 = vmatpush1.msra.mxu0 %v3097
    %3696 = vmatprep.subr.mxu0 0.0
    %3697 = vmatpush1.msra.mxu0 %v3098
    %3698 = vmatprep.subr.mxu0 0.0
    %3699 = vmatpush1.msra.mxu0 %v3099
    %3700 = vmatprep.subr.mxu0 0.0
    %3701 = vmatpush1.msra.mxu0 %v3100
    %3702 = vmatprep.subr.mxu0 0.0
    %3703 = vmatpush1.msra.mxu0 0.0
    %3704 = vmatprep.subr.mxu0 0.0
    %3705 = vmatpush1.msra.mxu0 0.0
    %3706 = vmatprep.subr.mxu0 0.0
    %3707 = vmatpush1.msra.mxu0 0.0
    %3708 = vmatprep.subr.mxu0 0.0
    %3709 = vmatpush1.msra.mxu0 0.0
    %3710 = vmatprep.subr.mxu0 0.0
    %3711 = vmatpush1.msra.mxu0 0.0
    %3712 = vmatprep.subr.mxu0 0.0
    %3713 = vmatpush1.msra.mxu0 0.0
    %3714 = vmatprep.subr.mxu0 0.0
    %3715 = vmatpush1.msra.mxu0 0.0
    %3716 = vmatprep.subr.mxu0 0.0
    %3717 = vmatpush1.msra.mxu0 0.0
    %3718 = vmatprep.subr.mxu0 0.0
    %3719 = vmatpush1.msra.mxu0 0.0
    %3720 = vmatprep.subr.mxu0 0.0
    %3721 = vmatpush1.msra.mxu0 0.0
    %3722 = vmatprep.subr.mxu0 0.0
    %3723 = vmatpush1.msra.mxu0 0.0
    %3724 = vmatprep.subr.mxu0 0.0
    %3725 = vmatpush1.msra.mxu0 0.0
    %3726 = vmatprep.subr.mxu0 0.0
    %3727 = vmatpush1.msra.mxu0 0.0
    %3728 = vmatprep.subr.mxu0 0.0
    %3729 = vmatpush1.msra.mxu0 0.0
    %3730 = vmatprep.subr.mxu0 0.0
    %3731 = vmatpush1.msra.mxu0 0.0
    %3732 = vmatprep.subr.mxu0 0.0
    %3733 = vmatpush1.msra.mxu0 0.0
    %3734 = vmatprep.subr.mxu0 0.0
    %3735 = vmatpush1.msra.mxu0 0.0
    %3736 = vmatprep.subr.mxu0 0.0
    %3737 = vmatpush1.msra.mxu0 0.0
    %3738 = vmatprep.subr.mxu0 0.0
    %3739 = vmatpush1.msra.mxu0 0.0
    %3740 = vmatprep.subr.mxu0 0.0
    %3741 = vmatpush1.msra.mxu0 0.0
    %3742 = vmatprep.subr.mxu0 0.0
    %3743 = vmatpush1.msra.mxu0 0.0
    %3744 = vmatprep.subr.mxu0 0.0
    %3745 = vmatpush1.msra.mxu0 0.0
    %3746 = vmatprep.subr.mxu0 0.0
    %3747 = vmatpush1.msra.mxu0 0.0
    %3748 = vmatprep.subr.mxu0 0.0
    %3749 = vmatpush1.msra.mxu0 0.0
    %3750 = vmatprep.subr.mxu0 0.0
    %3751 = vmatpush1.msra.mxu0 0.0
    %3752 = vmatprep.subr.mxu0 0.0
    %3753 = vmatpush1.msra.mxu0 0.0
    %3754 = vmatprep.subr.mxu0 0.0
    %3755 = vmatpush1.msra.mxu0 0.0
    %3756 = vmatprep.subr.mxu0 0.0
    %3757 = vmatpush1.msra.mxu0 0.0
    %3758 = vmatprep.mubr.f32.mxu0 0.0
    %3759 = vmatmul.mubr.f32.gmra.mrb[0].mxu0 %v3622
    %v3760 = vpop.f32.mrb[0].mxu0
    %v3761 = vadd.f32 0.0, %v3760
    %v3762 = vpop.f32.mrb[0].mxu0
    %3763 = vdwg.mxu0
    %v3764 = vld [vmem:[#allocation4 + $0x10] sm:$0xff]
    %v3765 = vadd.f32 %v3764, %v3691
    %v3766 = vadd.f32 %v3765, %v3265
    %v3767 = vxor.u32 %v3766, 2147483648
    %v3768 = vmul.f32 %v3767, 1.442695
    %v3769 = vpow.pop %v3768
    %v3770 = vadd.f32 %v3769, 1.0
    %v3771 = vrcp.pop %v3770
    %v3772 = vmul.f32 1.0, %v3771
    %v3773 = vld [vmem:[%s496 + $0x10] sm:$0xff]
    %v3774 = vadd.f32 %v3773, %v3761
    %v3775 = vadd.f32 %v3774, %v3280
    %v3776 = vxor.u32 %v3775, 2147483648
    %v3777 = vmul.f32 %v3776, 1.442695
    %v3778 = vpow.pop %v3777
    %v3779 = vadd.f32 %v3778, 1.0
    %v3780 = vrcp.pop %v3779
    %v3781 = vmul.f32 1.0, %v3780
    %v3782 = vld [vmem:[%s615 + $0x10] sm:$0xff]
    %v3783 = vadd.f32 %v3782, %v3294
    %3784 = vmatprep.subr.mxu0 0.0
    %3785 = vmatpush1.msra.mxu0 %v3102
    %3786 = vmatprep.subr.mxu0 0.0
    %3787 = vmatpush1.msra.mxu0 %v3103
    %3788 = vmatprep.subr.mxu0 0.0
    %3789 = vmatpush1.msra.mxu0 %v3104
    %3790 = vmatprep.subr.mxu0 0.0
    %3791 = vmatpush1.msra.mxu0 %v3105
    %3792 = vmatprep.subr.mxu0 0.0
    %3793 = vmatpush1.msra.mxu0 0.0
    %3794 = vmatprep.subr.mxu0 0.0
    %3795 = vmatpush1.msra.mxu0 0.0
    %3796 = vmatprep.subr.mxu0 0.0
    %3797 = vmatpush1.msra.mxu0 0.0
    %3798 = vmatprep.subr.mxu0 0.0
    %3799 = vmatpush1.msra.mxu0 0.0
    %3800 = vmatprep.subr.mxu0 0.0
    %3801 = vmatpush1.msra.mxu0 0.0
    %3802 = vmatprep.subr.mxu0 0.0
    %3803 = vmatpush1.msra.mxu0 0.0
    %3804 = vmatprep.subr.mxu0 0.0
    %3805 = vmatpush1.msra.mxu0 0.0
    %3806 = vmatprep.subr.mxu0 0.0
    %3807 = vmatpush1.msra.mxu0 0.0
    %3808 = vmatprep.subr.mxu0 0.0
    %3809 = vmatpush1.msra.mxu0 0.0
    %3810 = vmatprep.subr.mxu0 0.0
    %3811 = vmatpush1.msra.mxu0 0.0
    %3812 = vmatprep.subr.mxu0 0.0
    %3813 = vmatpush1.msra.mxu0 0.0
    %3814 = vmatprep.subr.mxu0 0.0
    %3815 = vmatpush1.msra.mxu0 0.0
    %3816 = vmatprep.subr.mxu0 0.0
    %3817 = vmatpush1.msra.mxu0 0.0
    %3818 = vmatprep.subr.mxu0 0.0
    %3819 = vmatpush1.msra.mxu0 0.0
    %3820 = vmatprep.subr.mxu0 0.0
    %3821 = vmatpush1.msra.mxu0 0.0
    %3822 = vmatprep.subr.mxu0 0.0
    %3823 = vmatpush1.msra.mxu0 0.0
    %3824 = vmatprep.subr.mxu0 0.0
    %3825 = vmatpush1.msra.mxu0 0.0
    %3826 = vmatprep.subr.mxu0 0.0
    %3827 = vmatpush1.msra.mxu0 0.0
    %3828 = vmatprep.subr.mxu0 0.0
    %3829 = vmatpush1.msra.mxu0 0.0
    %3830 = vmatprep.subr.mxu0 0.0
    %3831 = vmatpush1.msra.mxu0 0.0
    %3832 = vmatprep.subr.mxu0 0.0
    %3833 = vmatpush1.msra.mxu0 0.0
    %3834 = vmatprep.subr.mxu0 0.0
    %3835 = vmatpush1.msra.mxu0 0.0
    %3836 = vmatprep.subr.mxu0 0.0
    %3837 = vmatpush1.msra.mxu0 0.0
    %3838 = vmatprep.subr.mxu0 0.0
    %3839 = vmatpush1.msra.mxu0 0.0
    %3840 = vmatprep.subr.mxu0 0.0
    %3841 = vmatpush1.msra.mxu0 0.0
    %3842 = vmatprep.subr.mxu0 0.0
    %3843 = vmatpush1.msra.mxu0 0.0
    %3844 = vmatprep.subr.mxu0 0.0
    %3845 = vmatpush1.msra.mxu0 0.0
    %3846 = vmatprep.subr.mxu0 0.0
    %3847 = vmatpush1.msra.mxu0 0.0
    %3848 = vmatprep.mubr.f32.mxu0 0.0
    %3849 = vmatmul.mubr.f32.gmra.mrb[0].mxu0 %v3622
    %v3850 = vpop.f32.mrb[0].mxu0
    %v3851 = vadd.f32 %v3301, %v3850
    %v3852 = vpop.f32.mrb[0].mxu0
    %3853 = vdwg.mxu0
    %v3854 = vmul.f32 %v3772, %v3851
    %v3855 = vadd.f32 %v3783, %v3854
    %v3856 = vtanh.pop %v3855
    %v3857 = vsub.f32 %v3618, %v3856
    %v3858 = vmul.f32 %v3781, %v3857
    %v3859 = vadd.f32 %v3856, %v3858
    %s3860 = scalar_lea.vmem [#allocation12], 16
    %3861 = vst.msk [vmem:[%s3860] sm:$0xff] %vm228, %v3859
    %v3863 = vsel %vm228, %v3859, 0
    %3865 = vmatprep.subr.mxu0 0.0
    %3866 = vmatpush1.msra.mxu0 %v3092
    %3867 = vmatprep.subr.mxu0 0.0
    %3868 = vmatpush1.msra.mxu0 %v3093
    %3869 = vmatprep.subr.mxu0 0.0
    %3870 = vmatpush1.msra.mxu0 %v3094
    %3871 = vmatprep.subr.mxu0 0.0
    %3872 = vmatpush1.msra.mxu0 %v3095
    %3873 = vmatprep.subr.mxu0 0.0
    %3874 = vmatpush1.msra.mxu0 0.0
    %3875 = vmatprep.subr.mxu0 0.0
    %3876 = vmatpush1.msra.mxu0 0.0
    %3877 = vmatprep.subr.mxu0 0.0
    %3878 = vmatpush1.msra.mxu0 0.0
    %3879 = vmatprep.subr.mxu0 0.0
    %3880 = vmatpush1.msra.mxu0 0.0
    %3881 = vmatprep.subr.mxu0 0.0
    %3882 = vmatpush1.msra.mxu0 0.0
    %3883 = vmatprep.subr.mxu0 0.0
    %3884 = vmatpush1.msra.mxu0 0.0
    %3885 = vmatprep.subr.mxu0 0.0
    %3886 = vmatpush1.msra.mxu0 0.0
    %3887 = vmatprep.subr.mxu0 0.0
    %3888 = vmatpush1.msra.mxu0 0.0
    %3889 = vmatprep.subr.mxu0 0.0
    %3890 = vmatpush1.msra.mxu0 0.0
    %3891 = vmatprep.subr.mxu0 0.0
    %3892 = vmatpush1.msra.mxu0 0.0
    %3893 = vmatprep.subr.mxu0 0.0
    %3894 = vmatpush1.msra.mxu0 0.0
    %3895 = vmatprep.subr.mxu0 0.0
    %3896 = vmatpush1.msra.mxu0 0.0
    %3897 = vmatprep.subr.mxu0 0.0
    %3898 = vmatpush1.msra.mxu0 0.0
    %3899 = vmatprep.subr.mxu0 0.0
    %3900 = vmatpush1.msra.mxu0 0.0
    %3901 = vmatprep.subr.mxu0 0.0
    %3902 = vmatpush1.msra.mxu0 0.0
    %3903 = vmatprep.subr.mxu0 0.0
    %3904 = vmatpush1.msra.mxu0 0.0
    %3905 = vmatprep.subr.mxu0 0.0
    %3906 = vmatpush1.msra.mxu0 0.0
    %3907 = vmatprep.subr.mxu0 0.0
    %3908 = vmatpush1.msra.mxu0 0.0
    %3909 = vmatprep.subr.mxu0 0.0
    %3910 = vmatpush1.msra.mxu0 0.0
    %3911 = vmatprep.subr.mxu0 0.0
    %3912 = vmatpush1.msra.mxu0 0.0
    %3913 = vmatprep.subr.mxu0 0.0
    %3914 = vmatpush1.msra.mxu0 0.0
    %3915 = vmatprep.subr.mxu0 0.0
    %3916 = vmatpush1.msra.mxu0 0.0
    %3917 = vmatprep.subr.mxu0 0.0
    %3918 = vmatpush1.msra.mxu0 0.0
    %3919 = vmatprep.subr.mxu0 0.0
    %3920 = vmatpush1.msra.mxu0 0.0
    %3921 = vmatprep.subr.mxu0 0.0
    %3922 = vmatpush1.msra.mxu0 0.0
    %3923 = vmatprep.subr.mxu0 0.0
    %3924 = vmatpush1.msra.mxu0 0.0
    %3925 = vmatprep.subr.mxu0 0.0
    %3926 = vmatpush1.msra.mxu0 0.0
    %3927 = vmatprep.subr.mxu0 0.0
    %3928 = vmatpush1.msra.mxu0 0.0
    %3929 = vmatprep.mubr.f32.mxu0 0.0
    %3930 = vmatmul.mubr.f32.gmra.mrb[0].mxu0 %v3863
    %v3931 = vpop.f32.mrb[0].mxu0
    %v3932 = vadd.f32 0.0, %v3931
    %v3933 = vpop.f32.mrb[0].mxu0
    %3934 = vdwg.mxu0
    %3935 = vmatprep.subr.mxu0 0.0
    %3936 = vmatpush1.msra.mxu0 %v3097
    %3937 = vmatprep.subr.mxu0 0.0
    %3938 = vmatpush1.msra.mxu0 %v3098
    %3939 = vmatprep.subr.mxu0 0.0
    %3940 = vmatpush1.msra.mxu0 %v3099
    %3941 = vmatprep.subr.mxu0 0.0
    %3942 = vmatpush1.msra.mxu0 %v3100
    %3943 = vmatprep.subr.mxu0 0.0
    %3944 = vmatpush1.msra.mxu0 0.0
    %3945 = vmatprep.subr.mxu0 0.0
    %3946 = vmatpush1.msra.mxu0 0.0
    %3947 = vmatprep.subr.mxu0 0.0
    %3948 = vmatpush1.msra.mxu0 0.0
    %3949 = vmatprep.subr.mxu0 0.0
    %3950 = vmatpush1.msra.mxu0 0.0
    %3951 = vmatprep.subr.mxu0 0.0
    %3952 = vmatpush1.msra.mxu0 0.0
    %3953 = vmatprep.subr.mxu0 0.0
    %3954 = vmatpush1.msra.mxu0 0.0
    %3955 = vmatprep.subr.mxu0 0.0
    %3956 = vmatpush1.msra.mxu0 0.0
    %3957 = vmatprep.subr.mxu0 0.0
    %3958 = vmatpush1.msra.mxu0 0.0
    %3959 = vmatprep.subr.mxu0 0.0
    %3960 = vmatpush1.msra.mxu0 0.0
    %3961 = vmatprep.subr.mxu0 0.0
    %3962 = vmatpush1.msra.mxu0 0.0
    %3963 = vmatprep.subr.mxu0 0.0
    %3964 = vmatpush1.msra.mxu0 0.0
    %3965 = vmatprep.subr.mxu0 0.0
    %3966 = vmatpush1.msra.mxu0 0.0
    %3967 = vmatprep.subr.mxu0 0.0
    %3968 = vmatpush1.msra.mxu0 0.0
    %3969 = vmatprep.subr.mxu0 0.0
    %3970 = vmatpush1.msra.mxu0 0.0
    %3971 = vmatprep.subr.mxu0 0.0
    %3972 = vmatpush1.msra.mxu0 0.0
    %3973 = vmatprep.subr.mxu0 0.0
    %3974 = vmatpush1.msra.mxu0 0.0
    %3975 = vmatprep.subr.mxu0 0.0
    %3976 = vmatpush1.msra.mxu0 0.0
    %3977 = vmatprep.subr.mxu0 0.0
    %3978 = vmatpush1.msra.mxu0 0.0
    %3979 = vmatprep.subr.mxu0 0.0
    %3980 = vmatpush1.msra.mxu0 0.0
    %3981 = vmatprep.subr.mxu0 0.0
    %3982 = vmatpush1.msra.mxu0 0.0
    %3983 = vmatprep.subr.mxu0 0.0
    %3984 = vmatpush1.msra.mxu0 0.0
    %3985 = vmatprep.subr.mxu0 0.0
    %3986 = vmatpush1.msra.mxu0 0.0
    %3987 = vmatprep.subr.mxu0 0.0
    %3988 = vmatpush1.msra.mxu0 0.0
    %3989 = vmatprep.subr.mxu0 0.0
    %3990 = vmatpush1.msra.mxu0 0.0
    %3991 = vmatprep.subr.mxu0 0.0
    %3992 = vmatpush1.msra.mxu0 0.0
    %3993 = vmatprep.subr.mxu0 0.0
    %3994 = vmatpush1.msra.mxu0 0.0
    %3995 = vmatprep.subr.mxu0 0.0
    %3996 = vmatpush1.msra.mxu0 0.0
    %3997 = vmatprep.subr.mxu0 0.0
    %3998 = vmatpush1.msra.mxu0 0.0
    %3999 = vmatprep.mubr.f32.mxu0 0.0
    %4000 = vmatmul.mubr.f32.gmra.mrb[0].mxu0 %v3863
    %v4001 = vpop.f32.mrb[0].mxu0
    %v4002 = vadd.f32 0.0, %v4001
    %v4003 = vpop.f32.mrb[0].mxu0
    %4004 = vdwg.mxu0
    %v4005 = vld [vmem:[#allocation4 + $0x18] sm:$0xff]
    %v4006 = vadd.f32 %v4005, %v3932
    %v4007 = vadd.f32 %v4006, %v3265
    %v4008 = vxor.u32 %v4007, 2147483648
    %v4009 = vmul.f32 %v4008, 1.442695
    %v4010 = vpow.pop %v4009
    %v4011 = vadd.f32 %v4010, 1.0
    %v4012 = vrcp.pop %v4011
    %v4013 = vmul.f32 1.0, %v4012
    %v4014 = vld [vmem:[%s496 + $0x18] sm:$0xff]
    %v4015 = vadd.f32 %v4014, %v4002
    %v4016 = vadd.f32 %v4015, %v3280
    %v4017 = vxor.u32 %v4016, 2147483648
    %v4018 = vmul.f32 %v4017, 1.442695
    %v4019 = vpow.pop %v4018
    %v4020 = vadd.f32 %v4019, 1.0
    %v4021 = vrcp.pop %v4020
    %v4022 = vmul.f32 1.0, %v4021
    %v4023 = vld [vmem:[%s615 + $0x18] sm:$0xff]
    %v4024 = vadd.f32 %v4023, %v3294
    %4025 = vmatprep.subr.mxu0 0.0
    %4026 = vmatpush1.msra.mxu0 %v3102
    %4027 = vmatprep.subr.mxu0 0.0
    %4028 = vmatpush1.msra.mxu0 %v3103
    %4029 = vmatprep.subr.mxu0 0.0
    %4030 = vmatpush1.msra.mxu0 %v3104
    %4031 = vmatprep.subr.mxu0 0.0
    %4032 = vmatpush1.msra.mxu0 %v3105
    %4033 = vmatprep.subr.mxu0 0.0
    %4034 = vmatpush1.msra.mxu0 0.0
    %4035 = vmatprep.subr.mxu0 0.0
    %4036 = vmatpush1.msra.mxu0 0.0
    %4037 = vmatprep.subr.mxu0 0.0
    %4038 = vmatpush1.msra.mxu0 0.0
    %4039 = vmatprep.subr.mxu0 0.0
    %4040 = vmatpush1.msra.mxu0 0.0
    %4041 = vmatprep.subr.mxu0 0.0
    %4042 = vmatpush1.msra.mxu0 0.0
    %4043 = vmatprep.subr.mxu0 0.0
    %4044 = vmatpush1.msra.mxu0 0.0
    %4045 = vmatprep.subr.mxu0 0.0
    %4046 = vmatpush1.msra.mxu0 0.0
    %4047 = vmatprep.subr.mxu0 0.0
    %4048 = vmatpush1.msra.mxu0 0.0
    %4049 = vmatprep.subr.mxu0 0.0
    %4050 = vmatpush1.msra.mxu0 0.0
    %4051 = vmatprep.subr.mxu0 0.0
    %4052 = vmatpush1.msra.mxu0 0.0
    %4053 = vmatprep.subr.mxu0 0.0
    %4054 = vmatpush1.msra.mxu0 0.0
    %4055 = vmatprep.subr.mxu0 0.0
    %4056 = vmatpush1.msra.mxu0 0.0
    %4057 = vmatprep.subr.mxu0 0.0
    %4058 = vmatpush1.msra.mxu0 0.0
    %4059 = vmatprep.subr.mxu0 0.0
    %4060 = vmatpush1.msra.mxu0 0.0
    %4061 = vmatprep.subr.mxu0 0.0
    %4062 = vmatpush1.msra.mxu0 0.0
    %4063 = vmatprep.subr.mxu0 0.0
    %4064 = vmatpush1.msra.mxu0 0.0
    %4065 = vmatprep.subr.mxu0 0.0
    %4066 = vmatpush1.msra.mxu0 0.0
    %4067 = vmatprep.subr.mxu0 0.0
    %4068 = vmatpush1.msra.mxu0 0.0
    %4069 = vmatprep.subr.mxu0 0.0
    %4070 = vmatpush1.msra.mxu0 0.0
    %4071 = vmatprep.subr.mxu0 0.0
    %4072 = vmatpush1.msra.mxu0 0.0
    %4073 = vmatprep.subr.mxu0 0.0
    %4074 = vmatpush1.msra.mxu0 0.0
    %4075 = vmatprep.subr.mxu0 0.0
    %4076 = vmatpush1.msra.mxu0 0.0
    %4077 = vmatprep.subr.mxu0 0.0
    %4078 = vmatpush1.msra.mxu0 0.0
    %4079 = vmatprep.subr.mxu0 0.0
    %4080 = vmatpush1.msra.mxu0 0.0
    %4081 = vmatprep.subr.mxu0 0.0
    %4082 = vmatpush1.msra.mxu0 0.0
    %4083 = vmatprep.subr.mxu0 0.0
    %4084 = vmatpush1.msra.mxu0 0.0
    %4085 = vmatprep.subr.mxu0 0.0
    %4086 = vmatpush1.msra.mxu0 0.0
    %4087 = vmatprep.subr.mxu0 0.0
    %4088 = vmatpush1.msra.mxu0 0.0
    %4089 = vmatprep.mubr.f32.mxu0 0.0
    %4090 = vmatmul.mubr.f32.gmra.mrb[0].mxu0 %v3863
    %v4091 = vpop.f32.mrb[0].mxu0
    %v4092 = vadd.f32 %v3301, %v4091
    %v4093 = vpop.f32.mrb[0].mxu0
    %4094 = vdwg.mxu0
    %v4095 = vmul.f32 %v4013, %v4092
    %v4096 = vadd.f32 %v4024, %v4095
    %v4097 = vtanh.pop %v4096
    %v4098 = vsub.f32 %v3859, %v4097
    %v4099 = vmul.f32 %v4022, %v4098
    %v4100 = vadd.f32 %v4097, %v4099
    %s4101 = scalar_lea.vmem [#allocation12], 24
    %4102 = vst.msk [vmem:[%s4101] sm:$0xff] %vm228, %v4100
    %v4104 = vsel %vm228, %v4100, 0
    %4106 = vmatprep.subr.mxu0 0.0
    %4107 = vmatpush1.msra.mxu0 %v3092
    %4108 = vmatprep.subr.mxu0 0.0
    %4109 = vmatpush1.msra.mxu0 %v3093
    %4110 = vmatprep.subr.mxu0 0.0
    %4111 = vmatpush1.msra.mxu0 %v3094
    %4112 = vmatprep.subr.mxu0 0.0
    %4113 = vmatpush1.msra.mxu0 %v3095
    %4114 = vmatprep.subr.mxu0 0.0
    %4115 = vmatpush1.msra.mxu0 0.0
    %4116 = vmatprep.subr.mxu0 0.0
    %4117 = vmatpush1.msra.mxu0 0.0
    %4118 = vmatprep.subr.mxu0 0.0
    %4119 = vmatpush1.msra.mxu0 0.0
    %4120 = vmatprep.subr.mxu0 0.0
    %4121 = vmatpush1.msra.mxu0 0.0
    %4122 = vmatprep.subr.mxu0 0.0
    %4123 = vmatpush1.msra.mxu0 0.0
    %4124 = vmatprep.subr.mxu0 0.0
    %4125 = vmatpush1.msra.mxu0 0.0
    %4126 = vmatprep.subr.mxu0 0.0
    %4127 = vmatpush1.msra.mxu0 0.0
    %4128 = vmatprep.subr.mxu0 0.0
    %4129 = vmatpush1.msra.mxu0 0.0
    %4130 = vmatprep.subr.mxu0 0.0
    %4131 = vmatpush1.msra.mxu0 0.0
    %4132 = vmatprep.subr.mxu0 0.0
    %4133 = vmatpush1.msra.mxu0 0.0
    %4134 = vmatprep.subr.mxu0 0.0
    %4135 = vmatpush1.msra.mxu0 0.0
    %4136 = vmatprep.subr.mxu0 0.0
    %4137 = vmatpush1.msra.mxu0 0.0
    %4138 = vmatprep.subr.mxu0 0.0
    %4139 = vmatpush1.msra.mxu0 0.0
    %4140 = vmatprep.subr.mxu0 0.0
    %4141 = vmatpush1.msra.mxu0 0.0
    %4142 = vmatprep.subr.mxu0 0.0
    %4143 = vmatpush1.msra.mxu0 0.0
    %4144 = vmatprep.subr.mxu0 0.0
    %4145 = vmatpush1.msra.mxu0 0.0
    %4146 = vmatprep.subr.mxu0 0.0
    %4147 = vmatpush1.msra.mxu0 0.0
    %4148 = vmatprep.subr.mxu0 0.0
    %4149 = vmatpush1.msra.mxu0 0.0
    %4150 = vmatprep.subr.mxu0 0.0
    %4151 = vmatpush1.msra.mxu0 0.0
    %4152 = vmatprep.subr.mxu0 0.0
    %4153 = vmatpush1.msra.mxu0 0.0
    %4154 = vmatprep.subr.mxu0 0.0
    %4155 = vmatpush1.msra.mxu0 0.0
    %4156 = vmatprep.subr.mxu0 0.0
    %4157 = vmatpush1.msra.mxu0 0.0
    %4158 = vmatprep.subr.mxu0 0.0
    %4159 = vmatpush1.msra.mxu0 0.0
    %4160 = vmatprep.subr.mxu0 0.0
    %4161 = vmatpush1.msra.mxu0 0.0
    %4162 = vmatprep.subr.mxu0 0.0
    %4163 = vmatpush1.msra.mxu0 0.0
    %4164 = vmatprep.subr.mxu0 0.0
    %4165 = vmatpush1.msra.mxu0 0.0
    %4166 = vmatprep.subr.mxu0 0.0
    %4167 = vmatpush1.msra.mxu0 0.0
    %4168 = vmatprep.subr.mxu0 0.0
    %4169 = vmatpush1.msra.mxu0 0.0
    %4170 = vmatprep.mubr.f32.mxu0 0.0
    %4171 = vmatmul.mubr.f32.gmra.mrb[0].mxu0 %v4104
    %v4172 = vpop.f32.mrb[0].mxu0
    %v4173 = vadd.f32 0.0, %v4172
    %v4174 = vpop.f32.mrb[0].mxu0
    %4175 = vdwg.mxu0
    %4176 = vmatprep.subr.mxu0 0.0
    %4177 = vmatpush1.msra.mxu0 %v3097
    %4178 = vmatprep.subr.mxu0 0.0
    %4179 = vmatpush1.msra.mxu0 %v3098
    %4180 = vmatprep.subr.mxu0 0.0
    %4181 = vmatpush1.msra.mxu0 %v3099
    %4182 = vmatprep.subr.mxu0 0.0
    %4183 = vmatpush1.msra.mxu0 %v3100
    %4184 = vmatprep.subr.mxu0 0.0
    %4185 = vmatpush1.msra.mxu0 0.0
    %4186 = vmatprep.subr.mxu0 0.0
    %4187 = vmatpush1.msra.mxu0 0.0
    %4188 = vmatprep.subr.mxu0 0.0
    %4189 = vmatpush1.msra.mxu0 0.0
    %4190 = vmatprep.subr.mxu0 0.0
    %4191 = vmatpush1.msra.mxu0 0.0
    %4192 = vmatprep.subr.mxu0 0.0
    %4193 = vmatpush1.msra.mxu0 0.0
    %4194 = vmatprep.subr.mxu0 0.0
    %4195 = vmatpush1.msra.mxu0 0.0
    %4196 = vmatprep.subr.mxu0 0.0
    %4197 = vmatpush1.msra.mxu0 0.0
    %4198 = vmatprep.subr.mxu0 0.0
    %4199 = vmatpush1.msra.mxu0 0.0
    %4200 = vmatprep.subr.mxu0 0.0
    %4201 = vmatpush1.msra.mxu0 0.0
    %4202 = vmatprep.subr.mxu0 0.0
    %4203 = vmatpush1.msra.mxu0 0.0
    %4204 = vmatprep.subr.mxu0 0.0
    %4205 = vmatpush1.msra.mxu0 0.0
    %4206 = vmatprep.subr.mxu0 0.0
    %4207 = vmatpush1.msra.mxu0 0.0
    %4208 = vmatprep.subr.mxu0 0.0
    %4209 = vmatpush1.msra.mxu0 0.0
    %4210 = vmatprep.subr.mxu0 0.0
    %4211 = vmatpush1.msra.mxu0 0.0
    %4212 = vmatprep.subr.mxu0 0.0
    %4213 = vmatpush1.msra.mxu0 0.0
    %4214 = vmatprep.subr.mxu0 0.0
    %4215 = vmatpush1.msra.mxu0 0.0
    %4216 = vmatprep.subr.mxu0 0.0
    %4217 = vmatpush1.msra.mxu0 0.0
    %4218 = vmatprep.subr.mxu0 0.0
    %4219 = vmatpush1.msra.mxu0 0.0
    %4220 = vmatprep.subr.mxu0 0.0
    %4221 = vmatpush1.msra.mxu0 0.0
    %4222 = vmatprep.subr.mxu0 0.0
    %4223 = vmatpush1.msra.mxu0 0.0
    %4224 = vmatprep.subr.mxu0 0.0
    %4225 = vmatpush1.msra.mxu0 0.0
    %4226 = vmatprep.subr.mxu0 0.0
    %4227 = vmatpush1.msra.mxu0 0.0
    %4228 = vmatprep.subr.mxu0 0.0
    %4229 = vmatpush1.msra.mxu0 0.0
    %4230 = vmatprep.subr.mxu0 0.0
    %4231 = vmatpush1.msra.mxu0 0.0
    %4232 = vmatprep.subr.mxu0 0.0
    %4233 = vmatpush1.msra.mxu0 0.0
    %4234 = vmatprep.subr.mxu0 0.0
    %4235 = vmatpush1.msra.mxu0 0.0
    %4236 = vmatprep.subr.mxu0 0.0
    %4237 = vmatpush1.msra.mxu0 0.0
    %4238 = vmatprep.subr.mxu0 0.0
    %4239 = vmatpush1.msra.mxu0 0.0
    %4240 = vmatprep.mubr.f32.mxu0 0.0
    %4241 = vmatmul.mubr.f32.gmra.mrb[0].mxu0 %v4104
    %v4242 = vpop.f32.mrb[0].mxu0
    %v4243 = vadd.f32 0.0, %v4242
    %v4244 = vpop.f32.mrb[0].mxu0
    %4245 = vdwg.mxu0
    %v4246 = vld [vmem:[#allocation4 + $0x20] sm:$0xff]
    %v4247 = vadd.f32 %v4246, %v4173
    %v4248 = vadd.f32 %v4247, %v3265
    %v4249 = vxor.u32 %v4248, 2147483648
    %v4250 = vmul.f32 %v4249, 1.442695
    %v4251 = vpow.pop %v4250
    %v4252 = vadd.f32 %v4251, 1.0
    %v4253 = vrcp.pop %v4252
    %v4254 = vmul.f32 1.0, %v4253
    %v4255 = vld [vmem:[%s496 + $0x20] sm:$0xff]
    %v4256 = vadd.f32 %v4255, %v4243
    %v4257 = vadd.f32 %v4256, %v3280
    %v4258 = vxor.u32 %v4257, 2147483648
    %v4259 = vmul.f32 %v4258, 1.442695
    %v4260 = vpow.pop %v4259
    %v4261 = vadd.f32 %v4260, 1.0
    %v4262 = vrcp.pop %v4261
    %v4263 = vmul.f32 1.0, %v4262
    %v4264 = vld [vmem:[%s615 + $0x20] sm:$0xff]
    %v4265 = vadd.f32 %v4264, %v3294
    %4266 = vmatprep.subr.mxu0 0.0
    %4267 = vmatpush1.msra.mxu0 %v3102
    %4268 = vmatprep.subr.mxu0 0.0
    %4269 = vmatpush1.msra.mxu0 %v3103
    %4270 = vmatprep.subr.mxu0 0.0
    %4271 = vmatpush1.msra.mxu0 %v3104
    %4272 = vmatprep.subr.mxu0 0.0
    %4273 = vmatpush1.msra.mxu0 %v3105
    %4274 = vmatprep.subr.mxu0 0.0
    %4275 = vmatpush1.msra.mxu0 0.0
    %4276 = vmatprep.subr.mxu0 0.0
    %4277 = vmatpush1.msra.mxu0 0.0
    %4278 = vmatprep.subr.mxu0 0.0
    %4279 = vmatpush1.msra.mxu0 0.0
    %4280 = vmatprep.subr.mxu0 0.0
    %4281 = vmatpush1.msra.mxu0 0.0
    %4282 = vmatprep.subr.mxu0 0.0
    %4283 = vmatpush1.msra.mxu0 0.0
    %4284 = vmatprep.subr.mxu0 0.0
    %4285 = vmatpush1.msra.mxu0 0.0
    %4286 = vmatprep.subr.mxu0 0.0
    %4287 = vmatpush1.msra.mxu0 0.0
    %4288 = vmatprep.subr.mxu0 0.0
    %4289 = vmatpush1.msra.mxu0 0.0
    %4290 = vmatprep.subr.mxu0 0.0
    %4291 = vmatpush1.msra.mxu0 0.0
    %4292 = vmatprep.subr.mxu0 0.0
    %4293 = vmatpush1.msra.mxu0 0.0
    %4294 = vmatprep.subr.mxu0 0.0
    %4295 = vmatpush1.msra.mxu0 0.0
    %4296 = vmatprep.subr.mxu0 0.0
    %4297 = vmatpush1.msra.mxu0 0.0
    %4298 = vmatprep.subr.mxu0 0.0
    %4299 = vmatpush1.msra.mxu0 0.0
    %4300 = vmatprep.subr.mxu0 0.0
    %4301 = vmatpush1.msra.mxu0 0.0
    %4302 = vmatprep.subr.mxu0 0.0
    %4303 = vmatpush1.msra.mxu0 0.0
    %4304 = vmatprep.subr.mxu0 0.0
    %4305 = vmatpush1.msra.mxu0 0.0
    %4306 = vmatprep.subr.mxu0 0.0
    %4307 = vmatpush1.msra.mxu0 0.0
    %4308 = vmatprep.subr.mxu0 0.0
    %4309 = vmatpush1.msra.mxu0 0.0
    %4310 = vmatprep.subr.mxu0 0.0
    %4311 = vmatpush1.msra.mxu0 0.0
    %4312 = vmatprep.subr.mxu0 0.0
    %4313 = vmatpush1.msra.mxu0 0.0
    %4314 = vmatprep.subr.mxu0 0.0
    %4315 = vmatpush1.msra.mxu0 0.0
    %4316 = vmatprep.subr.mxu0 0.0
    %4317 = vmatpush1.msra.mxu0 0.0
    %4318 = vmatprep.subr.mxu0 0.0
    %4319 = vmatpush1.msra.mxu0 0.0
    %4320 = vmatprep.subr.mxu0 0.0
    %4321 = vmatpush1.msra.mxu0 0.0
    %4322 = vmatprep.subr.mxu0 0.0
    %4323 = vmatpush1.msra.mxu0 0.0
    %4324 = vmatprep.subr.mxu0 0.0
    %4325 = vmatpush1.msra.mxu0 0.0
    %4326 = vmatprep.subr.mxu0 0.0
    %4327 = vmatpush1.msra.mxu0 0.0
    %4328 = vmatprep.subr.mxu0 0.0
    %4329 = vmatpush1.msra.mxu0 0.0
    %4330 = vmatprep.mubr.f32.mxu0 0.0
    %4331 = vmatmul.mubr.f32.gmra.mrb[0].mxu0 %v4104
    %v4332 = vpop.f32.mrb[0].mxu0
    %v4333 = vadd.f32 %v3301, %v4332
    %v4334 = vpop.f32.mrb[0].mxu0
    %4335 = vdwg.mxu0
    %v4336 = vmul.f32 %v4254, %v4333
    %v4337 = vadd.f32 %v4265, %v4336
    %v4338 = vtanh.pop %v4337
    %v4339 = vsub.f32 %v4100, %v4338
    %v4340 = vmul.f32 %v4263, %v4339
    %v4341 = vadd.f32 %v4338, %v4340
    %s4342 = scalar_lea.vmem [#allocation12], 32
    %4343 = vst.msk [vmem:[%s4342] sm:$0xff] %vm228, %v4341
    %v4345 = vsel %vm228, %v4341, 0
    %4347 = vmatprep.subr.mxu0 0.0
    %4348 = vmatpush1.msra.mxu0 %v3092
    %4349 = vmatprep.subr.mxu0 0.0
    %4350 = vmatpush1.msra.mxu0 %v3093
    %4351 = vmatprep.subr.mxu0 0.0
    %4352 = vmatpush1.msra.mxu0 %v3094
    %4353 = vmatprep.subr.mxu0 0.0
    %4354 = vmatpush1.msra.mxu0 %v3095
    %4355 = vmatprep.subr.mxu0 0.0
    %4356 = vmatpush1.msra.mxu0 0.0
    %4357 = vmatprep.subr.mxu0 0.0
    %4358 = vmatpush1.msra.mxu0 0.0
    %4359 = vmatprep.subr.mxu0 0.0
    %4360 = vmatpush1.msra.mxu0 0.0
    %4361 = vmatprep.subr.mxu0 0.0
    %4362 = vmatpush1.msra.mxu0 0.0
    %4363 = vmatprep.subr.mxu0 0.0
    %4364 = vmatpush1.msra.mxu0 0.0
    %4365 = vmatprep.subr.mxu0 0.0
    %4366 = vmatpush1.msra.mxu0 0.0
    %4367 = vmatprep.subr.mxu0 0.0
    %4368 = vmatpush1.msra.mxu0 0.0
    %4369 = vmatprep.subr.mxu0 0.0
    %4370 = vmatpush1.msra.mxu0 0.0
    %4371 = vmatprep.subr.mxu0 0.0
    %4372 = vmatpush1.msra.mxu0 0.0
    %4373 = vmatprep.subr.mxu0 0.0
    %4374 = vmatpush1.msra.mxu0 0.0
    %4375 = vmatprep.subr.mxu0 0.0
    %4376 = vmatpush1.msra.mxu0 0.0
    %4377 = vmatprep.subr.mxu0 0.0
    %4378 = vmatpush1.msra.mxu0 0.0
    %4379 = vmatprep.subr.mxu0 0.0
    %4380 = vmatpush1.msra.mxu0 0.0
    %4381 = vmatprep.subr.mxu0 0.0
    %4382 = vmatpush1.msra.mxu0 0.0
    %4383 = vmatprep.subr.mxu0 0.0
    %4384 = vmatpush1.msra.mxu0 0.0
    %4385 = vmatprep.subr.mxu0 0.0
    %4386 = vmatpush1.msra.mxu0 0.0
    %4387 = vmatprep.subr.mxu0 0.0
    %4388 = vmatpush1.msra.mxu0 0.0
    %4389 = vmatprep.subr.mxu0 0.0
    %4390 = vmatpush1.msra.mxu0 0.0
    %4391 = vmatprep.subr.mxu0 0.0
    %4392 = vmatpush1.msra.mxu0 0.0
    %4393 = vmatprep.subr.mxu0 0.0
    %4394 = vmatpush1.msra.mxu0 0.0
    %4395 = vmatprep.subr.mxu0 0.0
    %4396 = vmatpush1.msra.mxu0 0.0
    %4397 = vmatprep.subr.mxu0 0.0
    %4398 = vmatpush1.msra.mxu0 0.0
    %4399 = vmatprep.subr.mxu0 0.0
    %4400 = vmatpush1.msra.mxu0 0.0
    %4401 = vmatprep.subr.mxu0 0.0
    %4402 = vmatpush1.msra.mxu0 0.0
    %4403 = vmatprep.subr.mxu0 0.0
    %4404 = vmatpush1.msra.mxu0 0.0
    %4405 = vmatprep.subr.mxu0 0.0
    %4406 = vmatpush1.msra.mxu0 0.0
    %4407 = vmatprep.subr.mxu0 0.0
    %4408 = vmatpush1.msra.mxu0 0.0
    %4409 = vmatprep.subr.mxu0 0.0
    %4410 = vmatpush1.msra.mxu0 0.0
    %4411 = vmatprep.mubr.f32.mxu0 0.0
    %4412 = vmatmul.mubr.f32.gmra.mrb[0].mxu0 %v4345
    %v4413 = vpop.f32.mrb[0].mxu0
    %v4414 = vadd.f32 0.0, %v4413
    %v4415 = vpop.f32.mrb[0].mxu0
    %4416 = vdwg.mxu0
    %4417 = vmatprep.subr.mxu0 0.0
    %4418 = vmatpush1.msra.mxu0 %v3097
    %4419 = vmatprep.subr.mxu0 0.0
    %4420 = vmatpush1.msra.mxu0 %v3098
    %4421 = vmatprep.subr.mxu0 0.0
    %4422 = vmatpush1.msra.mxu0 %v3099
    %4423 = vmatprep.subr.mxu0 0.0
    %4424 = vmatpush1.msra.mxu0 %v3100
    %4425 = vmatprep.subr.mxu0 0.0
    %4426 = vmatpush1.msra.mxu0 0.0
    %4427 = vmatprep.subr.mxu0 0.0
    %4428 = vmatpush1.msra.mxu0 0.0
    %4429 = vmatprep.subr.mxu0 0.0
    %4430 = vmatpush1.msra.mxu0 0.0
    %4431 = vmatprep.subr.mxu0 0.0
    %4432 = vmatpush1.msra.mxu0 0.0
    %4433 = vmatprep.subr.mxu0 0.0
    %4434 = vmatpush1.msra.mxu0 0.0
    %4435 = vmatprep.subr.mxu0 0.0
    %4436 = vmatpush1.msra.mxu0 0.0
    %4437 = vmatprep.subr.mxu0 0.0
    %4438 = vmatpush1.msra.mxu0 0.0
    %4439 = vmatprep.subr.mxu0 0.0
    %4440 = vmatpush1.msra.mxu0 0.0
    %4441 = vmatprep.subr.mxu0 0.0
    %4442 = vmatpush1.msra.mxu0 0.0
    %4443 = vmatprep.subr.mxu0 0.0
    %4444 = vmatpush1.msra.mxu0 0.0
    %4445 = vmatprep.subr.mxu0 0.0
    %4446 = vmatpush1.msra.mxu0 0.0
    %4447 = vmatprep.subr.mxu0 0.0
    %4448 = vmatpush1.msra.mxu0 0.0
    %4449 = vmatprep.subr.mxu0 0.0
    %4450 = vmatpush1.msra.mxu0 0.0
    %4451 = vmatprep.subr.mxu0 0.0
    %4452 = vmatpush1.msra.mxu0 0.0
    %4453 = vmatprep.subr.mxu0 0.0
    %4454 = vmatpush1.msra.mxu0 0.0
    %4455 = vmatprep.subr.mxu0 0.0
    %4456 = vmatpush1.msra.mxu0 0.0
    %4457 = vmatprep.subr.mxu0 0.0
    %4458 = vmatpush1.msra.mxu0 0.0
    %4459 = vmatprep.subr.mxu0 0.0
    %4460 = vmatpush1.msra.mxu0 0.0
    %4461 = vmatprep.subr.mxu0 0.0
    %4462 = vmatpush1.msra.mxu0 0.0
    %4463 = vmatprep.subr.mxu0 0.0
    %4464 = vmatpush1.msra.mxu0 0.0
    %4465 = vmatprep.subr.mxu0 0.0
    %4466 = vmatpush1.msra.mxu0 0.0
    %4467 = vmatprep.subr.mxu0 0.0
    %4468 = vmatpush1.msra.mxu0 0.0
    %4469 = vmatprep.subr.mxu0 0.0
    %4470 = vmatpush1.msra.mxu0 0.0
    %4471 = vmatprep.subr.mxu0 0.0
    %4472 = vmatpush1.msra.mxu0 0.0
    %4473 = vmatprep.subr.mxu0 0.0
    %4474 = vmatpush1.msra.mxu0 0.0
    %4475 = vmatprep.subr.mxu0 0.0
    %4476 = vmatpush1.msra.mxu0 0.0
    %4477 = vmatprep.subr.mxu0 0.0
    %4478 = vmatpush1.msra.mxu0 0.0
    %4479 = vmatprep.subr.mxu0 0.0
    %4480 = vmatpush1.msra.mxu0 0.0
    %4481 = vmatprep.mubr.f32.mxu0 0.0
    %4482 = vmatmul.mubr.f32.gmra.mrb[0].mxu0 %v4345
    %v4483 = vpop.f32.mrb[0].mxu0
    %v4484 = vadd.f32 0.0, %v4483
    %v4485 = vpop.f32.mrb[0].mxu0
    %4486 = vdwg.mxu0
    %v4487 = vld [vmem:[#allocation4 + $0x28] sm:$0xff]
    %v4488 = vadd.f32 %v4487, %v4414
    %v4489 = vadd.f32 %v4488, %v3265
    %v4490 = vxor.u32 %v4489, 2147483648
    %v4491 = vmul.f32 %v4490, 1.442695
    %v4492 = vpow.pop %v4491
    %v4493 = vadd.f32 %v4492, 1.0
    %v4494 = vrcp.pop %v4493
    %v4495 = vmul.f32 1.0, %v4494
    %v4496 = vld [vmem:[%s496 + $0x28] sm:$0xff]
    %v4497 = vadd.f32 %v4496, %v4484
    %v4498 = vadd.f32 %v4497, %v3280
    %v4499 = vxor.u32 %v4498, 2147483648
    %v4500 = vmul.f32 %v4499, 1.442695
    %v4501 = vpow.pop %v4500
    %v4502 = vadd.f32 %v4501, 1.0
    %v4503 = vrcp.pop %v4502
    %v4504 = vmul.f32 1.0, %v4503
    %v4505 = vld [vmem:[%s615 + $0x28] sm:$0xff]
    %v4506 = vadd.f32 %v4505, %v3294
    %4507 = vmatprep.subr.mxu0 0.0
    %4508 = vmatpush1.msra.mxu0 %v3102
    %4509 = vmatprep.subr.mxu0 0.0
    %4510 = vmatpush1.msra.mxu0 %v3103
    %4511 = vmatprep.subr.mxu0 0.0
    %4512 = vmatpush1.msra.mxu0 %v3104
    %4513 = vmatprep.subr.mxu0 0.0
    %4514 = vmatpush1.msra.mxu0 %v3105
    %4515 = vmatprep.subr.mxu0 0.0
    %4516 = vmatpush1.msra.mxu0 0.0
    %4517 = vmatprep.subr.mxu0 0.0
    %4518 = vmatpush1.msra.mxu0 0.0
    %4519 = vmatprep.subr.mxu0 0.0
    %4520 = vmatpush1.msra.mxu0 0.0
    %4521 = vmatprep.subr.mxu0 0.0
    %4522 = vmatpush1.msra.mxu0 0.0
    %4523 = vmatprep.subr.mxu0 0.0
    %4524 = vmatpush1.msra.mxu0 0.0
    %4525 = vmatprep.subr.mxu0 0.0
    %4526 = vmatpush1.msra.mxu0 0.0
    %4527 = vmatprep.subr.mxu0 0.0
    %4528 = vmatpush1.msra.mxu0 0.0
    %4529 = vmatprep.subr.mxu0 0.0
    %4530 = vmatpush1.msra.mxu0 0.0
    %4531 = vmatprep.subr.mxu0 0.0
    %4532 = vmatpush1.msra.mxu0 0.0
    %4533 = vmatprep.subr.mxu0 0.0
    %4534 = vmatpush1.msra.mxu0 0.0
    %4535 = vmatprep.subr.mxu0 0.0
    %4536 = vmatpush1.msra.mxu0 0.0
    %4537 = vmatprep.subr.mxu0 0.0
    %4538 = vmatpush1.msra.mxu0 0.0
    %4539 = vmatprep.subr.mxu0 0.0
    %4540 = vmatpush1.msra.mxu0 0.0
    %4541 = vmatprep.subr.mxu0 0.0
    %4542 = vmatpush1.msra.mxu0 0.0
    %4543 = vmatprep.subr.mxu0 0.0
    %4544 = vmatpush1.msra.mxu0 0.0
    %4545 = vmatprep.subr.mxu0 0.0
    %4546 = vmatpush1.msra.mxu0 0.0
    %4547 = vmatprep.subr.mxu0 0.0
    %4548 = vmatpush1.msra.mxu0 0.0
    %4549 = vmatprep.subr.mxu0 0.0
    %4550 = vmatpush1.msra.mxu0 0.0
    %4551 = vmatprep.subr.mxu0 0.0
    %4552 = vmatpush1.msra.mxu0 0.0
    %4553 = vmatprep.subr.mxu0 0.0
    %4554 = vmatpush1.msra.mxu0 0.0
    %4555 = vmatprep.subr.mxu0 0.0
    %4556 = vmatpush1.msra.mxu0 0.0
    %4557 = vmatprep.subr.mxu0 0.0
    %4558 = vmatpush1.msra.mxu0 0.0
    %4559 = vmatprep.subr.mxu0 0.0
    %4560 = vmatpush1.msra.mxu0 0.0
    %4561 = vmatprep.subr.mxu0 0.0
    %4562 = vmatpush1.msra.mxu0 0.0
    %4563 = vmatprep.subr.mxu0 0.0
    %4564 = vmatpush1.msra.mxu0 0.0
    %4565 = vmatprep.subr.mxu0 0.0
    %4566 = vmatpush1.msra.mxu0 0.0
    %4567 = vmatprep.subr.mxu0 0.0
    %4568 = vmatpush1.msra.mxu0 0.0
    %4569 = vmatprep.subr.mxu0 0.0
    %4570 = vmatpush1.msra.mxu0 0.0
    %4571 = vmatprep.mubr.f32.mxu0 0.0
    %4572 = vmatmul.mubr.f32.gmra.mrb[0].mxu0 %v4345
    %v4573 = vpop.f32.mrb[0].mxu0
    %v4574 = vadd.f32 %v3301, %v4573
    %v4575 = vpop.f32.mrb[0].mxu0
    %4576 = vdwg.mxu0
    %v4577 = vmul.f32 %v4495, %v4574
    %v4578 = vadd.f32 %v4506, %v4577
    %v4579 = vtanh.pop %v4578
    %v4580 = vsub.f32 %v4341, %v4579
    %v4581 = vmul.f32 %v4504, %v4580
    %v4582 = vadd.f32 %v4579, %v4581
    %s4583 = scalar_lea.vmem [#allocation12], 40
    %4584 = vst.msk [vmem:[%s4583] sm:$0xff] %vm228, %v4582
    %v4586 = vsel %vm228, %v4582, 0
    %4588 = vmatprep.subr.mxu0 0.0
    %4589 = vmatpush1.msra.mxu0 %v3092
    %4590 = vmatprep.subr.mxu0 0.0
    %4591 = vmatpush1.msra.mxu0 %v3093
    %4592 = vmatprep.subr.mxu0 0.0
    %4593 = vmatpush1.msra.mxu0 %v3094
    %4594 = vmatprep.subr.mxu0 0.0
    %4595 = vmatpush1.msra.mxu0 %v3095
    %4596 = vmatprep.subr.mxu0 0.0
    %4597 = vmatpush1.msra.mxu0 0.0
    %4598 = vmatprep.subr.mxu0 0.0
    %4599 = vmatpush1.msra.mxu0 0.0
    %4600 = vmatprep.subr.mxu0 0.0
    %4601 = vmatpush1.msra.mxu0 0.0
    %4602 = vmatprep.subr.mxu0 0.0
    %4603 = vmatpush1.msra.mxu0 0.0
    %4604 = vmatprep.subr.mxu0 0.0
    %4605 = vmatpush1.msra.mxu0 0.0
    %4606 = vmatprep.subr.mxu0 0.0
    %4607 = vmatpush1.msra.mxu0 0.0
    %4608 = vmatprep.subr.mxu0 0.0
    %4609 = vmatpush1.msra.mxu0 0.0
    %4610 = vmatprep.subr.mxu0 0.0
    %4611 = vmatpush1.msra.mxu0 0.0
    %4612 = vmatprep.subr.mxu0 0.0
    %4613 = vmatpush1.msra.mxu0 0.0
    %4614 = vmatprep.subr.mxu0 0.0
    %4615 = vmatpush1.msra.mxu0 0.0
    %4616 = vmatprep.subr.mxu0 0.0
    %4617 = vmatpush1.msra.mxu0 0.0
    %4618 = vmatprep.subr.mxu0 0.0
    %4619 = vmatpush1.msra.mxu0 0.0
    %4620 = vmatprep.subr.mxu0 0.0
    %4621 = vmatpush1.msra.mxu0 0.0
    %4622 = vmatprep.subr.mxu0 0.0
    %4623 = vmatpush1.msra.mxu0 0.0
    %4624 = vmatprep.subr.mxu0 0.0
    %4625 = vmatpush1.msra.mxu0 0.0
    %4626 = vmatprep.subr.mxu0 0.0
    %4627 = vmatpush1.msra.mxu0 0.0
    %4628 = vmatprep.subr.mxu0 0.0
    %4629 = vmatpush1.msra.mxu0 0.0
    %4630 = vmatprep.subr.mxu0 0.0
    %4631 = vmatpush1.msra.mxu0 0.0
    %4632 = vmatprep.subr.mxu0 0.0
    %4633 = vmatpush1.msra.mxu0 0.0
    %4634 = vmatprep.subr.mxu0 0.0
    %4635 = vmatpush1.msra.mxu0 0.0
    %4636 = vmatprep.subr.mxu0 0.0
    %4637 = vmatpush1.msra.mxu0 0.0
    %4638 = vmatprep.subr.mxu0 0.0
    %4639 = vmatpush1.msra.mxu0 0.0
    %4640 = vmatprep.subr.mxu0 0.0
    %4641 = vmatpush1.msra.mxu0 0.0
    %4642 = vmatprep.subr.mxu0 0.0
    %4643 = vmatpush1.msra.mxu0 0.0
    %4644 = vmatprep.subr.mxu0 0.0
    %4645 = vmatpush1.msra.mxu0 0.0
    %4646 = vmatprep.subr.mxu0 0.0
    %4647 = vmatpush1.msra.mxu0 0.0
    %4648 = vmatprep.subr.mxu0 0.0
    %4649 = vmatpush1.msra.mxu0 0.0
    %4650 = vmatprep.subr.mxu0 0.0
    %4651 = vmatpush1.msra.mxu0 0.0
    %4652 = vmatprep.mubr.f32.mxu0 0.0
    %4653 = vmatmul.mubr.f32.gmra.mrb[0].mxu0 %v4586
    %v4654 = vpop.f32.mrb[0].mxu0
    %v4655 = vadd.f32 0.0, %v4654
    %v4656 = vpop.f32.mrb[0].mxu0
    %4657 = vdwg.mxu0
    %4658 = vmatprep.subr.mxu0 0.0
    %4659 = vmatpush1.msra.mxu0 %v3097
    %4660 = vmatprep.subr.mxu0 0.0
    %4661 = vmatpush1.msra.mxu0 %v3098
    %4662 = vmatprep.subr.mxu0 0.0
    %4663 = vmatpush1.msra.mxu0 %v3099
    %4664 = vmatprep.subr.mxu0 0.0
    %4665 = vmatpush1.msra.mxu0 %v3100
    %4666 = vmatprep.subr.mxu0 0.0
    %4667 = vmatpush1.msra.mxu0 0.0
    %4668 = vmatprep.subr.mxu0 0.0
    %4669 = vmatpush1.msra.mxu0 0.0
    %4670 = vmatprep.subr.mxu0 0.0
    %4671 = vmatpush1.msra.mxu0 0.0
    %4672 = vmatprep.subr.mxu0 0.0
    %4673 = vmatpush1.msra.mxu0 0.0
    %4674 = vmatprep.subr.mxu0 0.0
    %4675 = vmatpush1.msra.mxu0 0.0
    %4676 = vmatprep.subr.mxu0 0.0
    %4677 = vmatpush1.msra.mxu0 0.0
    %4678 = vmatprep.subr.mxu0 0.0
    %4679 = vmatpush1.msra.mxu0 0.0
    %4680 = vmatprep.subr.mxu0 0.0
    %4681 = vmatpush1.msra.mxu0 0.0
    %4682 = vmatprep.subr.mxu0 0.0
    %4683 = vmatpush1.msra.mxu0 0.0
    %4684 = vmatprep.subr.mxu0 0.0
    %4685 = vmatpush1.msra.mxu0 0.0
    %4686 = vmatprep.subr.mxu0 0.0
    %4687 = vmatpush1.msra.mxu0 0.0
    %4688 = vmatprep.subr.mxu0 0.0
    %4689 = vmatpush1.msra.mxu0 0.0
    %4690 = vmatprep.subr.mxu0 0.0
    %4691 = vmatpush1.msra.mxu0 0.0
    %4692 = vmatprep.subr.mxu0 0.0
    %4693 = vmatpush1.msra.mxu0 0.0
    %4694 = vmatprep.subr.mxu0 0.0
    %4695 = vmatpush1.msra.mxu0 0.0
    %4696 = vmatprep.subr.mxu0 0.0
    %4697 = vmatpush1.msra.mxu0 0.0
    %4698 = vmatprep.subr.mxu0 0.0
    %4699 = vmatpush1.msra.mxu0 0.0
    %4700 = vmatprep.subr.mxu0 0.0
    %4701 = vmatpush1.msra.mxu0 0.0
    %4702 = vmatprep.subr.mxu0 0.0
    %4703 = vmatpush1.msra.mxu0 0.0
    %4704 = vmatprep.subr.mxu0 0.0
    %4705 = vmatpush1.msra.mxu0 0.0
    %4706 = vmatprep.subr.mxu0 0.0
    %4707 = vmatpush1.msra.mxu0 0.0
    %4708 = vmatprep.subr.mxu0 0.0
    %4709 = vmatpush1.msra.mxu0 0.0
    %4710 = vmatprep.subr.mxu0 0.0
    %4711 = vmatpush1.msra.mxu0 0.0
    %4712 = vmatprep.subr.mxu0 0.0
    %4713 = vmatpush1.msra.mxu0 0.0
    %4714 = vmatprep.subr.mxu0 0.0
    %4715 = vmatpush1.msra.mxu0 0.0
    %4716 = vmatprep.subr.mxu0 0.0
    %4717 = vmatpush1.msra.mxu0 0.0
    %4718 = vmatprep.subr.mxu0 0.0
    %4719 = vmatpush1.msra.mxu0 0.0
    %4720 = vmatprep.subr.mxu0 0.0
    %4721 = vmatpush1.msra.mxu0 0.0
    %4722 = vmatprep.mubr.f32.mxu0 0.0
    %4723 = vmatmul.mubr.f32.gmra.mrb[0].mxu0 %v4586
    %v4724 = vpop.f32.mrb[0].mxu0
    %v4725 = vadd.f32 0.0, %v4724
    %v4726 = vpop.f32.mrb[0].mxu0
    %4727 = vdwg.mxu0
    %v4728 = vld [vmem:[#allocation4 + $0x30] sm:$0xff]
    %v4729 = vadd.f32 %v4728, %v4655
    %v4730 = vadd.f32 %v4729, %v3265
    %v4731 = vxor.u32 %v4730, 2147483648
    %v4732 = vmul.f32 %v4731, 1.442695
    %v4733 = vpow.pop %v4732
    %v4734 = vadd.f32 %v4733, 1.0
    %v4735 = vrcp.pop %v4734
    %v4736 = vmul.f32 1.0, %v4735
    %v4737 = vld [vmem:[%s496 + $0x30] sm:$0xff]
    %v4738 = vadd.f32 %v4737, %v4725
    %v4739 = vadd.f32 %v4738, %v3280
    %v4740 = vxor.u32 %v4739, 2147483648
    %v4741 = vmul.f32 %v4740, 1.442695
    %v4742 = vpow.pop %v4741
    %v4743 = vadd.f32 %v4742, 1.0
    %v4744 = vrcp.pop %v4743
    %v4745 = vmul.f32 1.0, %v4744
    %v4746 = vld [vmem:[%s615 + $0x30] sm:$0xff]
    %v4747 = vadd.f32 %v4746, %v3294
    %4748 = vmatprep.subr.mxu0 0.0
    %4749 = vmatpush1.msra.mxu0 %v3102
    %4750 = vmatprep.subr.mxu0 0.0
    %4751 = vmatpush1.msra.mxu0 %v3103
    %4752 = vmatprep.subr.mxu0 0.0
    %4753 = vmatpush1.msra.mxu0 %v3104
    %4754 = vmatprep.subr.mxu0 0.0
    %4755 = vmatpush1.msra.mxu0 %v3105
    %4756 = vmatprep.subr.mxu0 0.0
    %4757 = vmatpush1.msra.mxu0 0.0
    %4758 = vmatprep.subr.mxu0 0.0
    %4759 = vmatpush1.msra.mxu0 0.0
    %4760 = vmatprep.subr.mxu0 0.0
    %4761 = vmatpush1.msra.mxu0 0.0
    %4762 = vmatprep.subr.mxu0 0.0
    %4763 = vmatpush1.msra.mxu0 0.0
    %4764 = vmatprep.subr.mxu0 0.0
    %4765 = vmatpush1.msra.mxu0 0.0
    %4766 = vmatprep.subr.mxu0 0.0
    %4767 = vmatpush1.msra.mxu0 0.0
    %4768 = vmatprep.subr.mxu0 0.0
    %4769 = vmatpush1.msra.mxu0 0.0
    %4770 = vmatprep.subr.mxu0 0.0
    %4771 = vmatpush1.msra.mxu0 0.0
    %4772 = vmatprep.subr.mxu0 0.0
    %4773 = vmatpush1.msra.mxu0 0.0
    %4774 = vmatprep.subr.mxu0 0.0
    %4775 = vmatpush1.msra.mxu0 0.0
    %4776 = vmatprep.subr.mxu0 0.0
    %4777 = vmatpush1.msra.mxu0 0.0
    %4778 = vmatprep.subr.mxu0 0.0
    %4779 = vmatpush1.msra.mxu0 0.0
    %4780 = vmatprep.subr.mxu0 0.0
    %4781 = vmatpush1.msra.mxu0 0.0
    %4782 = vmatprep.subr.mxu0 0.0
    %4783 = vmatpush1.msra.mxu0 0.0
    %4784 = vmatprep.subr.mxu0 0.0
    %4785 = vmatpush1.msra.mxu0 0.0
    %4786 = vmatprep.subr.mxu0 0.0
    %4787 = vmatpush1.msra.mxu0 0.0
    %4788 = vmatprep.subr.mxu0 0.0
    %4789 = vmatpush1.msra.mxu0 0.0
    %4790 = vmatprep.subr.mxu0 0.0
    %4791 = vmatpush1.msra.mxu0 0.0
    %4792 = vmatprep.subr.mxu0 0.0
    %4793 = vmatpush1.msra.mxu0 0.0
    %4794 = vmatprep.subr.mxu0 0.0
    %4795 = vmatpush1.msra.mxu0 0.0
    %4796 = vmatprep.subr.mxu0 0.0
    %4797 = vmatpush1.msra.mxu0 0.0
    %4798 = vmatprep.subr.mxu0 0.0
    %4799 = vmatpush1.msra.mxu0 0.0
    %4800 = vmatprep.subr.mxu0 0.0
    %4801 = vmatpush1.msra.mxu0 0.0
    %4802 = vmatprep.subr.mxu0 0.0
    %4803 = vmatpush1.msra.mxu0 0.0
    %4804 = vmatprep.subr.mxu0 0.0
    %4805 = vmatpush1.msra.mxu0 0.0
    %4806 = vmatprep.subr.mxu0 0.0
    %4807 = vmatpush1.msra.mxu0 0.0
    %4808 = vmatprep.subr.mxu0 0.0
    %4809 = vmatpush1.msra.mxu0 0.0
    %4810 = vmatprep.subr.mxu0 0.0
    %4811 = vmatpush1.msra.mxu0 0.0
    %4812 = vmatprep.mubr.f32.mxu0 0.0
    %4813 = vmatmul.mubr.f32.gmra.mrb[0].mxu0 %v4586
    %v4814 = vpop.f32.mrb[0].mxu0
    %v4815 = vadd.f32 %v3301, %v4814
    %v4816 = vpop.f32.mrb[0].mxu0
    %4817 = vdwg.mxu0
    %v4818 = vmul.f32 %v4736, %v4815
    %v4819 = vadd.f32 %v4747, %v4818
    %v4820 = vtanh.pop %v4819
    %v4821 = vsub.f32 %v4582, %v4820
    %v4822 = vmul.f32 %v4745, %v4821
    %v4823 = vadd.f32 %v4820, %v4822
    %s4824 = scalar_lea.vmem [#allocation12], 48
    %4825 = vst.msk [vmem:[%s4824] sm:$0xff] %vm228, %v4823
    %v4827 = vsel %vm228, %v4823, 0
    %4829 = vmatprep.subr.mxu0 0.0
    %4830 = vmatpush1.msra.mxu0 %v3092
    %4831 = vmatprep.subr.mxu0 0.0
    %4832 = vmatpush1.msra.mxu0 %v3093
    %4833 = vmatprep.subr.mxu0 0.0
    %4834 = vmatpush1.msra.mxu0 %v3094
    %4835 = vmatprep.subr.mxu0 0.0
    %4836 = vmatpush1.msra.mxu0 %v3095
    %4837 = vmatprep.subr.mxu0 0.0
    %4838 = vmatpush1.msra.mxu0 0.0
    %4839 = vmatprep.subr.mxu0 0.0
    %4840 = vmatpush1.msra.mxu0 0.0
    %4841 = vmatprep.subr.mxu0 0.0
    %4842 = vmatpush1.msra.mxu0 0.0
    %4843 = vmatprep.subr.mxu0 0.0
    %4844 = vmatpush1.msra.mxu0 0.0
    %4845 = vmatprep.subr.mxu0 0.0
    %4846 = vmatpush1.msra.mxu0 0.0
    %4847 = vmatprep.subr.mxu0 0.0
    %4848 = vmatpush1.msra.mxu0 0.0
    %4849 = vmatprep.subr.mxu0 0.0
    %4850 = vmatpush1.msra.mxu0 0.0
    %4851 = vmatprep.subr.mxu0 0.0
    %4852 = vmatpush1.msra.mxu0 0.0
    %4853 = vmatprep.subr.mxu0 0.0
    %4854 = vmatpush1.msra.mxu0 0.0
    %4855 = vmatprep.subr.mxu0 0.0
    %4856 = vmatpush1.msra.mxu0 0.0
    %4857 = vmatprep.subr.mxu0 0.0
    %4858 = vmatpush1.msra.mxu0 0.0
    %4859 = vmatprep.subr.mxu0 0.0
    %4860 = vmatpush1.msra.mxu0 0.0
    %4861 = vmatprep.subr.mxu0 0.0
    %4862 = vmatpush1.msra.mxu0 0.0
    %4863 = vmatprep.subr.mxu0 0.0
    %4864 = vmatpush1.msra.mxu0 0.0
    %4865 = vmatprep.subr.mxu0 0.0
    %4866 = vmatpush1.msra.mxu0 0.0
    %4867 = vmatprep.subr.mxu0 0.0
    %4868 = vmatpush1.msra.mxu0 0.0
    %4869 = vmatprep.subr.mxu0 0.0
    %4870 = vmatpush1.msra.mxu0 0.0
    %4871 = vmatprep.subr.mxu0 0.0
    %4872 = vmatpush1.msra.mxu0 0.0
    %4873 = vmatprep.subr.mxu0 0.0
    %4874 = vmatpush1.msra.mxu0 0.0
    %4875 = vmatprep.subr.mxu0 0.0
    %4876 = vmatpush1.msra.mxu0 0.0
    %4877 = vmatprep.subr.mxu0 0.0
    %4878 = vmatpush1.msra.mxu0 0.0
    %4879 = vmatprep.subr.mxu0 0.0
    %4880 = vmatpush1.msra.mxu0 0.0
    %4881 = vmatprep.subr.mxu0 0.0
    %4882 = vmatpush1.msra.mxu0 0.0
    %4883 = vmatprep.subr.mxu0 0.0
    %4884 = vmatpush1.msra.mxu0 0.0
    %4885 = vmatprep.subr.mxu0 0.0
    %4886 = vmatpush1.msra.mxu0 0.0
    %4887 = vmatprep.subr.mxu0 0.0
    %4888 = vmatpush1.msra.mxu0 0.0
    %4889 = vmatprep.subr.mxu0 0.0
    %4890 = vmatpush1.msra.mxu0 0.0
    %4891 = vmatprep.subr.mxu0 0.0
    %4892 = vmatpush1.msra.mxu0 0.0
    %4893 = vmatprep.mubr.f32.mxu0 0.0
    %4894 = vmatmul.mubr.f32.gmra.mrb[0].mxu0 %v4827
    %v4895 = vpop.f32.mrb[0].mxu0
    %v4896 = vadd.f32 0.0, %v4895
    %v4897 = vpop.f32.mrb[0].mxu0
    %4898 = vdwg.mxu0
    %4899 = vmatprep.subr.mxu0 0.0
    %4900 = vmatpush1.msra.mxu0 %v3097
    %4901 = vmatprep.subr.mxu0 0.0
    %4902 = vmatpush1.msra.mxu0 %v3098
    %4903 = vmatprep.subr.mxu0 0.0
    %4904 = vmatpush1.msra.mxu0 %v3099
    %4905 = vmatprep.subr.mxu0 0.0
    %4906 = vmatpush1.msra.mxu0 %v3100
    %4907 = vmatprep.subr.mxu0 0.0
    %4908 = vmatpush1.msra.mxu0 0.0
    %4909 = vmatprep.subr.mxu0 0.0
    %4910 = vmatpush1.msra.mxu0 0.0
    %4911 = vmatprep.subr.mxu0 0.0
    %4912 = vmatpush1.msra.mxu0 0.0
    %4913 = vmatprep.subr.mxu0 0.0
    %4914 = vmatpush1.msra.mxu0 0.0
    %4915 = vmatprep.subr.mxu0 0.0
    %4916 = vmatpush1.msra.mxu0 0.0
    %4917 = vmatprep.subr.mxu0 0.0
    %4918 = vmatpush1.msra.mxu0 0.0
    %4919 = vmatprep.subr.mxu0 0.0
    %4920 = vmatpush1.msra.mxu0 0.0
    %4921 = vmatprep.subr.mxu0 0.0
    %4922 = vmatpush1.msra.mxu0 0.0
    %4923 = vmatprep.subr.mxu0 0.0
    %4924 = vmatpush1.msra.mxu0 0.0
    %4925 = vmatprep.subr.mxu0 0.0
    %4926 = vmatpush1.msra.mxu0 0.0
    %4927 = vmatprep.subr.mxu0 0.0
    %4928 = vmatpush1.msra.mxu0 0.0
    %4929 = vmatprep.subr.mxu0 0.0
    %4930 = vmatpush1.msra.mxu0 0.0
    %4931 = vmatprep.subr.mxu0 0.0
    %4932 = vmatpush1.msra.mxu0 0.0
    %4933 = vmatprep.subr.mxu0 0.0
    %4934 = vmatpush1.msra.mxu0 0.0
    %4935 = vmatprep.subr.mxu0 0.0
    %4936 = vmatpush1.msra.mxu0 0.0
    %4937 = vmatprep.subr.mxu0 0.0
    %4938 = vmatpush1.msra.mxu0 0.0
    %4939 = vmatprep.subr.mxu0 0.0
    %4940 = vmatpush1.msra.mxu0 0.0
    %4941 = vmatprep.subr.mxu0 0.0
    %4942 = vmatpush1.msra.mxu0 0.0
    %4943 = vmatprep.subr.mxu0 0.0
    %4944 = vmatpush1.msra.mxu0 0.0
    %4945 = vmatprep.subr.mxu0 0.0
    %4946 = vmatpush1.msra.mxu0 0.0
    %4947 = vmatprep.subr.mxu0 0.0
    %4948 = vmatpush1.msra.mxu0 0.0
    %4949 = vmatprep.subr.mxu0 0.0
    %4950 = vmatpush1.msra.mxu0 0.0
    %4951 = vmatprep.subr.mxu0 0.0
    %4952 = vmatpush1.msra.mxu0 0.0
    %4953 = vmatprep.subr.mxu0 0.0
    %4954 = vmatpush1.msra.mxu0 0.0
    %4955 = vmatprep.subr.mxu0 0.0
    %4956 = vmatpush1.msra.mxu0 0.0
    %4957 = vmatprep.subr.mxu0 0.0
    %4958 = vmatpush1.msra.mxu0 0.0
    %4959 = vmatprep.subr.mxu0 0.0
    %4960 = vmatpush1.msra.mxu0 0.0
    %4961 = vmatprep.subr.mxu0 0.0
    %4962 = vmatpush1.msra.mxu0 0.0
    %4963 = vmatprep.mubr.f32.mxu0 0.0
    %4964 = vmatmul.mubr.f32.gmra.mrb[0].mxu0 %v4827
    %v4965 = vpop.f32.mrb[0].mxu0
    %v4966 = vadd.f32 0.0, %v4965
    %v4967 = vpop.f32.mrb[0].mxu0
    %4968 = vdwg.mxu0
    %v4969 = vld [vmem:[#allocation4 + $0x38] sm:$0xff]
    %v4970 = vadd.f32 %v4969, %v4896
    %v4971 = vadd.f32 %v4970, %v3265
    %v4972 = vxor.u32 %v4971, 2147483648
    %v4973 = vmul.f32 %v4972, 1.442695
    %v4974 = vpow.pop %v4973
    %v4975 = vadd.f32 %v4974, 1.0
    %v4976 = vrcp.pop %v4975
    %v4977 = vmul.f32 1.0, %v4976
    %v4978 = vld [vmem:[%s496 + $0x38] sm:$0xff]
    %v4979 = vadd.f32 %v4978, %v4966
    %v4980 = vadd.f32 %v4979, %v3280
    %v4981 = vxor.u32 %v4980, 2147483648
    %v4982 = vmul.f32 %v4981, 1.442695
    %v4983 = vpow.pop %v4982
    %v4984 = vadd.f32 %v4983, 1.0
    %v4985 = vrcp.pop %v4984
    %v4986 = vmul.f32 1.0, %v4985
    %v4987 = vld [vmem:[%s615 + $0x38] sm:$0xff]
    %v4988 = vadd.f32 %v4987, %v3294
    %4989 = vmatprep.subr.mxu0 0.0
    %4990 = vmatpush1.msra.mxu0 %v3102
    %4991 = vmatprep.subr.mxu0 0.0
    %4992 = vmatpush1.msra.mxu0 %v3103
    %4993 = vmatprep.subr.mxu0 0.0
    %4994 = vmatpush1.msra.mxu0 %v3104
    %4995 = vmatprep.subr.mxu0 0.0
    %4996 = vmatpush1.msra.mxu0 %v3105
    %4997 = vmatprep.subr.mxu0 0.0
    %4998 = vmatpush1.msra.mxu0 0.0
    %4999 = vmatprep.subr.mxu0 0.0
    %5000 = vmatpush1.msra.mxu0 0.0
    %5001 = vmatprep.subr.mxu0 0.0
    %5002 = vmatpush1.msra.mxu0 0.0
    %5003 = vmatprep.subr.mxu0 0.0
    %5004 = vmatpush1.msra.mxu0 0.0
    %5005 = vmatprep.subr.mxu0 0.0
    %5006 = vmatpush1.msra.mxu0 0.0
    %5007 = vmatprep.subr.mxu0 0.0
    %5008 = vmatpush1.msra.mxu0 0.0
    %5009 = vmatprep.subr.mxu0 0.0
    %5010 = vmatpush1.msra.mxu0 0.0
    %5011 = vmatprep.subr.mxu0 0.0
    %5012 = vmatpush1.msra.mxu0 0.0
    %5013 = vmatprep.subr.mxu0 0.0
    %5014 = vmatpush1.msra.mxu0 0.0
    %5015 = vmatprep.subr.mxu0 0.0
    %5016 = vmatpush1.msra.mxu0 0.0
    %5017 = vmatprep.subr.mxu0 0.0
    %5018 = vmatpush1.msra.mxu0 0.0
    %5019 = vmatprep.subr.mxu0 0.0
    %5020 = vmatpush1.msra.mxu0 0.0
    %5021 = vmatprep.subr.mxu0 0.0
    %5022 = vmatpush1.msra.mxu0 0.0
    %5023 = vmatprep.subr.mxu0 0.0
    %5024 = vmatpush1.msra.mxu0 0.0
    %5025 = vmatprep.subr.mxu0 0.0
    %5026 = vmatpush1.msra.mxu0 0.0
    %5027 = vmatprep.subr.mxu0 0.0
    %5028 = vmatpush1.msra.mxu0 0.0
    %5029 = vmatprep.subr.mxu0 0.0
    %5030 = vmatpush1.msra.mxu0 0.0
    %5031 = vmatprep.subr.mxu0 0.0
    %5032 = vmatpush1.msra.mxu0 0.0
    %5033 = vmatprep.subr.mxu0 0.0
    %5034 = vmatpush1.msra.mxu0 0.0
    %5035 = vmatprep.subr.mxu0 0.0
    %5036 = vmatpush1.msra.mxu0 0.0
    %5037 = vmatprep.subr.mxu0 0.0
    %5038 = vmatpush1.msra.mxu0 0.0
    %5039 = vmatprep.subr.mxu0 0.0
    %5040 = vmatpush1.msra.mxu0 0.0
    %5041 = vmatprep.subr.mxu0 0.0
    %5042 = vmatpush1.msra.mxu0 0.0
    %5043 = vmatprep.subr.mxu0 0.0
    %5044 = vmatpush1.msra.mxu0 0.0
    %5045 = vmatprep.subr.mxu0 0.0
    %5046 = vmatpush1.msra.mxu0 0.0
    %5047 = vmatprep.subr.mxu0 0.0
    %5048 = vmatpush1.msra.mxu0 0.0
    %5049 = vmatprep.subr.mxu0 0.0
    %5050 = vmatpush1.msra.mxu0 0.0
    %5051 = vmatprep.subr.mxu0 0.0
    %5052 = vmatpush1.msra.mxu0 0.0
    %5053 = vmatprep.mubr.f32.mxu0 0.0
    %5054 = vmatmul.mubr.f32.gmra.mrb[0].mxu0 %v4827
    %v5055 = vpop.f32.mrb[0].mxu0
    %v5056 = vadd.f32 %v3301, %v5055
    %v5057 = vpop.f32.mrb[0].mxu0
    %5058 = vdwg.mxu0
    %v5059 = vmul.f32 %v4977, %v5056
    %v5060 = vadd.f32 %v4988, %v5059
    %v5061 = vtanh.pop %v5060
    %v5062 = vsub.f32 %v4823, %v5061
    %v5063 = vmul.f32 %v4986, %v5062
    %v5064 = vadd.f32 %v5061, %v5063
    %s5065 = scalar_lea.vmem [#allocation12], 56
    %5066 = vst.msk [vmem:[%s5065] sm:$0xff] %vm228, %v5064
    %5067 = vst.msk [vmem:[%s3114] sm:$0xff] %vm228, %v5064
    // Predicated region
    $region42: #{tpu_custom_call.1} parent=1 // pred_check
      %p5068 = pneg %p70
    $region43: #{tpu_custom_call.1} parent=1 // pred_check_branch
      %5070 = sbr.rel (%p5068) target = $region45
    $region44: #{tpu_custom_call.1} parent=1 // pred_region
      %v5071 = vld [vmem:[#allocation2] sm:$0xff]
      %v5072 = vld [vmem:[#allocation2 + $0x8] sm:$0xff]
      %5073 = vst.msk [vmem:[#allocation13] sm:$0xff] %vm228, %v5071
      %5074 = vst.msk [vmem:[#allocation13 + $0x8] sm:$0xff] %vm228, %v5072
    $region45: #{tpu_custom_call.1} parent=1 // pred_fallthru
      _
    // Predicated region
    $region46: #{tpu_custom_call.1} parent=1 // pred_check
      _
    $region47: #{tpu_custom_call.1} parent=1 // pred_check_branch
      %5076 = sbr.rel (0) target = $region49
    $region48: #{tpu_custom_call.1} parent=1 // pred_region
      %s5078 = ssub.s32 1024, 1024
      %5079 = vsyncadd [#allocation8], %s5078
      %s5080 = sshll.u32 [#allocation12], 4
      %s5081 = int_to_ptr.vmem [resolvable:$true] %s5080
      %5086 = dma.vmem_to_hbm [thread:$0]  %s5081, 1024, %s6, [#allocation8], 128, 128, 8
    $region49: #{tpu_custom_call.1} parent=1 // pred_fallthru
      _
    // Predicated region
    $region50: #{tpu_custom_call.1} parent=1 // pred_check
      _
    $region51: #{tpu_custom_call.1} parent=1 // pred_check_branch
      %5088 = sbr.rel (0) target = $region53
    $region52: #{tpu_custom_call.1} parent=1 // pred_region
      %s5090 = ssub.s32 256, 256
      %5091 = vsyncadd [#allocation14], %s5090
      %s5092 = sshll.u32 [#allocation13], 4
      %s5093 = int_to_ptr.vmem [resolvable:$true] %s5092
      %5098 = dma.vmem_to_hbm [thread:$0]  %s5093, 256, %s7, [#allocation14], 128, 128, 8
    $region53: #{tpu_custom_call.1} parent=1 // pred_fallthru
      _
    // Predicated region
    $region54: #{tpu_custom_call.1} parent=1 // pred_check
      _
    $region55: #{tpu_custom_call.1} parent=1 // pred_check_branch
      %5100 = sbr.rel (0) target = $region57
    $region56: #{tpu_custom_call.1} parent=1 // pred_region
      %5101 = dma.done [#allocation8], 1024
    $region57: #{tpu_custom_call.1} parent=1 // pred_fallthru
      _
    // Predicated region
    $region58: #{tpu_custom_call.1} parent=1 // pred_check
      _
    $region59: #{tpu_custom_call.1} parent=1 // pred_check_branch
      %5103 = sbr.rel (0) target = $region61
    $region60: #{tpu_custom_call.1} parent=1 // pred_region
      %5104 = dma.done [#allocation14], 256
    $region61: #{tpu_custom_call.1} parent=1 // pred_fallthru
      _
    %5105 = vsyncpa [#allocation7], 1
    %5106 = vsyncpa [#allocation10], 1
    %5107 = vsyncpa [#allocation8], 1
    %5108 = vsyncpa [#allocation14], 1

</llo_original>
